<compile_context>
chip_gen: v5e
topology: v5e:2x2
jax: 0.10.0
libtpu: 0.0.40
codegen_flags: <defaults>
</compile_context>

<pallas_src>
import functools
import math

import jax
import jax.numpy as jnp
from jax import lax
from jax.experimental import pallas as pl
from jax.experimental.pallas import tpu as pltpu

# ----------------------------- model dims -----------------------------------
HIDDEN = 768
NUM_LAYERS = 12
NUM_HEADS = 12
HEAD_DIM = HIDDEN // NUM_HEADS          # 64
FFN = 4 * HIDDEN                        # 3072
LN_EPS = 1e-5                           # PyTorch LayerNorm default

HEADS_PER_BLOCK = 4                     # G: packed heads per attention step (GD=256)
TN_DEFAULT = 256                        # lane tile for the tiled linear
TM_TARGET = 256                         # row tile target for all kernels
FFN_CHUNK = 768                         # streamed slab of the 3072 FFN dim


def _vmem_limit_bytes():
    """~75% of the per-core VMEM: ~48 MiB on v7x (64 MiB/TC), ~96 MiB on v5e/v6e."""
    try:
        cap = pltpu.get_tpu_info().vmem_capacity_bytes
        return min(int(cap * 3 // 4), 100 * 1024 * 1024)
    except Exception:
        return 48 * 1024 * 1024


VMEM_LIMIT = _vmem_limit_bytes()


# ----------------------------- Pallas kernels -------------------------------
def _linear_kernel(x_ref, w_ref, b_ref, o_ref, *, activation):
    """One (TM, TN) tile of y = x @ w + b (optional ReLU). bf16 MXU, f32 acc."""
    acc = jnp.dot(x_ref[...].astype(jnp.bfloat16), w_ref[...],
                  preferred_element_type=jnp.float32)
    acc = acc + b_ref[...]
    if activation == "relu":
        acc = jnp.maximum(acc, 0.0)
    o_ref[...] = acc.astype(o_ref.dtype)


def linear_pallas(x, w, b, activation=None, out_dtype=jnp.float32,
                  tn=TN_DEFAULT, tm_target=TM_TARGET):
    """x: (M, K), w: (K, N) bf16, b: (N,) f32 -> (M, N) out_dtype."""
    M, K = x.shape
    N = w.shape[1]
    n_pad = (-N) % tn
    if n_pad:
        w = jnp.pad(w, ((0, 0), (0, n_pad)))
        b = jnp.pad(b, (0, n_pad))
    Np = N + n_pad
    if M <= tm_target:
        TM, m_pad = M, 0
    else:
        TM = tm_target
        m_pad = (-M) % TM
        if m_pad:
            x = jnp.pad(x, ((0, m_pad), (0, 0)))
    Mp = M + m_pad
    out = pl.pallas_call(
        functools.partial(_linear_kernel, activation=activation),
        out_shape=jax.ShapeDtypeStruct((Mp, Np), out_dtype),
        grid_spec=pltpu.PrefetchScalarGridSpec(
            num_scalar_prefetch=0,
            grid=(Mp // TM, Np // tn),
            in_specs=[
                pl.BlockSpec((TM, K), lambda i, j: (i, 0)),
                pl.BlockSpec((K, tn), lambda i, j: (0, j)),
                pl.BlockSpec((1, tn), lambda i, j: (0, j)),
            ],
            out_specs=pl.BlockSpec((TM, tn), lambda i, j: (i, j)),
        ),
        compiler_params=pltpu.CompilerParams(
            dimension_semantics=("parallel", "parallel"),
            vmem_limit_bytes=VMEM_LIMIT),
    )(x, w, b.reshape(1, Np))
    if n_pad or m_pad:
        out = out[:M, :N]
    return out


def _attn_kernel(q_ref, k_ref, v_ref, o_ref, *, scale, G, Dh):
    """softmax(q k^T * scale) v for G packed heads of one batch element.
    Inputs are bf16; scores/softmax in f32; normalization deferred to the
    (S, Dh) output via an approx EUP reciprocal."""
    outs = []
    for gi in range(G):
        lo = gi * Dh
        # TODO(synk): 64-lane slices / concat go through XLU lane shuffles;
        # secondary to the matmuls at these shapes (verified overhead-bound).
        q = q_ref[:, lo:lo + Dh]                            # (S, Dh) bf16
        k = k_ref[:, lo:lo + Dh]                            # (S, Dh) bf16
        v = v_ref[:, lo:lo + Dh]                            # (S, Dh) bf16
        s = lax.dot_general(q, k, (((1,), (1,)), ((), ())),
                            preferred_element_type=jnp.float32) * scale
        m = jnp.max(s, axis=-1, keepdims=True)
        p = jnp.exp(s - m)                                  # un-normalized
        row_sum = jnp.sum(p, axis=-1, keepdims=True)        # (S, 1) f32
        ctx = jnp.dot(p.astype(jnp.bfloat16), v,
                      preferred_element_type=jnp.float32)
        outs.append(ctx * pl.reciprocal(row_sum, approx=True))
    o_ref[...] = jnp.concatenate(outs, axis=-1).astype(o_ref.dtype)


def attention_pallas(qkv, B, S):
    """qkv: (B*S, 3H) bf16 in PyTorch in_proj layout (q|k|v, head-major columns).
    Returns ctx: (B*S, H) bf16 already in the layout w_out consumes -> no
    HBM transposes."""
    G = HEADS_PER_BLOCK
    GD = G * HEAD_DIM                         # 256 -> lane-dense blocks
    nhb = NUM_HEADS // G                      # head-group grid extent (3)
    assert S % 8 == 0, "seq len must be a multiple of 8 for (8,128) tiling"
    scale = 1.0 / math.sqrt(HEAD_DIM)

    def head_spec(col_block_off):
        return pl.BlockSpec((S, GD), lambda b, g: (b, col_block_off + g))

    return pl.pallas_call(
        functools.partial(_attn_kernel, scale=scale, G=G, Dh=HEAD_DIM),
        out_shape=jax.ShapeDtypeStruct((B * S, HIDDEN), jnp.bfloat16),
        grid_spec=pltpu.PrefetchScalarGridSpec(
            num_scalar_prefetch=0,
            grid=(B, nhb),
            in_specs=[head_spec(0),          # q columns [0, H)
                      head_spec(nhb),        # k columns [H, 2H)
                      head_spec(2 * nhb)],   # v columns [2H, 3H)
            out_specs=pl.BlockSpec((S, GD), lambda b, g: (b, g)),
        ),
        compiler_params=pltpu.CompilerParams(
            dimension_semantics=("parallel", "parallel"),
            vmem_limit_bytes=VMEM_LIMIT),
    )(qkv, qkv, qkv)


def _linear_res_ln_kernel(x_ref, w_ref, b_ref, r_ref, g_ref, bb_ref, o_ref):
    """out = LayerNorm((x @ w + b) + residual) * gamma + beta (full-N tile)."""
    acc = jnp.dot(x_ref[...].astype(jnp.bfloat16), w_ref[...],
                  preferred_element_type=jnp.float32)
    acc = acc + b_ref[...] + r_ref[...]
    mean = jnp.mean(acc, axis=-1, keepdims=True)
    d = acc - mean
    var = jnp.mean(d * d, axis=-1, keepdims=True)
    inv = lax.rsqrt(var + LN_EPS)
    o_ref[...] = (d * inv * g_ref[...] + bb_ref[...]).astype(o_ref.dtype)


def linear_residual_ln_pallas(x, w, b, residual, gamma, beta,
                              tm_target=TM_TARGET):
    """x: (M, K) bf16/f32, w: (K, H) bf16, residual: (M, H) f32 -> (M, H) f32."""
    M, K = x.shape
    N = w.shape[1]
    if M <= tm_target:
        TM, m_pad = M, 0
    else:
        TM = tm_target
        m_pad = (-M) % TM
        if m_pad:
            x = jnp.pad(x, ((0, m_pad), (0, 0)))
            residual = jnp.pad(residual, ((0, m_pad), (0, 0)))
    Mp = M + m_pad
    out = pl.pallas_call(
        _linear_res_ln_kernel,
        out_shape=jax.ShapeDtypeStruct((Mp, N), jnp.float32),
        grid_spec=pltpu.PrefetchScalarGridSpec(
            num_scalar_prefetch=0,
            grid=(Mp // TM,),
            in_specs=[
                pl.BlockSpec((TM, K), lambda i: (i, 0)),
                pl.BlockSpec((K, N), lambda i: (0, 0)),
                pl.BlockSpec((1, N), lambda i: (0, 0)),
                pl.BlockSpec((TM, N), lambda i: (i, 0)),
                pl.BlockSpec((1, N), lambda i: (0, 0)),
                pl.BlockSpec((1, N), lambda i: (0, 0)),
            ],
            out_specs=pl.BlockSpec((TM, N), lambda i: (i, 0)),
        ),
        compiler_params=pltpu.CompilerParams(
            dimension_semantics=("parallel",),
            vmem_limit_bytes=VMEM_LIMIT),
    )(x, w, b.reshape(1, N), residual, gamma.reshape(1, N), beta.reshape(1, N))
    return out[:M] if m_pad else out


def _ffn_res_ln_kernel(x_ref, w1_ref, b1_ref, w2_ref, b2_ref, g_ref, bb_ref,
                       o_ref, acc_ref):
    """out = LayerNorm(x + ff2(relu(ff1(x)))).
    The 3072-wide intermediate is streamed over grid axis 1 ('arbitrary');
    w1/w2 arrive as (768, chunk)/(chunk, 768) blocks so their DMA overlaps the
    MXU work of the previous chunk.  acc_ref is the resident f32 accumulator."""
    c = pl.program_id(1)

    @pl.when(c == 0)
    def _():
        acc_ref[...] = x_ref[...].astype(jnp.float32) + b2_ref[...]

    xb = x_ref[...].astype(jnp.bfloat16)
    mid = jnp.dot(xb, w1_ref[...], preferred_element_type=jnp.float32)
    mid = jnp.maximum(mid + b1_ref[...], 0.0)
    acc_ref[...] += jnp.dot(mid.astype(jnp.bfloat16), w2_ref[...],
                            preferred_element_type=jnp.float32)

    @pl.when(c == pl.num_programs(1) - 1)
    def _():
        acc = acc_ref[...]
        mean = jnp.mean(acc, axis=-1, keepdims=True)
        d = acc - mean
        var = jnp.mean(d * d, axis=-1, keepdims=True)
        inv = lax.rsqrt(var + LN_EPS)
        o_ref[...] = (d * inv * g_ref[...] + bb_ref[...]).astype(o_ref.dtype)


def ffn_residual_ln_pallas(x, w1, b1, w2, b2, gamma, beta,
                           tm_target=TM_TARGET, chunk=FFN_CHUNK):
    """Fused FFN + residual + LayerNorm.  x: (M, H) f32 -> (M, H) f32."""
    M, K = x.shape
    F = w1.shape[1]
    assert F % chunk == 0
    n_chunks = F // chunk
    if M <= tm_target:
        TM, m_pad = M, 0
    else:
        TM = tm_target
        m_pad = (-M) % TM
        if m_pad:
            x = jnp.pad(x, ((0, m_pad), (0, 0)))
    Mp = M + m_pad
    out = pl.pallas_call(
        _ffn_res_ln_kernel,
        out_shape=jax.ShapeDtypeStruct((Mp, K), jnp.float32),
        grid_spec=pltpu.PrefetchScalarGridSpec(
            num_scalar_prefetch=0,
            grid=(Mp // TM, n_chunks),
            in_specs=[
                pl.BlockSpec((TM, K), lambda i, c: (i, 0)),       # x (invariant in c)
                pl.BlockSpec((K, chunk), lambda i, c: (0, c)),    # w1 slab
                pl.BlockSpec((1, chunk), lambda i, c: (0, c)),    # b1 slab
                pl.BlockSpec((chunk, K), lambda i, c: (c, 0)),    # w2 slab
                pl.BlockSpec((1, K), lambda i, c: (0, 0)),        # b2
                pl.BlockSpec((1, K), lambda i, c: (0, 0)),        # gamma
                pl.BlockSpec((1, K), lambda i, c: (0, 0)),        # beta
            ],
            out_specs=pl.BlockSpec((TM, K), lambda i, c: (i, 0)),
            scratch_shapes=[pltpu.VMEM((TM, K), jnp.float32)],
        ),
        compiler_params=pltpu.CompilerParams(
            dimension_semantics=("parallel", "arbitrary"),
            vmem_limit_bytes=VMEM_LIMIT),
    )(x, w1, b1.reshape(1, F), w2, b2.reshape(1, K),
      gamma.reshape(1, K), beta.reshape(1, K))
    return out[:M] if m_pad else out


# ----------------------------- parameter init -------------------------------
def init_params(key, num_classes, vocab_size):
    std = 0.02

    def normal(k, shape, dtype=jnp.float32):
        return (jax.random.normal(k, shape, dtype=jnp.float32) * std).astype(dtype)

    keys = iter(jax.random.split(key, 8 + NUM_LAYERS * 4))
    params = {
        "tok_emb": normal(next(keys), (vocab_size, HIDDEN)),
        "pos_emb": normal(next(keys), (512, HIDDEN)),
        "layers": [],
        "cls_w1": normal(next(keys), (HIDDEN, HIDDEN)),
        "cls_b1": jnp.zeros((HIDDEN,), jnp.float32),
        "cls_w2": normal(next(keys), (HIDDEN, num_classes)),
        "cls_b2": jnp.zeros((num_classes,), jnp.float32),
    }
    for _ in range(NUM_LAYERS):
        layer = {
            # matmul weights stored bf16 (MXU operands); biases/LN params f32.
            # TODO(synk): int8 (v5e) / fp8 (v7x) weight storage not implemented.
            "w_qkv": normal(next(keys), (HIDDEN, 3 * HIDDEN), jnp.bfloat16),
            "b_qkv": jnp.zeros((3 * HIDDEN,), jnp.float32),
            "w_out": normal(next(keys), (HIDDEN, HIDDEN), jnp.bfloat16),
            "b_out": jnp.zeros((HIDDEN,), jnp.float32),
            "w_ff1": normal(next(keys), (HIDDEN, FFN), jnp.bfloat16),
            "b_ff1": jnp.zeros((FFN,), jnp.float32),
            "w_ff2": normal(next(keys), (FFN, HIDDEN), jnp.bfloat16),
            "b_ff2": jnp.zeros((HIDDEN,), jnp.float32),
            "ln1_g": jnp.ones((HIDDEN,), jnp.float32),
            "ln1_b": jnp.zeros((HIDDEN,), jnp.float32),
            "ln2_g": jnp.ones((HIDDEN,), jnp.float32),
            "ln2_b": jnp.zeros((HIDDEN,), jnp.float32),
        }
        params["layers"].append(layer)
    return params


# ----------------------------- forward pass ----------------------------------
def encoder_layer(xf, B, S, lp):
    """Post-LN TransformerEncoderLayer (ReLU FFN, dropout=identity).
    xf: (B*S, H) f32 -> (B*S, H) f32."""
    qkv = linear_pallas(xf, lp["w_qkv"], lp["b_qkv"],
                        out_dtype=jnp.bfloat16)                     # (B*S, 3H) bf16
    ctx = attention_pallas(qkv, B, S)                               # (B*S, H) bf16
    h = linear_residual_ln_pallas(ctx, lp["w_out"], lp["b_out"],
                                  xf, lp["ln1_g"], lp["ln1_b"])     # LN(x+attn), f32
    return ffn_residual_ln_pallas(h, lp["w_ff1"], lp["b_ff1"],
                                  lp["w_ff2"], lp["b_ff2"],
                                  lp["ln2_g"], lp["ln2_b"])         # LN(h+ffn), f32


def dnabert_forward(params, input_ids):
    """input_ids: (B, S) int32 -> logits (B, num_classes) f32."""
    B, S = input_ids.shape
    assert S <= 512, "position embeddings are defined for <= 512 positions"
    # Embedding gathers are glue (not the hot path).
    tok = jnp.take(params["tok_emb"], input_ids, axis=0)            # (B, S, H)
    pos = params["pos_emb"][:S][None, :, :]                         # (1, S, H)
    h = (tok + pos).reshape(B * S, HIDDEN)

    for lp in params["layers"]:
        h = encoder_layer(h, B, S, lp)

    h = h.reshape(B, S, HIDDEN)
    cls_tok = h[:, 0]                                               # (B, H)
    # Classifier head: tiny matmuls (M=B, N<=768/3) -> plain XLA per perf review.
    z = jnp.maximum(cls_tok @ params["cls_w1"] + params["cls_b1"], 0.0)
    # TODO(synk): dropout layers are eval-mode identities; not emitted.
    logits = z @ params["cls_w2"] + params["cls_b2"]
    return logits


# ----------------------------- main ------------------------------------------
if __name__ == "__main__":
    NUM_CLASSES = 3
    VOCAB_SIZE = 16
    B, S = 2, 8

    key = jax.random.PRNGKey(0)
    pkey, dkey = jax.random.split(key)
    params = init_params(pkey, NUM_CLASSES, VOCAB_SIZE)
    input_ids = jax.random.randint(dkey, (B, S), 0, VOCAB_SIZE, dtype=jnp.int32)

    logits = jax.jit(dnabert_forward)(params, input_ids)
    jax.block_until_ready(logits)
    assert logits.shape == (B, NUM_CLASSES)
    assert bool(jnp.all(jnp.isfinite(logits)))
    print("KERNEL_OK")
</pallas_src>

<mosaic_0001>
module attributes {stable_mosaic.version = 11 : i64} {
  func.func @_linear_kernel(%arg0: i32, %arg1: i32, %arg2: memref<16x768xf32, #tpu.memory_space<vmem>>, %arg3: memref<768x256xbf16, #tpu.memory_space<vmem>>, %arg4: memref<1x256xf32, #tpu.memory_space<vmem>>, %arg5: memref<16x256xbf16, #tpu.memory_space<vmem>>) attributes {dimension_semantics = [#tpu.dimension_semantics<parallel>, #tpu.dimension_semantics<parallel>], iteration_bounds = array<i64: 1, 9>, scalar_prefetch = 0 : i64, scratch_operands = 0 : i64, tpu.core_type = #tpu.core_type<tc>, window_params = [{transform_indices = @transform_0, window_bounds = array<i64: 16, 768>}, {transform_indices = @transform_1, window_bounds = array<i64: 768, 256>}, {transform_indices = @transform_2, window_bounds = array<i64: 1, 256>}, {transform_indices = @transform_3, window_bounds = array<i64: 16, 256>}]} {
    %c0 = arith.constant 0 : index
    %c0_0 = arith.constant 0 : index
    %0 = vector.load %arg2[%c0, %c0_0] : memref<16x768xf32, #tpu.memory_space<vmem>>, vector<16x768xf32>
    %1 = arith.truncf %0 : vector<16x768xf32> to vector<16x768xbf16>
    %c0_1 = arith.constant 0 : index
    %c0_2 = arith.constant 0 : index
    %2 = vector.load %arg3[%c0_1, %c0_2] : memref<768x256xbf16, #tpu.memory_space<vmem>>, vector<768x256xbf16>
    %cst = arith.constant dense<0.000000e+00> : vector<16x256xf32>
    %3 = tpu.matmul %1, %2, %cst {dimension_numbers = #tpu.dot_dimension_numbers<[1], [0], [0], [1], [0, 0, 1, 1], [], []>} : vector<16x768xbf16>, vector<768x256xbf16>, vector<16x256xf32> -> vector<16x256xf32>
    %c0_3 = arith.constant 0 : index
    %c0_4 = arith.constant 0 : index
    %4 = vector.load %arg4[%c0_3, %c0_4] : memref<1x256xf32, #tpu.memory_space<vmem>>, vector<1x256xf32>
    %5 = vector.broadcast %4 : vector<1x256xf32> to vector<16x256xf32>
    %6 = arith.addf %3, %5 : vector<16x256xf32>
    %7 = arith.truncf %6 : vector<16x256xf32> to vector<16x256xbf16>
    %c0_5 = arith.constant 0 : index
    %c0_6 = arith.constant 0 : index
    %8 = vector.load %arg5[%c0_5, %c0_6] : memref<16x256xbf16, #tpu.memory_space<vmem>>, vector<16x256xbf16>
    tpu.vector_store %arg5[%c0_5, %c0_6], %7 {strides = array<i32>} : memref<16x256xbf16, #tpu.memory_space<vmem>>, vector<16x256xbf16>,
    return
  }
  func.func @transform_0(%arg0: i32, %arg1: i32) -> (i32, i32) {
    %c0_i32 = arith.constant 0 : i32
    %c0_i32_0 = arith.constant 0 : i32
    return %arg0, %c0_i32 : i32, i32
  }
  func.func @transform_1(%arg0: i32, %arg1: i32) -> (i32, i32) {
    %c0_i32 = arith.constant 0 : i32
    %c0_i32_0 = arith.constant 0 : i32
    return %c0_i32, %arg1 : i32, i32
  }
  func.func @transform_2(%arg0: i32, %arg1: i32) -> (i32, i32) {
    %c0_i32 = arith.constant 0 : i32
    %c0_i32_0 = arith.constant 0 : i32
    return %c0_i32, %arg1 : i32, i32
  }
  func.func @transform_3(%arg0: i32, %arg1: i32) -> (i32, i32) {
    %c0_i32 = arith.constant 0 : i32
    return %arg0, %arg1 : i32, i32
  }
}

module attributes {stable_mosaic.version = 11 : i64} {
  func.func @_attn_kernel(%arg0: i32, %arg1: i32, %arg2: memref<8x256xbf16, #tpu.memory_space<vmem>>, %arg3: memref<8x256xbf16, #tpu.memory_space<vmem>>, %arg4: memref<8x256xbf16, #tpu.memory_space<vmem>>, %arg5: memref<8x256xbf16, #tpu.memory_space<vmem>>) attributes {dimension_semantics = [#tpu.dimension_semantics<parallel>, #tpu.dimension_semantics<parallel>], iteration_bounds = array<i64: 2, 3>, scalar_prefetch = 0 : i64, scratch_operands = 0 : i64, tpu.core_type = #tpu.core_type<tc>, window_params = [{transform_indices = @transform_0, window_bounds = array<i64: 8, 256>}, {transform_indices = @transform_1, window_bounds = array<i64: 8, 256>}, {transform_indices = @transform_2, window_bounds = array<i64: 8, 256>}, {transform_indices = @transform_3, window_bounds = array<i64: 8, 256>}]} {
    %c0 = arith.constant 0 : index
    %c0_0 = arith.constant 0 : index
    %0 = vector.load %arg2[%c0, %c0_0] : memref<8x256xbf16, #tpu.memory_space<vmem>>, vector<8x64xbf16>
    %c0_1 = arith.constant 0 : index
    %c0_2 = arith.constant 0 : index
    %1 = vector.load %arg3[%c0_1, %c0_2] : memref<8x256xbf16, #tpu.memory_space<vmem>>, vector<8x64xbf16>
    %c0_3 = arith.constant 0 : index
    %c0_4 = arith.constant 0 : index
    %2 = vector.load %arg4[%c0_3, %c0_4] : memref<8x256xbf16, #tpu.memory_space<vmem>>, vector<8x64xbf16>
    %cst = arith.constant dense<0.000000e+00> : vector<8x8xf32>
    %3 = tpu.matmul %0, %1, %cst {dimension_numbers = #tpu.dot_dimension_numbers<[1], [1], [0], [0], [0, 0, 1, 0], [], []>} : vector<8x64xbf16>, vector<8x64xbf16>, vector<8x8xf32> -> vector<8x8xf32>
    %cst_5 = arith.constant 1.250000e-01 : f32
    %4 = vector.broadcast %cst_5 : f32 to vector<8x8xf32>
    %5 = arith.mulf %3, %4 : vector<8x8xf32>
    %cst_6 = arith.constant dense<0xFF800000> : vector<8xf32>
    %6 = vector.multi_reduction <maximumf>, %5, %cst_6 [1] : vector<8x8xf32> to vector<8xf32>
    %7 = vector.shape_cast %6 : vector<8xf32> to vector<8x1xf32>
    %8 = vector.broadcast %7 : vector<8x1xf32> to vector<8x8xf32>
    %9 = arith.subf %5, %8 : vector<8x8xf32>
    %10 = math.exp %9 : vector<8x8xf32>
    %cst_7 = arith.constant dense<0.000000e+00> : vector<8xf32>
    %11 = vector.multi_reduction <add>, %10, %cst_7 [1] : vector<8x8xf32> to vector<8xf32>
    %12 = vector.shape_cast %11 : vector<8xf32> to vector<8x1xf32>
    %13 = arith.truncf %10 : vector<8x8xf32> to vector<8x8xbf16>
    %cst_8 = arith.constant dense<0.000000e+00> : vector<8x64xf32>
    %14 = tpu.matmul %13, %2, %cst_8 {dimension_numbers = #tpu.dot_dimension_numbers<[1], [0], [0], [1], [0, 0, 1, 1], [], []>} : vector<8x8xbf16>, vector<8x64xbf16>, vector<8x64xf32> -> vector<8x64xf32>
    %15 = tpu.reciprocal %12 {approx = true} : vector<8x1xf32> -> vector<8x1xf32>
    %16 = vector.broadcast %15 : vector<8x1xf32> to vector<8x64xf32>
    %17 = arith.mulf %14, %16 : vector<8x64xf32>
    %c0_9 = arith.constant 0 : index
    %c64 = arith.constant 64 : index
    %18 = vector.load %arg2[%c0_9, %c64] : memref<8x256xbf16, #tpu.memory_space<vmem>>, vector<8x64xbf16>
    %c0_10 = arith.constant 0 : index
    %c64_11 = arith.constant 64 : index
    %19 = vector.load %arg3[%c0_10, %c64_11] : memref<8x256xbf16, #tpu.memory_space<vmem>>, vector<8x64xbf16>
    %c0_12 = arith.constant 0 : index
    %c64_13 = arith.constant 64 : index
    %20 = vector.load %arg4[%c0_12, %c64_13] : memref<8x256xbf16, #tpu.memory_space<vmem>>, vector<8x64xbf16>
    %cst_14 = arith.constant dense<0.000000e+00> : vector<8x8xf32>
    %21 = tpu.matmul %18, %19, %cst_14 {dimension_numbers = #tpu.dot_dimension_numbers<[1], [1], [0], [0], [0, 0, 1, 0], [], []>} : vector<8x64xbf16>, vector<8x64xbf16>, vector<8x8xf32> -> vector<8x8xf32>
    %cst_15 = arith.constant 1.250000e-01 : f32
    %22 = vector.broadcast %cst_15 : f32 to vector<8x8xf32>
    %23 = arith.mulf %21, %22 : vector<8x8xf32>
    %cst_16 = arith.constant dense<0xFF800000> : vector<8xf32>
    %24 = vector.multi_reduction <maximumf>, %23, %cst_16 [1] : vector<8x8xf32> to vector<8xf32>
    %25 = vector.shape_cast %24 : vector<8xf32> to vector<8x1xf32>
    %26 = vector.broadcast %25 : vector<8x1xf32> to vector<8x8xf32>
    %27 = arith.subf %23, %26 : vector<8x8xf32>
    %28 = math.exp %27 : vector<8x8xf32>
    %cst_17 = arith.constant dense<0.000000e+00> : vector<8xf32>
    %29 = vector.multi_reduction <add>, %28, %cst_17 [1] : vector<8x8xf32> to vector<8xf32>
    %30 = vector.shape_cast %29 : vector<8xf32> to vector<8x1xf32>
    %31 = arith.truncf %28 : vector<8x8xf32> to vector<8x8xbf16>
    %cst_18 = arith.constant dense<0.000000e+00> : vector<8x64xf32>
    %32 = tpu.matmul %31, %20, %cst_18 {dimension_numbers = #tpu.dot_dimension_numbers<[1], [0], [0], [1], [0, 0, 1, 1], [], []>} : vector<8x8xbf16>, vector<8x64xbf16>, vector<8x64xf32> -> vector<8x64xf32>
    %33 = tpu.reciprocal %30 {approx = true} : vector<8x1xf32> -> vector<8x1xf32>
    %34 = vector.broadcast %33 : vector<8x1xf32> to vector<8x64xf32>
    %35 = arith.mulf %32, %34 : vector<8x64xf32>
    %c0_19 = arith.constant 0 : index
    %c128 = arith.constant 128 : index
    %36 = vector.load %arg2[%c0_19, %c128] : memref<8x256xbf16, #tpu.memory_space<vmem>>, vector<8x64xbf16>
    %c0_20 = arith.constant 0 : index
    %c128_21 = arith.constant 128 : index
    %37 = vector.load %arg3[%c0_20, %c128_21] : memref<8x256xbf16, #tpu.memory_space<vmem>>, vector<8x64xbf16>
    %c0_22 = arith.constant 0 : index
    %c128_23 = arith.constant 128 : index
    %38 = vector.load %arg4[%c0_22, %c128_23] : memref<8x256xbf16, #tpu.memory_space<vmem>>, vector<8x64xbf16>
    %cst_24 = arith.constant dense<0.000000e+00> : vector<8x8xf32>
    %39 = tpu.matmul %36, %37, %cst_24 {dimension_numbers = #tpu.dot_dimension_numbers<[1], [1], [0], [0], [0, 0, 1, 0], [], []>} : vector<8x64xbf16>, vector<8x64xbf16>, vector<8x8xf32> -> vector<8x8xf32>
    %cst_25 = arith.constant 1.250000e-01 : f32
    %40 = vector.broadcast %cst_25 : f32 to vector<8x8xf32>
    %41 = arith.mulf %39, %40 : vector<8x8xf32>
    %cst_26 = arith.constant dense<0xFF800000> : vector<8xf32>
    %42 = vector.multi_reduction <maximumf>, %41, %cst_26 [1] : vector<8x8xf32> to vector<8xf32>
    %43 = vector.shape_cast %42 : vector<8xf32> to vector<8x1xf32>
    %44 = vector.broadcast %43 : vector<8x1xf32> to vector<8x8xf32>
    %45 = arith.subf %41, %44 : vector<8x8xf32>
    %46 = math.exp %45 : vector<8x8xf32>
    %cst_27 = arith.constant dense<0.000000e+00> : vector<8xf32>
    %47 = vector.multi_reduction <add>, %46, %cst_27 [1] : vector<8x8xf32> to vector<8xf32>
    %48 = vector.shape_cast %47 : vector<8xf32> to vector<8x1xf32>
    %49 = arith.truncf %46 : vector<8x8xf32> to vector<8x8xbf16>
    %cst_28 = arith.constant dense<0.000000e+00> : vector<8x64xf32>
    %50 = tpu.matmul %49, %38, %cst_28 {dimension_numbers = #tpu.dot_dimension_numbers<[1], [0], [0], [1], [0, 0, 1, 1], [], []>} : vector<8x8xbf16>, vector<8x64xbf16>, vector<8x64xf32> -> vector<8x64xf32>
    %51 = tpu.reciprocal %48 {approx = true} : vector<8x1xf32> -> vector<8x1xf32>
    %52 = vector.broadcast %51 : vector<8x1xf32> to vector<8x64xf32>
    %53 = arith.mulf %50, %52 : vector<8x64xf32>
    %c0_29 = arith.constant 0 : index
    %c192 = arith.constant 192 : index
    %54 = vector.load %arg2[%c0_29, %c192] : memref<8x256xbf16, #tpu.memory_space<vmem>>, vector<8x64xbf16>
    %c0_30 = arith.constant 0 : index
    %c192_31 = arith.constant 192 : index
    %55 = vector.load %arg3[%c0_30, %c192_31] : memref<8x256xbf16, #tpu.memory_space<vmem>>, vector<8x64xbf16>
    %c0_32 = arith.constant 0 : index
    %c192_33 = arith.constant 192 : index
    %56 = vector.load %arg4[%c0_32, %c192_33] : memref<8x256xbf16, #tpu.memory_space<vmem>>, vector<8x64xbf16>
    %cst_34 = arith.constant dense<0.000000e+00> : vector<8x8xf32>
    %57 = tpu.matmul %54, %55, %cst_34 {dimension_numbers = #tpu.dot_dimension_numbers<[1], [1], [0], [0], [0, 0, 1, 0], [], []>} : vector<8x64xbf16>, vector<8x64xbf16>, vector<8x8xf32> -> vector<8x8xf32>
    %cst_35 = arith.constant 1.250000e-01 : f32
    %58 = vector.broadcast %cst_35 : f32 to vector<8x8xf32>
    %59 = arith.mulf %57, %58 : vector<8x8xf32>
    %cst_36 = arith.constant dense<0xFF800000> : vector<8xf32>
    %60 = vector.multi_reduction <maximumf>, %59, %cst_36 [1] : vector<8x8xf32> to vector<8xf32>
    %61 = vector.shape_cast %60 : vector<8xf32> to vector<8x1xf32>
    %62 = vector.broadcast %61 : vector<8x1xf32> to vector<8x8xf32>
    %63 = arith.subf %59, %62 : vector<8x8xf32>
    %64 = math.exp %63 : vector<8x8xf32>
    %cst_37 = arith.constant dense<0.000000e+00> : vector<8xf32>
    %65 = vector.multi_reduction <add>, %64, %cst_37 [1] : vector<8x8xf32> to vector<8xf32>
    %66 = vector.shape_cast %65 : vector<8xf32> to vector<8x1xf32>
    %67 = arith.truncf %64 : vector<8x8xf32> to vector<8x8xbf16>
    %cst_38 = arith.constant dense<0.000000e+00> : vector<8x64xf32>
    %68 = tpu.matmul %67, %56, %cst_38 {dimension_numbers = #tpu.dot_dimension_numbers<[1], [0], [0], [1], [0, 0, 1, 1], [], []>} : vector<8x8xbf16>, vector<8x64xbf16>, vector<8x64xf32> -> vector<8x64xf32>
    %69 = tpu.reciprocal %66 {approx = true} : vector<8x1xf32> -> vector<8x1xf32>
    %70 = vector.broadcast %69 : vector<8x1xf32> to vector<8x64xf32>
    %71 = arith.mulf %68, %70 : vector<8x64xf32>
    %72 = tpu.concatenate %17, %35, %53, %71 in 1 : vector<8x64xf32>, vector<8x64xf32>, vector<8x64xf32>, vector<8x64xf32> -> vector<8x256xf32>
    %73 = arith.truncf %72 : vector<8x256xf32> to vector<8x256xbf16>
    %c0_39 = arith.constant 0 : index
    %c0_40 = arith.constant 0 : index
    %74 = vector.load %arg5[%c0_39, %c0_40] : memref<8x256xbf16, #tpu.memory_space<vmem>>, vector<8x256xbf16>
    tpu.vector_store %arg5[%c0_39, %c0_40], %73 {strides = array<i32>} : memref<8x256xbf16, #tpu.memory_space<vmem>>, vector<8x256xbf16>,
    return
  }
  func.func @transform_0(%arg0: i32, %arg1: i32) -> (i32, i32) {
    %c0_i32 = arith.constant 0 : i32
    %0 = arith.addi %c0_i32, %arg1 : i32
    %c0_i32_0 = arith.constant 0 : i32
    return %arg0, %0 : i32, i32
  }
  func.func @transform_1(%arg0: i32, %arg1: i32) -> (i32, i32) {
    %c3_i32 = arith.constant 3 : i32
    %0 = arith.addi %c3_i32, %arg1 : i32
    %c0_i32 = arith.constant 0 : i32
    return %arg0, %0 : i32, i32
  }
  func.func @transform_2(%arg0: i32, %arg1: i32) -> (i32, i32) {
    %c6_i32 = arith.constant 6 : i32
    %0 = arith.addi %c6_i32, %arg1 : i32
    %c0_i32 = arith.constant 0 : i32
    return %arg0, %0 : i32, i32
  }
  func.func @transform_3(%arg0: i32, %arg1: i32) -> (i32, i32) {
    %c0_i32 = arith.constant 0 : i32
    return %arg0, %arg1 : i32, i32
  }
}

module attributes {stable_mosaic.version = 11 : i64} {
  func.func @_linear_res_ln_kernel(%arg0: i32, %arg1: memref<16x768xbf16, #tpu.memory_space<vmem>>, %arg2: memref<768x768xbf16, #tpu.memory_space<vmem>>, %arg3: memref<1x768xf32, #tpu.memory_space<vmem>>, %arg4: memref<16x768xf32, #tpu.memory_space<vmem>>, %arg5: memref<1x768xf32, #tpu.memory_space<vmem>>, %arg6: memref<1x768xf32, #tpu.memory_space<vmem>>, %arg7: memref<16x768xf32, #tpu.memory_space<vmem>>) attributes {dimension_semantics = [#tpu.dimension_semantics<parallel>], iteration_bounds = array<i64: 1>, scalar_prefetch = 0 : i64, scratch_operands = 0 : i64, tpu.core_type = #tpu.core_type<tc>, window_params = [{transform_indices = @transform_0, window_bounds = array<i64: 16, 768>}, {pipeline_mode = #tpu.pipeline_mode<synchronous>, transform_indices = @transform_1, window_bounds = array<i64: 768, 768>}, {pipeline_mode = #tpu.pipeline_mode<synchronous>, transform_indices = @transform_2, window_bounds = array<i64: 1, 768>}, {transform_indices = @transform_3, window_bounds = array<i64: 16, 768>}, {pipeline_mode = #tpu.pipeline_mode<synchronous>, transform_indices = @transform_4, window_bounds = array<i64: 1, 768>}, {pipeline_mode = #tpu.pipeline_mode<synchronous>, transform_indices = @transform_5, window_bounds = array<i64: 1, 768>}, {transform_indices = @transform_6, window_bounds = array<i64: 16, 768>}]} {
    %c0 = arith.constant 0 : index
    %c0_0 = arith.constant 0 : index
    %0 = vector.load %arg1[%c0, %c0_0] : memref<16x768xbf16, #tpu.memory_space<vmem>>, vector<16x768xbf16>
    %c0_1 = arith.constant 0 : index
    %c0_2 = arith.constant 0 : index
    %1 = vector.load %arg2[%c0_1, %c0_2] : memref<768x768xbf16, #tpu.memory_space<vmem>>, vector<768x768xbf16>
    %cst = arith.constant dense<0.000000e+00> : vector<16x768xf32>
    %2 = tpu.matmul %0, %1, %cst {dimension_numbers = #tpu.dot_dimension_numbers<[1], [0], [0], [1], [0, 0, 1, 1], [], []>} : vector<16x768xbf16>, vector<768x768xbf16>, vector<16x768xf32> -> vector<16x768xf32>
    %c0_3 = arith.constant 0 : index
    %c0_4 = arith.constant 0 : index
    %3 = vector.load %arg3[%c0_3, %c0_4] : memref<1x768xf32, #tpu.memory_space<vmem>>, vector<1x768xf32>
    %4 = vector.broadcast %3 : vector<1x768xf32> to vector<16x768xf32>
    %5 = arith.addf %2, %4 : vector<16x768xf32>
    %c0_5 = arith.constant 0 : index
    %c0_6 = arith.constant 0 : index
    %6 = vector.load %arg4[%c0_5, %c0_6] : memref<16x768xf32, #tpu.memory_space<vmem>>, vector<16x768xf32>
    %7 = arith.addf %5, %6 : vector<16x768xf32>
    %cst_7 = arith.constant dense<0.000000e+00> : vector<16xf32>
    %8 = vector.multi_reduction <add>, %7, %cst_7 [1] : vector<16x768xf32> to vector<16xf32>
    %9 = vector.shape_cast %8 : vector<16xf32> to vector<16x1xf32>
    %cst_8 = arith.constant 7.680000e+02 : f32
    %10 = vector.broadcast %cst_8 : f32 to vector<16x1xf32>
    %11 = arith.divf %9, %10 : vector<16x1xf32>
    %12 = vector.broadcast %11 : vector<16x1xf32> to vector<16x768xf32>
    %13 = arith.subf %7, %12 : vector<16x768xf32>
    %14 = arith.mulf %13, %13 : vector<16x768xf32>
    %cst_9 = arith.constant dense<0.000000e+00> : vector<16xf32>
    %15 = vector.multi_reduction <add>, %14, %cst_9 [1] : vector<16x768xf32> to vector<16xf32>
    %16 = vector.shape_cast %15 : vector<16xf32> to vector<16x1xf32>
    %cst_10 = arith.constant 7.680000e+02 : f32
    %17 = vector.broadcast %cst_10 : f32 to vector<16x1xf32>
    %18 = arith.divf %16, %17 : vector<16x1xf32>
    %cst_11 = arith.constant 9.99999974E-6 : f32
    %19 = vector.broadcast %cst_11 : f32 to vector<16x1xf32>
    %20 = arith.addf %18, %19 : vector<16x1xf32>
    %21 = math.rsqrt %20 : vector<16x1xf32>
    %22 = vector.broadcast %21 : vector<16x1xf32> to vector<16x768xf32>
    %23 = arith.mulf %13, %22 : vector<16x768xf32>
    %c0_12 = arith.constant 0 : index
    %c0_13 = arith.constant 0 : index
    %24 = vector.load %arg5[%c0_12, %c0_13] : memref<1x768xf32, #tpu.memory_space<vmem>>, vector<1x768xf32>
    %25 = vector.broadcast %24 : vector<1x768xf32> to vector<16x768xf32>
    %26 = arith.mulf %23, %25 : vector<16x768xf32>
    %c0_14 = arith.constant 0 : index
    %c0_15 = arith.constant 0 : index
    %27 = vector.load %arg6[%c0_14, %c0_15] : memref<1x768xf32, #tpu.memory_space<vmem>>, vector<1x768xf32>
    %28 = vector.broadcast %27 : vector<1x768xf32> to vector<16x768xf32>
    %29 = arith.addf %26, %28 : vector<16x768xf32>
    %c0_16 = arith.constant 0 : index
    %c0_17 = arith.constant 0 : index
    %30 = vector.load %arg7[%c0_16, %c0_17] : memref<16x768xf32, #tpu.memory_space<vmem>>, vector<16x768xf32>
    tpu.vector_store %arg7[%c0_16, %c0_17], %29 {strides = array<i32>} : memref<16x768xf32, #tpu.memory_space<vmem>>, vector<16x768xf32>,
    return
  }
  func.func @transform_0(%arg0: i32) -> (i32, i32) {
    %c0_i32 = arith.constant 0 : i32
    %c0_i32_0 = arith.constant 0 : i32
    return %arg0, %c0_i32 : i32, i32
  }
  func.func @transform_1(%arg0: i32) -> (i32, i32) {
    %c0_i32 = arith.constant 0 : i32
    %c0_i32_0 = arith.constant 0 : i32
    %c0_i32_1 = arith.constant 0 : i32
    return %c0_i32, %c0_i32_0 : i32, i32
  }
  func.func @transform_2(%arg0: i32) -> (i32, i32) {
    %c0_i32 = arith.constant 0 : i32
    %c0_i32_0 = arith.constant 0 : i32
    %c0_i32_1 = arith.constant 0 : i32
    return %c0_i32, %c0_i32_0 : i32, i32
  }
  func.func @transform_3(%arg0: i32) -> (i32, i32) {
    %c0_i32 = arith.constant 0 : i32
    %c0_i32_0 = arith.constant 0 : i32
    return %arg0, %c0_i32 : i32, i32
  }
  func.func @transform_4(%arg0: i32) -> (i32, i32) {
    %c0_i32 = arith.constant 0 : i32
    %c0_i32_0 = arith.constant 0 : i32
    %c0_i32_1 = arith.constant 0 : i32
    return %c0_i32, %c0_i32_0 : i32, i32
  }
  func.func @transform_5(%arg0: i32) -> (i32, i32) {
    %c0_i32 = arith.constant 0 : i32
    %c0_i32_0 = arith.constant 0 : i32
    %c0_i32_1 = arith.constant 0 : i32
    return %c0_i32, %c0_i32_0 : i32, i32
  }
  func.func @transform_6(%arg0: i32) -> (i32, i32) {
    %c0_i32 = arith.constant 0 : i32
    %c0_i32_0 = arith.constant 0 : i32
    return %arg0, %c0_i32 : i32, i32
  }
}

module attributes {stable_mosaic.version = 11 : i64} {
  func.func @_ffn_res_ln_kernel(%arg0: i32, %arg1: i32, %arg2: memref<16x768xf32, #tpu.memory_space<vmem>>, %arg3: memref<768x768xbf16, #tpu.memory_space<vmem>>, %arg4: memref<1x768xf32, #tpu.memory_space<vmem>>, %arg5: memref<768x768xbf16, #tpu.memory_space<vmem>>, %arg6: memref<1x768xf32, #tpu.memory_space<vmem>>, %arg7: memref<1x768xf32, #tpu.memory_space<vmem>>, %arg8: memref<1x768xf32, #tpu.memory_space<vmem>>, %arg9: memref<16x768xf32, #tpu.memory_space<vmem>>, %arg10: memref<16x768xf32, #tpu.memory_space<vmem>>) attributes {dimension_semantics = [#tpu.dimension_semantics<parallel>, #tpu.dimension_semantics<arbitrary>], iteration_bounds = array<i64: 1, 4>, scalar_prefetch = 0 : i64, scratch_operands = 1 : i64, tpu.core_type = #tpu.core_type<tc>, window_params = [{transform_indices = @transform_0, window_bounds = array<i64: 16, 768>}, {transform_indices = @transform_1, window_bounds = array<i64: 768, 768>}, {transform_indices = @transform_2, window_bounds = array<i64: 1, 768>}, {transform_indices = @transform_3, window_bounds = array<i64: 768, 768>}, {pipeline_mode = #tpu.pipeline_mode<synchronous>, transform_indices = @transform_4, window_bounds = array<i64: 1, 768>}, {pipeline_mode = #tpu.pipeline_mode<synchronous>, transform_indices = @transform_5, window_bounds = array<i64: 1, 768>}, {pipeline_mode = #tpu.pipeline_mode<synchronous>, transform_indices = @transform_6, window_bounds = array<i64: 1, 768>}, {transform_indices = @transform_7, window_bounds = array<i64: 16, 768>}]} {
    %c0_i32 = arith.constant 0 : i32
    %0 = arith.cmpi eq, %arg1, %c0_i32 : i32
    %1 = arith.extui %0 : i1 to i32
    %c0_i32_0 = arith.constant 0 : i32
    %2 = arith.cmpi ne, %1, %c0_i32_0 : i32
    scf.if %2 {
      %c0_15 = arith.constant 0 : index
      %c0_16 = arith.constant 0 : index
      %21 = vector.load %arg2[%c0_15, %c0_16] : memref<16x768xf32, #tpu.memory_space<vmem>>, vector<16x768xf32>
      %c0_17 = arith.constant 0 : index
      %c0_18 = arith.constant 0 : index
      %22 = vector.load %arg6[%c0_17, %c0_18] : memref<1x768xf32, #tpu.memory_space<vmem>>, vector<1x768xf32>
      %23 = vector.broadcast %22 : vector<1x768xf32> to vector<16x768xf32>
      %24 = arith.addf %21, %23 : vector<16x768xf32>
      %c0_19 = arith.constant 0 : index
      %c0_20 = arith.constant 0 : index
      %25 = vector.load %arg10[%c0_19, %c0_20] : memref<16x768xf32, #tpu.memory_space<vmem>>, vector<16x768xf32>
      tpu.vector_store %arg10[%c0_19, %c0_20], %24 {strides = array<i32>} : memref<16x768xf32, #tpu.memory_space<vmem>>, vector<16x768xf32>,
    } else {
    }
    %c0 = arith.constant 0 : index
    %c0_1 = arith.constant 0 : index
    %3 = vector.load %arg2[%c0, %c0_1] : memref<16x768xf32, #tpu.memory_space<vmem>>, vector<16x768xf32>
    %4 = arith.truncf %3 : vector<16x768xf32> to vector<16x768xbf16>
    %c0_2 = arith.constant 0 : index
    %c0_3 = arith.constant 0 : index
    %5 = vector.load %arg3[%c0_2, %c0_3] : memref<768x768xbf16, #tpu.memory_space<vmem>>, vector<768x768xbf16>
    %cst = arith.constant dense<0.000000e+00> : vector<16x768xf32>
    %6 = tpu.matmul %4, %5, %cst {dimension_numbers = #tpu.dot_dimension_numbers<[1], [0], [0], [1], [0, 0, 1, 1], [], []>} : vector<16x768xbf16>, vector<768x768xbf16>, vector<16x768xf32> -> vector<16x768xf32>
    %c0_4 = arith.constant 0 : index
    %c0_5 = arith.constant 0 : index
    %7 = vector.load %arg4[%c0_4, %c0_5] : memref<1x768xf32, #tpu.memory_space<vmem>>, vector<1x768xf32>
    %8 = vector.broadcast %7 : vector<1x768xf32> to vector<16x768xf32>
    %9 = arith.addf %6, %8 : vector<16x768xf32>
    %cst_6 = arith.constant 0.000000e+00 : f32
    %10 = vector.broadcast %cst_6 : f32 to vector<16x768xf32>
    %11 = arith.maximumf %9, %10 : vector<16x768xf32>
    %c0_7 = arith.constant 0 : index
    %c0_8 = arith.constant 0 : index
    %12 = vector.load %arg10[%c0_7, %c0_8] : memref<16x768xf32, #tpu.memory_space<vmem>>, vector<16x768xf32>
    %13 = arith.truncf %11 : vector<16x768xf32> to vector<16x768xbf16>
    %c0_9 = arith.constant 0 : index
    %c0_10 = arith.constant 0 : index
    %14 = vector.load %arg5[%c0_9, %c0_10] : memref<768x768xbf16, #tpu.memory_space<vmem>>, vector<768x768xbf16>
    %cst_11 = arith.constant dense<0.000000e+00> : vector<16x768xf32>
    %15 = tpu.matmul %13, %14, %cst_11 {dimension_numbers = #tpu.dot_dimension_numbers<[1], [0], [0], [1], [0, 0, 1, 1], [], []>} : vector<16x768xbf16>, vector<768x768xbf16>, vector<16x768xf32> -> vector<16x768xf32>
    %16 = arith.addf %12, %15 : vector<16x768xf32>
    %c0_12 = arith.constant 0 : index
    %c0_13 = arith.constant 0 : index
    %17 = vector.load %arg10[%c0_12, %c0_13] : memref<16x768xf32, #tpu.memory_space<vmem>>, vector<16x768xf32>
    tpu.vector_store %arg10[%c0_12, %c0_13], %16 {strides = array<i32>} : memref<16x768xf32, #tpu.memory_space<vmem>>, vector<16x768xf32>,
    %c3_i32 = arith.constant 3 : i32
    %18 = arith.cmpi eq, %arg1, %c3_i32 : i32
    %19 = arith.extui %18 : i1 to i32
    %c0_i32_14 = arith.constant 0 : i32
    %20 = arith.cmpi ne, %19, %c0_i32_14 : i32
    scf.if %20 {
      %c0_15 = arith.constant 0 : index
      %c0_16 = arith.constant 0 : index
      %21 = vector.load %arg10[%c0_15, %c0_16] : memref<16x768xf32, #tpu.memory_space<vmem>>, vector<16x768xf32>
      %cst_17 = arith.constant dense<0.000000e+00> : vector<16xf32>
      %22 = vector.multi_reduction <add>, %21, %cst_17 [1] : vector<16x768xf32> to vector<16xf32>
      %23 = vector.shape_cast %22 : vector<16xf32> to vector<16x1xf32>
      %cst_18 = arith.constant 7.680000e+02 : f32
      %24 = vector.broadcast %cst_18 : f32 to vector<16x1xf32>
      %25 = arith.divf %23, %24 : vector<16x1xf32>
      %26 = vector.broadcast %25 : vector<16x1xf32> to vector<16x768xf32>
      %27 = arith.subf %21, %26 : vector<16x768xf32>
      %28 = arith.mulf %27, %27 : vector<16x768xf32>
      %cst_19 = arith.constant dense<0.000000e+00> : vector<16xf32>
      %29 = vector.multi_reduction <add>, %28, %cst_19 [1] : vector<16x768xf32> to vector<16xf32>
      %30 = vector.shape_cast %29 : vector<16xf32> to vector<16x1xf32>
      %cst_20 = arith.constant 7.680000e+02 : f32
      %31 = vector.broadcast %cst_20 : f32 to vector<16x1xf32>
      %32 = arith.divf %30, %31 : vector<16x1xf32>
      %cst_21 = arith.constant 9.99999974E-6 : f32
      %33 = vector.broadcast %cst_21 : f32 to vector<16x1xf32>
      %34 = arith.addf %32, %33 : vector<16x1xf32>
      %35 = math.rsqrt %34 : vector<16x1xf32>
      %36 = vector.broadcast %35 : vector<16x1xf32> to vector<16x768xf32>
      %37 = arith.mulf %27, %36 : vector<16x768xf32>
      %c0_22 = arith.constant 0 : index
      %c0_23 = arith.constant 0 : index
      %38 = vector.load %arg7[%c0_22, %c0_23] : memref<1x768xf32, #tpu.memory_space<vmem>>, vector<1x768xf32>
      %39 = vector.broadcast %38 : vector<1x768xf32> to vector<16x768xf32>
      %40 = arith.mulf %37, %39 : vector<16x768xf32>
      %c0_24 = arith.constant 0 : index
      %c0_25 = arith.constant 0 : index
      %41 = vector.load %arg8[%c0_24, %c0_25] : memref<1x768xf32, #tpu.memory_space<vmem>>, vector<1x768xf32>
      %42 = vector.broadcast %41 : vector<1x768xf32> to vector<16x768xf32>
      %43 = arith.addf %40, %42 : vector<16x768xf32>
      %c0_26 = arith.constant 0 : index
      %c0_27 = arith.constant 0 : index
      %44 = vector.load %arg9[%c0_26, %c0_27] : memref<16x768xf32, #tpu.memory_space<vmem>>, vector<16x768xf32>
      tpu.vector_store %arg9[%c0_26, %c0_27], %43 {strides = array<i32>} : memref<16x768xf32, #tpu.memory_space<vmem>>, vector<16x768xf32>,
    } else {
    }
    return
  }
  func.func @transform_0(%arg0: i32, %arg1: i32) -> (i32, i32) {
    %c0_i32 = arith.constant 0 : i32
    %c0_i32_0 = arith.constant 0 : i32
    return %arg0, %c0_i32 : i32, i32
  }
  func.func @transform_1(%arg0: i32, %arg1: i32) -> (i32, i32) {
    %c0_i32 = arith.constant 0 : i32
    %c0_i32_0 = arith.constant 0 : i32
    return %c0_i32, %arg1 : i32, i32
  }
  func.func @transform_2(%arg0: i32, %arg1: i32) -> (i32, i32) {
    %c0_i32 = arith.constant 0 : i32
    %c0_i32_0 = arith.constant 0 : i32
    return %c0_i32, %arg1 : i32, i32
  }
  func.func @transform_3(%arg0: i32, %arg1: i32) -> (i32, i32) {
    %c0_i32 = arith.constant 0 : i32
    %c0_i32_0 = arith.constant 0 : i32
    return %arg1, %c0_i32 : i32, i32
  }
  func.func @transform_4(%arg0: i32, %arg1: i32) -> (i32, i32) {
    %c0_i32 = arith.constant 0 : i32
    %c0_i32_0 = arith.constant 0 : i32
    %c0_i32_1 = arith.constant 0 : i32
    return %c0_i32, %c0_i32_0 : i32, i32
  }
  func.func @transform_5(%arg0: i32, %arg1: i32) -> (i32, i32) {
    %c0_i32 = arith.constant 0 : i32
    %c0_i32_0 = arith.constant 0 : i32
    %c0_i32_1 = arith.constant 0 : i32
    return %c0_i32, %c0_i32_0 : i32, i32
  }
  func.func @transform_6(%arg0: i32, %arg1: i32) -> (i32, i32) {
    %c0_i32 = arith.constant 0 : i32
    %c0_i32_0 = arith.constant 0 : i32
    %c0_i32_1 = arith.constant 0 : i32
    return %c0_i32, %c0_i32_0 : i32, i32
  }
  func.func @transform_7(%arg0: i32, %arg1: i32) -> (i32, i32) {
    %c0_i32 = arith.constant 0 : i32
    %c0_i32_0 = arith.constant 0 : i32
    return %arg0, %c0_i32 : i32, i32
  }
}

</mosaic_0001>

<llo_original>
// kernel: dnabert_forward.49
$region0: #{dnabert_forward.49}
  #allocation0 [shape = 'u32[]', space=smem, size = 0x4, offset = 0x4, fixed_abs, tag = 'smem constant byte address 0x4 - core index']
  #allocation1 [shape = 'u32[72,128]{1,0:T(1,128)}', space=vmem, size = 0x9000, scoped, tag = 'internal scratch']
  %s0 = inlined_call_operand.vmem [shape: bf16[16,2304], index: 0, kind: input, shape index: {}, may-alias: {0,1,2}]
  %s1 = inlined_call_operand.vmem [shape: bf16[16,2304], index: 1, kind: input, shape index: {}, may-alias: {0,1,2}]
  %s2 = inlined_call_operand.vmem [shape: bf16[16,2304], index: 2, kind: input, shape index: {}, may-alias: {0,1,2}]
  %s3 = inlined_call_operand.vmem [shape: bf16[16,768], index: 3, kind: output, shape index: {}]
  %s4 = sld [smem:[#allocation0]]
  $region45: #{dnabert_forward.49} parent=0
    _
  %s6 = ssub.s32 1, %s4
  %s7 = scalar_select 0, %s6, %s4
  loop: start=0, step=1, limit=8
  $region2: #{dnabert_forward.49} parent=0 // loop_pre_header
    _
  $region3: #{dnabert_forward.49} parent=0 // loop_header
    %s9 = sphi 0, %s13
    %p10 = scmp.ge.s32.totalorder %s9, 8
    %s16 = sphi 0, %s28
    %s17 = sphi 0, %s24
    %s18 = sphi 0, %s16
    %s19 = sphi 0, %s17
    %s20 = sphi 0, %s18
    %s21 = sphi 0, %s19
    %s33 = sphi 0, %s35
    %s36 = sphi 0, %s33
    %s37 = sphi 0, %s36
    %s53 = sphi 0, %s37
    %s63 = sphi 0, %s65
    %s66 = sphi 0, %s63
    %s67 = sphi 0, %s66
    %s83 = sphi 0, %s67
    %s93 = sphi 0, %s95
    %s96 = sphi 0, %s93
    %s97 = sphi 0, %s96
    %s113 = sphi 0, %s97
    %s121 = sphi 0, %s123
    %s124 = sphi 0, %s121
    %s125 = sphi 0, %s124
    %s141 = sphi 0, %s125
  $region4: #{dnabert_forward.49} parent=0 // loop_header_branch
    %12 = sbr.rel (%p10) target = $region8
  $region5: #{dnabert_forward.49} parent=0 // loop_body
    %s14 = ssub.s32 %s9, 1
    %s15 = ssub.s32 %s9, 2
    %s22 = sadd.s32 1, %s17
    %p23 = scmp.ge.s32.totalorder %s22, 3
    %s24 = scalar_select %p23, 0, %s22
    %s25 = sadd.s32 1, %s16
    %s26 = scalar_select %p23, %s25, %s16
    %p27 = scmp.ge.s32.totalorder %s26, 2
    %s28 = scalar_select %p27, 0, %s26
    %s29 = ssub.s32 %s16, %s28
    %s30 = ssub.s32 %s17, %s24
    %s31 = sor.u32 %s29, %s30
    %p32 = scmp.eq.s32.totalorder %s31, 0
    %s34 = sadd.s32 %s33, 1
    %s35 = scalar_select %p32, %s33, %s34
    %p38 = pneg %p32
    %p39 = scmp.eq.s32.totalorder %s9, 5
    %p40 = por %p38, %p39
    %p41 = scmp.ne.s32.totalorder %s33, %s36
    %p42 = scmp.eq.s32.totalorder %s9, 0
    %p43 = por %p41, %p42
    %p44 = scmp.ne.s32.totalorder %s33, %s36
    %p45 = scmp.eq.s32.totalorder %s14, 5
    %p46 = por %p44, %p45
    %p47 = scmp.ne.s32.totalorder %s36, %s37
    %p48 = scmp.eq.s32.totalorder %s14, 0
    %p49 = por %p47, %p48
    %p50 = scmp.ne.s32.totalorder %s36, %s37
    %p51 = scmp.eq.s32.totalorder %s15, 5
    %p52 = por %p50, %p51
    %p54 = scmp.ne.s32.totalorder %s37, %s53
    %p55 = scmp.eq.s32.totalorder %s15, 0
    %p56 = por %p54, %p55
    %s57 = sadd.s32 %s17, 3
    %s58 = sadd.s32 %s24, 3
    %s59 = ssub.s32 %s16, %s28
    %s60 = ssub.s32 %s57, %s58
    %s61 = sor.u32 %s59, %s60
    %p62 = scmp.eq.s32.totalorder %s61, 0
    %s64 = sadd.s32 %s63, 1
    %s65 = scalar_select %p62, %s63, %s64
    %p68 = pneg %p62
    %p69 = scmp.eq.s32.totalorder %s9, 5
    %p70 = por %p68, %p69
    %p71 = scmp.ne.s32.totalorder %s63, %s66
    %p72 = scmp.eq.s32.totalorder %s9, 0
    %p73 = por %p71, %p72
    %p74 = scmp.ne.s32.totalorder %s63, %s66
    %p75 = scmp.eq.s32.totalorder %s14, 5
    %p76 = por %p74, %p75
    %p77 = scmp.ne.s32.totalorder %s66, %s67
    %p78 = scmp.eq.s32.totalorder %s14, 0
    %p79 = por %p77, %p78
    %p80 = scmp.ne.s32.totalorder %s66, %s67
    %p81 = scmp.eq.s32.totalorder %s15, 5
    %p82 = por %p80, %p81
    %p84 = scmp.ne.s32.totalorder %s67, %s83
    %p85 = scmp.eq.s32.totalorder %s15, 0
    %p86 = por %p84, %p85
    %s87 = sadd.s32 %s17, 6
    %s88 = sadd.s32 %s24, 6
    %s89 = ssub.s32 %s16, %s28
    %s90 = ssub.s32 %s87, %s88
    %s91 = sor.u32 %s89, %s90
    %p92 = scmp.eq.s32.totalorder %s91, 0
    %s94 = sadd.s32 %s93, 1
    %s95 = scalar_select %p92, %s93, %s94
    %p98 = pneg %p92
    %p99 = scmp.eq.s32.totalorder %s9, 5
    %p100 = por %p98, %p99
    %p101 = scmp.ne.s32.totalorder %s93, %s96
    %p102 = scmp.eq.s32.totalorder %s9, 0
    %p103 = por %p101, %p102
    %p104 = scmp.ne.s32.totalorder %s93, %s96
    %p105 = scmp.eq.s32.totalorder %s14, 5
    %p106 = por %p104, %p105
    %p107 = scmp.ne.s32.totalorder %s96, %s97
    %p108 = scmp.eq.s32.totalorder %s14, 0
    %p109 = por %p107, %p108
    %p110 = scmp.ne.s32.totalorder %s96, %s97
    %p111 = scmp.eq.s32.totalorder %s15, 5
    %p112 = por %p110, %p111
    %p114 = scmp.ne.s32.totalorder %s97, %s113
    %p115 = scmp.eq.s32.totalorder %s15, 0
    %p116 = por %p114, %p115
    %s117 = ssub.s32 %s16, %s28
    %s118 = ssub.s32 %s17, %s24
    %s119 = sor.u32 %s117, %s118
    %p120 = scmp.eq.s32.totalorder %s119, 0
    %s122 = sadd.s32 %s121, 1
    %s123 = scalar_select %p120, %s121, %s122
    %p126 = pneg %p120
    %p127 = scmp.eq.s32.totalorder %s9, 5
    %p128 = por %p126, %p127
    %p129 = scmp.ne.s32.totalorder %s121, %s124
    %p130 = scmp.eq.s32.totalorder %s9, 0
    %p131 = por %p129, %p130
    %p132 = scmp.ne.s32.totalorder %s121, %s124
    %p133 = scmp.eq.s32.totalorder %s14, 5
    %p134 = por %p132, %p133
    %p135 = scmp.ne.s32.totalorder %s124, %s125
    %p136 = scmp.eq.s32.totalorder %s14, 0
    %p137 = por %p135, %p136
    %p138 = scmp.ne.s32.totalorder %s124, %s125
    %p139 = scmp.eq.s32.totalorder %s15, 5
    %p140 = por %p138, %p139
    %p142 = scmp.ne.s32.totalorder %s125, %s141
    %p143 = scmp.eq.s32.totalorder %s15, 0
    %p144 = por %p142, %p143
    %p145 = scmp.le.s32.totalorder 1, %s9
    %p146 = scmp.lt.s32.totalorder %s9, 7
    %p147 = pnand %p145, %p146
    %p148 = pneg %p147
    // Predicated region
    $region9: #{dnabert_forward.49} parent=5 // pred_check
      _
    $region10: #{dnabert_forward.49} parent=5 // pred_check_branch
      %150 = sbr.rel (%p147) target = $region12
    $region11: #{dnabert_forward.49} parent=5 // pred_region
      %s151 = ssub.s32 %s9, 1
    $region12: #{dnabert_forward.49} parent=5 // pred_fallthru
      _
    %p152 = scmp.lt.s32.totalorder %s9, 6
    // Predicated region
    $region13: #{dnabert_forward.49} parent=5 // pred_check
      %p153 = pneg %p152
    $region14: #{dnabert_forward.49} parent=5 // pred_check_branch
      %155 = sbr.rel (%p153) target = $region16
    $region15: #{dnabert_forward.49} parent=5 // pred_region
      // Predicated region
      $region17: #{dnabert_forward.49} parent=15 // pred_check
        %p156 = pneg %p43
      $region18: #{dnabert_forward.49} parent=15 // pred_check_branch
        %158 = sbr.rel (%p156) target = $region20
      $region19: #{dnabert_forward.49} parent=15 // pred_region
        %s159 = smul.u32 2, %s17
        %p160 = scmp.lt.s32.totalorder %s16, 1
        %s161 = scalar_select %p160, %s16, 1
        %p162 = scmp.lt.s32.totalorder %s159, 17
        %s163 = scalar_select %p162, %s159, 17
        %s164 = smul.addr %s161, 18
        %s165 = sadd.s32 %s163, %s164
        %s166 = smul.addr %s165, 4
        %s167 = scalar_lea.vmem %s0, %s166
        %s168 = smul.u32 2, %s17
      $region20: #{dnabert_forward.49} parent=15 // pred_fallthru
        _
      // Predicated region
      $region21: #{dnabert_forward.49} parent=15 // pred_check
        %p169 = pneg %p73
      $region22: #{dnabert_forward.49} parent=15 // pred_check_branch
        %171 = sbr.rel (%p169) target = $region24
      $region23: #{dnabert_forward.49} parent=15 // pred_region
        %s172 = sadd.s32 %s17, 3
        %s173 = smul.u32 2, %s172
        %p174 = scmp.lt.s32.totalorder %s16, 1
        %s175 = scalar_select %p174, %s16, 1
        %p176 = scmp.lt.s32.totalorder %s173, 17
        %s177 = scalar_select %p176, %s173, 17
        %s178 = smul.addr %s175, 18
        %s179 = sadd.s32 %s177, %s178
        %s180 = smul.addr %s179, 4
        %s181 = scalar_lea.vmem %s1, %s180
        %s182 = sadd.s32 %s17, 3
        %s183 = smul.u32 2, %s182
      $region24: #{dnabert_forward.49} parent=15 // pred_fallthru
        _
      // Predicated region
      $region25: #{dnabert_forward.49} parent=15 // pred_check
        %p184 = pneg %p103
      $region26: #{dnabert_forward.49} parent=15 // pred_check_branch
        %186 = sbr.rel (%p184) target = $region28
      $region27: #{dnabert_forward.49} parent=15 // pred_region
        %s187 = sadd.s32 %s17, 6
        %s188 = smul.u32 2, %s187
        %p189 = scmp.lt.s32.totalorder %s16, 1
        %s190 = scalar_select %p189, %s16, 1
        %p191 = scmp.lt.s32.totalorder %s188, 17
        %s192 = scalar_select %p191, %s188, 17
        %s193 = smul.addr %s190, 18
        %s194 = sadd.s32 %s192, %s193
        %s195 = smul.addr %s194, 4
        %s196 = scalar_lea.vmem %s2, %s195
        %s197 = sadd.s32 %s17, 6
        %s198 = smul.u32 2, %s197
      $region28: #{dnabert_forward.49} parent=15 // pred_fallthru
        _
    $region16: #{dnabert_forward.49} parent=5 // pred_fallthru
      _
    %p199 = scmp.le.s32.totalorder 1, %s9
    %p200 = scmp.lt.s32.totalorder %s9, 7
    %p201 = pnand %p199, %p200
    %p202 = pneg %p201
    // Predicated region
    $region29: #{dnabert_forward.49} parent=5 // pred_check
      _
    $region30: #{dnabert_forward.49} parent=5 // pred_check_branch
      %204 = sbr.rel (%p201) target = $region32
    $region31: #{dnabert_forward.49} parent=5 // pred_region
      %s205 = ssub.s32 %s9, 1
      %s206 = smul.u32 2, %s19
      %p207 = scmp.lt.s32.totalorder %s18, 1
      %s208 = scalar_select %p207, %s18, 1
      %p209 = scmp.lt.s32.totalorder %s206, 17
      %s210 = scalar_select %p209, %s206, 17
      %s211 = smul.addr %s208, 18
      %s212 = sadd.s32 %s210, %s211
      %s213 = smul.addr %s212, 4
      %s214 = scalar_lea.vmem %s0, %s213
      %p215 = pneg %p49
      %p216 = pneg %p46
      %s217 = sadd.s32 %s19, 3
      %s218 = smul.u32 2, %s217
      %p219 = scmp.lt.s32.totalorder %s18, 1
      %s220 = scalar_select %p219, %s18, 1
      %p221 = scmp.lt.s32.totalorder %s218, 17
      %s222 = scalar_select %p221, %s218, 17
      %s223 = smul.addr %s220, 18
      %s224 = sadd.s32 %s222, %s223
      %s225 = smul.addr %s224, 4
      %s226 = scalar_lea.vmem %s1, %s225
      %p227 = pneg %p79
      %p228 = pneg %p76
      %s229 = sadd.s32 %s19, 6
      %s230 = smul.u32 2, %s229
      %p231 = scmp.lt.s32.totalorder %s18, 1
      %s232 = scalar_select %p231, %s18, 1
      %p233 = scmp.lt.s32.totalorder %s230, 17
      %s234 = scalar_select %p233, %s230, 17
      %s235 = smul.addr %s232, 18
      %s236 = sadd.s32 %s234, %s235
      %s237 = smul.addr %s236, 4
      %s238 = scalar_lea.vmem %s2, %s237
      %p239 = pneg %p109
      %p240 = pneg %p106
      %p241 = pneg %p137
      %p242 = pneg %p134
      %s243 = smul.u32 2, %s19
      %p244 = scmp.lt.s32.totalorder %s18, 1
      %s245 = scalar_select %p244, %s18, 1
      %p246 = scmp.lt.s32.totalorder %s243, 5
      %s247 = scalar_select %p246, %s243, 5
      %s248 = smul.addr %s245, 6
      %s249 = sadd.s32 %s247, %s248
      %s250 = smul.addr %s249, 4
      %s251 = scalar_lea.vmem %s3, %s250
      %s252 = smul.u32 2, %s19
      %p253 = scmp.lt.s32.totalorder %s18, 1
      %s254 = scalar_select %p253, %s18, 1
      %p255 = scmp.lt.s32.totalorder %s252, 17
      %s256 = scalar_select %p255, %s252, 17
      %s257 = smul.addr %s254, 18
      %s258 = sadd.s32 %s256, %s257
      %s259 = smul.addr %s258, 4
      %s260 = scalar_lea.vmem %s0, %s259
      %s261 = smul.u32 2, %s19
      %s262 = sadd.s32 %s19, 3
      %s263 = smul.u32 2, %s262
      %p264 = scmp.lt.s32.totalorder %s18, 1
      %s265 = scalar_select %p264, %s18, 1
      %p266 = scmp.lt.s32.totalorder %s263, 17
      %s267 = scalar_select %p266, %s263, 17
      %s268 = smul.addr %s265, 18
      %s269 = sadd.s32 %s267, %s268
      %s270 = smul.addr %s269, 4
      %s271 = scalar_lea.vmem %s1, %s270
      %s272 = sadd.s32 %s19, 3
      %s273 = smul.u32 2, %s272
      %s274 = sadd.s32 %s19, 6
      %s275 = smul.u32 2, %s274
      %p276 = scmp.lt.s32.totalorder %s18, 1
      %s277 = scalar_select %p276, %s18, 1
      %p278 = scmp.lt.s32.totalorder %s275, 17
      %s279 = scalar_select %p278, %s275, 17
      %s280 = smul.addr %s277, 18
      %s281 = sadd.s32 %s279, %s280
      %s282 = smul.addr %s281, 4
      %s283 = scalar_lea.vmem %s2, %s282
      %s284 = sadd.s32 %s19, 6
      %s285 = smul.u32 2, %s284
      %s286 = smul.u32 2, %s19
      %p287 = scmp.lt.s32.totalorder %s18, 1
      %s288 = scalar_select %p287, %s18, 1
      %p289 = scmp.lt.s32.totalorder %s286, 5
      %s290 = scalar_select %p289, %s286, 5
      %s291 = smul.addr %s288, 6
      %s292 = sadd.s32 %s290, %s291
      %s293 = smul.addr %s292, 4
      %s294 = scalar_lea.vmem %s3, %s293
      %s295 = smul.u32 2, %s19
      %v297 = vld [vmem:[%s260] sm:$0xf]
      %v298 = vld [vmem:[%s271] sm:$0xf]
      %v299 = vld [vmem:[%s283] sm:$0xf]
      %vm300 = vcmask 523264
      %v302 = vsel %vm300, %v297, 0
      %v305 = vsel %vm300, %v298, 0
      %307 = vmatpush.bf16.xpose.msra.mxu0 0
      %308 = vmatpush.bf16.xpose.msra.mxu0 0
      %309 = vmatpush.bf16.xpose.msra.mxu0 0
      %310 = vmatpush.bf16.xpose.msra.mxu0 0
      %311 = vmatpush.bf16.xpose.msra.mxu0 0
      %312 = vmatpush.bf16.xpose.msra.mxu0 0
      %313 = vmatpush.bf16.xpose.msra.mxu0 0
      %314 = vmatpush.bf16.xpose.msra.mxu0 %v305
      %315 = vmatmul.bf16.gmra.mxu0 %v302
      %v316 = vpop.f32.mrf.mxu0
      %v317 = vadd.f32 0.0, %v316
      %v318 = vpop.f32.mrf.mxu0
      %319 = vdwg.mxu0
      %v320 = vmul.f32 %v317, 0.125
      %vm321 = vcmask 64512
      %v322 = vsel %vm321, %v320, -inf
      %323 = vmax.xlane.f32.xlu0 %v322
      %v324 = vpop.xlane.xlu0 %323
      %v325 = vsub.f32 %v320, %v324
      %v326 = vmul.f32 %v325, 1.442695
      %v327 = vpow.pop %v326
      %v328 = vsel %vm321, %v327, 0.0
      %329 = vadd.xlane.f32.xlu0 %v328
      %v330 = vpop.xlane.xlu0 %329
      %v331 = vpack.c.bf16 %v327, %v327
      %v333 = vsel %vm321, %v331, 0
      %vm335 = vcmask 1043456
      %v337 = vsel %vm335, %v299, 0
      %339 = vmatpush.bf16.msra.mxu0 0
      %340 = vmatpush.bf16.msra.mxu0 0
      %341 = vmatpush.bf16.msra.mxu0 0
      %342 = vmatpush.bf16.msra.mxu0 0
      %343 = vmatpush.bf16.msra.mxu0 0
      %344 = vmatpush.bf16.msra.mxu0 0
      %345 = vmatpush.bf16.msra.mxu0 0
      %346 = vmatpush.bf16.msra.mxu0 %v337
      %347 = vmatmul.bf16.gmra.mxu0 %v333
      %v348 = vpop.f32.mrf.mxu0
      %v349 = vadd.f32 0.0, %v348
      %v350 = vpop.f32.mrf.mxu0
      %351 = vdwg.mxu0
      %v352 = vrcp.pop %v330
      %v353 = vmul.f32 %v349, %v352
      %v355 = vunpack.c.l.b16 %v297
      %v356 = vpack.c.b16 %v355, %v355
      %357 = vrot.lane.b32.xlu0 %v356, 64
      %v358 = vpop.permute.xlu0 %357
      %v360 = vunpack.c.l.b16 %v298
      %v361 = vpack.c.b16 %v360, %v360
      %362 = vrot.lane.b32.xlu0 %v361, 64
      %v363 = vpop.permute.xlu0 %362
      %v365 = vsel %vm300, %v358, 0
      %v368 = vsel %vm300, %v363, 0
      %370 = vmatpush.bf16.xpose.msra.mxu0 0
      %371 = vmatpush.bf16.xpose.msra.mxu0 0
      %372 = vmatpush.bf16.xpose.msra.mxu0 0
      %373 = vmatpush.bf16.xpose.msra.mxu0 0
      %374 = vmatpush.bf16.xpose.msra.mxu0 0
      %375 = vmatpush.bf16.xpose.msra.mxu0 0
      %376 = vmatpush.bf16.xpose.msra.mxu0 0
      %377 = vmatpush.bf16.xpose.msra.mxu0 %v368
      %378 = vmatmul.bf16.gmra.mxu0 %v365
      %v379 = vpop.f32.mrf.mxu0
      %v380 = vadd.f32 0.0, %v379
      %v381 = vpop.f32.mrf.mxu0
      %382 = vdwg.mxu0
      %v383 = vmul.f32 %v380, 0.125
      %v384 = vsel %vm321, %v383, -inf
      %385 = vmax.xlane.f32.xlu0 %v384
      %v386 = vpop.xlane.xlu0 %385
      %v387 = vsub.f32 %v383, %v386
      %v388 = vmul.f32 %v387, 1.442695
      %v389 = vpow.pop %v388
      %v390 = vsel %vm321, %v389, 0.0
      %391 = vadd.xlane.f32.xlu0 %v390
      %v392 = vpop.xlane.xlu0 %391
      %v393 = vpack.c.bf16 %v389, %v389
      %v395 = vunpack.c.l.b16 %v299
      %v396 = vpack.c.b16 %v395, %v395
      %397 = vrot.lane.b32.xlu0 %v396, 64
      %v398 = vpop.permute.xlu0 %397
      %v400 = vsel %vm321, %v393, 0
      %v403 = vsel %vm335, %v398, 0
      %405 = vmatpush.bf16.msra.mxu0 0
      %406 = vmatpush.bf16.msra.mxu0 0
      %407 = vmatpush.bf16.msra.mxu0 0
      %408 = vmatpush.bf16.msra.mxu0 0
      %409 = vmatpush.bf16.msra.mxu0 0
      %410 = vmatpush.bf16.msra.mxu0 0
      %411 = vmatpush.bf16.msra.mxu0 0
      %412 = vmatpush.bf16.msra.mxu0 %v403
      %413 = vmatmul.bf16.gmra.mxu0 %v400
      %v414 = vpop.f32.mrf.mxu0
      %v415 = vadd.f32 0.0, %v414
      %v416 = vpop.f32.mrf.mxu0
      %417 = vdwg.mxu0
      %v418 = vrcp.pop %v392
      %v419 = vmul.f32 %v415, %v418
      %v420 = vld [vmem:[%s260 + $0x4] sm:$0xf]
      %v421 = vld [vmem:[%s271 + $0x4] sm:$0xf]
      %v422 = vld [vmem:[%s283 + $0x4] sm:$0xf]
      %v424 = vsel %vm300, %v420, 0
      %v427 = vsel %vm300, %v421, 0
      %429 = vmatpush.bf16.xpose.msra.mxu0 0
      %430 = vmatpush.bf16.xpose.msra.mxu0 0
      %431 = vmatpush.bf16.xpose.msra.mxu0 0
      %432 = vmatpush.bf16.xpose.msra.mxu0 0
      %433 = vmatpush.bf16.xpose.msra.mxu0 0
      %434 = vmatpush.bf16.xpose.msra.mxu0 0
      %435 = vmatpush.bf16.xpose.msra.mxu0 0
      %436 = vmatpush.bf16.xpose.msra.mxu0 %v427
      %437 = vmatmul.bf16.gmra.mxu0 %v424
      %v438 = vpop.f32.mrf.mxu0
      %v439 = vadd.f32 0.0, %v438
      %v440 = vpop.f32.mrf.mxu0
      %441 = vdwg.mxu0
      %v442 = vmul.f32 %v439, 0.125
      %v443 = vsel %vm321, %v442, -inf
      %444 = vmax.xlane.f32.xlu0 %v443
      %v445 = vpop.xlane.xlu0 %444
      %v446 = vsub.f32 %v442, %v445
      %v447 = vmul.f32 %v446, 1.442695
      %v448 = vpow.pop %v447
      %v449 = vsel %vm321, %v448, 0.0
      %450 = vadd.xlane.f32.xlu0 %v449
      %v451 = vpop.xlane.xlu0 %450
      %v452 = vpack.c.bf16 %v448, %v448
      %v454 = vsel %vm321, %v452, 0
      %v457 = vsel %vm335, %v422, 0
      %459 = vmatpush.bf16.msra.mxu0 0
      %460 = vmatpush.bf16.msra.mxu0 0
      %461 = vmatpush.bf16.msra.mxu0 0
      %462 = vmatpush.bf16.msra.mxu0 0
      %463 = vmatpush.bf16.msra.mxu0 0
      %464 = vmatpush.bf16.msra.mxu0 0
      %465 = vmatpush.bf16.msra.mxu0 0
      %466 = vmatpush.bf16.msra.mxu0 %v457
      %467 = vmatmul.bf16.gmra.mxu0 %v454
      %v468 = vpop.f32.mrf.mxu0
      %v469 = vadd.f32 0.0, %v468
      %v470 = vpop.f32.mrf.mxu0
      %471 = vdwg.mxu0
      %v472 = vrcp.pop %v451
      %v473 = vmul.f32 %v469, %v472
      %v475 = vunpack.c.l.b16 %v420
      %v476 = vpack.c.b16 %v475, %v475
      %477 = vrot.lane.b32.xlu0 %v476, 64
      %v478 = vpop.permute.xlu0 %477
      %v480 = vunpack.c.l.b16 %v421
      %v481 = vpack.c.b16 %v480, %v480
      %482 = vrot.lane.b32.xlu0 %v481, 64
      %v483 = vpop.permute.xlu0 %482
      %v485 = vsel %vm300, %v478, 0
      %v488 = vsel %vm300, %v483, 0
      %490 = vmatpush.bf16.xpose.msra.mxu0 0
      %491 = vmatpush.bf16.xpose.msra.mxu0 0
      %492 = vmatpush.bf16.xpose.msra.mxu0 0
      %493 = vmatpush.bf16.xpose.msra.mxu0 0
      %494 = vmatpush.bf16.xpose.msra.mxu0 0
      %495 = vmatpush.bf16.xpose.msra.mxu0 0
      %496 = vmatpush.bf16.xpose.msra.mxu0 0
      %497 = vmatpush.bf16.xpose.msra.mxu0 %v488
      %498 = vmatmul.bf16.gmra.mxu0 %v485
      %v499 = vpop.f32.mrf.mxu0
      %v500 = vadd.f32 0.0, %v499
      %v501 = vpop.f32.mrf.mxu0
      %502 = vdwg.mxu0
      %v503 = vmul.f32 %v500, 0.125
      %v504 = vsel %vm321, %v503, -inf
      %505 = vmax.xlane.f32.xlu0 %v504
      %v506 = vpop.xlane.xlu0 %505
      %v507 = vsub.f32 %v503, %v506
      %v508 = vmul.f32 %v507, 1.442695
      %v509 = vpow.pop %v508
      %v510 = vsel %vm321, %v509, 0.0
      %511 = vadd.xlane.f32.xlu0 %v510
      %v512 = vpop.xlane.xlu0 %511
      %v513 = vpack.c.bf16 %v509, %v509
      %v515 = vunpack.c.l.b16 %v422
      %v516 = vpack.c.b16 %v515, %v515
      %517 = vrot.lane.b32.xlu0 %v516, 64
      %v518 = vpop.permute.xlu0 %517
      %v520 = vsel %vm321, %v513, 0
      %v523 = vsel %vm335, %v518, 0
      %525 = vmatpush.bf16.msra.mxu0 0
      %526 = vmatpush.bf16.msra.mxu0 0
      %527 = vmatpush.bf16.msra.mxu0 0
      %528 = vmatpush.bf16.msra.mxu0 0
      %529 = vmatpush.bf16.msra.mxu0 0
      %530 = vmatpush.bf16.msra.mxu0 0
      %531 = vmatpush.bf16.msra.mxu0 0
      %532 = vmatpush.bf16.msra.mxu0 %v523
      %533 = vmatmul.bf16.gmra.mxu0 %v520
      %v534 = vpop.f32.mrf.mxu0
      %v535 = vadd.f32 0.0, %v534
      %v536 = vpop.f32.mrf.mxu0
      %537 = vdwg.mxu0
      %v538 = vrcp.pop %v512
      %v539 = vmul.f32 %v535, %v538
      %541 = vrot.lane.b32.xlu0 %v419, 64
      %v542 = vpop.permute.xlu0 %541
      %545 = vrot.lane.b32.xlu0 %v539, 64
      %v546 = vpop.permute.xlu0 %545
      %v548 = vsel %vm300, %v353, %v542
      %v549 = vsel %vm300, %v473, %v546
      %v550 = vpack.c.bf16 %v549, %v548
      %551 = vst [vmem:[%s294] sm:$0xff] %v550
      %s552 = smul.u32 2, %s19
      %p553 = scmp.lt.s32.totalorder %s18, 1
      %s554 = scalar_select %p553, %s18, 1
      %p555 = scmp.lt.s32.totalorder %s552, 5
      %s556 = scalar_select %p555, %s552, 5
      %s557 = smul.addr %s554, 6
      %s558 = sadd.s32 %s556, %s557
      %s559 = smul.addr %s558, 4
      %s560 = scalar_lea.vmem %s3, %s559
      // Predicated region
      $region33: #{dnabert_forward.49} parent=31 // pred_check
        %p561 = pneg %p134
      $region34: #{dnabert_forward.49} parent=31 // pred_check_branch
        %563 = sbr.rel (%p561) target = $region36
      $region35: #{dnabert_forward.49} parent=31 // pred_region
        %s564 = smul.u32 2, %s19
      $region36: #{dnabert_forward.49} parent=31 // pred_fallthru
        _
    $region32: #{dnabert_forward.49} parent=5 // pred_fallthru
      _
    %p565 = scmp.le.s32.totalorder 2, %s9
    // Predicated region
    $region37: #{dnabert_forward.49} parent=5 // pred_check
      %p566 = pneg %p565
    $region38: #{dnabert_forward.49} parent=5 // pred_check_branch
      %568 = sbr.rel (%p566) target = $region40
    $region39: #{dnabert_forward.49} parent=5 // pred_region
      %s569 = ssub.s32 %s9, 2
      // Predicated region
      $region41: #{dnabert_forward.49} parent=39 // pred_check
        %p570 = pneg %p140
      $region42: #{dnabert_forward.49} parent=39 // pred_check_branch
        %572 = sbr.rel (%p570) target = $region44
      $region43: #{dnabert_forward.49} parent=39 // pred_region
        %s573 = smul.u32 2, %s21
        %p574 = scmp.lt.s32.totalorder %s20, 1
        %s575 = scalar_select %p574, %s20, 1
        %p576 = scmp.lt.s32.totalorder %s573, 5
        %s577 = scalar_select %p576, %s573, 5
        %s578 = smul.addr %s575, 6
        %s579 = sadd.s32 %s577, %s578
        %s580 = smul.addr %s579, 4
        %s581 = scalar_lea.vmem %s3, %s580
      $region44: #{dnabert_forward.49} parent=39 // pred_fallthru
        _
    $region40: #{dnabert_forward.49} parent=5 // pred_fallthru
      _
  $region6: #{dnabert_forward.49} parent=0 // loop_footer
    %s13 = sadd.s32 1, %s9
  $region7: #{dnabert_forward.49} parent=0 // loop_footer_branch
    %8 = sbr.rel target = $region3
  $region8: #{dnabert_forward.49} parent=0 // loop_exit
    _

// kernel: dnabert_forward.48
$region0: #{dnabert_forward.48}
  #allocation0 [shape = 'u32[]', space=smem, size = 0x4, offset = 0x4, fixed_abs, tag = 'smem constant byte address 0x4 - core index']
  #allocation1 [shape = 'u32[72,128]{1,0:T(1,128)}', space=vmem, size = 0x9000, scoped, tag = 'internal scratch']
  %s0 = inlined_call_operand.vmem [shape: f32[16,768], index: 0, kind: input, shape index: {}]
  %s1 = inlined_call_operand.hbm [shape: bf16[768,2304], index: 1, kind: input, shape index: {}]
  %s2 = inlined_call_operand.vmem [shape: f32[1,2304], index: 2, kind: input, shape index: {}]
  %s3 = inlined_call_operand.vmem [shape: bf16[16,2304], index: 3, kind: output, shape index: {}]
  %s4 = sld [smem:[#allocation0]]
  $region83: #{dnabert_forward.48} parent=0
    _
  %s6 = ssub.s32 1, %s4
  %s7 = scalar_select 0, %s6, %s4
  $region1: #{dnabert_forward.48} parent=0
    #allocation2 [shape = 'u8[786432]{0}', space=vmem, size = 0xc0000, scoped, tag = 'input window, operand 1']
    #allocation3 [shape = 's32[2]{0}', space=sflag, size = 0x8, scoped, tag = 'scoped memory for dnabert_forward.48']
    #allocation4 [shape = 'u8[16384]{0}', space=vmem, size = 0x4000, scoped, tag = 'output window, operand 0']
    %8 = vsyncpa [#allocation3], 0
    %s9 = scalar_lea.sflag [#allocation3], 1
    %10 = vsyncpa %s9, 0
    loop: start=0, step=1, limit=11
    $region2: #{dnabert_forward.48} parent=1 // loop_pre_header
      _
    $region3: #{dnabert_forward.48} parent=1 // loop_header
      %s12 = sphi 0, %s16
      %p13 = scmp.ge.s32.totalorder %s12, 11
      %s19 = sphi 0, %s31
      %s20 = sphi 0, %s27
      %s21 = sphi 0, %s19
      %s22 = sphi 0, %s20
      %s23 = sphi 0, %s21
      %s24 = sphi 0, %s22
      %s34 = sphi 0, %s36
      %s37 = sphi 0, %s34
      %s38 = sphi 0, %s37
      %s54 = sphi 0, %s38
      %s60 = sphi 0, %s62
      %s63 = sphi 0, %s60
      %s64 = sphi 0, %s63
      %s80 = sphi 0, %s64
      %s86 = sphi 0, %s88
      %s89 = sphi 0, %s86
      %s90 = sphi 0, %s89
      %s106 = sphi 0, %s90
      %s114 = sphi 0, %s116
      %s117 = sphi 0, %s114
      %s118 = sphi 0, %s117
      %s134 = sphi 0, %s118
    $region4: #{dnabert_forward.48} parent=1 // loop_header_branch
      %15 = sbr.rel (%p13) target = $region8
    $region5: #{dnabert_forward.48} parent=1 // loop_body
      %s17 = ssub.s32 %s12, 1
      %s18 = ssub.s32 %s12, 2
      %s25 = sadd.s32 1, %s20
      %p26 = scmp.ge.s32.totalorder %s25, 9
      %s27 = scalar_select %p26, 0, %s25
      %s28 = sadd.s32 1, %s19
      %s29 = scalar_select %p26, %s28, %s19
      %p30 = scmp.ge.s32.totalorder %s29, 1
      %s31 = scalar_select %p30, 0, %s29
      %s32 = ssub.s32 %s19, %s31
      %p33 = scmp.eq.s32.totalorder %s32, 0
      %s35 = sadd.s32 %s34, 1
      %s36 = scalar_select %p33, %s34, %s35
      %p39 = pneg %p33
      %p40 = scmp.eq.s32.totalorder %s12, 8
      %p41 = por %p39, %p40
      %p42 = scmp.ne.s32.totalorder %s34, %s37
      %p43 = scmp.eq.s32.totalorder %s12, 0
      %p44 = por %p42, %p43
      %p45 = scmp.ne.s32.totalorder %s34, %s37
      %p46 = scmp.eq.s32.totalorder %s17, 8
      %p47 = por %p45, %p46
      %p48 = scmp.ne.s32.totalorder %s37, %s38
      %p49 = scmp.eq.s32.totalorder %s17, 0
      %p50 = por %p48, %p49
      %p51 = scmp.ne.s32.totalorder %s37, %s38
      %p52 = scmp.eq.s32.totalorder %s18, 8
      %p53 = por %p51, %p52
      %p55 = scmp.ne.s32.totalorder %s38, %s54
      %p56 = scmp.eq.s32.totalorder %s18, 0
      %p57 = por %p55, %p56
      %s58 = ssub.s32 %s20, %s27
      %p59 = scmp.eq.s32.totalorder %s58, 0
      %s61 = sadd.s32 %s60, 1
      %s62 = scalar_select %p59, %s60, %s61
      %p65 = pneg %p59
      %p66 = scmp.eq.s32.totalorder %s12, 8
      %p67 = por %p65, %p66
      %p68 = scmp.ne.s32.totalorder %s60, %s63
      %p69 = scmp.eq.s32.totalorder %s12, 0
      %p70 = por %p68, %p69
      %p71 = scmp.ne.s32.totalorder %s60, %s63
      %p72 = scmp.eq.s32.totalorder %s17, 8
      %p73 = por %p71, %p72
      %p74 = scmp.ne.s32.totalorder %s63, %s64
      %p75 = scmp.eq.s32.totalorder %s17, 0
      %p76 = por %p74, %p75
      %p77 = scmp.ne.s32.totalorder %s63, %s64
      %p78 = scmp.eq.s32.totalorder %s18, 8
      %p79 = por %p77, %p78
      %p81 = scmp.ne.s32.totalorder %s64, %s80
      %p82 = scmp.eq.s32.totalorder %s18, 0
      %p83 = por %p81, %p82
      %s84 = ssub.s32 %s20, %s27
      %p85 = scmp.eq.s32.totalorder %s84, 0
      %s87 = sadd.s32 %s86, 1
      %s88 = scalar_select %p85, %s86, %s87
      %p91 = pneg %p85
      %p92 = scmp.eq.s32.totalorder %s12, 8
      %p93 = por %p91, %p92
      %p94 = scmp.ne.s32.totalorder %s86, %s89
      %p95 = scmp.eq.s32.totalorder %s12, 0
      %p96 = por %p94, %p95
      %p97 = scmp.ne.s32.totalorder %s86, %s89
      %p98 = scmp.eq.s32.totalorder %s17, 8
      %p99 = por %p97, %p98
      %p100 = scmp.ne.s32.totalorder %s89, %s90
      %p101 = scmp.eq.s32.totalorder %s17, 0
      %p102 = por %p100, %p101
      %p103 = scmp.ne.s32.totalorder %s89, %s90
      %p104 = scmp.eq.s32.totalorder %s18, 8
      %p105 = por %p103, %p104
      %p107 = scmp.ne.s32.totalorder %s90, %s106
      %p108 = scmp.eq.s32.totalorder %s18, 0
      %p109 = por %p107, %p108
      %s110 = ssub.s32 %s19, %s31
      %s111 = ssub.s32 %s20, %s27
      %s112 = sor.u32 %s110, %s111
      %p113 = scmp.eq.s32.totalorder %s112, 0
      %s115 = sadd.s32 %s114, 1
      %s116 = scalar_select %p113, %s114, %s115
      %p119 = pneg %p113
      %p120 = scmp.eq.s32.totalorder %s12, 8
      %p121 = por %p119, %p120
      %p122 = scmp.ne.s32.totalorder %s114, %s117
      %p123 = scmp.eq.s32.totalorder %s12, 0
      %p124 = por %p122, %p123
      %p125 = scmp.ne.s32.totalorder %s114, %s117
      %p126 = scmp.eq.s32.totalorder %s17, 8
      %p127 = por %p125, %p126
      %p128 = scmp.ne.s32.totalorder %s117, %s118
      %p129 = scmp.eq.s32.totalorder %s17, 0
      %p130 = por %p128, %p129
      %p131 = scmp.ne.s32.totalorder %s117, %s118
      %p132 = scmp.eq.s32.totalorder %s18, 8
      %p133 = por %p131, %p132
      %p135 = scmp.ne.s32.totalorder %s118, %s134
      %p136 = scmp.eq.s32.totalorder %s18, 0
      %p137 = por %p135, %p136
      %p138 = scmp.le.s32.totalorder 1, %s12
      %p139 = scmp.lt.s32.totalorder %s12, 10
      %p140 = pnand %p138, %p139
      %p141 = pneg %p140
      // Predicated region
      $region9: #{dnabert_forward.48} parent=5 // pred_check
        _
      $region10: #{dnabert_forward.48} parent=5 // pred_check_branch
        %143 = sbr.rel (%p140) target = $region12
      $region11: #{dnabert_forward.48} parent=5 // pred_region
        %s144 = ssub.s32 %s12, 1
        // Predicated region
        $region13: #{dnabert_forward.48} parent=11 // pred_check
          %p145 = pneg %p50
        $region14: #{dnabert_forward.48} parent=11 // pred_check_branch
          %147 = sbr.rel (%p145) target = $region16
        $region15: #{dnabert_forward.48} parent=11 // pred_region
          %s148 = smul.u32 2, %s21
          %p149 = scmp.lt.s32.totalorder %s148, 1
          %s150 = scalar_select %p149, %s148, 1
          %s151 = smul.addr %s150, 6
          %s152 = smul.addr %s151, 8
          %s153 = scalar_lea.vmem %s0, %s152
          %s154 = smul.u32 2, %s21
        $region16: #{dnabert_forward.48} parent=11 // pred_fallthru
          _
      $region12: #{dnabert_forward.48} parent=5 // pred_fallthru
        _
      %p155 = scmp.lt.s32.totalorder %s12, 9
      // Predicated region
      $region17: #{dnabert_forward.48} parent=5 // pred_check
        %p156 = pneg %p155
      $region18: #{dnabert_forward.48} parent=5 // pred_check_branch
        %158 = sbr.rel (%p156) target = $region20
      $region19: #{dnabert_forward.48} parent=5 // pred_region
        // Predicated region
        $region21: #{dnabert_forward.48} parent=19 // pred_check
          %p159 = pneg %p70
        $region22: #{dnabert_forward.48} parent=19 // pred_check_branch
          %161 = sbr.rel (%p159) target = $region24
        $region23: #{dnabert_forward.48} parent=19 // pred_region
          %s162 = sand.u32 %s60, 1
          %s163 = scalar_lea.sflag [#allocation3], %s162
          %s164 = sand.u32 %s60, 1
          %s165 = smul.addr %s164, 768
          %s166 = scalar_lea.vmem [#allocation2], %s165
          %s167 = smul.u32 2, %s20
          %169 = vsyncadd %s163, 0
          %s170 = smul.addr %s167, 4
          %s171 = scalar_lea.hbm %s1, %s170
          %s172 = sshll.u32 %s171, 4
          %s173 = int_to_ptr.hbm [resolvable:$true] %s172
          %s174 = sshll.u32 %s166, 4
          %s175 = int_to_ptr.vmem [resolvable:$true] %s174
          %180 = dma.hbm_to_vmem [thread:$0]  %s173, 12288, %s175, %s163, 1152, 128, 8
        $region24: #{dnabert_forward.48} parent=19 // pred_fallthru
          _
        // Predicated region
        $region25: #{dnabert_forward.48} parent=19 // pred_check
          %p181 = pneg %p96
        $region26: #{dnabert_forward.48} parent=19 // pred_check_branch
          %183 = sbr.rel (%p181) target = $region28
        $region27: #{dnabert_forward.48} parent=19 // pred_region
          %s184 = smul.u32 2, %s20
          %p185 = scmp.lt.s32.totalorder %s184, 17
          %s186 = scalar_select %p185, %s184, 17
          %s187 = scalar_lea.vmem %s2, %s186
          %s188 = smul.u32 2, %s20
        $region28: #{dnabert_forward.48} parent=19 // pred_fallthru
          _
      $region20: #{dnabert_forward.48} parent=5 // pred_fallthru
        _
      %p189 = scmp.le.s32.totalorder 1, %s12
      %p190 = scmp.lt.s32.totalorder %s12, 10
      %p191 = pnand %p189, %p190
      %p192 = pneg %p191
      // Predicated region
      $region29: #{dnabert_forward.48} parent=5 // pred_check
        _
      $region30: #{dnabert_forward.48} parent=5 // pred_check_branch
        %194 = sbr.rel (%p191) target = $region32
      $region31: #{dnabert_forward.48} parent=5 // pred_region
        %s195 = ssub.s32 %s12, 1
        %s196 = sand.u32 %s63, 1
        %s197 = scalar_lea.sflag [#allocation3], %s196
        %s198 = sand.u32 %s63, 1
        %s199 = smul.addr %s198, 768
        %s200 = scalar_lea.vmem [#allocation2], %s199
        // Predicated region
        $region33: #{dnabert_forward.48} parent=31 // pred_check
          %p201 = pneg %p76
        $region34: #{dnabert_forward.48} parent=31 // pred_check_branch
          %203 = sbr.rel (%p201) target = $region36
        $region35: #{dnabert_forward.48} parent=31 // pred_region
          %205 = dma.done %s197, 12288
        $region36: #{dnabert_forward.48} parent=31 // pred_fallthru
          _
        %s206 = smul.u32 2, %s21
        %p207 = scmp.lt.s32.totalorder %s206, 1
        %s208 = scalar_select %p207, %s206, 1
        %s209 = smul.addr %s208, 6
        %s210 = smul.addr %s209, 8
        %s211 = scalar_lea.vmem %s0, %s210
        %p212 = pneg %p50
        %p213 = pneg %p47
        %s214 = sand.u32 %s63, 1
        %s215 = scalar_lea.sflag [#allocation3], %s214
        %s216 = sand.u32 %s63, 1
        %s217 = smul.addr %s216, 768
        %s218 = scalar_lea.vmem [#allocation2], %s217
        %p219 = pneg %p76
        %p220 = pneg %p73
        %s221 = smul.u32 2, %s22
        %p222 = scmp.lt.s32.totalorder %s221, 17
        %s223 = scalar_select %p222, %s221, 17
        %s224 = scalar_lea.vmem %s2, %s223
        %p225 = pneg %p102
        %p226 = pneg %p99
        %p227 = pneg %p130
        %p228 = pneg %p127
        %s229 = sand.u32 %s117, 1
        %s230 = sand.u32 %s117, 1
        %s231 = smul.addr %s230, 16
        %s232 = scalar_lea.vmem [#allocation4], %s231
        %s233 = smul.u32 2, %s21
        %p234 = scmp.lt.s32.totalorder %s233, 1
        %s235 = scalar_select %p234, %s233, 1
        %s236 = smul.addr %s235, 6
        %s237 = smul.addr %s236, 8
        %s238 = scalar_lea.vmem %s0, %s237
        %s239 = smul.u32 2, %s21
        %s240 = smul.u32 2, %s22
        %s241 = smul.u32 2, %s22
        %p242 = scmp.lt.s32.totalorder %s241, 17
        %s243 = scalar_select %p242, %s241, 17
        %s244 = scalar_lea.vmem %s2, %s243
        %s245 = smul.u32 2, %s22
        %s246 = smul.u32 2, %s21
        %s247 = smul.u32 2, %s22
        %v248 = vld [vmem:[%s238] sm:$0xff]
        %v249 = vld [vmem:[%s238 + $0x8] sm:$0xff]
        %v250 = vld [vmem:[%s238 + $0x10] sm:$0xff]
        %v251 = vld [vmem:[%s238 + $0x18] sm:$0xff]
        %v252 = vld [vmem:[%s238 + $0x20] sm:$0xff]
        %v253 = vld [vmem:[%s238 + $0x28] sm:$0xff]
        %v254 = vld [vmem:[%s238 + $0x30] sm:$0xff]
        %v255 = vld [vmem:[%s238 + $0x38] sm:$0xff]
        %v256 = vld [vmem:[%s238 + $0x40] sm:$0xff]
        %v257 = vld [vmem:[%s238 + $0x48] sm:$0xff]
        %v258 = vld [vmem:[%s238 + $0x50] sm:$0xff]
        %v259 = vld [vmem:[%s238 + $0x58] sm:$0xff]
        %v260 = vpack.c.bf16 %v254, %v248
        %v261 = vpack.c.bf16 %v255, %v249
        %v262 = vpack.c.bf16 %v256, %v250
        %v263 = vpack.c.bf16 %v257, %v251
        %v264 = vpack.c.bf16 %v258, %v252
        %v265 = vpack.c.bf16 %v259, %v253
        %v266 = vld [vmem:[%s200] sm:$0xff]
        %v267 = vld [vmem:[%s200 + $0x8] sm:$0xff]
        %v268 = vld [vmem:[%s200 + $0x10] sm:$0xff]
        %v269 = vld [vmem:[%s200 + $0x18] sm:$0xff]
        %v270 = vld [vmem:[%s200 + $0x20] sm:$0xff]
        %v271 = vld [vmem:[%s200 + $0x28] sm:$0xff]
        %v272 = vld [vmem:[%s200 + $0x30] sm:$0xff]
        %v273 = vld [vmem:[%s200 + $0x38] sm:$0xff]
        %v274 = vld [vmem:[%s200 + $0x40] sm:$0xff]
        %v275 = vld [vmem:[%s200 + $0x48] sm:$0xff]
        %v276 = vld [vmem:[%s200 + $0x50] sm:$0xff]
        %v277 = vld [vmem:[%s200 + $0x58] sm:$0xff]
        %v278 = vld [vmem:[%s200 + $0x60] sm:$0xff]
        %v279 = vld [vmem:[%s200 + $0x68] sm:$0xff]
        %v280 = vld [vmem:[%s200 + $0x70] sm:$0xff]
        %v281 = vld [vmem:[%s200 + $0x78] sm:$0xff]
        %v282 = vld [vmem:[%s200 + $0x80] sm:$0xff]
        %v283 = vld [vmem:[%s200 + $0x88] sm:$0xff]
        %v284 = vld [vmem:[%s200 + $0x90] sm:$0xff]
        %v285 = vld [vmem:[%s200 + $0x98] sm:$0xff]
        %v286 = vld [vmem:[%s200 + $0xa0] sm:$0xff]
        %v287 = vld [vmem:[%s200 + $0xa8] sm:$0xff]
        %v288 = vld [vmem:[%s200 + $0xb0] sm:$0xff]
        %v289 = vld [vmem:[%s200 + $0xb8] sm:$0xff]
        %v290 = vld [vmem:[%s200 + $0xc0] sm:$0xff]
        %v291 = vld [vmem:[%s200 + $0xc8] sm:$0xff]
        %v292 = vld [vmem:[%s200 + $0xd0] sm:$0xff]
        %v293 = vld [vmem:[%s200 + $0xd8] sm:$0xff]
        %v294 = vld [vmem:[%s200 + $0xe0] sm:$0xff]
        %v295 = vld [vmem:[%s200 + $0xe8] sm:$0xff]
        %v296 = vld [vmem:[%s200 + $0xf0] sm:$0xff]
        %v297 = vld [vmem:[%s200 + $0xf8] sm:$0xff]
        %v298 = vld [vmem:[%s200 + $0x100] sm:$0xff]
        %v299 = vld [vmem:[%s200 + $0x108] sm:$0xff]
        %v300 = vld [vmem:[%s200 + $0x110] sm:$0xff]
        %v301 = vld [vmem:[%s200 + $0x118] sm:$0xff]
        %v302 = vld [vmem:[%s200 + $0x120] sm:$0xff]
        %v303 = vld [vmem:[%s200 + $0x128] sm:$0xff]
        %v304 = vld [vmem:[%s200 + $0x130] sm:$0xff]
        %v305 = vld [vmem:[%s200 + $0x138] sm:$0xff]
        %v306 = vld [vmem:[%s200 + $0x140] sm:$0xff]
        %v307 = vld [vmem:[%s200 + $0x148] sm:$0xff]
        %v308 = vld [vmem:[%s200 + $0x150] sm:$0xff]
        %v309 = vld [vmem:[%s200 + $0x158] sm:$0xff]
        %v310 = vld [vmem:[%s200 + $0x160] sm:$0xff]
        %v311 = vld [vmem:[%s200 + $0x168] sm:$0xff]
        %v312 = vld [vmem:[%s200 + $0x170] sm:$0xff]
        %v313 = vld [vmem:[%s200 + $0x178] sm:$0xff]
        %v314 = vld [vmem:[%s200 + $0x180] sm:$0xff]
        %v315 = vld [vmem:[%s200 + $0x188] sm:$0xff]
        %v316 = vld [vmem:[%s200 + $0x190] sm:$0xff]
        %v317 = vld [vmem:[%s200 + $0x198] sm:$0xff]
        %v318 = vld [vmem:[%s200 + $0x1a0] sm:$0xff]
        %v319 = vld [vmem:[%s200 + $0x1a8] sm:$0xff]
        %v320 = vld [vmem:[%s200 + $0x1b0] sm:$0xff]
        %v321 = vld [vmem:[%s200 + $0x1b8] sm:$0xff]
        %v322 = vld [vmem:[%s200 + $0x1c0] sm:$0xff]
        %v323 = vld [vmem:[%s200 + $0x1c8] sm:$0xff]
        %v324 = vld [vmem:[%s200 + $0x1d0] sm:$0xff]
        %v325 = vld [vmem:[%s200 + $0x1d8] sm:$0xff]
        %v326 = vld [vmem:[%s200 + $0x1e0] sm:$0xff]
        %v327 = vld [vmem:[%s200 + $0x1e8] sm:$0xff]
        %v328 = vld [vmem:[%s200 + $0x1f0] sm:$0xff]
        %v329 = vld [vmem:[%s200 + $0x1f8] sm:$0xff]
        %v330 = vld [vmem:[%s200 + $0x200] sm:$0xff]
        %v331 = vld [vmem:[%s200 + $0x208] sm:$0xff]
        %v332 = vld [vmem:[%s200 + $0x210] sm:$0xff]
        %v333 = vld [vmem:[%s200 + $0x218] sm:$0xff]
        %v334 = vld [vmem:[%s200 + $0x220] sm:$0xff]
        %v335 = vld [vmem:[%s200 + $0x228] sm:$0xff]
        %v336 = vld [vmem:[%s200 + $0x230] sm:$0xff]
        %v337 = vld [vmem:[%s200 + $0x238] sm:$0xff]
        %v338 = vld [vmem:[%s200 + $0x240] sm:$0xff]
        %v339 = vld [vmem:[%s200 + $0x248] sm:$0xff]
        %v340 = vld [vmem:[%s200 + $0x250] sm:$0xff]
        %v341 = vld [vmem:[%s200 + $0x258] sm:$0xff]
        %v342 = vld [vmem:[%s200 + $0x260] sm:$0xff]
        %v343 = vld [vmem:[%s200 + $0x268] sm:$0xff]
        %v344 = vld [vmem:[%s200 + $0x270] sm:$0xff]
        %v345 = vld [vmem:[%s200 + $0x278] sm:$0xff]
        %v346 = vld [vmem:[%s200 + $0x280] sm:$0xff]
        %v347 = vld [vmem:[%s200 + $0x288] sm:$0xff]
        %v348 = vld [vmem:[%s200 + $0x290] sm:$0xff]
        %v349 = vld [vmem:[%s200 + $0x298] sm:$0xff]
        %v350 = vld [vmem:[%s200 + $0x2a0] sm:$0xff]
        %v351 = vld [vmem:[%s200 + $0x2a8] sm:$0xff]
        %v352 = vld [vmem:[%s200 + $0x2b0] sm:$0xff]
        %v353 = vld [vmem:[%s200 + $0x2b8] sm:$0xff]
        %v354 = vld [vmem:[%s200 + $0x2c0] sm:$0xff]
        %v355 = vld [vmem:[%s200 + $0x2c8] sm:$0xff]
        %v356 = vld [vmem:[%s200 + $0x2d0] sm:$0xff]
        %v357 = vld [vmem:[%s200 + $0x2d8] sm:$0xff]
        %v358 = vld [vmem:[%s200 + $0x2e0] sm:$0xff]
        %v359 = vld [vmem:[%s200 + $0x2e8] sm:$0xff]
        %v360 = vld [vmem:[%s200 + $0x2f0] sm:$0xff]
        %v361 = vld [vmem:[%s200 + $0x2f8] sm:$0xff]
        %v362 = vld [vmem:[%s244] sm:$0x3]
        %v364 = vperm.slane %v362, 0
        %v365 = vperm.slane %v362, 1
        %v464 = vunpack.c.l.b16 %v266
        %v465 = vunpack.c.h.b16 %v266
        %v466 = vunpack.c.l.b16 %v267
        %v467 = vunpack.c.h.b16 %v267
        %v468 = vunpack.c.l.b16 %v268
        %v469 = vunpack.c.h.b16 %v268
        %v470 = vunpack.c.l.b16 %v269
        %v471 = vunpack.c.h.b16 %v269
        %v472 = vunpack.c.l.b16 %v270
        %v473 = vunpack.c.h.b16 %v270
        %v474 = vunpack.c.l.b16 %v271
        %v475 = vunpack.c.h.b16 %v271
        %v476 = vunpack.c.l.b16 %v272
        %v477 = vunpack.c.h.b16 %v272
        %v478 = vunpack.c.l.b16 %v273
        %v479 = vunpack.c.h.b16 %v273
        %v480 = vunpack.c.l.b16 %v274
        %v481 = vunpack.c.h.b16 %v274
        %v482 = vunpack.c.l.b16 %v275
        %v483 = vunpack.c.h.b16 %v275
        %v484 = vunpack.c.l.b16 %v276
        %v485 = vunpack.c.h.b16 %v276
        %v486 = vunpack.c.l.b16 %v277
        %v487 = vunpack.c.h.b16 %v277
        %v488 = vunpack.c.l.b16 %v278
        %v489 = vunpack.c.h.b16 %v278
        %v490 = vunpack.c.l.b16 %v279
        %v491 = vunpack.c.h.b16 %v279
        %v492 = vunpack.c.l.b16 %v280
        %v493 = vunpack.c.h.b16 %v280
        %v494 = vunpack.c.l.b16 %v281
        %v495 = vunpack.c.h.b16 %v281
        %v496 = vunpack.c.l.b16 %v282
        %v497 = vunpack.c.h.b16 %v282
        %v498 = vunpack.c.l.b16 %v283
        %v499 = vunpack.c.h.b16 %v283
        %v500 = vunpack.c.l.b16 %v284
        %v501 = vunpack.c.h.b16 %v284
        %v502 = vunpack.c.l.b16 %v285
        %v503 = vunpack.c.h.b16 %v285
        %v504 = vunpack.c.l.b16 %v286
        %v505 = vunpack.c.h.b16 %v286
        %v506 = vunpack.c.l.b16 %v287
        %v507 = vunpack.c.h.b16 %v287
        %v508 = vunpack.c.l.b16 %v288
        %v509 = vunpack.c.h.b16 %v288
        %v510 = vunpack.c.l.b16 %v289
        %v511 = vunpack.c.h.b16 %v289
        %v512 = vunpack.c.l.b16 %v290
        %v513 = vunpack.c.h.b16 %v290
        %v514 = vunpack.c.l.b16 %v291
        %v515 = vunpack.c.h.b16 %v291
        %v516 = vunpack.c.l.b16 %v292
        %v517 = vunpack.c.h.b16 %v292
        %v518 = vunpack.c.l.b16 %v293
        %v519 = vunpack.c.h.b16 %v293
        %v520 = vunpack.c.l.b16 %v294
        %v521 = vunpack.c.h.b16 %v294
        %v522 = vunpack.c.l.b16 %v295
        %v523 = vunpack.c.h.b16 %v295
        %v524 = vunpack.c.l.b16 %v296
        %v525 = vunpack.c.h.b16 %v296
        %v526 = vunpack.c.l.b16 %v297
        %v527 = vunpack.c.h.b16 %v297
        %v528 = vunpack.c.l.b16 %v298
        %v529 = vunpack.c.h.b16 %v298
        %v530 = vunpack.c.l.b16 %v299
        %v531 = vunpack.c.h.b16 %v299
        %v532 = vunpack.c.l.b16 %v300
        %v533 = vunpack.c.h.b16 %v300
        %v534 = vunpack.c.l.b16 %v301
        %v535 = vunpack.c.h.b16 %v301
        %v536 = vunpack.c.l.b16 %v302
        %v537 = vunpack.c.h.b16 %v302
        %v538 = vunpack.c.l.b16 %v303
        %v539 = vunpack.c.h.b16 %v303
        %v540 = vunpack.c.l.b16 %v304
        %v541 = vunpack.c.h.b16 %v304
        %v542 = vunpack.c.l.b16 %v305
        %v543 = vunpack.c.h.b16 %v305
        %v544 = vunpack.c.l.b16 %v306
        %v545 = vunpack.c.h.b16 %v306
        %v546 = vunpack.c.l.b16 %v307
        %v547 = vunpack.c.h.b16 %v307
        %v548 = vunpack.c.l.b16 %v308
        %v549 = vunpack.c.h.b16 %v308
        %v550 = vunpack.c.l.b16 %v309
        %v551 = vunpack.c.h.b16 %v309
        %v552 = vunpack.c.l.b16 %v310
        %v553 = vunpack.c.h.b16 %v310
        %v554 = vunpack.c.l.b16 %v311
        %v555 = vunpack.c.h.b16 %v311
        %v556 = vunpack.c.l.b16 %v312
        %v557 = vunpack.c.h.b16 %v312
        %v558 = vunpack.c.l.b16 %v313
        %v559 = vunpack.c.h.b16 %v313
        %v560 = vunpack.c.l.b16 %v314
        %v561 = vunpack.c.h.b16 %v314
        %v562 = vunpack.c.l.b16 %v315
        %v563 = vunpack.c.h.b16 %v315
        %v564 = vunpack.c.l.b16 %v316
        %v565 = vunpack.c.h.b16 %v316
        %v566 = vunpack.c.l.b16 %v317
        %v567 = vunpack.c.h.b16 %v317
        %v568 = vunpack.c.l.b16 %v318
        %v569 = vunpack.c.h.b16 %v318
        %v570 = vunpack.c.l.b16 %v319
        %v571 = vunpack.c.h.b16 %v319
        %v572 = vunpack.c.l.b16 %v320
        %v573 = vunpack.c.h.b16 %v320
        %v574 = vunpack.c.l.b16 %v321
        %v575 = vunpack.c.h.b16 %v321
        %v576 = vunpack.c.l.b16 %v322
        %v577 = vunpack.c.h.b16 %v322
        %v578 = vunpack.c.l.b16 %v323
        %v579 = vunpack.c.h.b16 %v323
        %v580 = vunpack.c.l.b16 %v324
        %v581 = vunpack.c.h.b16 %v324
        %v582 = vunpack.c.l.b16 %v325
        %v583 = vunpack.c.h.b16 %v325
        %v584 = vunpack.c.l.b16 %v326
        %v585 = vunpack.c.h.b16 %v326
        %v586 = vunpack.c.l.b16 %v327
        %v587 = vunpack.c.h.b16 %v327
        %v588 = vunpack.c.l.b16 %v328
        %v589 = vunpack.c.h.b16 %v328
        %v590 = vunpack.c.l.b16 %v329
        %v591 = vunpack.c.h.b16 %v329
        %v592 = vunpack.c.l.b16 %v330
        %v593 = vunpack.c.h.b16 %v330
        %v594 = vunpack.c.l.b16 %v331
        %v595 = vunpack.c.h.b16 %v331
        %v596 = vunpack.c.l.b16 %v332
        %v597 = vunpack.c.h.b16 %v332
        %v598 = vunpack.c.l.b16 %v333
        %v599 = vunpack.c.h.b16 %v333
        %v600 = vunpack.c.l.b16 %v334
        %v601 = vunpack.c.h.b16 %v334
        %v602 = vunpack.c.l.b16 %v335
        %v603 = vunpack.c.h.b16 %v335
        %v604 = vunpack.c.l.b16 %v336
        %v605 = vunpack.c.h.b16 %v336
        %v606 = vunpack.c.l.b16 %v337
        %v607 = vunpack.c.h.b16 %v337
        %v608 = vunpack.c.l.b16 %v338
        %v609 = vunpack.c.h.b16 %v338
        %v610 = vunpack.c.l.b16 %v339
        %v611 = vunpack.c.h.b16 %v339
        %v612 = vunpack.c.l.b16 %v340
        %v613 = vunpack.c.h.b16 %v340
        %v614 = vunpack.c.l.b16 %v341
        %v615 = vunpack.c.h.b16 %v341
        %v616 = vunpack.c.l.b16 %v342
        %v617 = vunpack.c.h.b16 %v342
        %v618 = vunpack.c.l.b16 %v343
        %v619 = vunpack.c.h.b16 %v343
        %v620 = vunpack.c.l.b16 %v344
        %v621 = vunpack.c.h.b16 %v344
        %v622 = vunpack.c.l.b16 %v345
        %v623 = vunpack.c.h.b16 %v345
        %v624 = vunpack.c.l.b16 %v346
        %v625 = vunpack.c.h.b16 %v346
        %v626 = vunpack.c.l.b16 %v347
        %v627 = vunpack.c.h.b16 %v347
        %v628 = vunpack.c.l.b16 %v348
        %v629 = vunpack.c.h.b16 %v348
        %v630 = vunpack.c.l.b16 %v349
        %v631 = vunpack.c.h.b16 %v349
        %v632 = vunpack.c.l.b16 %v350
        %v633 = vunpack.c.h.b16 %v350
        %v634 = vunpack.c.l.b16 %v351
        %v635 = vunpack.c.h.b16 %v351
        %v636 = vunpack.c.l.b16 %v352
        %v637 = vunpack.c.h.b16 %v352
        %v638 = vunpack.c.l.b16 %v353
        %v639 = vunpack.c.h.b16 %v353
        %v640 = vunpack.c.l.b16 %v354
        %v641 = vunpack.c.h.b16 %v354
        %v642 = vunpack.c.l.b16 %v355
        %v643 = vunpack.c.h.b16 %v355
        %v644 = vunpack.c.l.b16 %v356
        %v645 = vunpack.c.h.b16 %v356
        %v646 = vunpack.c.l.b16 %v357
        %v647 = vunpack.c.h.b16 %v357
        %v648 = vunpack.c.l.b16 %v358
        %v649 = vunpack.c.h.b16 %v358
        %v650 = vunpack.c.l.b16 %v359
        %v651 = vunpack.c.h.b16 %v359
        %v652 = vunpack.c.l.b16 %v360
        %v653 = vunpack.c.h.b16 %v360
        %v654 = vunpack.c.l.b16 %v361
        %v655 = vunpack.c.h.b16 %v361
        %v656 = vpack.c.b16 %v466, %v464
        %v657 = vpack.c.b16 %v467, %v465
        %v658 = vpack.c.b16 %v470, %v468
        %v659 = vpack.c.b16 %v471, %v469
        %v660 = vpack.c.b16 %v474, %v472
        %v661 = vpack.c.b16 %v475, %v473
        %v662 = vpack.c.b16 %v478, %v476
        %v663 = vpack.c.b16 %v479, %v477
        %v664 = vpack.c.b16 %v482, %v480
        %v665 = vpack.c.b16 %v483, %v481
        %v666 = vpack.c.b16 %v486, %v484
        %v667 = vpack.c.b16 %v487, %v485
        %v668 = vpack.c.b16 %v490, %v488
        %v669 = vpack.c.b16 %v491, %v489
        %v670 = vpack.c.b16 %v494, %v492
        %v671 = vpack.c.b16 %v495, %v493
        %v672 = vpack.c.b16 %v498, %v496
        %v673 = vpack.c.b16 %v499, %v497
        %v674 = vpack.c.b16 %v502, %v500
        %v675 = vpack.c.b16 %v503, %v501
        %v676 = vpack.c.b16 %v506, %v504
        %v677 = vpack.c.b16 %v507, %v505
        %v678 = vpack.c.b16 %v510, %v508
        %v679 = vpack.c.b16 %v511, %v509
        %v680 = vpack.c.b16 %v514, %v512
        %v681 = vpack.c.b16 %v515, %v513
        %v682 = vpack.c.b16 %v518, %v516
        %v683 = vpack.c.b16 %v519, %v517
        %v684 = vpack.c.b16 %v522, %v520
        %v685 = vpack.c.b16 %v523, %v521
        %v686 = vpack.c.b16 %v526, %v524
        %v687 = vpack.c.b16 %v527, %v525
        %v688 = vpack.c.b16 %v530, %v528
        %v689 = vpack.c.b16 %v531, %v529
        %v690 = vpack.c.b16 %v534, %v532
        %v691 = vpack.c.b16 %v535, %v533
        %v692 = vpack.c.b16 %v538, %v536
        %v693 = vpack.c.b16 %v539, %v537
        %v694 = vpack.c.b16 %v542, %v540
        %v695 = vpack.c.b16 %v543, %v541
        %v696 = vpack.c.b16 %v546, %v544
        %v697 = vpack.c.b16 %v547, %v545
        %v698 = vpack.c.b16 %v550, %v548
        %v699 = vpack.c.b16 %v551, %v549
        %v700 = vpack.c.b16 %v554, %v552
        %v701 = vpack.c.b16 %v555, %v553
        %v702 = vpack.c.b16 %v558, %v556
        %v703 = vpack.c.b16 %v559, %v557
        %v704 = vpack.c.b16 %v562, %v560
        %v705 = vpack.c.b16 %v563, %v561
        %v706 = vpack.c.b16 %v566, %v564
        %v707 = vpack.c.b16 %v567, %v565
        %v708 = vpack.c.b16 %v570, %v568
        %v709 = vpack.c.b16 %v571, %v569
        %v710 = vpack.c.b16 %v574, %v572
        %v711 = vpack.c.b16 %v575, %v573
        %v712 = vpack.c.b16 %v578, %v576
        %v713 = vpack.c.b16 %v579, %v577
        %v714 = vpack.c.b16 %v582, %v580
        %v715 = vpack.c.b16 %v583, %v581
        %v716 = vpack.c.b16 %v586, %v584
        %v717 = vpack.c.b16 %v587, %v585
        %v718 = vpack.c.b16 %v590, %v588
        %v719 = vpack.c.b16 %v591, %v589
        %v720 = vpack.c.b16 %v594, %v592
        %v721 = vpack.c.b16 %v595, %v593
        %v722 = vpack.c.b16 %v598, %v596
        %v723 = vpack.c.b16 %v599, %v597
        %v724 = vpack.c.b16 %v602, %v600
        %v725 = vpack.c.b16 %v603, %v601
        %v726 = vpack.c.b16 %v606, %v604
        %v727 = vpack.c.b16 %v607, %v605
        %v728 = vpack.c.b16 %v610, %v608
        %v729 = vpack.c.b16 %v611, %v609
        %v730 = vpack.c.b16 %v614, %v612
        %v731 = vpack.c.b16 %v615, %v613
        %v732 = vpack.c.b16 %v618, %v616
        %v733 = vpack.c.b16 %v619, %v617
        %v734 = vpack.c.b16 %v622, %v620
        %v735 = vpack.c.b16 %v623, %v621
        %v736 = vpack.c.b16 %v626, %v624
        %v737 = vpack.c.b16 %v627, %v625
        %v738 = vpack.c.b16 %v630, %v628
        %v739 = vpack.c.b16 %v631, %v629
        %v740 = vpack.c.b16 %v634, %v632
        %v741 = vpack.c.b16 %v635, %v633
        %v742 = vpack.c.b16 %v638, %v636
        %v743 = vpack.c.b16 %v639, %v637
        %v744 = vpack.c.b16 %v642, %v640
        %v745 = vpack.c.b16 %v643, %v641
        %v746 = vpack.c.b16 %v646, %v644
        %v747 = vpack.c.b16 %v647, %v645
        %v748 = vpack.c.b16 %v650, %v648
        %v749 = vpack.c.b16 %v651, %v649
        %v750 = vpack.c.b16 %v654, %v652
        %v751 = vpack.c.b16 %v655, %v653
        %848 = vmatpush.bf16.msra.mxu0 %v670
        %849 = vmatpush.bf16.msra.mxu0 %v668
        %850 = vmatpush.bf16.msra.mxu0 %v666
        %851 = vmatpush.bf16.msra.mxu0 %v664
        %852 = vmatpush.bf16.msra.mxu0 %v662
        %853 = vmatpush.bf16.msra.mxu0 %v660
        %854 = vmatpush.bf16.msra.mxu0 %v658
        %855 = vmatpush.bf16.msra.mxu0 %v656
        %856 = vmatmul.bf16.gmra.mxu0 %v260
        %v857 = vpop.f32.mrf.mxu0
        %v858 = vadd.f32 %v364, %v857
        %v859 = vpop.f32.mrf.mxu0
        %v860 = vadd.f32 %v364, %v859
        %861 = vdwg.mxu0
        %862 = vmatpush.bf16.msra.mxu0 %v686
        %863 = vmatpush.bf16.msra.mxu0 %v684
        %864 = vmatpush.bf16.msra.mxu0 %v682
        %865 = vmatpush.bf16.msra.mxu0 %v680
        %866 = vmatpush.bf16.msra.mxu0 %v678
        %867 = vmatpush.bf16.msra.mxu0 %v676
        %868 = vmatpush.bf16.msra.mxu0 %v674
        %869 = vmatpush.bf16.msra.mxu0 %v672
        %870 = vmatmul.bf16.gmra.mxu0 %v261
        %v871 = vpop.f32.mrf.mxu0
        %v872 = vadd.f32 %v858, %v871
        %v873 = vpop.f32.mrf.mxu0
        %v874 = vadd.f32 %v860, %v873
        %875 = vdwg.mxu0
        %876 = vmatpush.bf16.msra.mxu0 %v702
        %877 = vmatpush.bf16.msra.mxu0 %v700
        %878 = vmatpush.bf16.msra.mxu0 %v698
        %879 = vmatpush.bf16.msra.mxu0 %v696
        %880 = vmatpush.bf16.msra.mxu0 %v694
        %881 = vmatpush.bf16.msra.mxu0 %v692
        %882 = vmatpush.bf16.msra.mxu0 %v690
        %883 = vmatpush.bf16.msra.mxu0 %v688
        %884 = vmatmul.bf16.gmra.mxu0 %v262
        %v885 = vpop.f32.mrf.mxu0
        %v886 = vadd.f32 %v872, %v885
        %v887 = vpop.f32.mrf.mxu0
        %v888 = vadd.f32 %v874, %v887
        %889 = vdwg.mxu0
        %890 = vmatpush.bf16.msra.mxu0 %v718
        %891 = vmatpush.bf16.msra.mxu0 %v716
        %892 = vmatpush.bf16.msra.mxu0 %v714
        %893 = vmatpush.bf16.msra.mxu0 %v712
        %894 = vmatpush.bf16.msra.mxu0 %v710
        %895 = vmatpush.bf16.msra.mxu0 %v708
        %896 = vmatpush.bf16.msra.mxu0 %v706
        %897 = vmatpush.bf16.msra.mxu0 %v704
        %898 = vmatmul.bf16.gmra.mxu0 %v263
        %v899 = vpop.f32.mrf.mxu0
        %v900 = vadd.f32 %v886, %v899
        %v901 = vpop.f32.mrf.mxu0
        %v902 = vadd.f32 %v888, %v901
        %903 = vdwg.mxu0
        %904 = vmatpush.bf16.msra.mxu0 %v734
        %905 = vmatpush.bf16.msra.mxu0 %v732
        %906 = vmatpush.bf16.msra.mxu0 %v730
        %907 = vmatpush.bf16.msra.mxu0 %v728
        %908 = vmatpush.bf16.msra.mxu0 %v726
        %909 = vmatpush.bf16.msra.mxu0 %v724
        %910 = vmatpush.bf16.msra.mxu0 %v722
        %911 = vmatpush.bf16.msra.mxu0 %v720
        %912 = vmatmul.bf16.gmra.mxu0 %v264
        %v913 = vpop.f32.mrf.mxu0
        %v914 = vadd.f32 %v900, %v913
        %v915 = vpop.f32.mrf.mxu0
        %v916 = vadd.f32 %v902, %v915
        %917 = vdwg.mxu0
        %918 = vmatpush.bf16.msra.mxu0 %v750
        %919 = vmatpush.bf16.msra.mxu0 %v748
        %920 = vmatpush.bf16.msra.mxu0 %v746
        %921 = vmatpush.bf16.msra.mxu0 %v744
        %922 = vmatpush.bf16.msra.mxu0 %v742
        %923 = vmatpush.bf16.msra.mxu0 %v740
        %924 = vmatpush.bf16.msra.mxu0 %v738
        %925 = vmatpush.bf16.msra.mxu0 %v736
        %926 = vmatmul.bf16.gmra.mxu0 %v265
        %v927 = vpop.f32.mrf.mxu0
        %v928 = vadd.f32 %v914, %v927
        %v929 = vpop.f32.mrf.mxu0
        %v930 = vadd.f32 %v916, %v929
        %931 = vdwg.mxu0
        %932 = vmatpush.bf16.msra.mxu0 %v671
        %933 = vmatpush.bf16.msra.mxu0 %v669
        %934 = vmatpush.bf16.msra.mxu0 %v667
        %935 = vmatpush.bf16.msra.mxu0 %v665
        %936 = vmatpush.bf16.msra.mxu0 %v663
        %937 = vmatpush.bf16.msra.mxu0 %v661
        %938 = vmatpush.bf16.msra.mxu0 %v659
        %939 = vmatpush.bf16.msra.mxu0 %v657
        %940 = vmatmul.bf16.gmra.mxu0 %v260
        %v941 = vpop.f32.mrf.mxu0
        %v942 = vadd.f32 %v365, %v941
        %v943 = vpop.f32.mrf.mxu0
        %v944 = vadd.f32 %v365, %v943
        %945 = vdwg.mxu0
        %946 = vmatpush.bf16.msra.mxu0 %v687
        %947 = vmatpush.bf16.msra.mxu0 %v685
        %948 = vmatpush.bf16.msra.mxu0 %v683
        %949 = vmatpush.bf16.msra.mxu0 %v681
        %950 = vmatpush.bf16.msra.mxu0 %v679
        %951 = vmatpush.bf16.msra.mxu0 %v677
        %952 = vmatpush.bf16.msra.mxu0 %v675
        %953 = vmatpush.bf16.msra.mxu0 %v673
        %954 = vmatmul.bf16.gmra.mxu0 %v261
        %v955 = vpop.f32.mrf.mxu0
        %v956 = vadd.f32 %v942, %v955
        %v957 = vpop.f32.mrf.mxu0
        %v958 = vadd.f32 %v944, %v957
        %959 = vdwg.mxu0
        %960 = vmatpush.bf16.msra.mxu0 %v703
        %961 = vmatpush.bf16.msra.mxu0 %v701
        %962 = vmatpush.bf16.msra.mxu0 %v699
        %963 = vmatpush.bf16.msra.mxu0 %v697
        %964 = vmatpush.bf16.msra.mxu0 %v695
        %965 = vmatpush.bf16.msra.mxu0 %v693
        %966 = vmatpush.bf16.msra.mxu0 %v691
        %967 = vmatpush.bf16.msra.mxu0 %v689
        %968 = vmatmul.bf16.gmra.mxu0 %v262
        %v969 = vpop.f32.mrf.mxu0
        %v970 = vadd.f32 %v956, %v969
        %v971 = vpop.f32.mrf.mxu0
        %v972 = vadd.f32 %v958, %v971
        %973 = vdwg.mxu0
        %974 = vmatpush.bf16.msra.mxu0 %v719
        %975 = vmatpush.bf16.msra.mxu0 %v717
        %976 = vmatpush.bf16.msra.mxu0 %v715
        %977 = vmatpush.bf16.msra.mxu0 %v713
        %978 = vmatpush.bf16.msra.mxu0 %v711
        %979 = vmatpush.bf16.msra.mxu0 %v709
        %980 = vmatpush.bf16.msra.mxu0 %v707
        %981 = vmatpush.bf16.msra.mxu0 %v705
        %982 = vmatmul.bf16.gmra.mxu0 %v263
        %v983 = vpop.f32.mrf.mxu0
        %v984 = vadd.f32 %v970, %v983
        %v985 = vpop.f32.mrf.mxu0
        %v986 = vadd.f32 %v972, %v985
        %987 = vdwg.mxu0
        %988 = vmatpush.bf16.msra.mxu0 %v735
        %989 = vmatpush.bf16.msra.mxu0 %v733
        %990 = vmatpush.bf16.msra.mxu0 %v731
        %991 = vmatpush.bf16.msra.mxu0 %v729
        %992 = vmatpush.bf16.msra.mxu0 %v727
        %993 = vmatpush.bf16.msra.mxu0 %v725
        %994 = vmatpush.bf16.msra.mxu0 %v723
        %995 = vmatpush.bf16.msra.mxu0 %v721
        %996 = vmatmul.bf16.gmra.mxu0 %v264
        %v997 = vpop.f32.mrf.mxu0
        %v998 = vadd.f32 %v984, %v997
        %v999 = vpop.f32.mrf.mxu0
        %v1000 = vadd.f32 %v986, %v999
        %1001 = vdwg.mxu0
        %1002 = vmatpush.bf16.msra.mxu0 %v751
        %1003 = vmatpush.bf16.msra.mxu0 %v749
        %1004 = vmatpush.bf16.msra.mxu0 %v747
        %1005 = vmatpush.bf16.msra.mxu0 %v745
        %1006 = vmatpush.bf16.msra.mxu0 %v743
        %1007 = vmatpush.bf16.msra.mxu0 %v741
        %1008 = vmatpush.bf16.msra.mxu0 %v739
        %1009 = vmatpush.bf16.msra.mxu0 %v737
        %1010 = vmatmul.bf16.gmra.mxu0 %v265
        %v1011 = vpop.f32.mrf.mxu0
        %v1012 = vadd.f32 %v998, %v1011
        %v1013 = vpop.f32.mrf.mxu0
        %v1014 = vadd.f32 %v1000, %v1013
        %1015 = vdwg.mxu0
        %v1016 = vpack.c.bf16 %v1012, %v928
        %v1017 = vpack.c.bf16 %v1014, %v930
        %1018 = vst [vmem:[%s232] sm:$0xff] %v1016
        %1019 = vst [vmem:[%s232 + $0x8] sm:$0xff] %v1017
        %s1020 = sand.u32 %s117, 1
        %s1021 = sand.u32 %s117, 1
        %s1022 = smul.addr %s1021, 16
        %s1023 = scalar_lea.vmem [#allocation4], %s1022
        // Predicated region
        $region37: #{dnabert_forward.48} parent=31 // pred_check
          %p1024 = pneg %p127
        $region38: #{dnabert_forward.48} parent=31 // pred_check_branch
          %1026 = sbr.rel (%p1024) target = $region40
        $region39: #{dnabert_forward.48} parent=31 // pred_region
          %s1027 = smul.u32 2, %s21
          %s1028 = smul.u32 2, %s22
          %s1029 = smul.addr %s1027, 18
          %s1030 = sadd.s32 %s1028, %s1029
          %s1031 = smul.addr %s1030, 4
          %s1032 = scalar_lea.vmem %s3, %s1031
          // Predicated region
          $region41: #{dnabert_forward.48} parent=39 // pred_check
            _
          $region42: #{dnabert_forward.48} parent=39 // pred_check_branch
            %1034 = sbr.rel (0) target = $region44
          $region43: #{dnabert_forward.48} parent=39 // pred_region
            // Predicated region
            $region45: #{dnabert_forward.48} parent=43 // pred_check
              _
            $region46: #{dnabert_forward.48} parent=43 // pred_check_branch
              %1036 = sbr.rel (0) target = $region48
            $region47: #{dnabert_forward.48} parent=43 // pred_region
              // Predicated region
              $region60: #{dnabert_forward.48} parent=47 // pred_check
                _
              $region61: #{dnabert_forward.48} parent=47 // pred_check_branch
                %1054 = sbr.rel (0) target = $region63
              $region62: #{dnabert_forward.48} parent=47 // pred_region
                loop: start=0, step=1, limit=1
                $region64: #{dnabert_forward.48} parent=62 // loop_pre_header
                  _
                $region65: #{dnabert_forward.48} parent=62 // loop_header
                  %s1056 = sphi 0, %s1060
                  %p1057 = scmp.ge.s32.totalorder %s1056, 1
                  %s1061 = sphi %s1023, %s1023
                  %s1062 = sphi %s1032, %s1032
                $region66: #{dnabert_forward.48} parent=62 // loop_header_branch
                  %1059 = sbr.rel (%p1057) target = $region70
                $region67: #{dnabert_forward.48} parent=62 // loop_body
                  %v1063 = vld [vmem:[%s1061] sm:$0xff]
                  %1064 = vst [vmem:[%s1062] sm:$0xff] %v1063
                  %v1065 = vld [vmem:[%s1061 + $0x8] sm:$0xff]
                  %1066 = vst [vmem:[%s1062 + $0x48] sm:$0xff] %v1065
                $region68: #{dnabert_forward.48} parent=62 // loop_footer
                  %s1060 = sadd.s32 1, %s1056
                $region69: #{dnabert_forward.48} parent=62 // loop_footer_branch
                  %1055 = sbr.rel target = $region65
                $region70: #{dnabert_forward.48} parent=62 // loop_exit
                  _
              $region63: #{dnabert_forward.48} parent=47 // pred_fallthru
                _
              // Predicated region
              $region71: #{dnabert_forward.48} parent=47 // pred_check
                _
              $region72: #{dnabert_forward.48} parent=47 // pred_check_branch
                %1068 = sbr.rel target = $region74
              $region73: #{dnabert_forward.48} parent=47 // pred_region
                _
              $region74: #{dnabert_forward.48} parent=47 // pred_fallthru
                _
            $region48: #{dnabert_forward.48} parent=43 // pred_fallthru
              _
            // Predicated region
            $region49: #{dnabert_forward.48} parent=43 // pred_check
              _
            $region50: #{dnabert_forward.48} parent=43 // pred_check_branch
              %1038 = sbr.rel target = $region52
            $region51: #{dnabert_forward.48} parent=43 // pred_region
              %s1040 = ssub.s32 256, 1
              loop: start=0, step=1, limit=1
              $region53: #{dnabert_forward.48} parent=51 // loop_pre_header
                _
              $region54: #{dnabert_forward.48} parent=51 // loop_header
                %s1042 = sphi 0, %s1046
                %p1043 = scmp.ge.s32.totalorder %s1042, 1
                %s1047 = sphi %s1023, %s1023
                %s1048 = sphi %s1032, %s1032
              $region55: #{dnabert_forward.48} parent=51 // loop_header_branch
                %1045 = sbr.rel (%p1043) target = $region59
              $region56: #{dnabert_forward.48} parent=51 // loop_body
                %v1049 = vld [vmem:[%s1047] sm:%s1040]
                %1050 = vst [vmem:[%s1048] sm:%s1040] %v1049
                %v1051 = vld [vmem:[%s1047 + $0x8] sm:%s1040]
                %1052 = vst [vmem:[%s1048 + $0x48] sm:%s1040] %v1051
              $region57: #{dnabert_forward.48} parent=51 // loop_footer
                %s1046 = sadd.s32 1, %s1042
              $region58: #{dnabert_forward.48} parent=51 // loop_footer_branch
                %1041 = sbr.rel target = $region54
              $region59: #{dnabert_forward.48} parent=51 // loop_exit
                _
            $region52: #{dnabert_forward.48} parent=43 // pred_fallthru
              _
          $region44: #{dnabert_forward.48} parent=39 // pred_fallthru
            _
          %1069 = vnop
        $region40: #{dnabert_forward.48} parent=31 // pred_fallthru
          _
      $region32: #{dnabert_forward.48} parent=5 // pred_fallthru
        _
      %p1070 = scmp.le.s32.totalorder 2, %s12
      // Predicated region
      $region75: #{dnabert_forward.48} parent=5 // pred_check
        %p1071 = pneg %p1070
      $region76: #{dnabert_forward.48} parent=5 // pred_check_branch
        %1073 = sbr.rel (%p1071) target = $region78
      $region77: #{dnabert_forward.48} parent=5 // pred_region
        %s1074 = ssub.s32 %s12, 2
        // Predicated region
        $region79: #{dnabert_forward.48} parent=77 // pred_check
          %p1075 = pneg %p133
        $region80: #{dnabert_forward.48} parent=77 // pred_check_branch
          %1077 = sbr.rel (%p1075) target = $region82
        $region81: #{dnabert_forward.48} parent=77 // pred_region
          %s1078 = sand.u32 %s118, 1
          %s1079 = sand.u32 %s118, 1
          %s1080 = smul.addr %s1079, 16
          %s1081 = scalar_lea.vmem [#allocation4], %s1080
        $region82: #{dnabert_forward.48} parent=77 // pred_fallthru
          _
      $region78: #{dnabert_forward.48} parent=5 // pred_fallthru
        _
    $region6: #{dnabert_forward.48} parent=1 // loop_footer
      %s16 = sadd.s32 1, %s12
    $region7: #{dnabert_forward.48} parent=1 // loop_footer_branch
      %11 = sbr.rel target = $region3
    $region8: #{dnabert_forward.48} parent=1 // loop_exit
      _
    %1082 = vsyncpa [#allocation3], 1
    %s1083 = scalar_lea.sflag [#allocation3], 1
    %1084 = vsyncpa %s1083, 1

// kernel: dnabert_forward.50
$region0: #{dnabert_forward.50}
  #allocation0 [shape = 'u32[]', space=smem, size = 0x4, offset = 0x4, fixed_abs, tag = 'smem constant byte address 0x4 - core index']
  #allocation1 [shape = 'u32[72,128]{1,0:T(1,128)}', space=vmem, size = 0x9000, scoped, tag = 'internal scratch']
  %s0 = inlined_call_operand.vmem [shape: bf16[16,768], index: 0, kind: input, shape index: {}]
  %s1 = inlined_call_operand.hbm [shape: bf16[768,768], index: 1, kind: input, shape index: {}]
  %s2 = inlined_call_operand.vmem [shape: f32[1,768], index: 2, kind: input, shape index: {}]
  %s3 = inlined_call_operand.vmem [shape: f32[16,768], index: 3, kind: input, shape index: {}]
  %s4 = inlined_call_operand.vmem [shape: f32[1,768], index: 4, kind: input, shape index: {}]
  %s5 = inlined_call_operand.vmem [shape: f32[1,768], index: 5, kind: input, shape index: {}]
  %s6 = inlined_call_operand.vmem [shape: f32[16,768], index: 6, kind: output, shape index: {}]
  %s7 = sld [smem:[#allocation0]]
  $region38: #{dnabert_forward.50} parent=0
    _
  %s9 = ssub.s32 1, %s7
  %s10 = scalar_select 0, %s9, %s7
  $region1: #{dnabert_forward.50} parent=0
    #allocation2 [shape = 'u8[1179648]{0}', space=vmem, size = 0x120000, scoped, tag = 'input window, operand 1, single buffered']
    #allocation3 [shape = 's32[1]{0}', space=sflag, size = 0x4, scoped, tag = 'scoped memory for dnabert_forward.50']
    %11 = vsyncpa [#allocation3], 0
    // Predicated region
    $region2: #{dnabert_forward.50} parent=1 // pred_check
      _
    $region3: #{dnabert_forward.50} parent=1 // pred_check_branch
      %13 = sbr.rel (0) target = $region5
    $region4: #{dnabert_forward.50} parent=1 // pred_region
      _
    $region5: #{dnabert_forward.50} parent=1 // pred_fallthru
      _
    // Predicated region
    $region6: #{dnabert_forward.50} parent=1 // pred_check
      _
    $region7: #{dnabert_forward.50} parent=1 // pred_check_branch
      %15 = sbr.rel (0) target = $region9
    $region8: #{dnabert_forward.50} parent=1 // pred_region
      %17 = vsyncadd [#allocation3], 0
      %s18 = sshll.u32 %s1, 4
      %s19 = int_to_ptr.hbm [resolvable:$true] %s18
      %s20 = sshll.u32 [#allocation2], 4
      %s21 = int_to_ptr.vmem [resolvable:$true] %s20
      %26 = dma.hbm_to_vmem [thread:$0]  %s19, 36864, %s21, [#allocation3], 384, 384, 24
    $region9: #{dnabert_forward.50} parent=1 // pred_fallthru
      _
    // Predicated region
    $region10: #{dnabert_forward.50} parent=1 // pred_check
      _
    $region11: #{dnabert_forward.50} parent=1 // pred_check_branch
      %28 = sbr.rel (0) target = $region13
    $region12: #{dnabert_forward.50} parent=1 // pred_region
      _
    $region13: #{dnabert_forward.50} parent=1 // pred_fallthru
      _
    // Predicated region
    $region14: #{dnabert_forward.50} parent=1 // pred_check
      _
    $region15: #{dnabert_forward.50} parent=1 // pred_check_branch
      %30 = sbr.rel (0) target = $region17
    $region16: #{dnabert_forward.50} parent=1 // pred_region
      _
    $region17: #{dnabert_forward.50} parent=1 // pred_fallthru
      _
    // Predicated region
    $region18: #{dnabert_forward.50} parent=1 // pred_check
      _
    $region19: #{dnabert_forward.50} parent=1 // pred_check_branch
      %32 = sbr.rel (0) target = $region21
    $region20: #{dnabert_forward.50} parent=1 // pred_region
      _
    $region21: #{dnabert_forward.50} parent=1 // pred_fallthru
      _
    // Predicated region
    $region22: #{dnabert_forward.50} parent=1 // pred_check
      _
    $region23: #{dnabert_forward.50} parent=1 // pred_check_branch
      %34 = sbr.rel (0) target = $region25
    $region24: #{dnabert_forward.50} parent=1 // pred_region
      _
    $region25: #{dnabert_forward.50} parent=1 // pred_fallthru
      _
    // Predicated region
    $region26: #{dnabert_forward.50} parent=1 // pred_check
      _
    $region27: #{dnabert_forward.50} parent=1 // pred_check_branch
      %36 = sbr.rel (0) target = $region29
    $region28: #{dnabert_forward.50} parent=1 // pred_region
      %38 = dma.done [#allocation3], 36864
    $region29: #{dnabert_forward.50} parent=1 // pred_fallthru
      _
    %v39 = vld [vmem:[%s0] sm:$0xff]
    %v40 = vld [vmem:[%s0 + $0x8] sm:$0xff]
    %v41 = vld [vmem:[%s0 + $0x10] sm:$0xff]
    %v42 = vld [vmem:[%s0 + $0x18] sm:$0xff]
    %v43 = vld [vmem:[%s0 + $0x20] sm:$0xff]
    %v44 = vld [vmem:[%s0 + $0x28] sm:$0xff]
    %v45 = vld [vmem:[#allocation2] sm:$0xff]
    %v46 = vld [vmem:[#allocation2 + $0x8] sm:$0xff]
    %v47 = vld [vmem:[#allocation2 + $0x10] sm:$0xff]
    %v48 = vld [vmem:[#allocation2 + $0x18] sm:$0xff]
    %v49 = vld [vmem:[#allocation2 + $0x20] sm:$0xff]
    %v50 = vld [vmem:[#allocation2 + $0x28] sm:$0xff]
    %v51 = vld [vmem:[#allocation2 + $0x30] sm:$0xff]
    %v52 = vld [vmem:[#allocation2 + $0x38] sm:$0xff]
    %v53 = vld [vmem:[#allocation2 + $0x40] sm:$0xff]
    %v54 = vld [vmem:[#allocation2 + $0x48] sm:$0xff]
    %v55 = vld [vmem:[#allocation2 + $0x50] sm:$0xff]
    %v56 = vld [vmem:[#allocation2 + $0x58] sm:$0xff]
    %v57 = vld [vmem:[#allocation2 + $0x60] sm:$0xff]
    %v58 = vld [vmem:[#allocation2 + $0x68] sm:$0xff]
    %v59 = vld [vmem:[#allocation2 + $0x70] sm:$0xff]
    %v60 = vld [vmem:[#allocation2 + $0x78] sm:$0xff]
    %v61 = vld [vmem:[#allocation2 + $0x80] sm:$0xff]
    %v62 = vld [vmem:[#allocation2 + $0x88] sm:$0xff]
    %v63 = vld [vmem:[#allocation2 + $0x90] sm:$0xff]
    %v64 = vld [vmem:[#allocation2 + $0x98] sm:$0xff]
    %v65 = vld [vmem:[#allocation2 + $0xa0] sm:$0xff]
    %v66 = vld [vmem:[#allocation2 + $0xa8] sm:$0xff]
    %v67 = vld [vmem:[#allocation2 + $0xb0] sm:$0xff]
    %v68 = vld [vmem:[#allocation2 + $0xb8] sm:$0xff]
    %v69 = vld [vmem:[#allocation2 + $0xc0] sm:$0xff]
    %v70 = vld [vmem:[#allocation2 + $0xc8] sm:$0xff]
    %v71 = vld [vmem:[#allocation2 + $0xd0] sm:$0xff]
    %v72 = vld [vmem:[#allocation2 + $0xd8] sm:$0xff]
    %v73 = vld [vmem:[#allocation2 + $0xe0] sm:$0xff]
    %v74 = vld [vmem:[#allocation2 + $0xe8] sm:$0xff]
    %v75 = vld [vmem:[#allocation2 + $0xf0] sm:$0xff]
    %v76 = vld [vmem:[#allocation2 + $0xf8] sm:$0xff]
    %v77 = vld [vmem:[#allocation2 + $0x100] sm:$0xff]
    %v78 = vld [vmem:[#allocation2 + $0x108] sm:$0xff]
    %v79 = vld [vmem:[#allocation2 + $0x110] sm:$0xff]
    %v80 = vld [vmem:[#allocation2 + $0x118] sm:$0xff]
    %v81 = vld [vmem:[#allocation2 + $0x120] sm:$0xff]
    %v82 = vld [vmem:[#allocation2 + $0x128] sm:$0xff]
    %v83 = vld [vmem:[#allocation2 + $0x130] sm:$0xff]
    %v84 = vld [vmem:[#allocation2 + $0x138] sm:$0xff]
    %v85 = vld [vmem:[#allocation2 + $0x140] sm:$0xff]
    %v86 = vld [vmem:[#allocation2 + $0x148] sm:$0xff]
    %v87 = vld [vmem:[#allocation2 + $0x150] sm:$0xff]
    %v88 = vld [vmem:[#allocation2 + $0x158] sm:$0xff]
    %v89 = vld [vmem:[#allocation2 + $0x160] sm:$0xff]
    %v90 = vld [vmem:[#allocation2 + $0x168] sm:$0xff]
    %v91 = vld [vmem:[#allocation2 + $0x170] sm:$0xff]
    %v92 = vld [vmem:[#allocation2 + $0x178] sm:$0xff]
    %v93 = vld [vmem:[#allocation2 + $0x180] sm:$0xff]
    %v94 = vld [vmem:[#allocation2 + $0x188] sm:$0xff]
    %v95 = vld [vmem:[#allocation2 + $0x190] sm:$0xff]
    %v96 = vld [vmem:[#allocation2 + $0x198] sm:$0xff]
    %v97 = vld [vmem:[#allocation2 + $0x1a0] sm:$0xff]
    %v98 = vld [vmem:[#allocation2 + $0x1a8] sm:$0xff]
    %v99 = vld [vmem:[#allocation2 + $0x1b0] sm:$0xff]
    %v100 = vld [vmem:[#allocation2 + $0x1b8] sm:$0xff]
    %v101 = vld [vmem:[#allocation2 + $0x1c0] sm:$0xff]
    %v102 = vld [vmem:[#allocation2 + $0x1c8] sm:$0xff]
    %v103 = vld [vmem:[#allocation2 + $0x1d0] sm:$0xff]
    %v104 = vld [vmem:[#allocation2 + $0x1d8] sm:$0xff]
    %v105 = vld [vmem:[#allocation2 + $0x1e0] sm:$0xff]
    %v106 = vld [vmem:[#allocation2 + $0x1e8] sm:$0xff]
    %v107 = vld [vmem:[#allocation2 + $0x1f0] sm:$0xff]
    %v108 = vld [vmem:[#allocation2 + $0x1f8] sm:$0xff]
    %v109 = vld [vmem:[#allocation2 + $0x200] sm:$0xff]
    %v110 = vld [vmem:[#allocation2 + $0x208] sm:$0xff]
    %v111 = vld [vmem:[#allocation2 + $0x210] sm:$0xff]
    %v112 = vld [vmem:[#allocation2 + $0x218] sm:$0xff]
    %v113 = vld [vmem:[#allocation2 + $0x220] sm:$0xff]
    %v114 = vld [vmem:[#allocation2 + $0x228] sm:$0xff]
    %v115 = vld [vmem:[#allocation2 + $0x230] sm:$0xff]
    %v116 = vld [vmem:[#allocation2 + $0x238] sm:$0xff]
    %v117 = vld [vmem:[#allocation2 + $0x240] sm:$0xff]
    %v118 = vld [vmem:[#allocation2 + $0x248] sm:$0xff]
    %v119 = vld [vmem:[#allocation2 + $0x250] sm:$0xff]
    %v120 = vld [vmem:[#allocation2 + $0x258] sm:$0xff]
    %v121 = vld [vmem:[#allocation2 + $0x260] sm:$0xff]
    %v122 = vld [vmem:[#allocation2 + $0x268] sm:$0xff]
    %v123 = vld [vmem:[#allocation2 + $0x270] sm:$0xff]
    %v124 = vld [vmem:[#allocation2 + $0x278] sm:$0xff]
    %v125 = vld [vmem:[#allocation2 + $0x280] sm:$0xff]
    %v126 = vld [vmem:[#allocation2 + $0x288] sm:$0xff]
    %v127 = vld [vmem:[#allocation2 + $0x290] sm:$0xff]
    %v128 = vld [vmem:[#allocation2 + $0x298] sm:$0xff]
    %v129 = vld [vmem:[#allocation2 + $0x2a0] sm:$0xff]
    %v130 = vld [vmem:[#allocation2 + $0x2a8] sm:$0xff]
    %v131 = vld [vmem:[#allocation2 + $0x2b0] sm:$0xff]
    %v132 = vld [vmem:[#allocation2 + $0x2b8] sm:$0xff]
    %v133 = vld [vmem:[#allocation2 + $0x2c0] sm:$0xff]
    %v134 = vld [vmem:[#allocation2 + $0x2c8] sm:$0xff]
    %v135 = vld [vmem:[#allocation2 + $0x2d0] sm:$0xff]
    %v136 = vld [vmem:[#allocation2 + $0x2d8] sm:$0xff]
    %v137 = vld [vmem:[#allocation2 + $0x2e0] sm:$0xff]
    %v138 = vld [vmem:[#allocation2 + $0x2e8] sm:$0xff]
    %v139 = vld [vmem:[#allocation2 + $0x2f0] sm:$0xff]
    %v140 = vld [vmem:[#allocation2 + $0x2f8] sm:$0xff]
    %v141 = vld [vmem:[#allocation2 + $0x300] sm:$0xff]
    %v142 = vld [vmem:[#allocation2 + $0x308] sm:$0xff]
    %v143 = vld [vmem:[#allocation2 + $0x310] sm:$0xff]
    %v144 = vld [vmem:[#allocation2 + $0x318] sm:$0xff]
    %v145 = vld [vmem:[#allocation2 + $0x320] sm:$0xff]
    %v146 = vld [vmem:[#allocation2 + $0x328] sm:$0xff]
    %v147 = vld [vmem:[#allocation2 + $0x330] sm:$0xff]
    %v148 = vld [vmem:[#allocation2 + $0x338] sm:$0xff]
    %v149 = vld [vmem:[#allocation2 + $0x340] sm:$0xff]
    %v150 = vld [vmem:[#allocation2 + $0x348] sm:$0xff]
    %v151 = vld [vmem:[#allocation2 + $0x350] sm:$0xff]
    %v152 = vld [vmem:[#allocation2 + $0x358] sm:$0xff]
    %v153 = vld [vmem:[#allocation2 + $0x360] sm:$0xff]
    %v154 = vld [vmem:[#allocation2 + $0x368] sm:$0xff]
    %v155 = vld [vmem:[#allocation2 + $0x370] sm:$0xff]
    %v156 = vld [vmem:[#allocation2 + $0x378] sm:$0xff]
    %v157 = vld [vmem:[#allocation2 + $0x380] sm:$0xff]
    %v158 = vld [vmem:[#allocation2 + $0x388] sm:$0xff]
    %v159 = vld [vmem:[#allocation2 + $0x390] sm:$0xff]
    %v160 = vld [vmem:[#allocation2 + $0x398] sm:$0xff]
    %v161 = vld [vmem:[#allocation2 + $0x3a0] sm:$0xff]
    %v162 = vld [vmem:[#allocation2 + $0x3a8] sm:$0xff]
    %v163 = vld [vmem:[#allocation2 + $0x3b0] sm:$0xff]
    %v164 = vld [vmem:[#allocation2 + $0x3b8] sm:$0xff]
    %v165 = vld [vmem:[#allocation2 + $0x3c0] sm:$0xff]
    %v166 = vld [vmem:[#allocation2 + $0x3c8] sm:$0xff]
    %v167 = vld [vmem:[#allocation2 + $0x3d0] sm:$0xff]
    %v168 = vld [vmem:[#allocation2 + $0x3d8] sm:$0xff]
    %v169 = vld [vmem:[#allocation2 + $0x3e0] sm:$0xff]
    %v170 = vld [vmem:[#allocation2 + $0x3e8] sm:$0xff]
    %v171 = vld [vmem:[#allocation2 + $0x3f0] sm:$0xff]
    %v172 = vld [vmem:[#allocation2 + $0x3f8] sm:$0xff]
    %v173 = vld [vmem:[#allocation2 + $0x400] sm:$0xff]
    %v174 = vld [vmem:[#allocation2 + $0x408] sm:$0xff]
    %v175 = vld [vmem:[#allocation2 + $0x410] sm:$0xff]
    %v176 = vld [vmem:[#allocation2 + $0x418] sm:$0xff]
    %v177 = vld [vmem:[#allocation2 + $0x420] sm:$0xff]
    %v178 = vld [vmem:[#allocation2 + $0x428] sm:$0xff]
    %v179 = vld [vmem:[#allocation2 + $0x430] sm:$0xff]
    %v180 = vld [vmem:[#allocation2 + $0x438] sm:$0xff]
    %v181 = vld [vmem:[#allocation2 + $0x440] sm:$0xff]
    %v182 = vld [vmem:[#allocation2 + $0x448] sm:$0xff]
    %v183 = vld [vmem:[#allocation2 + $0x450] sm:$0xff]
    %v184 = vld [vmem:[#allocation2 + $0x458] sm:$0xff]
    %v185 = vld [vmem:[#allocation2 + $0x460] sm:$0xff]
    %v186 = vld [vmem:[#allocation2 + $0x468] sm:$0xff]
    %v187 = vld [vmem:[#allocation2 + $0x470] sm:$0xff]
    %v188 = vld [vmem:[#allocation2 + $0x478] sm:$0xff]
    %v189 = vld [vmem:[#allocation2 + $0x480] sm:$0xff]
    %v190 = vld [vmem:[#allocation2 + $0x488] sm:$0xff]
    %v191 = vld [vmem:[#allocation2 + $0x490] sm:$0xff]
    %v192 = vld [vmem:[#allocation2 + $0x498] sm:$0xff]
    %v193 = vld [vmem:[#allocation2 + $0x4a0] sm:$0xff]
    %v194 = vld [vmem:[#allocation2 + $0x4a8] sm:$0xff]
    %v195 = vld [vmem:[#allocation2 + $0x4b0] sm:$0xff]
    %v196 = vld [vmem:[#allocation2 + $0x4b8] sm:$0xff]
    %v197 = vld [vmem:[#allocation2 + $0x4c0] sm:$0xff]
    %v198 = vld [vmem:[#allocation2 + $0x4c8] sm:$0xff]
    %v199 = vld [vmem:[#allocation2 + $0x4d0] sm:$0xff]
    %v200 = vld [vmem:[#allocation2 + $0x4d8] sm:$0xff]
    %v201 = vld [vmem:[#allocation2 + $0x4e0] sm:$0xff]
    %v202 = vld [vmem:[#allocation2 + $0x4e8] sm:$0xff]
    %v203 = vld [vmem:[#allocation2 + $0x4f0] sm:$0xff]
    %v204 = vld [vmem:[#allocation2 + $0x4f8] sm:$0xff]
    %v205 = vld [vmem:[#allocation2 + $0x500] sm:$0xff]
    %v206 = vld [vmem:[#allocation2 + $0x508] sm:$0xff]
    %v207 = vld [vmem:[#allocation2 + $0x510] sm:$0xff]
    %v208 = vld [vmem:[#allocation2 + $0x518] sm:$0xff]
    %v209 = vld [vmem:[#allocation2 + $0x520] sm:$0xff]
    %v210 = vld [vmem:[#allocation2 + $0x528] sm:$0xff]
    %v211 = vld [vmem:[#allocation2 + $0x530] sm:$0xff]
    %v212 = vld [vmem:[#allocation2 + $0x538] sm:$0xff]
    %v213 = vld [vmem:[#allocation2 + $0x540] sm:$0xff]
    %v214 = vld [vmem:[#allocation2 + $0x548] sm:$0xff]
    %v215 = vld [vmem:[#allocation2 + $0x550] sm:$0xff]
    %v216 = vld [vmem:[#allocation2 + $0x558] sm:$0xff]
    %v217 = vld [vmem:[#allocation2 + $0x560] sm:$0xff]
    %v218 = vld [vmem:[#allocation2 + $0x568] sm:$0xff]
    %v219 = vld [vmem:[#allocation2 + $0x570] sm:$0xff]
    %v220 = vld [vmem:[#allocation2 + $0x578] sm:$0xff]
    %v221 = vld [vmem:[#allocation2 + $0x580] sm:$0xff]
    %v222 = vld [vmem:[#allocation2 + $0x588] sm:$0xff]
    %v223 = vld [vmem:[#allocation2 + $0x590] sm:$0xff]
    %v224 = vld [vmem:[#allocation2 + $0x598] sm:$0xff]
    %v225 = vld [vmem:[#allocation2 + $0x5a0] sm:$0xff]
    %v226 = vld [vmem:[#allocation2 + $0x5a8] sm:$0xff]
    %v227 = vld [vmem:[#allocation2 + $0x5b0] sm:$0xff]
    %v228 = vld [vmem:[#allocation2 + $0x5b8] sm:$0xff]
    %v229 = vld [vmem:[#allocation2 + $0x5c0] sm:$0xff]
    %v230 = vld [vmem:[#allocation2 + $0x5c8] sm:$0xff]
    %v231 = vld [vmem:[#allocation2 + $0x5d0] sm:$0xff]
    %v232 = vld [vmem:[#allocation2 + $0x5d8] sm:$0xff]
    %v233 = vld [vmem:[#allocation2 + $0x5e0] sm:$0xff]
    %v234 = vld [vmem:[#allocation2 + $0x5e8] sm:$0xff]
    %v235 = vld [vmem:[#allocation2 + $0x5f0] sm:$0xff]
    %v236 = vld [vmem:[#allocation2 + $0x5f8] sm:$0xff]
    %v237 = vld [vmem:[#allocation2 + $0x600] sm:$0xff]
    %v238 = vld [vmem:[#allocation2 + $0x608] sm:$0xff]
    %v239 = vld [vmem:[#allocation2 + $0x610] sm:$0xff]
    %v240 = vld [vmem:[#allocation2 + $0x618] sm:$0xff]
    %v241 = vld [vmem:[#allocation2 + $0x620] sm:$0xff]
    %v242 = vld [vmem:[#allocation2 + $0x628] sm:$0xff]
    %v243 = vld [vmem:[#allocation2 + $0x630] sm:$0xff]
    %v244 = vld [vmem:[#allocation2 + $0x638] sm:$0xff]
    %v245 = vld [vmem:[#allocation2 + $0x640] sm:$0xff]
    %v246 = vld [vmem:[#allocation2 + $0x648] sm:$0xff]
    %v247 = vld [vmem:[#allocation2 + $0x650] sm:$0xff]
    %v248 = vld [vmem:[#allocation2 + $0x658] sm:$0xff]
    %v249 = vld [vmem:[#allocation2 + $0x660] sm:$0xff]
    %v250 = vld [vmem:[#allocation2 + $0x668] sm:$0xff]
    %v251 = vld [vmem:[#allocation2 + $0x670] sm:$0xff]
    %v252 = vld [vmem:[#allocation2 + $0x678] sm:$0xff]
    %v253 = vld [vmem:[#allocation2 + $0x680] sm:$0xff]
    %v254 = vld [vmem:[#allocation2 + $0x688] sm:$0xff]
    %v255 = vld [vmem:[#allocation2 + $0x690] sm:$0xff]
    %v256 = vld [vmem:[#allocation2 + $0x698] sm:$0xff]
    %v257 = vld [vmem:[#allocation2 + $0x6a0] sm:$0xff]
    %v258 = vld [vmem:[#allocation2 + $0x6a8] sm:$0xff]
    %v259 = vld [vmem:[#allocation2 + $0x6b0] sm:$0xff]
    %v260 = vld [vmem:[#allocation2 + $0x6b8] sm:$0xff]
    %v261 = vld [vmem:[#allocation2 + $0x6c0] sm:$0xff]
    %v262 = vld [vmem:[#allocation2 + $0x6c8] sm:$0xff]
    %v263 = vld [vmem:[#allocation2 + $0x6d0] sm:$0xff]
    %v264 = vld [vmem:[#allocation2 + $0x6d8] sm:$0xff]
    %v265 = vld [vmem:[#allocation2 + $0x6e0] sm:$0xff]
    %v266 = vld [vmem:[#allocation2 + $0x6e8] sm:$0xff]
    %v267 = vld [vmem:[#allocation2 + $0x6f0] sm:$0xff]
    %v268 = vld [vmem:[#allocation2 + $0x6f8] sm:$0xff]
    %v269 = vld [vmem:[#allocation2 + $0x700] sm:$0xff]
    %v270 = vld [vmem:[#allocation2 + $0x708] sm:$0xff]
    %v271 = vld [vmem:[#allocation2 + $0x710] sm:$0xff]
    %v272 = vld [vmem:[#allocation2 + $0x718] sm:$0xff]
    %v273 = vld [vmem:[#allocation2 + $0x720] sm:$0xff]
    %v274 = vld [vmem:[#allocation2 + $0x728] sm:$0xff]
    %v275 = vld [vmem:[#allocation2 + $0x730] sm:$0xff]
    %v276 = vld [vmem:[#allocation2 + $0x738] sm:$0xff]
    %v277 = vld [vmem:[#allocation2 + $0x740] sm:$0xff]
    %v278 = vld [vmem:[#allocation2 + $0x748] sm:$0xff]
    %v279 = vld [vmem:[#allocation2 + $0x750] sm:$0xff]
    %v280 = vld [vmem:[#allocation2 + $0x758] sm:$0xff]
    %v281 = vld [vmem:[#allocation2 + $0x760] sm:$0xff]
    %v282 = vld [vmem:[#allocation2 + $0x768] sm:$0xff]
    %v283 = vld [vmem:[#allocation2 + $0x770] sm:$0xff]
    %v284 = vld [vmem:[#allocation2 + $0x778] sm:$0xff]
    %v285 = vld [vmem:[#allocation2 + $0x780] sm:$0xff]
    %v286 = vld [vmem:[#allocation2 + $0x788] sm:$0xff]
    %v287 = vld [vmem:[#allocation2 + $0x790] sm:$0xff]
    %v288 = vld [vmem:[#allocation2 + $0x798] sm:$0xff]
    %v289 = vld [vmem:[#allocation2 + $0x7a0] sm:$0xff]
    %v290 = vld [vmem:[#allocation2 + $0x7a8] sm:$0xff]
    %v291 = vld [vmem:[#allocation2 + $0x7b0] sm:$0xff]
    %v292 = vld [vmem:[#allocation2 + $0x7b8] sm:$0xff]
    %v293 = vld [vmem:[#allocation2 + $0x7c0] sm:$0xff]
    %v294 = vld [vmem:[#allocation2 + $0x7c8] sm:$0xff]
    %v295 = vld [vmem:[#allocation2 + $0x7d0] sm:$0xff]
    %v296 = vld [vmem:[#allocation2 + $0x7d8] sm:$0xff]
    %v297 = vld [vmem:[#allocation2 + $0x7e0] sm:$0xff]
    %v298 = vld [vmem:[#allocation2 + $0x7e8] sm:$0xff]
    %v299 = vld [vmem:[#allocation2 + $0x7f0] sm:$0xff]
    %v300 = vld [vmem:[#allocation2 + $0x7f8] sm:$0xff]
    %v301 = vld [vmem:[#allocation2 + $0x800] sm:$0xff]
    %v302 = vld [vmem:[#allocation2 + $0x808] sm:$0xff]
    %v303 = vld [vmem:[#allocation2 + $0x810] sm:$0xff]
    %v304 = vld [vmem:[#allocation2 + $0x818] sm:$0xff]
    %v305 = vld [vmem:[#allocation2 + $0x820] sm:$0xff]
    %v306 = vld [vmem:[#allocation2 + $0x828] sm:$0xff]
    %v307 = vld [vmem:[#allocation2 + $0x830] sm:$0xff]
    %v308 = vld [vmem:[#allocation2 + $0x838] sm:$0xff]
    %v309 = vld [vmem:[#allocation2 + $0x840] sm:$0xff]
    %v310 = vld [vmem:[#allocation2 + $0x848] sm:$0xff]
    %v311 = vld [vmem:[#allocation2 + $0x850] sm:$0xff]
    %v312 = vld [vmem:[#allocation2 + $0x858] sm:$0xff]
    %v313 = vld [vmem:[#allocation2 + $0x860] sm:$0xff]
    %v314 = vld [vmem:[#allocation2 + $0x868] sm:$0xff]
    %v315 = vld [vmem:[#allocation2 + $0x870] sm:$0xff]
    %v316 = vld [vmem:[#allocation2 + $0x878] sm:$0xff]
    %v317 = vld [vmem:[#allocation2 + $0x880] sm:$0xff]
    %v318 = vld [vmem:[#allocation2 + $0x888] sm:$0xff]
    %v319 = vld [vmem:[#allocation2 + $0x890] sm:$0xff]
    %v320 = vld [vmem:[#allocation2 + $0x898] sm:$0xff]
    %v321 = vld [vmem:[#allocation2 + $0x8a0] sm:$0xff]
    %v322 = vld [vmem:[#allocation2 + $0x8a8] sm:$0xff]
    %v323 = vld [vmem:[#allocation2 + $0x8b0] sm:$0xff]
    %v324 = vld [vmem:[#allocation2 + $0x8b8] sm:$0xff]
    %v325 = vld [vmem:[#allocation2 + $0x8c0] sm:$0xff]
    %v326 = vld [vmem:[#allocation2 + $0x8c8] sm:$0xff]
    %v327 = vld [vmem:[#allocation2 + $0x8d0] sm:$0xff]
    %v328 = vld [vmem:[#allocation2 + $0x8d8] sm:$0xff]
    %v329 = vld [vmem:[#allocation2 + $0x8e0] sm:$0xff]
    %v330 = vld [vmem:[#allocation2 + $0x8e8] sm:$0xff]
    %v331 = vld [vmem:[#allocation2 + $0x8f0] sm:$0xff]
    %v332 = vld [vmem:[#allocation2 + $0x8f8] sm:$0xff]
    %v333 = vld [vmem:[%s2] sm:$0x3f]
    %v335 = vperm.slane %v333, 0
    %v336 = vperm.slane %v333, 1
    %v337 = vperm.slane %v333, 2
    %v338 = vperm.slane %v333, 3
    %v339 = vperm.slane %v333, 4
    %v340 = vperm.slane %v333, 5
    %v353 = vunpack.c.l.b16 %v39
    %v354 = vunpack.c.h.b16 %v39
    %v355 = vunpack.c.l.b16 %v40
    %v356 = vunpack.c.h.b16 %v40
    %v357 = vunpack.c.l.b16 %v41
    %v358 = vunpack.c.h.b16 %v41
    %v359 = vunpack.c.l.b16 %v42
    %v360 = vunpack.c.h.b16 %v42
    %v361 = vunpack.c.l.b16 %v43
    %v362 = vunpack.c.h.b16 %v43
    %v363 = vunpack.c.l.b16 %v44
    %v364 = vunpack.c.h.b16 %v44
    %v365 = vpack.c.b16 %v359, %v353
    %v366 = vpack.c.b16 %v360, %v354
    %v367 = vpack.c.b16 %v361, %v355
    %v368 = vpack.c.b16 %v362, %v356
    %v369 = vpack.c.b16 %v363, %v357
    %v370 = vpack.c.b16 %v364, %v358
    %v665 = vunpack.c.l.b16 %v45
    %v666 = vunpack.c.h.b16 %v45
    %v667 = vunpack.c.l.b16 %v46
    %v668 = vunpack.c.h.b16 %v46
    %v669 = vunpack.c.l.b16 %v47
    %v670 = vunpack.c.h.b16 %v47
    %v671 = vunpack.c.l.b16 %v48
    %v672 = vunpack.c.h.b16 %v48
    %v673 = vunpack.c.l.b16 %v49
    %v674 = vunpack.c.h.b16 %v49
    %v675 = vunpack.c.l.b16 %v50
    %v676 = vunpack.c.h.b16 %v50
    %v677 = vunpack.c.l.b16 %v51
    %v678 = vunpack.c.h.b16 %v51
    %v679 = vunpack.c.l.b16 %v52
    %v680 = vunpack.c.h.b16 %v52
    %v681 = vunpack.c.l.b16 %v53
    %v682 = vunpack.c.h.b16 %v53
    %v683 = vunpack.c.l.b16 %v54
    %v684 = vunpack.c.h.b16 %v54
    %v685 = vunpack.c.l.b16 %v55
    %v686 = vunpack.c.h.b16 %v55
    %v687 = vunpack.c.l.b16 %v56
    %v688 = vunpack.c.h.b16 %v56
    %v689 = vunpack.c.l.b16 %v57
    %v690 = vunpack.c.h.b16 %v57
    %v691 = vunpack.c.l.b16 %v58
    %v692 = vunpack.c.h.b16 %v58
    %v693 = vunpack.c.l.b16 %v59
    %v694 = vunpack.c.h.b16 %v59
    %v695 = vunpack.c.l.b16 %v60
    %v696 = vunpack.c.h.b16 %v60
    %v697 = vunpack.c.l.b16 %v61
    %v698 = vunpack.c.h.b16 %v61
    %v699 = vunpack.c.l.b16 %v62
    %v700 = vunpack.c.h.b16 %v62
    %v701 = vunpack.c.l.b16 %v63
    %v702 = vunpack.c.h.b16 %v63
    %v703 = vunpack.c.l.b16 %v64
    %v704 = vunpack.c.h.b16 %v64
    %v705 = vunpack.c.l.b16 %v65
    %v706 = vunpack.c.h.b16 %v65
    %v707 = vunpack.c.l.b16 %v66
    %v708 = vunpack.c.h.b16 %v66
    %v709 = vunpack.c.l.b16 %v67
    %v710 = vunpack.c.h.b16 %v67
    %v711 = vunpack.c.l.b16 %v68
    %v712 = vunpack.c.h.b16 %v68
    %v713 = vunpack.c.l.b16 %v69
    %v714 = vunpack.c.h.b16 %v69
    %v715 = vunpack.c.l.b16 %v70
    %v716 = vunpack.c.h.b16 %v70
    %v717 = vunpack.c.l.b16 %v71
    %v718 = vunpack.c.h.b16 %v71
    %v719 = vunpack.c.l.b16 %v72
    %v720 = vunpack.c.h.b16 %v72
    %v721 = vunpack.c.l.b16 %v73
    %v722 = vunpack.c.h.b16 %v73
    %v723 = vunpack.c.l.b16 %v74
    %v724 = vunpack.c.h.b16 %v74
    %v725 = vunpack.c.l.b16 %v75
    %v726 = vunpack.c.h.b16 %v75
    %v727 = vunpack.c.l.b16 %v76
    %v728 = vunpack.c.h.b16 %v76
    %v729 = vunpack.c.l.b16 %v77
    %v730 = vunpack.c.h.b16 %v77
    %v731 = vunpack.c.l.b16 %v78
    %v732 = vunpack.c.h.b16 %v78
    %v733 = vunpack.c.l.b16 %v79
    %v734 = vunpack.c.h.b16 %v79
    %v735 = vunpack.c.l.b16 %v80
    %v736 = vunpack.c.h.b16 %v80
    %v737 = vunpack.c.l.b16 %v81
    %v738 = vunpack.c.h.b16 %v81
    %v739 = vunpack.c.l.b16 %v82
    %v740 = vunpack.c.h.b16 %v82
    %v741 = vunpack.c.l.b16 %v83
    %v742 = vunpack.c.h.b16 %v83
    %v743 = vunpack.c.l.b16 %v84
    %v744 = vunpack.c.h.b16 %v84
    %v745 = vunpack.c.l.b16 %v85
    %v746 = vunpack.c.h.b16 %v85
    %v747 = vunpack.c.l.b16 %v86
    %v748 = vunpack.c.h.b16 %v86
    %v749 = vunpack.c.l.b16 %v87
    %v750 = vunpack.c.h.b16 %v87
    %v751 = vunpack.c.l.b16 %v88
    %v752 = vunpack.c.h.b16 %v88
    %v753 = vunpack.c.l.b16 %v89
    %v754 = vunpack.c.h.b16 %v89
    %v755 = vunpack.c.l.b16 %v90
    %v756 = vunpack.c.h.b16 %v90
    %v757 = vunpack.c.l.b16 %v91
    %v758 = vunpack.c.h.b16 %v91
    %v759 = vunpack.c.l.b16 %v92
    %v760 = vunpack.c.h.b16 %v92
    %v761 = vunpack.c.l.b16 %v93
    %v762 = vunpack.c.h.b16 %v93
    %v763 = vunpack.c.l.b16 %v94
    %v764 = vunpack.c.h.b16 %v94
    %v765 = vunpack.c.l.b16 %v95
    %v766 = vunpack.c.h.b16 %v95
    %v767 = vunpack.c.l.b16 %v96
    %v768 = vunpack.c.h.b16 %v96
    %v769 = vunpack.c.l.b16 %v97
    %v770 = vunpack.c.h.b16 %v97
    %v771 = vunpack.c.l.b16 %v98
    %v772 = vunpack.c.h.b16 %v98
    %v773 = vunpack.c.l.b16 %v99
    %v774 = vunpack.c.h.b16 %v99
    %v775 = vunpack.c.l.b16 %v100
    %v776 = vunpack.c.h.b16 %v100
    %v777 = vunpack.c.l.b16 %v101
    %v778 = vunpack.c.h.b16 %v101
    %v779 = vunpack.c.l.b16 %v102
    %v780 = vunpack.c.h.b16 %v102
    %v781 = vunpack.c.l.b16 %v103
    %v782 = vunpack.c.h.b16 %v103
    %v783 = vunpack.c.l.b16 %v104
    %v784 = vunpack.c.h.b16 %v104
    %v785 = vunpack.c.l.b16 %v105
    %v786 = vunpack.c.h.b16 %v105
    %v787 = vunpack.c.l.b16 %v106
    %v788 = vunpack.c.h.b16 %v106
    %v789 = vunpack.c.l.b16 %v107
    %v790 = vunpack.c.h.b16 %v107
    %v791 = vunpack.c.l.b16 %v108
    %v792 = vunpack.c.h.b16 %v108
    %v793 = vunpack.c.l.b16 %v109
    %v794 = vunpack.c.h.b16 %v109
    %v795 = vunpack.c.l.b16 %v110
    %v796 = vunpack.c.h.b16 %v110
    %v797 = vunpack.c.l.b16 %v111
    %v798 = vunpack.c.h.b16 %v111
    %v799 = vunpack.c.l.b16 %v112
    %v800 = vunpack.c.h.b16 %v112
    %v801 = vunpack.c.l.b16 %v113
    %v802 = vunpack.c.h.b16 %v113
    %v803 = vunpack.c.l.b16 %v114
    %v804 = vunpack.c.h.b16 %v114
    %v805 = vunpack.c.l.b16 %v115
    %v806 = vunpack.c.h.b16 %v115
    %v807 = vunpack.c.l.b16 %v116
    %v808 = vunpack.c.h.b16 %v116
    %v809 = vunpack.c.l.b16 %v117
    %v810 = vunpack.c.h.b16 %v117
    %v811 = vunpack.c.l.b16 %v118
    %v812 = vunpack.c.h.b16 %v118
    %v813 = vunpack.c.l.b16 %v119
    %v814 = vunpack.c.h.b16 %v119
    %v815 = vunpack.c.l.b16 %v120
    %v816 = vunpack.c.h.b16 %v120
    %v817 = vunpack.c.l.b16 %v121
    %v818 = vunpack.c.h.b16 %v121
    %v819 = vunpack.c.l.b16 %v122
    %v820 = vunpack.c.h.b16 %v122
    %v821 = vunpack.c.l.b16 %v123
    %v822 = vunpack.c.h.b16 %v123
    %v823 = vunpack.c.l.b16 %v124
    %v824 = vunpack.c.h.b16 %v124
    %v825 = vunpack.c.l.b16 %v125
    %v826 = vunpack.c.h.b16 %v125
    %v827 = vunpack.c.l.b16 %v126
    %v828 = vunpack.c.h.b16 %v126
    %v829 = vunpack.c.l.b16 %v127
    %v830 = vunpack.c.h.b16 %v127
    %v831 = vunpack.c.l.b16 %v128
    %v832 = vunpack.c.h.b16 %v128
    %v833 = vunpack.c.l.b16 %v129
    %v834 = vunpack.c.h.b16 %v129
    %v835 = vunpack.c.l.b16 %v130
    %v836 = vunpack.c.h.b16 %v130
    %v837 = vunpack.c.l.b16 %v131
    %v838 = vunpack.c.h.b16 %v131
    %v839 = vunpack.c.l.b16 %v132
    %v840 = vunpack.c.h.b16 %v132
    %v841 = vunpack.c.l.b16 %v133
    %v842 = vunpack.c.h.b16 %v133
    %v843 = vunpack.c.l.b16 %v134
    %v844 = vunpack.c.h.b16 %v134
    %v845 = vunpack.c.l.b16 %v135
    %v846 = vunpack.c.h.b16 %v135
    %v847 = vunpack.c.l.b16 %v136
    %v848 = vunpack.c.h.b16 %v136
    %v849 = vunpack.c.l.b16 %v137
    %v850 = vunpack.c.h.b16 %v137
    %v851 = vunpack.c.l.b16 %v138
    %v852 = vunpack.c.h.b16 %v138
    %v853 = vunpack.c.l.b16 %v139
    %v854 = vunpack.c.h.b16 %v139
    %v855 = vunpack.c.l.b16 %v140
    %v856 = vunpack.c.h.b16 %v140
    %v857 = vunpack.c.l.b16 %v141
    %v858 = vunpack.c.h.b16 %v141
    %v859 = vunpack.c.l.b16 %v142
    %v860 = vunpack.c.h.b16 %v142
    %v861 = vunpack.c.l.b16 %v143
    %v862 = vunpack.c.h.b16 %v143
    %v863 = vunpack.c.l.b16 %v144
    %v864 = vunpack.c.h.b16 %v144
    %v865 = vunpack.c.l.b16 %v145
    %v866 = vunpack.c.h.b16 %v145
    %v867 = vunpack.c.l.b16 %v146
    %v868 = vunpack.c.h.b16 %v146
    %v869 = vunpack.c.l.b16 %v147
    %v870 = vunpack.c.h.b16 %v147
    %v871 = vunpack.c.l.b16 %v148
    %v872 = vunpack.c.h.b16 %v148
    %v873 = vunpack.c.l.b16 %v149
    %v874 = vunpack.c.h.b16 %v149
    %v875 = vunpack.c.l.b16 %v150
    %v876 = vunpack.c.h.b16 %v150
    %v877 = vunpack.c.l.b16 %v151
    %v878 = vunpack.c.h.b16 %v151
    %v879 = vunpack.c.l.b16 %v152
    %v880 = vunpack.c.h.b16 %v152
    %v881 = vunpack.c.l.b16 %v153
    %v882 = vunpack.c.h.b16 %v153
    %v883 = vunpack.c.l.b16 %v154
    %v884 = vunpack.c.h.b16 %v154
    %v885 = vunpack.c.l.b16 %v155
    %v886 = vunpack.c.h.b16 %v155
    %v887 = vunpack.c.l.b16 %v156
    %v888 = vunpack.c.h.b16 %v156
    %v889 = vunpack.c.l.b16 %v157
    %v890 = vunpack.c.h.b16 %v157
    %v891 = vunpack.c.l.b16 %v158
    %v892 = vunpack.c.h.b16 %v158
    %v893 = vunpack.c.l.b16 %v159
    %v894 = vunpack.c.h.b16 %v159
    %v895 = vunpack.c.l.b16 %v160
    %v896 = vunpack.c.h.b16 %v160
    %v897 = vunpack.c.l.b16 %v161
    %v898 = vunpack.c.h.b16 %v161
    %v899 = vunpack.c.l.b16 %v162
    %v900 = vunpack.c.h.b16 %v162
    %v901 = vunpack.c.l.b16 %v163
    %v902 = vunpack.c.h.b16 %v163
    %v903 = vunpack.c.l.b16 %v164
    %v904 = vunpack.c.h.b16 %v164
    %v905 = vunpack.c.l.b16 %v165
    %v906 = vunpack.c.h.b16 %v165
    %v907 = vunpack.c.l.b16 %v166
    %v908 = vunpack.c.h.b16 %v166
    %v909 = vunpack.c.l.b16 %v167
    %v910 = vunpack.c.h.b16 %v167
    %v911 = vunpack.c.l.b16 %v168
    %v912 = vunpack.c.h.b16 %v168
    %v913 = vunpack.c.l.b16 %v169
    %v914 = vunpack.c.h.b16 %v169
    %v915 = vunpack.c.l.b16 %v170
    %v916 = vunpack.c.h.b16 %v170
    %v917 = vunpack.c.l.b16 %v171
    %v918 = vunpack.c.h.b16 %v171
    %v919 = vunpack.c.l.b16 %v172
    %v920 = vunpack.c.h.b16 %v172
    %v921 = vunpack.c.l.b16 %v173
    %v922 = vunpack.c.h.b16 %v173
    %v923 = vunpack.c.l.b16 %v174
    %v924 = vunpack.c.h.b16 %v174
    %v925 = vunpack.c.l.b16 %v175
    %v926 = vunpack.c.h.b16 %v175
    %v927 = vunpack.c.l.b16 %v176
    %v928 = vunpack.c.h.b16 %v176
    %v929 = vunpack.c.l.b16 %v177
    %v930 = vunpack.c.h.b16 %v177
    %v931 = vunpack.c.l.b16 %v178
    %v932 = vunpack.c.h.b16 %v178
    %v933 = vunpack.c.l.b16 %v179
    %v934 = vunpack.c.h.b16 %v179
    %v935 = vunpack.c.l.b16 %v180
    %v936 = vunpack.c.h.b16 %v180
    %v937 = vunpack.c.l.b16 %v181
    %v938 = vunpack.c.h.b16 %v181
    %v939 = vunpack.c.l.b16 %v182
    %v940 = vunpack.c.h.b16 %v182
    %v941 = vunpack.c.l.b16 %v183
    %v942 = vunpack.c.h.b16 %v183
    %v943 = vunpack.c.l.b16 %v184
    %v944 = vunpack.c.h.b16 %v184
    %v945 = vunpack.c.l.b16 %v185
    %v946 = vunpack.c.h.b16 %v185
    %v947 = vunpack.c.l.b16 %v186
    %v948 = vunpack.c.h.b16 %v186
    %v949 = vunpack.c.l.b16 %v187
    %v950 = vunpack.c.h.b16 %v187
    %v951 = vunpack.c.l.b16 %v188
    %v952 = vunpack.c.h.b16 %v188
    %v953 = vunpack.c.l.b16 %v189
    %v954 = vunpack.c.h.b16 %v189
    %v955 = vunpack.c.l.b16 %v190
    %v956 = vunpack.c.h.b16 %v190
    %v957 = vunpack.c.l.b16 %v191
    %v958 = vunpack.c.h.b16 %v191
    %v959 = vunpack.c.l.b16 %v192
    %v960 = vunpack.c.h.b16 %v192
    %v961 = vunpack.c.l.b16 %v193
    %v962 = vunpack.c.h.b16 %v193
    %v963 = vunpack.c.l.b16 %v194
    %v964 = vunpack.c.h.b16 %v194
    %v965 = vunpack.c.l.b16 %v195
    %v966 = vunpack.c.h.b16 %v195
    %v967 = vunpack.c.l.b16 %v196
    %v968 = vunpack.c.h.b16 %v196
    %v969 = vunpack.c.l.b16 %v197
    %v970 = vunpack.c.h.b16 %v197
    %v971 = vunpack.c.l.b16 %v198
    %v972 = vunpack.c.h.b16 %v198
    %v973 = vunpack.c.l.b16 %v199
    %v974 = vunpack.c.h.b16 %v199
    %v975 = vunpack.c.l.b16 %v200
    %v976 = vunpack.c.h.b16 %v200
    %v977 = vunpack.c.l.b16 %v201
    %v978 = vunpack.c.h.b16 %v201
    %v979 = vunpack.c.l.b16 %v202
    %v980 = vunpack.c.h.b16 %v202
    %v981 = vunpack.c.l.b16 %v203
    %v982 = vunpack.c.h.b16 %v203
    %v983 = vunpack.c.l.b16 %v204
    %v984 = vunpack.c.h.b16 %v204
    %v985 = vunpack.c.l.b16 %v205
    %v986 = vunpack.c.h.b16 %v205
    %v987 = vunpack.c.l.b16 %v206
    %v988 = vunpack.c.h.b16 %v206
    %v989 = vunpack.c.l.b16 %v207
    %v990 = vunpack.c.h.b16 %v207
    %v991 = vunpack.c.l.b16 %v208
    %v992 = vunpack.c.h.b16 %v208
    %v993 = vunpack.c.l.b16 %v209
    %v994 = vunpack.c.h.b16 %v209
    %v995 = vunpack.c.l.b16 %v210
    %v996 = vunpack.c.h.b16 %v210
    %v997 = vunpack.c.l.b16 %v211
    %v998 = vunpack.c.h.b16 %v211
    %v999 = vunpack.c.l.b16 %v212
    %v1000 = vunpack.c.h.b16 %v212
    %v1001 = vunpack.c.l.b16 %v213
    %v1002 = vunpack.c.h.b16 %v213
    %v1003 = vunpack.c.l.b16 %v214
    %v1004 = vunpack.c.h.b16 %v214
    %v1005 = vunpack.c.l.b16 %v215
    %v1006 = vunpack.c.h.b16 %v215
    %v1007 = vunpack.c.l.b16 %v216
    %v1008 = vunpack.c.h.b16 %v216
    %v1009 = vunpack.c.l.b16 %v217
    %v1010 = vunpack.c.h.b16 %v217
    %v1011 = vunpack.c.l.b16 %v218
    %v1012 = vunpack.c.h.b16 %v218
    %v1013 = vunpack.c.l.b16 %v219
    %v1014 = vunpack.c.h.b16 %v219
    %v1015 = vunpack.c.l.b16 %v220
    %v1016 = vunpack.c.h.b16 %v220
    %v1017 = vunpack.c.l.b16 %v221
    %v1018 = vunpack.c.h.b16 %v221
    %v1019 = vunpack.c.l.b16 %v222
    %v1020 = vunpack.c.h.b16 %v222
    %v1021 = vunpack.c.l.b16 %v223
    %v1022 = vunpack.c.h.b16 %v223
    %v1023 = vunpack.c.l.b16 %v224
    %v1024 = vunpack.c.h.b16 %v224
    %v1025 = vunpack.c.l.b16 %v225
    %v1026 = vunpack.c.h.b16 %v225
    %v1027 = vunpack.c.l.b16 %v226
    %v1028 = vunpack.c.h.b16 %v226
    %v1029 = vunpack.c.l.b16 %v227
    %v1030 = vunpack.c.h.b16 %v227
    %v1031 = vunpack.c.l.b16 %v228
    %v1032 = vunpack.c.h.b16 %v228
    %v1033 = vunpack.c.l.b16 %v229
    %v1034 = vunpack.c.h.b16 %v229
    %v1035 = vunpack.c.l.b16 %v230
    %v1036 = vunpack.c.h.b16 %v230
    %v1037 = vunpack.c.l.b16 %v231
    %v1038 = vunpack.c.h.b16 %v231
    %v1039 = vunpack.c.l.b16 %v232
    %v1040 = vunpack.c.h.b16 %v232
    %v1041 = vunpack.c.l.b16 %v233
    %v1042 = vunpack.c.h.b16 %v233
    %v1043 = vunpack.c.l.b16 %v234
    %v1044 = vunpack.c.h.b16 %v234
    %v1045 = vunpack.c.l.b16 %v235
    %v1046 = vunpack.c.h.b16 %v235
    %v1047 = vunpack.c.l.b16 %v236
    %v1048 = vunpack.c.h.b16 %v236
    %v1049 = vunpack.c.l.b16 %v237
    %v1050 = vunpack.c.h.b16 %v237
    %v1051 = vunpack.c.l.b16 %v238
    %v1052 = vunpack.c.h.b16 %v238
    %v1053 = vunpack.c.l.b16 %v239
    %v1054 = vunpack.c.h.b16 %v239
    %v1055 = vunpack.c.l.b16 %v240
    %v1056 = vunpack.c.h.b16 %v240
    %v1057 = vunpack.c.l.b16 %v241
    %v1058 = vunpack.c.h.b16 %v241
    %v1059 = vunpack.c.l.b16 %v242
    %v1060 = vunpack.c.h.b16 %v242
    %v1061 = vunpack.c.l.b16 %v243
    %v1062 = vunpack.c.h.b16 %v243
    %v1063 = vunpack.c.l.b16 %v244
    %v1064 = vunpack.c.h.b16 %v244
    %v1065 = vunpack.c.l.b16 %v245
    %v1066 = vunpack.c.h.b16 %v245
    %v1067 = vunpack.c.l.b16 %v246
    %v1068 = vunpack.c.h.b16 %v246
    %v1069 = vunpack.c.l.b16 %v247
    %v1070 = vunpack.c.h.b16 %v247
    %v1071 = vunpack.c.l.b16 %v248
    %v1072 = vunpack.c.h.b16 %v248
    %v1073 = vunpack.c.l.b16 %v249
    %v1074 = vunpack.c.h.b16 %v249
    %v1075 = vunpack.c.l.b16 %v250
    %v1076 = vunpack.c.h.b16 %v250
    %v1077 = vunpack.c.l.b16 %v251
    %v1078 = vunpack.c.h.b16 %v251
    %v1079 = vunpack.c.l.b16 %v252
    %v1080 = vunpack.c.h.b16 %v252
    %v1081 = vunpack.c.l.b16 %v253
    %v1082 = vunpack.c.h.b16 %v253
    %v1083 = vunpack.c.l.b16 %v254
    %v1084 = vunpack.c.h.b16 %v254
    %v1085 = vunpack.c.l.b16 %v255
    %v1086 = vunpack.c.h.b16 %v255
    %v1087 = vunpack.c.l.b16 %v256
    %v1088 = vunpack.c.h.b16 %v256
    %v1089 = vunpack.c.l.b16 %v257
    %v1090 = vunpack.c.h.b16 %v257
    %v1091 = vunpack.c.l.b16 %v258
    %v1092 = vunpack.c.h.b16 %v258
    %v1093 = vunpack.c.l.b16 %v259
    %v1094 = vunpack.c.h.b16 %v259
    %v1095 = vunpack.c.l.b16 %v260
    %v1096 = vunpack.c.h.b16 %v260
    %v1097 = vunpack.c.l.b16 %v261
    %v1098 = vunpack.c.h.b16 %v261
    %v1099 = vunpack.c.l.b16 %v262
    %v1100 = vunpack.c.h.b16 %v262
    %v1101 = vunpack.c.l.b16 %v263
    %v1102 = vunpack.c.h.b16 %v263
    %v1103 = vunpack.c.l.b16 %v264
    %v1104 = vunpack.c.h.b16 %v264
    %v1105 = vunpack.c.l.b16 %v265
    %v1106 = vunpack.c.h.b16 %v265
    %v1107 = vunpack.c.l.b16 %v266
    %v1108 = vunpack.c.h.b16 %v266
    %v1109 = vunpack.c.l.b16 %v267
    %v1110 = vunpack.c.h.b16 %v267
    %v1111 = vunpack.c.l.b16 %v268
    %v1112 = vunpack.c.h.b16 %v268
    %v1113 = vunpack.c.l.b16 %v269
    %v1114 = vunpack.c.h.b16 %v269
    %v1115 = vunpack.c.l.b16 %v270
    %v1116 = vunpack.c.h.b16 %v270
    %v1117 = vunpack.c.l.b16 %v271
    %v1118 = vunpack.c.h.b16 %v271
    %v1119 = vunpack.c.l.b16 %v272
    %v1120 = vunpack.c.h.b16 %v272
    %v1121 = vunpack.c.l.b16 %v273
    %v1122 = vunpack.c.h.b16 %v273
    %v1123 = vunpack.c.l.b16 %v274
    %v1124 = vunpack.c.h.b16 %v274
    %v1125 = vunpack.c.l.b16 %v275
    %v1126 = vunpack.c.h.b16 %v275
    %v1127 = vunpack.c.l.b16 %v276
    %v1128 = vunpack.c.h.b16 %v276
    %v1129 = vunpack.c.l.b16 %v277
    %v1130 = vunpack.c.h.b16 %v277
    %v1131 = vunpack.c.l.b16 %v278
    %v1132 = vunpack.c.h.b16 %v278
    %v1133 = vunpack.c.l.b16 %v279
    %v1134 = vunpack.c.h.b16 %v279
    %v1135 = vunpack.c.l.b16 %v280
    %v1136 = vunpack.c.h.b16 %v280
    %v1137 = vunpack.c.l.b16 %v281
    %v1138 = vunpack.c.h.b16 %v281
    %v1139 = vunpack.c.l.b16 %v282
    %v1140 = vunpack.c.h.b16 %v282
    %v1141 = vunpack.c.l.b16 %v283
    %v1142 = vunpack.c.h.b16 %v283
    %v1143 = vunpack.c.l.b16 %v284
    %v1144 = vunpack.c.h.b16 %v284
    %v1145 = vunpack.c.l.b16 %v285
    %v1146 = vunpack.c.h.b16 %v285
    %v1147 = vunpack.c.l.b16 %v286
    %v1148 = vunpack.c.h.b16 %v286
    %v1149 = vunpack.c.l.b16 %v287
    %v1150 = vunpack.c.h.b16 %v287
    %v1151 = vunpack.c.l.b16 %v288
    %v1152 = vunpack.c.h.b16 %v288
    %v1153 = vunpack.c.l.b16 %v289
    %v1154 = vunpack.c.h.b16 %v289
    %v1155 = vunpack.c.l.b16 %v290
    %v1156 = vunpack.c.h.b16 %v290
    %v1157 = vunpack.c.l.b16 %v291
    %v1158 = vunpack.c.h.b16 %v291
    %v1159 = vunpack.c.l.b16 %v292
    %v1160 = vunpack.c.h.b16 %v292
    %v1161 = vunpack.c.l.b16 %v293
    %v1162 = vunpack.c.h.b16 %v293
    %v1163 = vunpack.c.l.b16 %v294
    %v1164 = vunpack.c.h.b16 %v294
    %v1165 = vunpack.c.l.b16 %v295
    %v1166 = vunpack.c.h.b16 %v295
    %v1167 = vunpack.c.l.b16 %v296
    %v1168 = vunpack.c.h.b16 %v296
    %v1169 = vunpack.c.l.b16 %v297
    %v1170 = vunpack.c.h.b16 %v297
    %v1171 = vunpack.c.l.b16 %v298
    %v1172 = vunpack.c.h.b16 %v298
    %v1173 = vunpack.c.l.b16 %v299
    %v1174 = vunpack.c.h.b16 %v299
    %v1175 = vunpack.c.l.b16 %v300
    %v1176 = vunpack.c.h.b16 %v300
    %v1177 = vunpack.c.l.b16 %v301
    %v1178 = vunpack.c.h.b16 %v301
    %v1179 = vunpack.c.l.b16 %v302
    %v1180 = vunpack.c.h.b16 %v302
    %v1181 = vunpack.c.l.b16 %v303
    %v1182 = vunpack.c.h.b16 %v303
    %v1183 = vunpack.c.l.b16 %v304
    %v1184 = vunpack.c.h.b16 %v304
    %v1185 = vunpack.c.l.b16 %v305
    %v1186 = vunpack.c.h.b16 %v305
    %v1187 = vunpack.c.l.b16 %v306
    %v1188 = vunpack.c.h.b16 %v306
    %v1189 = vunpack.c.l.b16 %v307
    %v1190 = vunpack.c.h.b16 %v307
    %v1191 = vunpack.c.l.b16 %v308
    %v1192 = vunpack.c.h.b16 %v308
    %v1193 = vunpack.c.l.b16 %v309
    %v1194 = vunpack.c.h.b16 %v309
    %v1195 = vunpack.c.l.b16 %v310
    %v1196 = vunpack.c.h.b16 %v310
    %v1197 = vunpack.c.l.b16 %v311
    %v1198 = vunpack.c.h.b16 %v311
    %v1199 = vunpack.c.l.b16 %v312
    %v1200 = vunpack.c.h.b16 %v312
    %v1201 = vunpack.c.l.b16 %v313
    %v1202 = vunpack.c.h.b16 %v313
    %v1203 = vunpack.c.l.b16 %v314
    %v1204 = vunpack.c.h.b16 %v314
    %v1205 = vunpack.c.l.b16 %v315
    %v1206 = vunpack.c.h.b16 %v315
    %v1207 = vunpack.c.l.b16 %v316
    %v1208 = vunpack.c.h.b16 %v316
    %v1209 = vunpack.c.l.b16 %v317
    %v1210 = vunpack.c.h.b16 %v317
    %v1211 = vunpack.c.l.b16 %v318
    %v1212 = vunpack.c.h.b16 %v318
    %v1213 = vunpack.c.l.b16 %v319
    %v1214 = vunpack.c.h.b16 %v319
    %v1215 = vunpack.c.l.b16 %v320
    %v1216 = vunpack.c.h.b16 %v320
    %v1217 = vunpack.c.l.b16 %v321
    %v1218 = vunpack.c.h.b16 %v321
    %v1219 = vunpack.c.l.b16 %v322
    %v1220 = vunpack.c.h.b16 %v322
    %v1221 = vunpack.c.l.b16 %v323
    %v1222 = vunpack.c.h.b16 %v323
    %v1223 = vunpack.c.l.b16 %v324
    %v1224 = vunpack.c.h.b16 %v324
    %v1225 = vunpack.c.l.b16 %v325
    %v1226 = vunpack.c.h.b16 %v325
    %v1227 = vunpack.c.l.b16 %v326
    %v1228 = vunpack.c.h.b16 %v326
    %v1229 = vunpack.c.l.b16 %v327
    %v1230 = vunpack.c.h.b16 %v327
    %v1231 = vunpack.c.l.b16 %v328
    %v1232 = vunpack.c.h.b16 %v328
    %v1233 = vunpack.c.l.b16 %v329
    %v1234 = vunpack.c.h.b16 %v329
    %v1235 = vunpack.c.l.b16 %v330
    %v1236 = vunpack.c.h.b16 %v330
    %v1237 = vunpack.c.l.b16 %v331
    %v1238 = vunpack.c.h.b16 %v331
    %v1239 = vunpack.c.l.b16 %v332
    %v1240 = vunpack.c.h.b16 %v332
    %v1241 = vpack.c.b16 %v671, %v665
    %v1242 = vpack.c.b16 %v672, %v666
    %v1243 = vpack.c.b16 %v673, %v667
    %v1244 = vpack.c.b16 %v674, %v668
    %v1245 = vpack.c.b16 %v675, %v669
    %v1246 = vpack.c.b16 %v676, %v670
    %v1247 = vpack.c.b16 %v683, %v677
    %v1248 = vpack.c.b16 %v684, %v678
    %v1249 = vpack.c.b16 %v685, %v679
    %v1250 = vpack.c.b16 %v686, %v680
    %v1251 = vpack.c.b16 %v687, %v681
    %v1252 = vpack.c.b16 %v688, %v682
    %v1253 = vpack.c.b16 %v695, %v689
    %v1254 = vpack.c.b16 %v696, %v690
    %v1255 = vpack.c.b16 %v697, %v691
    %v1256 = vpack.c.b16 %v698, %v692
    %v1257 = vpack.c.b16 %v699, %v693
    %v1258 = vpack.c.b16 %v700, %v694
    %v1259 = vpack.c.b16 %v707, %v701
    %v1260 = vpack.c.b16 %v708, %v702
    %v1261 = vpack.c.b16 %v709, %v703
    %v1262 = vpack.c.b16 %v710, %v704
    %v1263 = vpack.c.b16 %v711, %v705
    %v1264 = vpack.c.b16 %v712, %v706
    %v1265 = vpack.c.b16 %v719, %v713
    %v1266 = vpack.c.b16 %v720, %v714
    %v1267 = vpack.c.b16 %v721, %v715
    %v1268 = vpack.c.b16 %v722, %v716
    %v1269 = vpack.c.b16 %v723, %v717
    %v1270 = vpack.c.b16 %v724, %v718
    %v1271 = vpack.c.b16 %v731, %v725
    %v1272 = vpack.c.b16 %v732, %v726
    %v1273 = vpack.c.b16 %v733, %v727
    %v1274 = vpack.c.b16 %v734, %v728
    %v1275 = vpack.c.b16 %v735, %v729
    %v1276 = vpack.c.b16 %v736, %v730
    %v1277 = vpack.c.b16 %v743, %v737
    %v1278 = vpack.c.b16 %v744, %v738
    %v1279 = vpack.c.b16 %v745, %v739
    %v1280 = vpack.c.b16 %v746, %v740
    %v1281 = vpack.c.b16 %v747, %v741
    %v1282 = vpack.c.b16 %v748, %v742
    %v1283 = vpack.c.b16 %v755, %v749
    %v1284 = vpack.c.b16 %v756, %v750
    %v1285 = vpack.c.b16 %v757, %v751
    %v1286 = vpack.c.b16 %v758, %v752
    %v1287 = vpack.c.b16 %v759, %v753
    %v1288 = vpack.c.b16 %v760, %v754
    %v1289 = vpack.c.b16 %v767, %v761
    %v1290 = vpack.c.b16 %v768, %v762
    %v1291 = vpack.c.b16 %v769, %v763
    %v1292 = vpack.c.b16 %v770, %v764
    %v1293 = vpack.c.b16 %v771, %v765
    %v1294 = vpack.c.b16 %v772, %v766
    %v1295 = vpack.c.b16 %v779, %v773
    %v1296 = vpack.c.b16 %v780, %v774
    %v1297 = vpack.c.b16 %v781, %v775
    %v1298 = vpack.c.b16 %v782, %v776
    %v1299 = vpack.c.b16 %v783, %v777
    %v1300 = vpack.c.b16 %v784, %v778
    %v1301 = vpack.c.b16 %v791, %v785
    %v1302 = vpack.c.b16 %v792, %v786
    %v1303 = vpack.c.b16 %v793, %v787
    %v1304 = vpack.c.b16 %v794, %v788
    %v1305 = vpack.c.b16 %v795, %v789
    %v1306 = vpack.c.b16 %v796, %v790
    %v1307 = vpack.c.b16 %v803, %v797
    %v1308 = vpack.c.b16 %v804, %v798
    %v1309 = vpack.c.b16 %v805, %v799
    %v1310 = vpack.c.b16 %v806, %v800
    %v1311 = vpack.c.b16 %v807, %v801
    %v1312 = vpack.c.b16 %v808, %v802
    %v1313 = vpack.c.b16 %v815, %v809
    %v1314 = vpack.c.b16 %v816, %v810
    %v1315 = vpack.c.b16 %v817, %v811
    %v1316 = vpack.c.b16 %v818, %v812
    %v1317 = vpack.c.b16 %v819, %v813
    %v1318 = vpack.c.b16 %v820, %v814
    %v1319 = vpack.c.b16 %v827, %v821
    %v1320 = vpack.c.b16 %v828, %v822
    %v1321 = vpack.c.b16 %v829, %v823
    %v1322 = vpack.c.b16 %v830, %v824
    %v1323 = vpack.c.b16 %v831, %v825
    %v1324 = vpack.c.b16 %v832, %v826
    %v1325 = vpack.c.b16 %v839, %v833
    %v1326 = vpack.c.b16 %v840, %v834
    %v1327 = vpack.c.b16 %v841, %v835
    %v1328 = vpack.c.b16 %v842, %v836
    %v1329 = vpack.c.b16 %v843, %v837
    %v1330 = vpack.c.b16 %v844, %v838
    %v1331 = vpack.c.b16 %v851, %v845
    %v1332 = vpack.c.b16 %v852, %v846
    %v1333 = vpack.c.b16 %v853, %v847
    %v1334 = vpack.c.b16 %v854, %v848
    %v1335 = vpack.c.b16 %v855, %v849
    %v1336 = vpack.c.b16 %v856, %v850
    %v1337 = vpack.c.b16 %v863, %v857
    %v1338 = vpack.c.b16 %v864, %v858
    %v1339 = vpack.c.b16 %v865, %v859
    %v1340 = vpack.c.b16 %v866, %v860
    %v1341 = vpack.c.b16 %v867, %v861
    %v1342 = vpack.c.b16 %v868, %v862
    %v1343 = vpack.c.b16 %v875, %v869
    %v1344 = vpack.c.b16 %v876, %v870
    %v1345 = vpack.c.b16 %v877, %v871
    %v1346 = vpack.c.b16 %v878, %v872
    %v1347 = vpack.c.b16 %v879, %v873
    %v1348 = vpack.c.b16 %v880, %v874
    %v1349 = vpack.c.b16 %v887, %v881
    %v1350 = vpack.c.b16 %v888, %v882
    %v1351 = vpack.c.b16 %v889, %v883
    %v1352 = vpack.c.b16 %v890, %v884
    %v1353 = vpack.c.b16 %v891, %v885
    %v1354 = vpack.c.b16 %v892, %v886
    %v1355 = vpack.c.b16 %v899, %v893
    %v1356 = vpack.c.b16 %v900, %v894
    %v1357 = vpack.c.b16 %v901, %v895
    %v1358 = vpack.c.b16 %v902, %v896
    %v1359 = vpack.c.b16 %v903, %v897
    %v1360 = vpack.c.b16 %v904, %v898
    %v1361 = vpack.c.b16 %v911, %v905
    %v1362 = vpack.c.b16 %v912, %v906
    %v1363 = vpack.c.b16 %v913, %v907
    %v1364 = vpack.c.b16 %v914, %v908
    %v1365 = vpack.c.b16 %v915, %v909
    %v1366 = vpack.c.b16 %v916, %v910
    %v1367 = vpack.c.b16 %v923, %v917
    %v1368 = vpack.c.b16 %v924, %v918
    %v1369 = vpack.c.b16 %v925, %v919
    %v1370 = vpack.c.b16 %v926, %v920
    %v1371 = vpack.c.b16 %v927, %v921
    %v1372 = vpack.c.b16 %v928, %v922
    %v1373 = vpack.c.b16 %v935, %v929
    %v1374 = vpack.c.b16 %v936, %v930
    %v1375 = vpack.c.b16 %v937, %v931
    %v1376 = vpack.c.b16 %v938, %v932
    %v1377 = vpack.c.b16 %v939, %v933
    %v1378 = vpack.c.b16 %v940, %v934
    %v1379 = vpack.c.b16 %v947, %v941
    %v1380 = vpack.c.b16 %v948, %v942
    %v1381 = vpack.c.b16 %v949, %v943
    %v1382 = vpack.c.b16 %v950, %v944
    %v1383 = vpack.c.b16 %v951, %v945
    %v1384 = vpack.c.b16 %v952, %v946
    %v1385 = vpack.c.b16 %v959, %v953
    %v1386 = vpack.c.b16 %v960, %v954
    %v1387 = vpack.c.b16 %v961, %v955
    %v1388 = vpack.c.b16 %v962, %v956
    %v1389 = vpack.c.b16 %v963, %v957
    %v1390 = vpack.c.b16 %v964, %v958
    %v1391 = vpack.c.b16 %v971, %v965
    %v1392 = vpack.c.b16 %v972, %v966
    %v1393 = vpack.c.b16 %v973, %v967
    %v1394 = vpack.c.b16 %v974, %v968
    %v1395 = vpack.c.b16 %v975, %v969
    %v1396 = vpack.c.b16 %v976, %v970
    %v1397 = vpack.c.b16 %v983, %v977
    %v1398 = vpack.c.b16 %v984, %v978
    %v1399 = vpack.c.b16 %v985, %v979
    %v1400 = vpack.c.b16 %v986, %v980
    %v1401 = vpack.c.b16 %v987, %v981
    %v1402 = vpack.c.b16 %v988, %v982
    %v1403 = vpack.c.b16 %v995, %v989
    %v1404 = vpack.c.b16 %v996, %v990
    %v1405 = vpack.c.b16 %v997, %v991
    %v1406 = vpack.c.b16 %v998, %v992
    %v1407 = vpack.c.b16 %v999, %v993
    %v1408 = vpack.c.b16 %v1000, %v994
    %v1409 = vpack.c.b16 %v1007, %v1001
    %v1410 = vpack.c.b16 %v1008, %v1002
    %v1411 = vpack.c.b16 %v1009, %v1003
    %v1412 = vpack.c.b16 %v1010, %v1004
    %v1413 = vpack.c.b16 %v1011, %v1005
    %v1414 = vpack.c.b16 %v1012, %v1006
    %v1415 = vpack.c.b16 %v1019, %v1013
    %v1416 = vpack.c.b16 %v1020, %v1014
    %v1417 = vpack.c.b16 %v1021, %v1015
    %v1418 = vpack.c.b16 %v1022, %v1016
    %v1419 = vpack.c.b16 %v1023, %v1017
    %v1420 = vpack.c.b16 %v1024, %v1018
    %v1421 = vpack.c.b16 %v1031, %v1025
    %v1422 = vpack.c.b16 %v1032, %v1026
    %v1423 = vpack.c.b16 %v1033, %v1027
    %v1424 = vpack.c.b16 %v1034, %v1028
    %v1425 = vpack.c.b16 %v1035, %v1029
    %v1426 = vpack.c.b16 %v1036, %v1030
    %v1427 = vpack.c.b16 %v1043, %v1037
    %v1428 = vpack.c.b16 %v1044, %v1038
    %v1429 = vpack.c.b16 %v1045, %v1039
    %v1430 = vpack.c.b16 %v1046, %v1040
    %v1431 = vpack.c.b16 %v1047, %v1041
    %v1432 = vpack.c.b16 %v1048, %v1042
    %v1433 = vpack.c.b16 %v1055, %v1049
    %v1434 = vpack.c.b16 %v1056, %v1050
    %v1435 = vpack.c.b16 %v1057, %v1051
    %v1436 = vpack.c.b16 %v1058, %v1052
    %v1437 = vpack.c.b16 %v1059, %v1053
    %v1438 = vpack.c.b16 %v1060, %v1054
    %v1439 = vpack.c.b16 %v1067, %v1061
    %v1440 = vpack.c.b16 %v1068, %v1062
    %v1441 = vpack.c.b16 %v1069, %v1063
    %v1442 = vpack.c.b16 %v1070, %v1064
    %v1443 = vpack.c.b16 %v1071, %v1065
    %v1444 = vpack.c.b16 %v1072, %v1066
    %v1445 = vpack.c.b16 %v1079, %v1073
    %v1446 = vpack.c.b16 %v1080, %v1074
    %v1447 = vpack.c.b16 %v1081, %v1075
    %v1448 = vpack.c.b16 %v1082, %v1076
    %v1449 = vpack.c.b16 %v1083, %v1077
    %v1450 = vpack.c.b16 %v1084, %v1078
    %v1451 = vpack.c.b16 %v1091, %v1085
    %v1452 = vpack.c.b16 %v1092, %v1086
    %v1453 = vpack.c.b16 %v1093, %v1087
    %v1454 = vpack.c.b16 %v1094, %v1088
    %v1455 = vpack.c.b16 %v1095, %v1089
    %v1456 = vpack.c.b16 %v1096, %v1090
    %v1457 = vpack.c.b16 %v1103, %v1097
    %v1458 = vpack.c.b16 %v1104, %v1098
    %v1459 = vpack.c.b16 %v1105, %v1099
    %v1460 = vpack.c.b16 %v1106, %v1100
    %v1461 = vpack.c.b16 %v1107, %v1101
    %v1462 = vpack.c.b16 %v1108, %v1102
    %v1463 = vpack.c.b16 %v1115, %v1109
    %v1464 = vpack.c.b16 %v1116, %v1110
    %v1465 = vpack.c.b16 %v1117, %v1111
    %v1466 = vpack.c.b16 %v1118, %v1112
    %v1467 = vpack.c.b16 %v1119, %v1113
    %v1468 = vpack.c.b16 %v1120, %v1114
    %v1469 = vpack.c.b16 %v1127, %v1121
    %v1470 = vpack.c.b16 %v1128, %v1122
    %v1471 = vpack.c.b16 %v1129, %v1123
    %v1472 = vpack.c.b16 %v1130, %v1124
    %v1473 = vpack.c.b16 %v1131, %v1125
    %v1474 = vpack.c.b16 %v1132, %v1126
    %v1475 = vpack.c.b16 %v1139, %v1133
    %v1476 = vpack.c.b16 %v1140, %v1134
    %v1477 = vpack.c.b16 %v1141, %v1135
    %v1478 = vpack.c.b16 %v1142, %v1136
    %v1479 = vpack.c.b16 %v1143, %v1137
    %v1480 = vpack.c.b16 %v1144, %v1138
    %v1481 = vpack.c.b16 %v1151, %v1145
    %v1482 = vpack.c.b16 %v1152, %v1146
    %v1483 = vpack.c.b16 %v1153, %v1147
    %v1484 = vpack.c.b16 %v1154, %v1148
    %v1485 = vpack.c.b16 %v1155, %v1149
    %v1486 = vpack.c.b16 %v1156, %v1150
    %v1487 = vpack.c.b16 %v1163, %v1157
    %v1488 = vpack.c.b16 %v1164, %v1158
    %v1489 = vpack.c.b16 %v1165, %v1159
    %v1490 = vpack.c.b16 %v1166, %v1160
    %v1491 = vpack.c.b16 %v1167, %v1161
    %v1492 = vpack.c.b16 %v1168, %v1162
    %v1493 = vpack.c.b16 %v1175, %v1169
    %v1494 = vpack.c.b16 %v1176, %v1170
    %v1495 = vpack.c.b16 %v1177, %v1171
    %v1496 = vpack.c.b16 %v1178, %v1172
    %v1497 = vpack.c.b16 %v1179, %v1173
    %v1498 = vpack.c.b16 %v1180, %v1174
    %v1499 = vpack.c.b16 %v1187, %v1181
    %v1500 = vpack.c.b16 %v1188, %v1182
    %v1501 = vpack.c.b16 %v1189, %v1183
    %v1502 = vpack.c.b16 %v1190, %v1184
    %v1503 = vpack.c.b16 %v1191, %v1185
    %v1504 = vpack.c.b16 %v1192, %v1186
    %v1505 = vpack.c.b16 %v1199, %v1193
    %v1506 = vpack.c.b16 %v1200, %v1194
    %v1507 = vpack.c.b16 %v1201, %v1195
    %v1508 = vpack.c.b16 %v1202, %v1196
    %v1509 = vpack.c.b16 %v1203, %v1197
    %v1510 = vpack.c.b16 %v1204, %v1198
    %v1511 = vpack.c.b16 %v1211, %v1205
    %v1512 = vpack.c.b16 %v1212, %v1206
    %v1513 = vpack.c.b16 %v1213, %v1207
    %v1514 = vpack.c.b16 %v1214, %v1208
    %v1515 = vpack.c.b16 %v1215, %v1209
    %v1516 = vpack.c.b16 %v1216, %v1210
    %v1517 = vpack.c.b16 %v1223, %v1217
    %v1518 = vpack.c.b16 %v1224, %v1218
    %v1519 = vpack.c.b16 %v1225, %v1219
    %v1520 = vpack.c.b16 %v1226, %v1220
    %v1521 = vpack.c.b16 %v1227, %v1221
    %v1522 = vpack.c.b16 %v1228, %v1222
    %v1523 = vpack.c.b16 %v1235, %v1229
    %v1524 = vpack.c.b16 %v1236, %v1230
    %v1525 = vpack.c.b16 %v1237, %v1231
    %v1526 = vpack.c.b16 %v1238, %v1232
    %v1527 = vpack.c.b16 %v1239, %v1233
    %v1528 = vpack.c.b16 %v1240, %v1234
    %1817 = vmatpush.bf16.msra.mxu0 %v1283
    %1818 = vmatpush.bf16.msra.mxu0 %v1277
    %1819 = vmatpush.bf16.msra.mxu0 %v1271
    %1820 = vmatpush.bf16.msra.mxu0 %v1265
    %1821 = vmatpush.bf16.msra.mxu0 %v1259
    %1822 = vmatpush.bf16.msra.mxu0 %v1253
    %1823 = vmatpush.bf16.msra.mxu0 %v1247
    %1824 = vmatpush.bf16.msra.mxu0 %v1241
    %1825 = vmatmul.bf16.gmra.mxu0 %v365
    %v1826 = vpop.f32.mrf.mxu0
    %v1827 = vadd.f32 %v335, %v1826
    %v1828 = vpop.f32.mrf.mxu0
    %v1829 = vadd.f32 %v335, %v1828
    %1830 = vdwg.mxu0
    %1831 = vmatpush.bf16.msra.mxu0 %v1331
    %1832 = vmatpush.bf16.msra.mxu0 %v1325
    %1833 = vmatpush.bf16.msra.mxu0 %v1319
    %1834 = vmatpush.bf16.msra.mxu0 %v1313
    %1835 = vmatpush.bf16.msra.mxu0 %v1307
    %1836 = vmatpush.bf16.msra.mxu0 %v1301
    %1837 = vmatpush.bf16.msra.mxu0 %v1295
    %1838 = vmatpush.bf16.msra.mxu0 %v1289
    %1839 = vmatmul.bf16.gmra.mxu0 %v366
    %v1840 = vpop.f32.mrf.mxu0
    %v1841 = vadd.f32 %v1827, %v1840
    %v1842 = vpop.f32.mrf.mxu0
    %v1843 = vadd.f32 %v1829, %v1842
    %1844 = vdwg.mxu0
    %1845 = vmatpush.bf16.msra.mxu0 %v1379
    %1846 = vmatpush.bf16.msra.mxu0 %v1373
    %1847 = vmatpush.bf16.msra.mxu0 %v1367
    %1848 = vmatpush.bf16.msra.mxu0 %v1361
    %1849 = vmatpush.bf16.msra.mxu0 %v1355
    %1850 = vmatpush.bf16.msra.mxu0 %v1349
    %1851 = vmatpush.bf16.msra.mxu0 %v1343
    %1852 = vmatpush.bf16.msra.mxu0 %v1337
    %1853 = vmatmul.bf16.gmra.mxu0 %v367
    %v1854 = vpop.f32.mrf.mxu0
    %v1855 = vadd.f32 %v1841, %v1854
    %v1856 = vpop.f32.mrf.mxu0
    %v1857 = vadd.f32 %v1843, %v1856
    %1858 = vdwg.mxu0
    %1859 = vmatpush.bf16.msra.mxu0 %v1427
    %1860 = vmatpush.bf16.msra.mxu0 %v1421
    %1861 = vmatpush.bf16.msra.mxu0 %v1415
    %1862 = vmatpush.bf16.msra.mxu0 %v1409
    %1863 = vmatpush.bf16.msra.mxu0 %v1403
    %1864 = vmatpush.bf16.msra.mxu0 %v1397
    %1865 = vmatpush.bf16.msra.mxu0 %v1391
    %1866 = vmatpush.bf16.msra.mxu0 %v1385
    %1867 = vmatmul.bf16.gmra.mxu0 %v368
    %v1868 = vpop.f32.mrf.mxu0
    %v1869 = vadd.f32 %v1855, %v1868
    %v1870 = vpop.f32.mrf.mxu0
    %v1871 = vadd.f32 %v1857, %v1870
    %1872 = vdwg.mxu0
    %1873 = vmatpush.bf16.msra.mxu0 %v1475
    %1874 = vmatpush.bf16.msra.mxu0 %v1469
    %1875 = vmatpush.bf16.msra.mxu0 %v1463
    %1876 = vmatpush.bf16.msra.mxu0 %v1457
    %1877 = vmatpush.bf16.msra.mxu0 %v1451
    %1878 = vmatpush.bf16.msra.mxu0 %v1445
    %1879 = vmatpush.bf16.msra.mxu0 %v1439
    %1880 = vmatpush.bf16.msra.mxu0 %v1433
    %1881 = vmatmul.bf16.gmra.mxu0 %v369
    %v1882 = vpop.f32.mrf.mxu0
    %v1883 = vadd.f32 %v1869, %v1882
    %v1884 = vpop.f32.mrf.mxu0
    %v1885 = vadd.f32 %v1871, %v1884
    %1886 = vdwg.mxu0
    %1887 = vmatpush.bf16.msra.mxu0 %v1523
    %1888 = vmatpush.bf16.msra.mxu0 %v1517
    %1889 = vmatpush.bf16.msra.mxu0 %v1511
    %1890 = vmatpush.bf16.msra.mxu0 %v1505
    %1891 = vmatpush.bf16.msra.mxu0 %v1499
    %1892 = vmatpush.bf16.msra.mxu0 %v1493
    %1893 = vmatpush.bf16.msra.mxu0 %v1487
    %1894 = vmatpush.bf16.msra.mxu0 %v1481
    %1895 = vmatmul.bf16.gmra.mxu0 %v370
    %v1896 = vpop.f32.mrf.mxu0
    %v1897 = vadd.f32 %v1883, %v1896
    %v1898 = vpop.f32.mrf.mxu0
    %v1899 = vadd.f32 %v1885, %v1898
    %1900 = vdwg.mxu0
    %1901 = vmatpush.bf16.msra.mxu0 %v1284
    %1902 = vmatpush.bf16.msra.mxu0 %v1278
    %1903 = vmatpush.bf16.msra.mxu0 %v1272
    %1904 = vmatpush.bf16.msra.mxu0 %v1266
    %1905 = vmatpush.bf16.msra.mxu0 %v1260
    %1906 = vmatpush.bf16.msra.mxu0 %v1254
    %1907 = vmatpush.bf16.msra.mxu0 %v1248
    %1908 = vmatpush.bf16.msra.mxu0 %v1242
    %1909 = vmatmul.bf16.gmra.mxu0 %v365
    %v1910 = vpop.f32.mrf.mxu0
    %v1911 = vadd.f32 %v336, %v1910
    %v1912 = vpop.f32.mrf.mxu0
    %v1913 = vadd.f32 %v336, %v1912
    %1914 = vdwg.mxu0
    %1915 = vmatpush.bf16.msra.mxu0 %v1332
    %1916 = vmatpush.bf16.msra.mxu0 %v1326
    %1917 = vmatpush.bf16.msra.mxu0 %v1320
    %1918 = vmatpush.bf16.msra.mxu0 %v1314
    %1919 = vmatpush.bf16.msra.mxu0 %v1308
    %1920 = vmatpush.bf16.msra.mxu0 %v1302
    %1921 = vmatpush.bf16.msra.mxu0 %v1296
    %1922 = vmatpush.bf16.msra.mxu0 %v1290
    %1923 = vmatmul.bf16.gmra.mxu0 %v366
    %v1924 = vpop.f32.mrf.mxu0
    %v1925 = vadd.f32 %v1911, %v1924
    %v1926 = vpop.f32.mrf.mxu0
    %v1927 = vadd.f32 %v1913, %v1926
    %1928 = vdwg.mxu0
    %1929 = vmatpush.bf16.msra.mxu0 %v1380
    %1930 = vmatpush.bf16.msra.mxu0 %v1374
    %1931 = vmatpush.bf16.msra.mxu0 %v1368
    %1932 = vmatpush.bf16.msra.mxu0 %v1362
    %1933 = vmatpush.bf16.msra.mxu0 %v1356
    %1934 = vmatpush.bf16.msra.mxu0 %v1350
    %1935 = vmatpush.bf16.msra.mxu0 %v1344
    %1936 = vmatpush.bf16.msra.mxu0 %v1338
    %1937 = vmatmul.bf16.gmra.mxu0 %v367
    %v1938 = vpop.f32.mrf.mxu0
    %v1939 = vadd.f32 %v1925, %v1938
    %v1940 = vpop.f32.mrf.mxu0
    %v1941 = vadd.f32 %v1927, %v1940
    %1942 = vdwg.mxu0
    %1943 = vmatpush.bf16.msra.mxu0 %v1428
    %1944 = vmatpush.bf16.msra.mxu0 %v1422
    %1945 = vmatpush.bf16.msra.mxu0 %v1416
    %1946 = vmatpush.bf16.msra.mxu0 %v1410
    %1947 = vmatpush.bf16.msra.mxu0 %v1404
    %1948 = vmatpush.bf16.msra.mxu0 %v1398
    %1949 = vmatpush.bf16.msra.mxu0 %v1392
    %1950 = vmatpush.bf16.msra.mxu0 %v1386
    %1951 = vmatmul.bf16.gmra.mxu0 %v368
    %v1952 = vpop.f32.mrf.mxu0
    %v1953 = vadd.f32 %v1939, %v1952
    %v1954 = vpop.f32.mrf.mxu0
    %v1955 = vadd.f32 %v1941, %v1954
    %1956 = vdwg.mxu0
    %1957 = vmatpush.bf16.msra.mxu0 %v1476
    %1958 = vmatpush.bf16.msra.mxu0 %v1470
    %1959 = vmatpush.bf16.msra.mxu0 %v1464
    %1960 = vmatpush.bf16.msra.mxu0 %v1458
    %1961 = vmatpush.bf16.msra.mxu0 %v1452
    %1962 = vmatpush.bf16.msra.mxu0 %v1446
    %1963 = vmatpush.bf16.msra.mxu0 %v1440
    %1964 = vmatpush.bf16.msra.mxu0 %v1434
    %1965 = vmatmul.bf16.gmra.mxu0 %v369
    %v1966 = vpop.f32.mrf.mxu0
    %v1967 = vadd.f32 %v1953, %v1966
    %v1968 = vpop.f32.mrf.mxu0
    %v1969 = vadd.f32 %v1955, %v1968
    %1970 = vdwg.mxu0
    %1971 = vmatpush.bf16.msra.mxu0 %v1524
    %1972 = vmatpush.bf16.msra.mxu0 %v1518
    %1973 = vmatpush.bf16.msra.mxu0 %v1512
    %1974 = vmatpush.bf16.msra.mxu0 %v1506
    %1975 = vmatpush.bf16.msra.mxu0 %v1500
    %1976 = vmatpush.bf16.msra.mxu0 %v1494
    %1977 = vmatpush.bf16.msra.mxu0 %v1488
    %1978 = vmatpush.bf16.msra.mxu0 %v1482
    %1979 = vmatmul.bf16.gmra.mxu0 %v370
    %v1980 = vpop.f32.mrf.mxu0
    %v1981 = vadd.f32 %v1967, %v1980
    %v1982 = vpop.f32.mrf.mxu0
    %v1983 = vadd.f32 %v1969, %v1982
    %1984 = vdwg.mxu0
    %1985 = vmatpush.bf16.msra.mxu0 %v1285
    %1986 = vmatpush.bf16.msra.mxu0 %v1279
    %1987 = vmatpush.bf16.msra.mxu0 %v1273
    %1988 = vmatpush.bf16.msra.mxu0 %v1267
    %1989 = vmatpush.bf16.msra.mxu0 %v1261
    %1990 = vmatpush.bf16.msra.mxu0 %v1255
    %1991 = vmatpush.bf16.msra.mxu0 %v1249
    %1992 = vmatpush.bf16.msra.mxu0 %v1243
    %1993 = vmatmul.bf16.gmra.mxu0 %v365
    %v1994 = vpop.f32.mrf.mxu0
    %v1995 = vadd.f32 %v337, %v1994
    %v1996 = vpop.f32.mrf.mxu0
    %v1997 = vadd.f32 %v337, %v1996
    %1998 = vdwg.mxu0
    %1999 = vmatpush.bf16.msra.mxu0 %v1333
    %2000 = vmatpush.bf16.msra.mxu0 %v1327
    %2001 = vmatpush.bf16.msra.mxu0 %v1321
    %2002 = vmatpush.bf16.msra.mxu0 %v1315
    %2003 = vmatpush.bf16.msra.mxu0 %v1309
    %2004 = vmatpush.bf16.msra.mxu0 %v1303
    %2005 = vmatpush.bf16.msra.mxu0 %v1297
    %2006 = vmatpush.bf16.msra.mxu0 %v1291
    %2007 = vmatmul.bf16.gmra.mxu0 %v366
    %v2008 = vpop.f32.mrf.mxu0
    %v2009 = vadd.f32 %v1995, %v2008
    %v2010 = vpop.f32.mrf.mxu0
    %v2011 = vadd.f32 %v1997, %v2010
    %2012 = vdwg.mxu0
    %2013 = vmatpush.bf16.msra.mxu0 %v1381
    %2014 = vmatpush.bf16.msra.mxu0 %v1375
    %2015 = vmatpush.bf16.msra.mxu0 %v1369
    %2016 = vmatpush.bf16.msra.mxu0 %v1363
    %2017 = vmatpush.bf16.msra.mxu0 %v1357
    %2018 = vmatpush.bf16.msra.mxu0 %v1351
    %2019 = vmatpush.bf16.msra.mxu0 %v1345
    %2020 = vmatpush.bf16.msra.mxu0 %v1339
    %2021 = vmatmul.bf16.gmra.mxu0 %v367
    %v2022 = vpop.f32.mrf.mxu0
    %v2023 = vadd.f32 %v2009, %v2022
    %v2024 = vpop.f32.mrf.mxu0
    %v2025 = vadd.f32 %v2011, %v2024
    %2026 = vdwg.mxu0
    %2027 = vmatpush.bf16.msra.mxu0 %v1429
    %2028 = vmatpush.bf16.msra.mxu0 %v1423
    %2029 = vmatpush.bf16.msra.mxu0 %v1417
    %2030 = vmatpush.bf16.msra.mxu0 %v1411
    %2031 = vmatpush.bf16.msra.mxu0 %v1405
    %2032 = vmatpush.bf16.msra.mxu0 %v1399
    %2033 = vmatpush.bf16.msra.mxu0 %v1393
    %2034 = vmatpush.bf16.msra.mxu0 %v1387
    %2035 = vmatmul.bf16.gmra.mxu0 %v368
    %v2036 = vpop.f32.mrf.mxu0
    %v2037 = vadd.f32 %v2023, %v2036
    %v2038 = vpop.f32.mrf.mxu0
    %v2039 = vadd.f32 %v2025, %v2038
    %2040 = vdwg.mxu0
    %2041 = vmatpush.bf16.msra.mxu0 %v1477
    %2042 = vmatpush.bf16.msra.mxu0 %v1471
    %2043 = vmatpush.bf16.msra.mxu0 %v1465
    %2044 = vmatpush.bf16.msra.mxu0 %v1459
    %2045 = vmatpush.bf16.msra.mxu0 %v1453
    %2046 = vmatpush.bf16.msra.mxu0 %v1447
    %2047 = vmatpush.bf16.msra.mxu0 %v1441
    %2048 = vmatpush.bf16.msra.mxu0 %v1435
    %2049 = vmatmul.bf16.gmra.mxu0 %v369
    %v2050 = vpop.f32.mrf.mxu0
    %v2051 = vadd.f32 %v2037, %v2050
    %v2052 = vpop.f32.mrf.mxu0
    %v2053 = vadd.f32 %v2039, %v2052
    %2054 = vdwg.mxu0
    %2055 = vmatpush.bf16.msra.mxu0 %v1525
    %2056 = vmatpush.bf16.msra.mxu0 %v1519
    %2057 = vmatpush.bf16.msra.mxu0 %v1513
    %2058 = vmatpush.bf16.msra.mxu0 %v1507
    %2059 = vmatpush.bf16.msra.mxu0 %v1501
    %2060 = vmatpush.bf16.msra.mxu0 %v1495
    %2061 = vmatpush.bf16.msra.mxu0 %v1489
    %2062 = vmatpush.bf16.msra.mxu0 %v1483
    %2063 = vmatmul.bf16.gmra.mxu0 %v370
    %v2064 = vpop.f32.mrf.mxu0
    %v2065 = vadd.f32 %v2051, %v2064
    %v2066 = vpop.f32.mrf.mxu0
    %v2067 = vadd.f32 %v2053, %v2066
    %2068 = vdwg.mxu0
    %2069 = vmatpush.bf16.msra.mxu0 %v1286
    %2070 = vmatpush.bf16.msra.mxu0 %v1280
    %2071 = vmatpush.bf16.msra.mxu0 %v1274
    %2072 = vmatpush.bf16.msra.mxu0 %v1268
    %2073 = vmatpush.bf16.msra.mxu0 %v1262
    %2074 = vmatpush.bf16.msra.mxu0 %v1256
    %2075 = vmatpush.bf16.msra.mxu0 %v1250
    %2076 = vmatpush.bf16.msra.mxu0 %v1244
    %2077 = vmatmul.bf16.gmra.mxu0 %v365
    %v2078 = vpop.f32.mrf.mxu0
    %v2079 = vadd.f32 %v338, %v2078
    %v2080 = vpop.f32.mrf.mxu0
    %v2081 = vadd.f32 %v338, %v2080
    %2082 = vdwg.mxu0
    %2083 = vmatpush.bf16.msra.mxu0 %v1334
    %2084 = vmatpush.bf16.msra.mxu0 %v1328
    %2085 = vmatpush.bf16.msra.mxu0 %v1322
    %2086 = vmatpush.bf16.msra.mxu0 %v1316
    %2087 = vmatpush.bf16.msra.mxu0 %v1310
    %2088 = vmatpush.bf16.msra.mxu0 %v1304
    %2089 = vmatpush.bf16.msra.mxu0 %v1298
    %2090 = vmatpush.bf16.msra.mxu0 %v1292
    %2091 = vmatmul.bf16.gmra.mxu0 %v366
    %v2092 = vpop.f32.mrf.mxu0
    %v2093 = vadd.f32 %v2079, %v2092
    %v2094 = vpop.f32.mrf.mxu0
    %v2095 = vadd.f32 %v2081, %v2094
    %2096 = vdwg.mxu0
    %2097 = vmatpush.bf16.msra.mxu0 %v1382
    %2098 = vmatpush.bf16.msra.mxu0 %v1376
    %2099 = vmatpush.bf16.msra.mxu0 %v1370
    %2100 = vmatpush.bf16.msra.mxu0 %v1364
    %2101 = vmatpush.bf16.msra.mxu0 %v1358
    %2102 = vmatpush.bf16.msra.mxu0 %v1352
    %2103 = vmatpush.bf16.msra.mxu0 %v1346
    %2104 = vmatpush.bf16.msra.mxu0 %v1340
    %2105 = vmatmul.bf16.gmra.mxu0 %v367
    %v2106 = vpop.f32.mrf.mxu0
    %v2107 = vadd.f32 %v2093, %v2106
    %v2108 = vpop.f32.mrf.mxu0
    %v2109 = vadd.f32 %v2095, %v2108
    %2110 = vdwg.mxu0
    %2111 = vmatpush.bf16.msra.mxu0 %v1430
    %2112 = vmatpush.bf16.msra.mxu0 %v1424
    %2113 = vmatpush.bf16.msra.mxu0 %v1418
    %2114 = vmatpush.bf16.msra.mxu0 %v1412
    %2115 = vmatpush.bf16.msra.mxu0 %v1406
    %2116 = vmatpush.bf16.msra.mxu0 %v1400
    %2117 = vmatpush.bf16.msra.mxu0 %v1394
    %2118 = vmatpush.bf16.msra.mxu0 %v1388
    %2119 = vmatmul.bf16.gmra.mxu0 %v368
    %v2120 = vpop.f32.mrf.mxu0
    %v2121 = vadd.f32 %v2107, %v2120
    %v2122 = vpop.f32.mrf.mxu0
    %v2123 = vadd.f32 %v2109, %v2122
    %2124 = vdwg.mxu0
    %2125 = vmatpush.bf16.msra.mxu0 %v1478
    %2126 = vmatpush.bf16.msra.mxu0 %v1472
    %2127 = vmatpush.bf16.msra.mxu0 %v1466
    %2128 = vmatpush.bf16.msra.mxu0 %v1460
    %2129 = vmatpush.bf16.msra.mxu0 %v1454
    %2130 = vmatpush.bf16.msra.mxu0 %v1448
    %2131 = vmatpush.bf16.msra.mxu0 %v1442
    %2132 = vmatpush.bf16.msra.mxu0 %v1436
    %2133 = vmatmul.bf16.gmra.mxu0 %v369
    %v2134 = vpop.f32.mrf.mxu0
    %v2135 = vadd.f32 %v2121, %v2134
    %v2136 = vpop.f32.mrf.mxu0
    %v2137 = vadd.f32 %v2123, %v2136
    %2138 = vdwg.mxu0
    %2139 = vmatpush.bf16.msra.mxu0 %v1526
    %2140 = vmatpush.bf16.msra.mxu0 %v1520
    %2141 = vmatpush.bf16.msra.mxu0 %v1514
    %2142 = vmatpush.bf16.msra.mxu0 %v1508
    %2143 = vmatpush.bf16.msra.mxu0 %v1502
    %2144 = vmatpush.bf16.msra.mxu0 %v1496
    %2145 = vmatpush.bf16.msra.mxu0 %v1490
    %2146 = vmatpush.bf16.msra.mxu0 %v1484
    %2147 = vmatmul.bf16.gmra.mxu0 %v370
    %v2148 = vpop.f32.mrf.mxu0
    %v2149 = vadd.f32 %v2135, %v2148
    %v2150 = vpop.f32.mrf.mxu0
    %v2151 = vadd.f32 %v2137, %v2150
    %2152 = vdwg.mxu0
    %2153 = vmatpush.bf16.msra.mxu0 %v1287
    %2154 = vmatpush.bf16.msra.mxu0 %v1281
    %2155 = vmatpush.bf16.msra.mxu0 %v1275
    %2156 = vmatpush.bf16.msra.mxu0 %v1269
    %2157 = vmatpush.bf16.msra.mxu0 %v1263
    %2158 = vmatpush.bf16.msra.mxu0 %v1257
    %2159 = vmatpush.bf16.msra.mxu0 %v1251
    %2160 = vmatpush.bf16.msra.mxu0 %v1245
    %2161 = vmatmul.bf16.gmra.mxu0 %v365
    %v2162 = vpop.f32.mrf.mxu0
    %v2163 = vadd.f32 %v339, %v2162
    %v2164 = vpop.f32.mrf.mxu0
    %v2165 = vadd.f32 %v339, %v2164
    %2166 = vdwg.mxu0
    %2167 = vmatpush.bf16.msra.mxu0 %v1335
    %2168 = vmatpush.bf16.msra.mxu0 %v1329
    %2169 = vmatpush.bf16.msra.mxu0 %v1323
    %2170 = vmatpush.bf16.msra.mxu0 %v1317
    %2171 = vmatpush.bf16.msra.mxu0 %v1311
    %2172 = vmatpush.bf16.msra.mxu0 %v1305
    %2173 = vmatpush.bf16.msra.mxu0 %v1299
    %2174 = vmatpush.bf16.msra.mxu0 %v1293
    %2175 = vmatmul.bf16.gmra.mxu0 %v366
    %v2176 = vpop.f32.mrf.mxu0
    %v2177 = vadd.f32 %v2163, %v2176
    %v2178 = vpop.f32.mrf.mxu0
    %v2179 = vadd.f32 %v2165, %v2178
    %2180 = vdwg.mxu0
    %2181 = vmatpush.bf16.msra.mxu0 %v1383
    %2182 = vmatpush.bf16.msra.mxu0 %v1377
    %2183 = vmatpush.bf16.msra.mxu0 %v1371
    %2184 = vmatpush.bf16.msra.mxu0 %v1365
    %2185 = vmatpush.bf16.msra.mxu0 %v1359
    %2186 = vmatpush.bf16.msra.mxu0 %v1353
    %2187 = vmatpush.bf16.msra.mxu0 %v1347
    %2188 = vmatpush.bf16.msra.mxu0 %v1341
    %2189 = vmatmul.bf16.gmra.mxu0 %v367
    %v2190 = vpop.f32.mrf.mxu0
    %v2191 = vadd.f32 %v2177, %v2190
    %v2192 = vpop.f32.mrf.mxu0
    %v2193 = vadd.f32 %v2179, %v2192
    %2194 = vdwg.mxu0
    %2195 = vmatpush.bf16.msra.mxu0 %v1431
    %2196 = vmatpush.bf16.msra.mxu0 %v1425
    %2197 = vmatpush.bf16.msra.mxu0 %v1419
    %2198 = vmatpush.bf16.msra.mxu0 %v1413
    %2199 = vmatpush.bf16.msra.mxu0 %v1407
    %2200 = vmatpush.bf16.msra.mxu0 %v1401
    %2201 = vmatpush.bf16.msra.mxu0 %v1395
    %2202 = vmatpush.bf16.msra.mxu0 %v1389
    %2203 = vmatmul.bf16.gmra.mxu0 %v368
    %v2204 = vpop.f32.mrf.mxu0
    %v2205 = vadd.f32 %v2191, %v2204
    %v2206 = vpop.f32.mrf.mxu0
    %v2207 = vadd.f32 %v2193, %v2206
    %2208 = vdwg.mxu0
    %2209 = vmatpush.bf16.msra.mxu0 %v1479
    %2210 = vmatpush.bf16.msra.mxu0 %v1473
    %2211 = vmatpush.bf16.msra.mxu0 %v1467
    %2212 = vmatpush.bf16.msra.mxu0 %v1461
    %2213 = vmatpush.bf16.msra.mxu0 %v1455
    %2214 = vmatpush.bf16.msra.mxu0 %v1449
    %2215 = vmatpush.bf16.msra.mxu0 %v1443
    %2216 = vmatpush.bf16.msra.mxu0 %v1437
    %2217 = vmatmul.bf16.gmra.mxu0 %v369
    %v2218 = vpop.f32.mrf.mxu0
    %v2219 = vadd.f32 %v2205, %v2218
    %v2220 = vpop.f32.mrf.mxu0
    %v2221 = vadd.f32 %v2207, %v2220
    %2222 = vdwg.mxu0
    %2223 = vmatpush.bf16.msra.mxu0 %v1527
    %2224 = vmatpush.bf16.msra.mxu0 %v1521
    %2225 = vmatpush.bf16.msra.mxu0 %v1515
    %2226 = vmatpush.bf16.msra.mxu0 %v1509
    %2227 = vmatpush.bf16.msra.mxu0 %v1503
    %2228 = vmatpush.bf16.msra.mxu0 %v1497
    %2229 = vmatpush.bf16.msra.mxu0 %v1491
    %2230 = vmatpush.bf16.msra.mxu0 %v1485
    %2231 = vmatmul.bf16.gmra.mxu0 %v370
    %v2232 = vpop.f32.mrf.mxu0
    %v2233 = vadd.f32 %v2219, %v2232
    %v2234 = vpop.f32.mrf.mxu0
    %v2235 = vadd.f32 %v2221, %v2234
    %2236 = vdwg.mxu0
    %2237 = vmatpush.bf16.msra.mxu0 %v1288
    %2238 = vmatpush.bf16.msra.mxu0 %v1282
    %2239 = vmatpush.bf16.msra.mxu0 %v1276
    %2240 = vmatpush.bf16.msra.mxu0 %v1270
    %2241 = vmatpush.bf16.msra.mxu0 %v1264
    %2242 = vmatpush.bf16.msra.mxu0 %v1258
    %2243 = vmatpush.bf16.msra.mxu0 %v1252
    %2244 = vmatpush.bf16.msra.mxu0 %v1246
    %2245 = vmatmul.bf16.gmra.mxu0 %v365
    %v2246 = vpop.f32.mrf.mxu0
    %v2247 = vadd.f32 %v340, %v2246
    %v2248 = vpop.f32.mrf.mxu0
    %v2249 = vadd.f32 %v340, %v2248
    %2250 = vdwg.mxu0
    %2251 = vmatpush.bf16.msra.mxu0 %v1336
    %2252 = vmatpush.bf16.msra.mxu0 %v1330
    %2253 = vmatpush.bf16.msra.mxu0 %v1324
    %2254 = vmatpush.bf16.msra.mxu0 %v1318
    %2255 = vmatpush.bf16.msra.mxu0 %v1312
    %2256 = vmatpush.bf16.msra.mxu0 %v1306
    %2257 = vmatpush.bf16.msra.mxu0 %v1300
    %2258 = vmatpush.bf16.msra.mxu0 %v1294
    %2259 = vmatmul.bf16.gmra.mxu0 %v366
    %v2260 = vpop.f32.mrf.mxu0
    %v2261 = vadd.f32 %v2247, %v2260
    %v2262 = vpop.f32.mrf.mxu0
    %v2263 = vadd.f32 %v2249, %v2262
    %2264 = vdwg.mxu0
    %2265 = vmatpush.bf16.msra.mxu0 %v1384
    %2266 = vmatpush.bf16.msra.mxu0 %v1378
    %2267 = vmatpush.bf16.msra.mxu0 %v1372
    %2268 = vmatpush.bf16.msra.mxu0 %v1366
    %2269 = vmatpush.bf16.msra.mxu0 %v1360
    %2270 = vmatpush.bf16.msra.mxu0 %v1354
    %2271 = vmatpush.bf16.msra.mxu0 %v1348
    %2272 = vmatpush.bf16.msra.mxu0 %v1342
    %2273 = vmatmul.bf16.gmra.mxu0 %v367
    %v2274 = vpop.f32.mrf.mxu0
    %v2275 = vadd.f32 %v2261, %v2274
    %v2276 = vpop.f32.mrf.mxu0
    %v2277 = vadd.f32 %v2263, %v2276
    %2278 = vdwg.mxu0
    %2279 = vmatpush.bf16.msra.mxu0 %v1432
    %2280 = vmatpush.bf16.msra.mxu0 %v1426
    %2281 = vmatpush.bf16.msra.mxu0 %v1420
    %2282 = vmatpush.bf16.msra.mxu0 %v1414
    %2283 = vmatpush.bf16.msra.mxu0 %v1408
    %2284 = vmatpush.bf16.msra.mxu0 %v1402
    %2285 = vmatpush.bf16.msra.mxu0 %v1396
    %2286 = vmatpush.bf16.msra.mxu0 %v1390
    %2287 = vmatmul.bf16.gmra.mxu0 %v368
    %v2288 = vpop.f32.mrf.mxu0
    %v2289 = vadd.f32 %v2275, %v2288
    %v2290 = vpop.f32.mrf.mxu0
    %v2291 = vadd.f32 %v2277, %v2290
    %2292 = vdwg.mxu0
    %2293 = vmatpush.bf16.msra.mxu0 %v1480
    %2294 = vmatpush.bf16.msra.mxu0 %v1474
    %2295 = vmatpush.bf16.msra.mxu0 %v1468
    %2296 = vmatpush.bf16.msra.mxu0 %v1462
    %2297 = vmatpush.bf16.msra.mxu0 %v1456
    %2298 = vmatpush.bf16.msra.mxu0 %v1450
    %2299 = vmatpush.bf16.msra.mxu0 %v1444
    %2300 = vmatpush.bf16.msra.mxu0 %v1438
    %2301 = vmatmul.bf16.gmra.mxu0 %v369
    %v2302 = vpop.f32.mrf.mxu0
    %v2303 = vadd.f32 %v2289, %v2302
    %v2304 = vpop.f32.mrf.mxu0
    %v2305 = vadd.f32 %v2291, %v2304
    %2306 = vdwg.mxu0
    %2307 = vmatpush.bf16.msra.mxu0 %v1528
    %2308 = vmatpush.bf16.msra.mxu0 %v1522
    %2309 = vmatpush.bf16.msra.mxu0 %v1516
    %2310 = vmatpush.bf16.msra.mxu0 %v1510
    %2311 = vmatpush.bf16.msra.mxu0 %v1504
    %2312 = vmatpush.bf16.msra.mxu0 %v1498
    %2313 = vmatpush.bf16.msra.mxu0 %v1492
    %2314 = vmatpush.bf16.msra.mxu0 %v1486
    %2315 = vmatmul.bf16.gmra.mxu0 %v370
    %v2316 = vpop.f32.mrf.mxu0
    %v2317 = vadd.f32 %v2303, %v2316
    %v2318 = vpop.f32.mrf.mxu0
    %v2319 = vadd.f32 %v2305, %v2318
    %2320 = vdwg.mxu0
    %v2321 = vld [vmem:[%s3] sm:$0xff]
    %v2322 = vld [vmem:[%s3 + $0x8] sm:$0xff]
    %v2323 = vld [vmem:[%s3 + $0x10] sm:$0xff]
    %v2324 = vld [vmem:[%s3 + $0x18] sm:$0xff]
    %v2325 = vld [vmem:[%s3 + $0x20] sm:$0xff]
    %v2326 = vld [vmem:[%s3 + $0x28] sm:$0xff]
    %v2327 = vld [vmem:[%s3 + $0x30] sm:$0xff]
    %v2328 = vld [vmem:[%s3 + $0x38] sm:$0xff]
    %v2329 = vld [vmem:[%s3 + $0x40] sm:$0xff]
    %v2330 = vld [vmem:[%s3 + $0x48] sm:$0xff]
    %v2331 = vld [vmem:[%s3 + $0x50] sm:$0xff]
    %v2332 = vld [vmem:[%s3 + $0x58] sm:$0xff]
    %v2333 = vadd.f32 %v1897, %v2321
    %v2334 = vadd.f32 %v1981, %v2322
    %v2335 = vadd.f32 %v2065, %v2323
    %v2336 = vadd.f32 %v2149, %v2324
    %v2337 = vadd.f32 %v2233, %v2325
    %v2338 = vadd.f32 %v2317, %v2326
    %v2339 = vadd.f32 %v1899, %v2327
    %v2340 = vadd.f32 %v1983, %v2328
    %v2341 = vadd.f32 %v2067, %v2329
    %v2342 = vadd.f32 %v2151, %v2330
    %v2343 = vadd.f32 %v2235, %v2331
    %v2344 = vadd.f32 %v2319, %v2332
    %v2345 = vadd.f32 %v2333, %v2334
    %v2346 = vadd.f32 %v2345, %v2335
    %v2347 = vadd.f32 %v2346, %v2336
    %v2348 = vadd.f32 %v2347, %v2337
    %v2349 = vadd.f32 %v2348, %v2338
    %2350 = vadd.xlane.f32.xlu0 %v2349
    %v2351 = vpop.xlane.xlu0 %2350
    %v2352 = vadd.f32 %v2339, %v2340
    %v2353 = vadd.f32 %v2352, %v2341
    %v2354 = vadd.f32 %v2353, %v2342
    %v2355 = vadd.f32 %v2354, %v2343
    %v2356 = vadd.f32 %v2355, %v2344
    %2357 = vadd.xlane.f32.xlu0 %v2356
    %v2358 = vpop.xlane.xlu0 %2357
    %v2359 = vrcp.pop 768.0
    %v2360 = vmul.f32 768.0, %v2359
    %v2361 = vsub.f32 1.0, %v2360
    %v2362 = vmul.f32 %v2359, %v2361
    %v2363 = vadd.f32 %v2359, %v2362
    %vm2364 = vweird.f32 %v2359
    %v2365 = vsel %vm2364, %v2359, %v2363
    %v2366 = vmul.f32 %v2351, %v2365
    %v2367 = vmul.f32 %v2358, %v2365
    %v2368 = vsub.f32 %v2333, %v2366
    %v2369 = vsub.f32 %v2334, %v2366
    %v2370 = vsub.f32 %v2335, %v2366
    %v2371 = vsub.f32 %v2336, %v2366
    %v2372 = vsub.f32 %v2337, %v2366
    %v2373 = vsub.f32 %v2338, %v2366
    %v2374 = vsub.f32 %v2339, %v2367
    %v2375 = vsub.f32 %v2340, %v2367
    %v2376 = vsub.f32 %v2341, %v2367
    %v2377 = vsub.f32 %v2342, %v2367
    %v2378 = vsub.f32 %v2343, %v2367
    %v2379 = vsub.f32 %v2344, %v2367
    %v2380 = vmul.f32 %v2368, %v2368
    %v2381 = vmul.f32 %v2369, %v2369
    %v2382 = vmul.f32 %v2370, %v2370
    %v2383 = vmul.f32 %v2371, %v2371
    %v2384 = vmul.f32 %v2372, %v2372
    %v2385 = vmul.f32 %v2373, %v2373
    %v2386 = vmul.f32 %v2374, %v2374
    %v2387 = vmul.f32 %v2375, %v2375
    %v2388 = vmul.f32 %v2376, %v2376
    %v2389 = vmul.f32 %v2377, %v2377
    %v2390 = vmul.f32 %v2378, %v2378
    %v2391 = vmul.f32 %v2379, %v2379
    %v2392 = vadd.f32 %v2380, %v2381
    %v2393 = vadd.f32 %v2392, %v2382
    %v2394 = vadd.f32 %v2393, %v2383
    %v2395 = vadd.f32 %v2394, %v2384
    %v2396 = vadd.f32 %v2395, %v2385
    %2397 = vadd.xlane.f32.xlu0 %v2396
    %v2398 = vpop.xlane.xlu0 %2397
    %v2399 = vadd.f32 %v2386, %v2387
    %v2400 = vadd.f32 %v2399, %v2388
    %v2401 = vadd.f32 %v2400, %v2389
    %v2402 = vadd.f32 %v2401, %v2390
    %v2403 = vadd.f32 %v2402, %v2391
    %2404 = vadd.xlane.f32.xlu0 %v2403
    %v2405 = vpop.xlane.xlu0 %2404
    %v2406 = vmul.f32 %v2398, %v2365
    %v2407 = vmul.f32 %v2405, %v2365
    %v2408 = vadd.f32 %v2406, 1e-05
    %v2409 = vadd.f32 %v2407, 1e-05
    %v2410 = vrsqrt.pop %v2408
    %v2411 = vmul.f32 %v2410, %v2408
    %v2412 = vmul.f32 %v2411, %v2410
    %v2413 = vmul.f32 0.5, %v2412
    %v2414 = vsub.f32 1.5, %v2413
    %v2415 = vmul.f32 %v2410, %v2414
    %vm2416 = vweird.f32 %v2408
    %vm2417 = vweird.f32 %v2410
    %vm2418 = vmor %vm2416, %vm2417
    %v2419 = vsel %vm2418, %v2410, %v2415
    %v2420 = vrsqrt.pop %v2409
    %v2421 = vmul.f32 %v2420, %v2409
    %v2422 = vmul.f32 %v2421, %v2420
    %v2423 = vmul.f32 0.5, %v2422
    %v2424 = vsub.f32 1.5, %v2423
    %v2425 = vmul.f32 %v2420, %v2424
    %vm2426 = vweird.f32 %v2409
    %vm2427 = vweird.f32 %v2420
    %vm2428 = vmor %vm2426, %vm2427
    %v2429 = vsel %vm2428, %v2420, %v2425
    %v2430 = vmul.f32 %v2368, %v2419
    %v2431 = vmul.f32 %v2369, %v2419
    %v2432 = vmul.f32 %v2370, %v2419
    %v2433 = vmul.f32 %v2371, %v2419
    %v2434 = vmul.f32 %v2372, %v2419
    %v2435 = vmul.f32 %v2373, %v2419
    %v2436 = vmul.f32 %v2374, %v2429
    %v2437 = vmul.f32 %v2375, %v2429
    %v2438 = vmul.f32 %v2376, %v2429
    %v2439 = vmul.f32 %v2377, %v2429
    %v2440 = vmul.f32 %v2378, %v2429
    %v2441 = vmul.f32 %v2379, %v2429
    %v2442 = vld [vmem:[%s4] sm:$0x3f]
    %v2444 = vperm.slane %v2442, 0
    %v2445 = vperm.slane %v2442, 1
    %v2446 = vperm.slane %v2442, 2
    %v2447 = vperm.slane %v2442, 3
    %v2448 = vperm.slane %v2442, 4
    %v2449 = vperm.slane %v2442, 5
    %v2456 = vmul.f32 %v2430, %v2444
    %v2457 = vmul.f32 %v2431, %v2445
    %v2458 = vmul.f32 %v2432, %v2446
    %v2459 = vmul.f32 %v2433, %v2447
    %v2460 = vmul.f32 %v2434, %v2448
    %v2461 = vmul.f32 %v2435, %v2449
    %v2462 = vmul.f32 %v2436, %v2444
    %v2463 = vmul.f32 %v2437, %v2445
    %v2464 = vmul.f32 %v2438, %v2446
    %v2465 = vmul.f32 %v2439, %v2447
    %v2466 = vmul.f32 %v2440, %v2448
    %v2467 = vmul.f32 %v2441, %v2449
    %v2468 = vld [vmem:[%s5] sm:$0x3f]
    %v2470 = vperm.slane %v2468, 0
    %v2471 = vperm.slane %v2468, 1
    %v2472 = vperm.slane %v2468, 2
    %v2473 = vperm.slane %v2468, 3
    %v2474 = vperm.slane %v2468, 4
    %v2475 = vperm.slane %v2468, 5
    %v2482 = vadd.f32 %v2456, %v2470
    %v2483 = vadd.f32 %v2457, %v2471
    %v2484 = vadd.f32 %v2458, %v2472
    %v2485 = vadd.f32 %v2459, %v2473
    %v2486 = vadd.f32 %v2460, %v2474
    %v2487 = vadd.f32 %v2461, %v2475
    %v2488 = vadd.f32 %v2462, %v2470
    %v2489 = vadd.f32 %v2463, %v2471
    %v2490 = vadd.f32 %v2464, %v2472
    %v2491 = vadd.f32 %v2465, %v2473
    %v2492 = vadd.f32 %v2466, %v2474
    %v2493 = vadd.f32 %v2467, %v2475
    %2494 = vst [vmem:[%s6] sm:$0xff] %v2482
    %2495 = vst [vmem:[%s6 + $0x8] sm:$0xff] %v2483
    %2496 = vst [vmem:[%s6 + $0x10] sm:$0xff] %v2484
    %2497 = vst [vmem:[%s6 + $0x18] sm:$0xff] %v2485
    %2498 = vst [vmem:[%s6 + $0x20] sm:$0xff] %v2486
    %2499 = vst [vmem:[%s6 + $0x28] sm:$0xff] %v2487
    %2500 = vst [vmem:[%s6 + $0x30] sm:$0xff] %v2488
    %2501 = vst [vmem:[%s6 + $0x38] sm:$0xff] %v2489
    %2502 = vst [vmem:[%s6 + $0x40] sm:$0xff] %v2490
    %2503 = vst [vmem:[%s6 + $0x48] sm:$0xff] %v2491
    %2504 = vst [vmem:[%s6 + $0x50] sm:$0xff] %v2492
    %2505 = vst [vmem:[%s6 + $0x58] sm:$0xff] %v2493
    // Predicated region
    $region30: #{dnabert_forward.50} parent=1 // pred_check
      _
    $region31: #{dnabert_forward.50} parent=1 // pred_check_branch
      %2507 = sbr.rel (0) target = $region33
    $region32: #{dnabert_forward.50} parent=1 // pred_region
      _
    $region33: #{dnabert_forward.50} parent=1 // pred_fallthru
      _
    // Predicated region
    $region34: #{dnabert_forward.50} parent=1 // pred_check
      _
    $region35: #{dnabert_forward.50} parent=1 // pred_check_branch
      %2509 = sbr.rel (0) target = $region37
    $region36: #{dnabert_forward.50} parent=1 // pred_region
      _
    $region37: #{dnabert_forward.50} parent=1 // pred_fallthru
      _
    %2510 = vsyncpa [#allocation3], 1

// kernel: dnabert_forward.51
$region0: #{dnabert_forward.51}
  #allocation0 [shape = 'u32[]', space=smem, size = 0x4, offset = 0x4, fixed_abs, tag = 'smem constant byte address 0x4 - core index']
  #allocation1 [shape = 'u32[72,128]{1,0:T(1,128)}', space=vmem, size = 0x9000, scoped, tag = 'internal scratch']
  #allocation2 [shape = 'f32[16,768]{1,0:T(8,128)}', space=vmem, size = 0xc000, scoped, tag = 'scratch operand']
  %s0 = inlined_call_operand.vmem [shape: f32[16,768], index: 0, kind: input, shape index: {}]
  %s1 = inlined_call_operand.hbm [shape: bf16[768,3072], index: 1, kind: input, shape index: {}]
  %s2 = inlined_call_operand.hbm [shape: f32[1,3072], index: 2, kind: input, shape index: {}]
  %s3 = inlined_call_operand.hbm [shape: bf16[3072,768], index: 3, kind: input, shape index: {}]
  %s4 = inlined_call_operand.vmem [shape: f32[1,768], index: 4, kind: input, shape index: {}]
  %s5 = inlined_call_operand.vmem [shape: f32[1,768], index: 5, kind: input, shape index: {}]
  %s6 = inlined_call_operand.vmem [shape: f32[1,768], index: 6, kind: input, shape index: {}]
  %s7 = inlined_call_operand.vmem [shape: f32[16,768], index: 7, kind: output, shape index: {}]
  %s8 = sld [smem:[#allocation0]]
  $region81: #{dnabert_forward.51} parent=0
    _
  %s10 = ssub.s32 1, %s8
  %s11 = scalar_select 0, %s10, %s8
  $region1: #{dnabert_forward.51} parent=0
    #allocation3 [shape = 'u8[2359296]{0}', space=vmem, size = 0x240000, scoped, tag = 'input window, operand 1']
    #allocation4 [shape = 's32[2]{0}', space=sflag, size = 0x8, scoped, tag = 'scoped memory for dnabert_forward.51']
    #allocation5 [shape = 'u8[6144]{0}', space=vmem, size = 0x1800, scoped, tag = 'input window, operand 2']
    #allocation6 [shape = 's32[2]{0}', space=sflag, size = 0x8, scoped, tag = 'scoped memory for dnabert_forward.51']
    #allocation7 [shape = 'u8[2359296]{0}', space=vmem, size = 0x240000, scoped, tag = 'input window, operand 3']
    %12 = vsyncpa [#allocation4], 0
    %s13 = scalar_lea.sflag [#allocation4], 1
    %14 = vsyncpa %s13, 0
    %15 = vsyncpa [#allocation6], 0
    %s16 = scalar_lea.sflag [#allocation6], 1
    %17 = vsyncpa %s16, 0
    loop: start=0, step=1, limit=6
    $region2: #{dnabert_forward.51} parent=1 // loop_pre_header
      _
    $region3: #{dnabert_forward.51} parent=1 // loop_header
      %s19 = sphi 0, %s23
      %p20 = scmp.ge.s32.totalorder %s19, 6
      %s26 = sphi 0, %s38
      %s27 = sphi 0, %s34
      %s28 = sphi 0, %s26
      %s29 = sphi 0, %s27
      %s30 = sphi 0, %s28
      %s31 = sphi 0, %s29
      %s41 = sphi 0, %s43
      %s44 = sphi 0, %s41
      %s45 = sphi 0, %s44
      %s61 = sphi 0, %s45
      %s67 = sphi 0, %s69
      %s70 = sphi 0, %s67
      %s71 = sphi 0, %s70
      %s87 = sphi 0, %s71
      %s93 = sphi 0, %s95
      %s96 = sphi 0, %s93
      %s97 = sphi 0, %s96
      %s113 = sphi 0, %s97
      %s119 = sphi 0, %s121
      %s122 = sphi 0, %s119
      %s123 = sphi 0, %s122
      %s139 = sphi 0, %s123
      %s143 = sphi 0, %s143
      %s145 = sphi 0, %s143
      %s146 = sphi 0, %s145
      %s160 = sphi 0, %s146
      %s164 = sphi 0, %s164
      %s166 = sphi 0, %s164
      %s167 = sphi 0, %s166
      %s181 = sphi 0, %s167
      %s185 = sphi 0, %s185
      %s187 = sphi 0, %s185
      %s188 = sphi 0, %s187
      %s202 = sphi 0, %s188
      %s208 = sphi 0, %s210
      %s211 = sphi 0, %s208
      %s212 = sphi 0, %s211
      %s228 = sphi 0, %s212
    $region4: #{dnabert_forward.51} parent=1 // loop_header_branch
      %22 = sbr.rel (%p20) target = $region8
    $region5: #{dnabert_forward.51} parent=1 // loop_body
      %s24 = ssub.s32 %s19, 1
      %s25 = ssub.s32 %s19, 2
      %s32 = sadd.s32 1, %s27
      %p33 = scmp.ge.s32.totalorder %s32, 4
      %s34 = scalar_select %p33, 0, %s32
      %s35 = sadd.s32 1, %s26
      %s36 = scalar_select %p33, %s35, %s26
      %p37 = scmp.ge.s32.totalorder %s36, 1
      %s38 = scalar_select %p37, 0, %s36
      %s39 = ssub.s32 %s26, %s38
      %p40 = scmp.eq.s32.totalorder %s39, 0
      %s42 = sadd.s32 %s41, 1
      %s43 = scalar_select %p40, %s41, %s42
      %p46 = pneg %p40
      %p47 = scmp.eq.s32.totalorder %s19, 3
      %p48 = por %p46, %p47
      %p49 = scmp.ne.s32.totalorder %s41, %s44
      %p50 = scmp.eq.s32.totalorder %s19, 0
      %p51 = por %p49, %p50
      %p52 = scmp.ne.s32.totalorder %s41, %s44
      %p53 = scmp.eq.s32.totalorder %s24, 3
      %p54 = por %p52, %p53
      %p55 = scmp.ne.s32.totalorder %s44, %s45
      %p56 = scmp.eq.s32.totalorder %s24, 0
      %p57 = por %p55, %p56
      %p58 = scmp.ne.s32.totalorder %s44, %s45
      %p59 = scmp.eq.s32.totalorder %s25, 3
      %p60 = por %p58, %p59
      %p62 = scmp.ne.s32.totalorder %s45, %s61
      %p63 = scmp.eq.s32.totalorder %s25, 0
      %p64 = por %p62, %p63
      %s65 = ssub.s32 %s27, %s34
      %p66 = scmp.eq.s32.totalorder %s65, 0
      %s68 = sadd.s32 %s67, 1
      %s69 = scalar_select %p66, %s67, %s68
      %p72 = pneg %p66
      %p73 = scmp.eq.s32.totalorder %s19, 3
      %p74 = por %p72, %p73
      %p75 = scmp.ne.s32.totalorder %s67, %s70
      %p76 = scmp.eq.s32.totalorder %s19, 0
      %p77 = por %p75, %p76
      %p78 = scmp.ne.s32.totalorder %s67, %s70
      %p79 = scmp.eq.s32.totalorder %s24, 3
      %p80 = por %p78, %p79
      %p81 = scmp.ne.s32.totalorder %s70, %s71
      %p82 = scmp.eq.s32.totalorder %s24, 0
      %p83 = por %p81, %p82
      %p84 = scmp.ne.s32.totalorder %s70, %s71
      %p85 = scmp.eq.s32.totalorder %s25, 3
      %p86 = por %p84, %p85
      %p88 = scmp.ne.s32.totalorder %s71, %s87
      %p89 = scmp.eq.s32.totalorder %s25, 0
      %p90 = por %p88, %p89
      %s91 = ssub.s32 %s27, %s34
      %p92 = scmp.eq.s32.totalorder %s91, 0
      %s94 = sadd.s32 %s93, 1
      %s95 = scalar_select %p92, %s93, %s94
      %p98 = pneg %p92
      %p99 = scmp.eq.s32.totalorder %s19, 3
      %p100 = por %p98, %p99
      %p101 = scmp.ne.s32.totalorder %s93, %s96
      %p102 = scmp.eq.s32.totalorder %s19, 0
      %p103 = por %p101, %p102
      %p104 = scmp.ne.s32.totalorder %s93, %s96
      %p105 = scmp.eq.s32.totalorder %s24, 3
      %p106 = por %p104, %p105
      %p107 = scmp.ne.s32.totalorder %s96, %s97
      %p108 = scmp.eq.s32.totalorder %s24, 0
      %p109 = por %p107, %p108
      %p110 = scmp.ne.s32.totalorder %s96, %s97
      %p111 = scmp.eq.s32.totalorder %s25, 3
      %p112 = por %p110, %p111
      %p114 = scmp.ne.s32.totalorder %s97, %s113
      %p115 = scmp.eq.s32.totalorder %s25, 0
      %p116 = por %p114, %p115
      %s117 = ssub.s32 %s27, %s34
      %p118 = scmp.eq.s32.totalorder %s117, 0
      %s120 = sadd.s32 %s119, 1
      %s121 = scalar_select %p118, %s119, %s120
      %p124 = pneg %p118
      %p125 = scmp.eq.s32.totalorder %s19, 3
      %p126 = por %p124, %p125
      %p127 = scmp.ne.s32.totalorder %s119, %s122
      %p128 = scmp.eq.s32.totalorder %s19, 0
      %p129 = por %p127, %p128
      %p130 = scmp.ne.s32.totalorder %s119, %s122
      %p131 = scmp.eq.s32.totalorder %s24, 3
      %p132 = por %p130, %p131
      %p133 = scmp.ne.s32.totalorder %s122, %s123
      %p134 = scmp.eq.s32.totalorder %s24, 0
      %p135 = por %p133, %p134
      %p136 = scmp.ne.s32.totalorder %s122, %s123
      %p137 = scmp.eq.s32.totalorder %s25, 3
      %p138 = por %p136, %p137
      %p140 = scmp.ne.s32.totalorder %s123, %s139
      %p141 = scmp.eq.s32.totalorder %s25, 0
      %p142 = por %p140, %p141
      %s144 = sadd.s32 %s143, 1
      %p147 = scmp.eq.s32.totalorder %s19, 3
      %p148 = scmp.ne.s32.totalorder %s143, %s145
      %p149 = scmp.eq.s32.totalorder %s19, 0
      %p150 = por %p148, %p149
      %p151 = scmp.ne.s32.totalorder %s143, %s145
      %p152 = scmp.eq.s32.totalorder %s24, 3
      %p153 = por %p151, %p152
      %p154 = scmp.ne.s32.totalorder %s145, %s146
      %p155 = scmp.eq.s32.totalorder %s24, 0
      %p156 = por %p154, %p155
      %p157 = scmp.ne.s32.totalorder %s145, %s146
      %p158 = scmp.eq.s32.totalorder %s25, 3
      %p159 = por %p157, %p158
      %p161 = scmp.ne.s32.totalorder %s146, %s160
      %p162 = scmp.eq.s32.totalorder %s25, 0
      %p163 = por %p161, %p162
      %s165 = sadd.s32 %s164, 1
      %p168 = scmp.eq.s32.totalorder %s19, 3
      %p169 = scmp.ne.s32.totalorder %s164, %s166
      %p170 = scmp.eq.s32.totalorder %s19, 0
      %p171 = por %p169, %p170
      %p172 = scmp.ne.s32.totalorder %s164, %s166
      %p173 = scmp.eq.s32.totalorder %s24, 3
      %p174 = por %p172, %p173
      %p175 = scmp.ne.s32.totalorder %s166, %s167
      %p176 = scmp.eq.s32.totalorder %s24, 0
      %p177 = por %p175, %p176
      %p178 = scmp.ne.s32.totalorder %s166, %s167
      %p179 = scmp.eq.s32.totalorder %s25, 3
      %p180 = por %p178, %p179
      %p182 = scmp.ne.s32.totalorder %s167, %s181
      %p183 = scmp.eq.s32.totalorder %s25, 0
      %p184 = por %p182, %p183
      %s186 = sadd.s32 %s185, 1
      %p189 = scmp.eq.s32.totalorder %s19, 3
      %p190 = scmp.ne.s32.totalorder %s185, %s187
      %p191 = scmp.eq.s32.totalorder %s19, 0
      %p192 = por %p190, %p191
      %p193 = scmp.ne.s32.totalorder %s185, %s187
      %p194 = scmp.eq.s32.totalorder %s24, 3
      %p195 = por %p193, %p194
      %p196 = scmp.ne.s32.totalorder %s187, %s188
      %p197 = scmp.eq.s32.totalorder %s24, 0
      %p198 = por %p196, %p197
      %p199 = scmp.ne.s32.totalorder %s187, %s188
      %p200 = scmp.eq.s32.totalorder %s25, 3
      %p201 = por %p199, %p200
      %p203 = scmp.ne.s32.totalorder %s188, %s202
      %p204 = scmp.eq.s32.totalorder %s25, 0
      %p205 = por %p203, %p204
      %s206 = ssub.s32 %s26, %s38
      %p207 = scmp.eq.s32.totalorder %s206, 0
      %s209 = sadd.s32 %s208, 1
      %s210 = scalar_select %p207, %s208, %s209
      %p213 = pneg %p207
      %p214 = scmp.eq.s32.totalorder %s19, 3
      %p215 = por %p213, %p214
      %p216 = scmp.ne.s32.totalorder %s208, %s211
      %p217 = scmp.eq.s32.totalorder %s19, 0
      %p218 = por %p216, %p217
      %p219 = scmp.ne.s32.totalorder %s208, %s211
      %p220 = scmp.eq.s32.totalorder %s24, 3
      %p221 = por %p219, %p220
      %p222 = scmp.ne.s32.totalorder %s211, %s212
      %p223 = scmp.eq.s32.totalorder %s24, 0
      %p224 = por %p222, %p223
      %p225 = scmp.ne.s32.totalorder %s211, %s212
      %p226 = scmp.eq.s32.totalorder %s25, 3
      %p227 = por %p225, %p226
      %p229 = scmp.ne.s32.totalorder %s212, %s228
      %p230 = scmp.eq.s32.totalorder %s25, 0
      %p231 = por %p229, %p230
      %p232 = scmp.le.s32.totalorder 1, %s19
      %p233 = scmp.lt.s32.totalorder %s19, 5
      %p234 = pnand %p232, %p233
      %p235 = pneg %p234
      // Predicated region
      $region9: #{dnabert_forward.51} parent=5 // pred_check
        _
      $region10: #{dnabert_forward.51} parent=5 // pred_check_branch
        %237 = sbr.rel (%p234) target = $region12
      $region11: #{dnabert_forward.51} parent=5 // pred_region
        %s238 = ssub.s32 %s19, 1
        // Predicated region
        $region13: #{dnabert_forward.51} parent=11 // pred_check
          %p239 = pneg %p57
        $region14: #{dnabert_forward.51} parent=11 // pred_check_branch
          %241 = sbr.rel (%p239) target = $region16
        $region15: #{dnabert_forward.51} parent=11 // pred_region
          %s242 = smul.u32 2, %s28
          %p243 = scmp.lt.s32.totalorder %s242, 1
          %s244 = scalar_select %p243, %s242, 1
          %s245 = smul.addr %s244, 6
          %s246 = smul.addr %s245, 8
          %s247 = scalar_lea.vmem %s0, %s246
          %s248 = smul.u32 2, %s28
        $region16: #{dnabert_forward.51} parent=11 // pred_fallthru
          _
        // Predicated region
        $region17: #{dnabert_forward.51} parent=11 // pred_check
          %p249 = pneg %p156
        $region18: #{dnabert_forward.51} parent=11 // pred_check_branch
          %251 = sbr.rel (%p249) target = $region20
        $region19: #{dnabert_forward.51} parent=11 // pred_region
          _
        $region20: #{dnabert_forward.51} parent=11 // pred_fallthru
          _
        // Predicated region
        $region21: #{dnabert_forward.51} parent=11 // pred_check
          %p252 = pneg %p177
        $region22: #{dnabert_forward.51} parent=11 // pred_check_branch
          %254 = sbr.rel (%p252) target = $region24
        $region23: #{dnabert_forward.51} parent=11 // pred_region
          _
        $region24: #{dnabert_forward.51} parent=11 // pred_fallthru
          _
        // Predicated region
        $region25: #{dnabert_forward.51} parent=11 // pred_check
          %p255 = pneg %p198
        $region26: #{dnabert_forward.51} parent=11 // pred_check_branch
          %257 = sbr.rel (%p255) target = $region28
        $region27: #{dnabert_forward.51} parent=11 // pred_region
          _
        $region28: #{dnabert_forward.51} parent=11 // pred_fallthru
          _
      $region12: #{dnabert_forward.51} parent=5 // pred_fallthru
        _
      %p258 = scmp.lt.s32.totalorder %s19, 4
      // Predicated region
      $region29: #{dnabert_forward.51} parent=5 // pred_check
        %p259 = pneg %p258
      $region30: #{dnabert_forward.51} parent=5 // pred_check_branch
        %261 = sbr.rel (%p259) target = $region32
      $region31: #{dnabert_forward.51} parent=5 // pred_region
        // Predicated region
        $region33: #{dnabert_forward.51} parent=31 // pred_check
          %p262 = pneg %p77
        $region34: #{dnabert_forward.51} parent=31 // pred_check_branch
          %264 = sbr.rel (%p262) target = $region36
        $region35: #{dnabert_forward.51} parent=31 // pred_region
          %s265 = sand.u32 %s67, 1
          %s266 = scalar_lea.sflag [#allocation4], %s265
          %s267 = sand.u32 %s67, 1
          %s268 = smul.addr %s267, 2304
          %s269 = scalar_lea.vmem [#allocation3], %s268
          %s270 = smul.u32 6, %s27
          %272 = vsyncadd %s266, 0
          %s273 = smul.addr %s270, 4
          %s274 = scalar_lea.hbm %s1, %s273
          %s275 = sshll.u32 %s274, 4
          %s276 = int_to_ptr.hbm [resolvable:$true] %s275
          %s277 = sshll.u32 %s269, 4
          %s278 = int_to_ptr.vmem [resolvable:$true] %s277
          %283 = dma.hbm_to_vmem [thread:$0]  %s276, 36864, %s278, %s266, 1536, 384, 24
        $region36: #{dnabert_forward.51} parent=31 // pred_fallthru
          _
        // Predicated region
        $region37: #{dnabert_forward.51} parent=31 // pred_check
          %p284 = pneg %p103
        $region38: #{dnabert_forward.51} parent=31 // pred_check_branch
          %286 = sbr.rel (%p284) target = $region40
        $region39: #{dnabert_forward.51} parent=31 // pred_region
          %s287 = sand.u32 %s19, 1
          %s288 = scalar_lea.sflag [#allocation6], %s287
          %s289 = sand.u32 %s93, 1
          %s290 = smul.addr %s289, 6
          %s291 = scalar_lea.vmem [#allocation5], %s290
          %s292 = smul.u32 6, %s27
          %294 = vsyncadd %s288, 0
          %s295 = scalar_lea.hbm %s2, %s292
          %s297 = sshll.u32 %s295, 4
          %s298 = int_to_ptr.hbm [resolvable:$true] %s297
          %s299 = sshll.u32 %s291, 4
          %s300 = int_to_ptr.vmem [resolvable:$true] %s299
          %302 = dma.hbm_to_vmem [thread:$0]  %s298, 96, %s300, %s288
        $region40: #{dnabert_forward.51} parent=31 // pred_fallthru
          _
        // Predicated region
        $region41: #{dnabert_forward.51} parent=31 // pred_check
          %p303 = pneg %p129
        $region42: #{dnabert_forward.51} parent=31 // pred_check_branch
          %305 = sbr.rel (%p303) target = $region44
        $region43: #{dnabert_forward.51} parent=31 // pred_region
          %s306 = sand.u32 %s19, 1
          %s307 = scalar_lea.sflag [#allocation6], %s306
          %s308 = sand.u32 %s119, 1
          %s309 = smul.addr %s308, 2304
          %s310 = scalar_lea.vmem [#allocation7], %s309
          %s311 = smul.u32 96, %s27
          %313 = vsyncadd %s307, 0
          %s314 = smul.addr %s311, 6
          %s315 = smul.addr %s314, 4
          %s316 = scalar_lea.hbm %s3, %s315
          %s317 = sshll.u32 %s316, 4
          %s318 = int_to_ptr.hbm [resolvable:$true] %s317
          %s319 = sshll.u32 %s310, 4
          %s320 = int_to_ptr.vmem [resolvable:$true] %s319
          %325 = dma.hbm_to_vmem [thread:$0]  %s318, 36864, %s320, %s307, 384, 384, 24
        $region44: #{dnabert_forward.51} parent=31 // pred_fallthru
          _
      $region32: #{dnabert_forward.51} parent=5 // pred_fallthru
        _
      %p326 = scmp.le.s32.totalorder 1, %s19
      %p327 = scmp.lt.s32.totalorder %s19, 5
      %p328 = pnand %p326, %p327
      %p329 = pneg %p328
      // Predicated region
      $region45: #{dnabert_forward.51} parent=5 // pred_check
        _
      $region46: #{dnabert_forward.51} parent=5 // pred_check_branch
        %331 = sbr.rel (%p328) target = $region48
      $region47: #{dnabert_forward.51} parent=5 // pred_region
        %s332 = ssub.s32 %s19, 1
        %s333 = sand.u32 %s70, 1
        %s334 = scalar_lea.sflag [#allocation4], %s333
        %s335 = sand.u32 %s70, 1
        %s336 = smul.addr %s335, 2304
        %s337 = scalar_lea.vmem [#allocation3], %s336
        // Predicated region
        $region49: #{dnabert_forward.51} parent=47 // pred_check
          %p338 = pneg %p83
        $region50: #{dnabert_forward.51} parent=47 // pred_check_branch
          %340 = sbr.rel (%p338) target = $region52
        $region51: #{dnabert_forward.51} parent=47 // pred_region
          %342 = dma.done %s334, 36864
        $region52: #{dnabert_forward.51} parent=47 // pred_fallthru
          _
        %s343 = sand.u32 %s24, 1
        %s344 = scalar_lea.sflag [#allocation6], %s343
        %s345 = sand.u32 %s96, 1
        %s346 = smul.addr %s345, 6
        %s347 = scalar_lea.vmem [#allocation5], %s346
        // Predicated region
        $region53: #{dnabert_forward.51} parent=47 // pred_check
          %p348 = pneg %p109
        $region54: #{dnabert_forward.51} parent=47 // pred_check_branch
          %350 = sbr.rel (%p348) target = $region56
        $region55: #{dnabert_forward.51} parent=47 // pred_region
          %352 = dma.done %s344, 96
        $region56: #{dnabert_forward.51} parent=47 // pred_fallthru
          _
        %s353 = sand.u32 %s24, 1
        %s354 = scalar_lea.sflag [#allocation6], %s353
        %s355 = sand.u32 %s122, 1
        %s356 = smul.addr %s355, 2304
        %s357 = scalar_lea.vmem [#allocation7], %s356
        // Predicated region
        $region57: #{dnabert_forward.51} parent=47 // pred_check
          %p358 = pneg %p135
        $region58: #{dnabert_forward.51} parent=47 // pred_check_branch
          %360 = sbr.rel (%p358) target = $region60
        $region59: #{dnabert_forward.51} parent=47 // pred_region
          %362 = dma.done %s354, 36864
        $region60: #{dnabert_forward.51} parent=47 // pred_fallthru
          _
        %s363 = smul.u32 2, %s28
        %p364 = scmp.lt.s32.totalorder %s363, 1
        %s365 = scalar_select %p364, %s363, 1
        %s366 = smul.addr %s365, 6
        %s367 = smul.addr %s366, 8
        %s368 = scalar_lea.vmem %s0, %s367
        %p369 = pneg %p57
        %p370 = pneg %p54
        %s371 = sand.u32 %s70, 1
        %s372 = scalar_lea.sflag [#allocation4], %s371
        %s373 = sand.u32 %s70, 1
        %s374 = smul.addr %s373, 2304
        %s375 = scalar_lea.vmem [#allocation3], %s374
        %p376 = pneg %p83
        %p377 = pneg %p80
        %s378 = sand.u32 %s24, 1
        %s379 = scalar_lea.sflag [#allocation6], %s378
        %s380 = sand.u32 %s96, 1
        %s381 = smul.addr %s380, 6
        %s382 = scalar_lea.vmem [#allocation5], %s381
        %p383 = pneg %p109
        %p384 = pneg %p106
        %s385 = sand.u32 %s24, 1
        %s386 = scalar_lea.sflag [#allocation6], %s385
        %s387 = sand.u32 %s122, 1
        %s388 = smul.addr %s387, 2304
        %s389 = scalar_lea.vmem [#allocation7], %s388
        %p390 = pneg %p135
        %p391 = pneg %p132
        %p392 = pneg %p156
        %p393 = pneg %p153
        %p394 = pneg %p177
        %p395 = pneg %p174
        %p396 = pneg %p198
        %p397 = pneg %p195
        %p398 = pneg %p224
        %p399 = pneg %p221
        %s400 = smul.u32 2, %s28
        %p401 = scmp.lt.s32.totalorder %s400, 1
        %s402 = scalar_select %p401, %s400, 1
        %s403 = smul.addr %s402, 6
        %s404 = smul.addr %s403, 8
        %s405 = scalar_lea.vmem %s7, %s404
        %s406 = smul.u32 2, %s28
        %p407 = scmp.lt.s32.totalorder %s406, 1
        %s408 = scalar_select %p407, %s406, 1
        %s409 = smul.addr %s408, 6
        %s410 = smul.addr %s409, 8
        %s411 = scalar_lea.vmem %s0, %s410
        %s412 = smul.u32 2, %s28
        %s413 = smul.u32 6, %s29
        %s414 = smul.u32 6, %s29
        %s415 = smul.u32 96, %s29
        %s416 = smul.u32 2, %s28
        %p417 = scmp.lt.s32.totalorder %s416, 1
        %s418 = scalar_select %p417, %s416, 1
        %s419 = smul.addr %s418, 6
        %s420 = smul.addr %s419, 8
        %s421 = scalar_lea.vmem %s7, %s420
        %s422 = smul.u32 2, %s28
        %p423 = scmp.eq.s32.totalorder %s29, 0
        // Predicated region
        $region61: #{dnabert_forward.51} parent=47 // pred_check
          %p424 = pneg %p423
        $region62: #{dnabert_forward.51} parent=47 // pred_check_branch
          %426 = sbr.rel (%p424) target = $region64
        $region63: #{dnabert_forward.51} parent=47 // pred_region
          %v427 = vld [vmem:[%s411] sm:$0xff]
          %v428 = vld [vmem:[%s411 + $0x8] sm:$0xff]
          %v429 = vld [vmem:[%s411 + $0x10] sm:$0xff]
          %v430 = vld [vmem:[%s411 + $0x18] sm:$0xff]
          %v431 = vld [vmem:[%s411 + $0x20] sm:$0xff]
          %v432 = vld [vmem:[%s411 + $0x28] sm:$0xff]
          %v433 = vld [vmem:[%s411 + $0x30] sm:$0xff]
          %v434 = vld [vmem:[%s411 + $0x38] sm:$0xff]
          %v435 = vld [vmem:[%s411 + $0x40] sm:$0xff]
          %v436 = vld [vmem:[%s411 + $0x48] sm:$0xff]
          %v437 = vld [vmem:[%s411 + $0x50] sm:$0xff]
          %v438 = vld [vmem:[%s411 + $0x58] sm:$0xff]
          %v439 = vld [vmem:[%s4] sm:$0x3f]
          %v441 = vperm.slane %v439, 0
          %v442 = vperm.slane %v439, 1
          %v443 = vperm.slane %v439, 2
          %v444 = vperm.slane %v439, 3
          %v445 = vperm.slane %v439, 4
          %v446 = vperm.slane %v439, 5
          %v453 = vadd.f32 %v427, %v441
          %v454 = vadd.f32 %v428, %v442
          %v455 = vadd.f32 %v429, %v443
          %v456 = vadd.f32 %v430, %v444
          %v457 = vadd.f32 %v431, %v445
          %v458 = vadd.f32 %v432, %v446
          %v459 = vadd.f32 %v433, %v441
          %v460 = vadd.f32 %v434, %v442
          %v461 = vadd.f32 %v435, %v443
          %v462 = vadd.f32 %v436, %v444
          %v463 = vadd.f32 %v437, %v445
          %v464 = vadd.f32 %v438, %v446
          %465 = vst [vmem:[#allocation2] sm:$0xff] %v453
          %466 = vst [vmem:[#allocation2 + $0x8] sm:$0xff] %v454
          %467 = vst [vmem:[#allocation2 + $0x10] sm:$0xff] %v455
          %468 = vst [vmem:[#allocation2 + $0x18] sm:$0xff] %v456
          %469 = vst [vmem:[#allocation2 + $0x20] sm:$0xff] %v457
          %470 = vst [vmem:[#allocation2 + $0x28] sm:$0xff] %v458
          %471 = vst [vmem:[#allocation2 + $0x30] sm:$0xff] %v459
          %472 = vst [vmem:[#allocation2 + $0x38] sm:$0xff] %v460
          %473 = vst [vmem:[#allocation2 + $0x40] sm:$0xff] %v461
          %474 = vst [vmem:[#allocation2 + $0x48] sm:$0xff] %v462
          %475 = vst [vmem:[#allocation2 + $0x50] sm:$0xff] %v463
          %476 = vst [vmem:[#allocation2 + $0x58] sm:$0xff] %v464
        $region64: #{dnabert_forward.51} parent=47 // pred_fallthru
          _
        %v477 = vld [vmem:[%s411] sm:$0xff]
        %v478 = vld [vmem:[%s411 + $0x8] sm:$0xff]
        %v479 = vld [vmem:[%s411 + $0x10] sm:$0xff]
        %v480 = vld [vmem:[%s411 + $0x18] sm:$0xff]
        %v481 = vld [vmem:[%s411 + $0x20] sm:$0xff]
        %v482 = vld [vmem:[%s411 + $0x28] sm:$0xff]
        %v483 = vld [vmem:[%s411 + $0x30] sm:$0xff]
        %v484 = vld [vmem:[%s411 + $0x38] sm:$0xff]
        %v485 = vld [vmem:[%s411 + $0x40] sm:$0xff]
        %v486 = vld [vmem:[%s411 + $0x48] sm:$0xff]
        %v487 = vld [vmem:[%s411 + $0x50] sm:$0xff]
        %v488 = vld [vmem:[%s411 + $0x58] sm:$0xff]
        %v489 = vpack.c.bf16 %v483, %v477
        %v490 = vpack.c.bf16 %v484, %v478
        %v491 = vpack.c.bf16 %v485, %v479
        %v492 = vpack.c.bf16 %v486, %v480
        %v493 = vpack.c.bf16 %v487, %v481
        %v494 = vpack.c.bf16 %v488, %v482
        %v495 = vld [vmem:[%s337] sm:$0xff]
        %v496 = vld [vmem:[%s337 + $0x8] sm:$0xff]
        %v497 = vld [vmem:[%s337 + $0x10] sm:$0xff]
        %v498 = vld [vmem:[%s337 + $0x18] sm:$0xff]
        %v499 = vld [vmem:[%s337 + $0x20] sm:$0xff]
        %v500 = vld [vmem:[%s337 + $0x28] sm:$0xff]
        %v501 = vld [vmem:[%s337 + $0x30] sm:$0xff]
        %v502 = vld [vmem:[%s337 + $0x38] sm:$0xff]
        %v503 = vld [vmem:[%s337 + $0x40] sm:$0xff]
        %v504 = vld [vmem:[%s337 + $0x48] sm:$0xff]
        %v505 = vld [vmem:[%s337 + $0x50] sm:$0xff]
        %v506 = vld [vmem:[%s337 + $0x58] sm:$0xff]
        %v507 = vld [vmem:[%s337 + $0x60] sm:$0xff]
        %v508 = vld [vmem:[%s337 + $0x68] sm:$0xff]
        %v509 = vld [vmem:[%s337 + $0x70] sm:$0xff]
        %v510 = vld [vmem:[%s337 + $0x78] sm:$0xff]
        %v511 = vld [vmem:[%s337 + $0x80] sm:$0xff]
        %v512 = vld [vmem:[%s337 + $0x88] sm:$0xff]
        %v513 = vld [vmem:[%s337 + $0x90] sm:$0xff]
        %v514 = vld [vmem:[%s337 + $0x98] sm:$0xff]
        %v515 = vld [vmem:[%s337 + $0xa0] sm:$0xff]
        %v516 = vld [vmem:[%s337 + $0xa8] sm:$0xff]
        %v517 = vld [vmem:[%s337 + $0xb0] sm:$0xff]
        %v518 = vld [vmem:[%s337 + $0xb8] sm:$0xff]
        %v519 = vld [vmem:[%s337 + $0xc0] sm:$0xff]
        %v520 = vld [vmem:[%s337 + $0xc8] sm:$0xff]
        %v521 = vld [vmem:[%s337 + $0xd0] sm:$0xff]
        %v522 = vld [vmem:[%s337 + $0xd8] sm:$0xff]
        %v523 = vld [vmem:[%s337 + $0xe0] sm:$0xff]
        %v524 = vld [vmem:[%s337 + $0xe8] sm:$0xff]
        %v525 = vld [vmem:[%s337 + $0xf0] sm:$0xff]
        %v526 = vld [vmem:[%s337 + $0xf8] sm:$0xff]
        %v527 = vld [vmem:[%s337 + $0x100] sm:$0xff]
        %v528 = vld [vmem:[%s337 + $0x108] sm:$0xff]
        %v529 = vld [vmem:[%s337 + $0x110] sm:$0xff]
        %v530 = vld [vmem:[%s337 + $0x118] sm:$0xff]
        %v531 = vld [vmem:[%s337 + $0x120] sm:$0xff]
        %v532 = vld [vmem:[%s337 + $0x128] sm:$0xff]
        %v533 = vld [vmem:[%s337 + $0x130] sm:$0xff]
        %v534 = vld [vmem:[%s337 + $0x138] sm:$0xff]
        %v535 = vld [vmem:[%s337 + $0x140] sm:$0xff]
        %v536 = vld [vmem:[%s337 + $0x148] sm:$0xff]
        %v537 = vld [vmem:[%s337 + $0x150] sm:$0xff]
        %v538 = vld [vmem:[%s337 + $0x158] sm:$0xff]
        %v539 = vld [vmem:[%s337 + $0x160] sm:$0xff]
        %v540 = vld [vmem:[%s337 + $0x168] sm:$0xff]
        %v541 = vld [vmem:[%s337 + $0x170] sm:$0xff]
        %v542 = vld [vmem:[%s337 + $0x178] sm:$0xff]
        %v543 = vld [vmem:[%s337 + $0x180] sm:$0xff]
        %v544 = vld [vmem:[%s337 + $0x188] sm:$0xff]
        %v545 = vld [vmem:[%s337 + $0x190] sm:$0xff]
        %v546 = vld [vmem:[%s337 + $0x198] sm:$0xff]
        %v547 = vld [vmem:[%s337 + $0x1a0] sm:$0xff]
        %v548 = vld [vmem:[%s337 + $0x1a8] sm:$0xff]
        %v549 = vld [vmem:[%s337 + $0x1b0] sm:$0xff]
        %v550 = vld [vmem:[%s337 + $0x1b8] sm:$0xff]
        %v551 = vld [vmem:[%s337 + $0x1c0] sm:$0xff]
        %v552 = vld [vmem:[%s337 + $0x1c8] sm:$0xff]
        %v553 = vld [vmem:[%s337 + $0x1d0] sm:$0xff]
        %v554 = vld [vmem:[%s337 + $0x1d8] sm:$0xff]
        %v555 = vld [vmem:[%s337 + $0x1e0] sm:$0xff]
        %v556 = vld [vmem:[%s337 + $0x1e8] sm:$0xff]
        %v557 = vld [vmem:[%s337 + $0x1f0] sm:$0xff]
        %v558 = vld [vmem:[%s337 + $0x1f8] sm:$0xff]
        %v559 = vld [vmem:[%s337 + $0x200] sm:$0xff]
        %v560 = vld [vmem:[%s337 + $0x208] sm:$0xff]
        %v561 = vld [vmem:[%s337 + $0x210] sm:$0xff]
        %v562 = vld [vmem:[%s337 + $0x218] sm:$0xff]
        %v563 = vld [vmem:[%s337 + $0x220] sm:$0xff]
        %v564 = vld [vmem:[%s337 + $0x228] sm:$0xff]
        %v565 = vld [vmem:[%s337 + $0x230] sm:$0xff]
        %v566 = vld [vmem:[%s337 + $0x238] sm:$0xff]
        %v567 = vld [vmem:[%s337 + $0x240] sm:$0xff]
        %v568 = vld [vmem:[%s337 + $0x248] sm:$0xff]
        %v569 = vld [vmem:[%s337 + $0x250] sm:$0xff]
        %v570 = vld [vmem:[%s337 + $0x258] sm:$0xff]
        %v571 = vld [vmem:[%s337 + $0x260] sm:$0xff]
        %v572 = vld [vmem:[%s337 + $0x268] sm:$0xff]
        %v573 = vld [vmem:[%s337 + $0x270] sm:$0xff]
        %v574 = vld [vmem:[%s337 + $0x278] sm:$0xff]
        %v575 = vld [vmem:[%s337 + $0x280] sm:$0xff]
        %v576 = vld [vmem:[%s337 + $0x288] sm:$0xff]
        %v577 = vld [vmem:[%s337 + $0x290] sm:$0xff]
        %v578 = vld [vmem:[%s337 + $0x298] sm:$0xff]
        %v579 = vld [vmem:[%s337 + $0x2a0] sm:$0xff]
        %v580 = vld [vmem:[%s337 + $0x2a8] sm:$0xff]
        %v581 = vld [vmem:[%s337 + $0x2b0] sm:$0xff]
        %v582 = vld [vmem:[%s337 + $0x2b8] sm:$0xff]
        %v583 = vld [vmem:[%s337 + $0x2c0] sm:$0xff]
        %v584 = vld [vmem:[%s337 + $0x2c8] sm:$0xff]
        %v585 = vld [vmem:[%s337 + $0x2d0] sm:$0xff]
        %v586 = vld [vmem:[%s337 + $0x2d8] sm:$0xff]
        %v587 = vld [vmem:[%s337 + $0x2e0] sm:$0xff]
        %v588 = vld [vmem:[%s337 + $0x2e8] sm:$0xff]
        %v589 = vld [vmem:[%s337 + $0x2f0] sm:$0xff]
        %v590 = vld [vmem:[%s337 + $0x2f8] sm:$0xff]
        %v591 = vld [vmem:[%s337 + $0x300] sm:$0xff]
        %v592 = vld [vmem:[%s337 + $0x308] sm:$0xff]
        %v593 = vld [vmem:[%s337 + $0x310] sm:$0xff]
        %v594 = vld [vmem:[%s337 + $0x318] sm:$0xff]
        %v595 = vld [vmem:[%s337 + $0x320] sm:$0xff]
        %v596 = vld [vmem:[%s337 + $0x328] sm:$0xff]
        %v597 = vld [vmem:[%s337 + $0x330] sm:$0xff]
        %v598 = vld [vmem:[%s337 + $0x338] sm:$0xff]
        %v599 = vld [vmem:[%s337 + $0x340] sm:$0xff]
        %v600 = vld [vmem:[%s337 + $0x348] sm:$0xff]
        %v601 = vld [vmem:[%s337 + $0x350] sm:$0xff]
        %v602 = vld [vmem:[%s337 + $0x358] sm:$0xff]
        %v603 = vld [vmem:[%s337 + $0x360] sm:$0xff]
        %v604 = vld [vmem:[%s337 + $0x368] sm:$0xff]
        %v605 = vld [vmem:[%s337 + $0x370] sm:$0xff]
        %v606 = vld [vmem:[%s337 + $0x378] sm:$0xff]
        %v607 = vld [vmem:[%s337 + $0x380] sm:$0xff]
        %v608 = vld [vmem:[%s337 + $0x388] sm:$0xff]
        %v609 = vld [vmem:[%s337 + $0x390] sm:$0xff]
        %v610 = vld [vmem:[%s337 + $0x398] sm:$0xff]
        %v611 = vld [vmem:[%s337 + $0x3a0] sm:$0xff]
        %v612 = vld [vmem:[%s337 + $0x3a8] sm:$0xff]
        %v613 = vld [vmem:[%s337 + $0x3b0] sm:$0xff]
        %v614 = vld [vmem:[%s337 + $0x3b8] sm:$0xff]
        %v615 = vld [vmem:[%s337 + $0x3c0] sm:$0xff]
        %v616 = vld [vmem:[%s337 + $0x3c8] sm:$0xff]
        %v617 = vld [vmem:[%s337 + $0x3d0] sm:$0xff]
        %v618 = vld [vmem:[%s337 + $0x3d8] sm:$0xff]
        %v619 = vld [vmem:[%s337 + $0x3e0] sm:$0xff]
        %v620 = vld [vmem:[%s337 + $0x3e8] sm:$0xff]
        %v621 = vld [vmem:[%s337 + $0x3f0] sm:$0xff]
        %v622 = vld [vmem:[%s337 + $0x3f8] sm:$0xff]
        %v623 = vld [vmem:[%s337 + $0x400] sm:$0xff]
        %v624 = vld [vmem:[%s337 + $0x408] sm:$0xff]
        %v625 = vld [vmem:[%s337 + $0x410] sm:$0xff]
        %v626 = vld [vmem:[%s337 + $0x418] sm:$0xff]
        %v627 = vld [vmem:[%s337 + $0x420] sm:$0xff]
        %v628 = vld [vmem:[%s337 + $0x428] sm:$0xff]
        %v629 = vld [vmem:[%s337 + $0x430] sm:$0xff]
        %v630 = vld [vmem:[%s337 + $0x438] sm:$0xff]
        %v631 = vld [vmem:[%s337 + $0x440] sm:$0xff]
        %v632 = vld [vmem:[%s337 + $0x448] sm:$0xff]
        %v633 = vld [vmem:[%s337 + $0x450] sm:$0xff]
        %v634 = vld [vmem:[%s337 + $0x458] sm:$0xff]
        %v635 = vld [vmem:[%s337 + $0x460] sm:$0xff]
        %v636 = vld [vmem:[%s337 + $0x468] sm:$0xff]
        %v637 = vld [vmem:[%s337 + $0x470] sm:$0xff]
        %v638 = vld [vmem:[%s337 + $0x478] sm:$0xff]
        %v639 = vld [vmem:[%s337 + $0x480] sm:$0xff]
        %v640 = vld [vmem:[%s337 + $0x488] sm:$0xff]
        %v641 = vld [vmem:[%s337 + $0x490] sm:$0xff]
        %v642 = vld [vmem:[%s337 + $0x498] sm:$0xff]
        %v643 = vld [vmem:[%s337 + $0x4a0] sm:$0xff]
        %v644 = vld [vmem:[%s337 + $0x4a8] sm:$0xff]
        %v645 = vld [vmem:[%s337 + $0x4b0] sm:$0xff]
        %v646 = vld [vmem:[%s337 + $0x4b8] sm:$0xff]
        %v647 = vld [vmem:[%s337 + $0x4c0] sm:$0xff]
        %v648 = vld [vmem:[%s337 + $0x4c8] sm:$0xff]
        %v649 = vld [vmem:[%s337 + $0x4d0] sm:$0xff]
        %v650 = vld [vmem:[%s337 + $0x4d8] sm:$0xff]
        %v651 = vld [vmem:[%s337 + $0x4e0] sm:$0xff]
        %v652 = vld [vmem:[%s337 + $0x4e8] sm:$0xff]
        %v653 = vld [vmem:[%s337 + $0x4f0] sm:$0xff]
        %v654 = vld [vmem:[%s337 + $0x4f8] sm:$0xff]
        %v655 = vld [vmem:[%s337 + $0x500] sm:$0xff]
        %v656 = vld [vmem:[%s337 + $0x508] sm:$0xff]
        %v657 = vld [vmem:[%s337 + $0x510] sm:$0xff]
        %v658 = vld [vmem:[%s337 + $0x518] sm:$0xff]
        %v659 = vld [vmem:[%s337 + $0x520] sm:$0xff]
        %v660 = vld [vmem:[%s337 + $0x528] sm:$0xff]
        %v661 = vld [vmem:[%s337 + $0x530] sm:$0xff]
        %v662 = vld [vmem:[%s337 + $0x538] sm:$0xff]
        %v663 = vld [vmem:[%s337 + $0x540] sm:$0xff]
        %v664 = vld [vmem:[%s337 + $0x548] sm:$0xff]
        %v665 = vld [vmem:[%s337 + $0x550] sm:$0xff]
        %v666 = vld [vmem:[%s337 + $0x558] sm:$0xff]
        %v667 = vld [vmem:[%s337 + $0x560] sm:$0xff]
        %v668 = vld [vmem:[%s337 + $0x568] sm:$0xff]
        %v669 = vld [vmem:[%s337 + $0x570] sm:$0xff]
        %v670 = vld [vmem:[%s337 + $0x578] sm:$0xff]
        %v671 = vld [vmem:[%s337 + $0x580] sm:$0xff]
        %v672 = vld [vmem:[%s337 + $0x588] sm:$0xff]
        %v673 = vld [vmem:[%s337 + $0x590] sm:$0xff]
        %v674 = vld [vmem:[%s337 + $0x598] sm:$0xff]
        %v675 = vld [vmem:[%s337 + $0x5a0] sm:$0xff]
        %v676 = vld [vmem:[%s337 + $0x5a8] sm:$0xff]
        %v677 = vld [vmem:[%s337 + $0x5b0] sm:$0xff]
        %v678 = vld [vmem:[%s337 + $0x5b8] sm:$0xff]
        %v679 = vld [vmem:[%s337 + $0x5c0] sm:$0xff]
        %v680 = vld [vmem:[%s337 + $0x5c8] sm:$0xff]
        %v681 = vld [vmem:[%s337 + $0x5d0] sm:$0xff]
        %v682 = vld [vmem:[%s337 + $0x5d8] sm:$0xff]
        %v683 = vld [vmem:[%s337 + $0x5e0] sm:$0xff]
        %v684 = vld [vmem:[%s337 + $0x5e8] sm:$0xff]
        %v685 = vld [vmem:[%s337 + $0x5f0] sm:$0xff]
        %v686 = vld [vmem:[%s337 + $0x5f8] sm:$0xff]
        %v687 = vld [vmem:[%s337 + $0x600] sm:$0xff]
        %v688 = vld [vmem:[%s337 + $0x608] sm:$0xff]
        %v689 = vld [vmem:[%s337 + $0x610] sm:$0xff]
        %v690 = vld [vmem:[%s337 + $0x618] sm:$0xff]
        %v691 = vld [vmem:[%s337 + $0x620] sm:$0xff]
        %v692 = vld [vmem:[%s337 + $0x628] sm:$0xff]
        %v693 = vld [vmem:[%s337 + $0x630] sm:$0xff]
        %v694 = vld [vmem:[%s337 + $0x638] sm:$0xff]
        %v695 = vld [vmem:[%s337 + $0x640] sm:$0xff]
        %v696 = vld [vmem:[%s337 + $0x648] sm:$0xff]
        %v697 = vld [vmem:[%s337 + $0x650] sm:$0xff]
        %v698 = vld [vmem:[%s337 + $0x658] sm:$0xff]
        %v699 = vld [vmem:[%s337 + $0x660] sm:$0xff]
        %v700 = vld [vmem:[%s337 + $0x668] sm:$0xff]
        %v701 = vld [vmem:[%s337 + $0x670] sm:$0xff]
        %v702 = vld [vmem:[%s337 + $0x678] sm:$0xff]
        %v703 = vld [vmem:[%s337 + $0x680] sm:$0xff]
        %v704 = vld [vmem:[%s337 + $0x688] sm:$0xff]
        %v705 = vld [vmem:[%s337 + $0x690] sm:$0xff]
        %v706 = vld [vmem:[%s337 + $0x698] sm:$0xff]
        %v707 = vld [vmem:[%s337 + $0x6a0] sm:$0xff]
        %v708 = vld [vmem:[%s337 + $0x6a8] sm:$0xff]
        %v709 = vld [vmem:[%s337 + $0x6b0] sm:$0xff]
        %v710 = vld [vmem:[%s337 + $0x6b8] sm:$0xff]
        %v711 = vld [vmem:[%s337 + $0x6c0] sm:$0xff]
        %v712 = vld [vmem:[%s337 + $0x6c8] sm:$0xff]
        %v713 = vld [vmem:[%s337 + $0x6d0] sm:$0xff]
        %v714 = vld [vmem:[%s337 + $0x6d8] sm:$0xff]
        %v715 = vld [vmem:[%s337 + $0x6e0] sm:$0xff]
        %v716 = vld [vmem:[%s337 + $0x6e8] sm:$0xff]
        %v717 = vld [vmem:[%s337 + $0x6f0] sm:$0xff]
        %v718 = vld [vmem:[%s337 + $0x6f8] sm:$0xff]
        %v719 = vld [vmem:[%s337 + $0x700] sm:$0xff]
        %v720 = vld [vmem:[%s337 + $0x708] sm:$0xff]
        %v721 = vld [vmem:[%s337 + $0x710] sm:$0xff]
        %v722 = vld [vmem:[%s337 + $0x718] sm:$0xff]
        %v723 = vld [vmem:[%s337 + $0x720] sm:$0xff]
        %v724 = vld [vmem:[%s337 + $0x728] sm:$0xff]
        %v725 = vld [vmem:[%s337 + $0x730] sm:$0xff]
        %v726 = vld [vmem:[%s337 + $0x738] sm:$0xff]
        %v727 = vld [vmem:[%s337 + $0x740] sm:$0xff]
        %v728 = vld [vmem:[%s337 + $0x748] sm:$0xff]
        %v729 = vld [vmem:[%s337 + $0x750] sm:$0xff]
        %v730 = vld [vmem:[%s337 + $0x758] sm:$0xff]
        %v731 = vld [vmem:[%s337 + $0x760] sm:$0xff]
        %v732 = vld [vmem:[%s337 + $0x768] sm:$0xff]
        %v733 = vld [vmem:[%s337 + $0x770] sm:$0xff]
        %v734 = vld [vmem:[%s337 + $0x778] sm:$0xff]
        %v735 = vld [vmem:[%s337 + $0x780] sm:$0xff]
        %v736 = vld [vmem:[%s337 + $0x788] sm:$0xff]
        %v737 = vld [vmem:[%s337 + $0x790] sm:$0xff]
        %v738 = vld [vmem:[%s337 + $0x798] sm:$0xff]
        %v739 = vld [vmem:[%s337 + $0x7a0] sm:$0xff]
        %v740 = vld [vmem:[%s337 + $0x7a8] sm:$0xff]
        %v741 = vld [vmem:[%s337 + $0x7b0] sm:$0xff]
        %v742 = vld [vmem:[%s337 + $0x7b8] sm:$0xff]
        %v743 = vld [vmem:[%s337 + $0x7c0] sm:$0xff]
        %v744 = vld [vmem:[%s337 + $0x7c8] sm:$0xff]
        %v745 = vld [vmem:[%s337 + $0x7d0] sm:$0xff]
        %v746 = vld [vmem:[%s337 + $0x7d8] sm:$0xff]
        %v747 = vld [vmem:[%s337 + $0x7e0] sm:$0xff]
        %v748 = vld [vmem:[%s337 + $0x7e8] sm:$0xff]
        %v749 = vld [vmem:[%s337 + $0x7f0] sm:$0xff]
        %v750 = vld [vmem:[%s337 + $0x7f8] sm:$0xff]
        %v751 = vld [vmem:[%s337 + $0x800] sm:$0xff]
        %v752 = vld [vmem:[%s337 + $0x808] sm:$0xff]
        %v753 = vld [vmem:[%s337 + $0x810] sm:$0xff]
        %v754 = vld [vmem:[%s337 + $0x818] sm:$0xff]
        %v755 = vld [vmem:[%s337 + $0x820] sm:$0xff]
        %v756 = vld [vmem:[%s337 + $0x828] sm:$0xff]
        %v757 = vld [vmem:[%s337 + $0x830] sm:$0xff]
        %v758 = vld [vmem:[%s337 + $0x838] sm:$0xff]
        %v759 = vld [vmem:[%s337 + $0x840] sm:$0xff]
        %v760 = vld [vmem:[%s337 + $0x848] sm:$0xff]
        %v761 = vld [vmem:[%s337 + $0x850] sm:$0xff]
        %v762 = vld [vmem:[%s337 + $0x858] sm:$0xff]
        %v763 = vld [vmem:[%s337 + $0x860] sm:$0xff]
        %v764 = vld [vmem:[%s337 + $0x868] sm:$0xff]
        %v765 = vld [vmem:[%s337 + $0x870] sm:$0xff]
        %v766 = vld [vmem:[%s337 + $0x878] sm:$0xff]
        %v767 = vld [vmem:[%s337 + $0x880] sm:$0xff]
        %v768 = vld [vmem:[%s337 + $0x888] sm:$0xff]
        %v769 = vld [vmem:[%s337 + $0x890] sm:$0xff]
        %v770 = vld [vmem:[%s337 + $0x898] sm:$0xff]
        %v771 = vld [vmem:[%s337 + $0x8a0] sm:$0xff]
        %v772 = vld [vmem:[%s337 + $0x8a8] sm:$0xff]
        %v773 = vld [vmem:[%s337 + $0x8b0] sm:$0xff]
        %v774 = vld [vmem:[%s337 + $0x8b8] sm:$0xff]
        %v775 = vld [vmem:[%s337 + $0x8c0] sm:$0xff]
        %v776 = vld [vmem:[%s337 + $0x8c8] sm:$0xff]
        %v777 = vld [vmem:[%s337 + $0x8d0] sm:$0xff]
        %v778 = vld [vmem:[%s337 + $0x8d8] sm:$0xff]
        %v779 = vld [vmem:[%s337 + $0x8e0] sm:$0xff]
        %v780 = vld [vmem:[%s337 + $0x8e8] sm:$0xff]
        %v781 = vld [vmem:[%s337 + $0x8f0] sm:$0xff]
        %v782 = vld [vmem:[%s337 + $0x8f8] sm:$0xff]
        %v783 = vld [vmem:[%s347] sm:$0x3f]
        %v785 = vperm.slane %v783, 0
        %v786 = vperm.slane %v783, 1
        %v787 = vperm.slane %v783, 2
        %v788 = vperm.slane %v783, 3
        %v789 = vperm.slane %v783, 4
        %v790 = vperm.slane %v783, 5
        %v1085 = vunpack.c.l.b16 %v495
        %v1086 = vunpack.c.h.b16 %v495
        %v1087 = vunpack.c.l.b16 %v496
        %v1088 = vunpack.c.h.b16 %v496
        %v1089 = vunpack.c.l.b16 %v497
        %v1090 = vunpack.c.h.b16 %v497
        %v1091 = vunpack.c.l.b16 %v498
        %v1092 = vunpack.c.h.b16 %v498
        %v1093 = vunpack.c.l.b16 %v499
        %v1094 = vunpack.c.h.b16 %v499
        %v1095 = vunpack.c.l.b16 %v500
        %v1096 = vunpack.c.h.b16 %v500
        %v1097 = vunpack.c.l.b16 %v501
        %v1098 = vunpack.c.h.b16 %v501
        %v1099 = vunpack.c.l.b16 %v502
        %v1100 = vunpack.c.h.b16 %v502
        %v1101 = vunpack.c.l.b16 %v503
        %v1102 = vunpack.c.h.b16 %v503
        %v1103 = vunpack.c.l.b16 %v504
        %v1104 = vunpack.c.h.b16 %v504
        %v1105 = vunpack.c.l.b16 %v505
        %v1106 = vunpack.c.h.b16 %v505
        %v1107 = vunpack.c.l.b16 %v506
        %v1108 = vunpack.c.h.b16 %v506
        %v1109 = vunpack.c.l.b16 %v507
        %v1110 = vunpack.c.h.b16 %v507
        %v1111 = vunpack.c.l.b16 %v508
        %v1112 = vunpack.c.h.b16 %v508
        %v1113 = vunpack.c.l.b16 %v509
        %v1114 = vunpack.c.h.b16 %v509
        %v1115 = vunpack.c.l.b16 %v510
        %v1116 = vunpack.c.h.b16 %v510
        %v1117 = vunpack.c.l.b16 %v511
        %v1118 = vunpack.c.h.b16 %v511
        %v1119 = vunpack.c.l.b16 %v512
        %v1120 = vunpack.c.h.b16 %v512
        %v1121 = vunpack.c.l.b16 %v513
        %v1122 = vunpack.c.h.b16 %v513
        %v1123 = vunpack.c.l.b16 %v514
        %v1124 = vunpack.c.h.b16 %v514
        %v1125 = vunpack.c.l.b16 %v515
        %v1126 = vunpack.c.h.b16 %v515
        %v1127 = vunpack.c.l.b16 %v516
        %v1128 = vunpack.c.h.b16 %v516
        %v1129 = vunpack.c.l.b16 %v517
        %v1130 = vunpack.c.h.b16 %v517
        %v1131 = vunpack.c.l.b16 %v518
        %v1132 = vunpack.c.h.b16 %v518
        %v1133 = vunpack.c.l.b16 %v519
        %v1134 = vunpack.c.h.b16 %v519
        %v1135 = vunpack.c.l.b16 %v520
        %v1136 = vunpack.c.h.b16 %v520
        %v1137 = vunpack.c.l.b16 %v521
        %v1138 = vunpack.c.h.b16 %v521
        %v1139 = vunpack.c.l.b16 %v522
        %v1140 = vunpack.c.h.b16 %v522
        %v1141 = vunpack.c.l.b16 %v523
        %v1142 = vunpack.c.h.b16 %v523
        %v1143 = vunpack.c.l.b16 %v524
        %v1144 = vunpack.c.h.b16 %v524
        %v1145 = vunpack.c.l.b16 %v525
        %v1146 = vunpack.c.h.b16 %v525
        %v1147 = vunpack.c.l.b16 %v526
        %v1148 = vunpack.c.h.b16 %v526
        %v1149 = vunpack.c.l.b16 %v527
        %v1150 = vunpack.c.h.b16 %v527
        %v1151 = vunpack.c.l.b16 %v528
        %v1152 = vunpack.c.h.b16 %v528
        %v1153 = vunpack.c.l.b16 %v529
        %v1154 = vunpack.c.h.b16 %v529
        %v1155 = vunpack.c.l.b16 %v530
        %v1156 = vunpack.c.h.b16 %v530
        %v1157 = vunpack.c.l.b16 %v531
        %v1158 = vunpack.c.h.b16 %v531
        %v1159 = vunpack.c.l.b16 %v532
        %v1160 = vunpack.c.h.b16 %v532
        %v1161 = vunpack.c.l.b16 %v533
        %v1162 = vunpack.c.h.b16 %v533
        %v1163 = vunpack.c.l.b16 %v534
        %v1164 = vunpack.c.h.b16 %v534
        %v1165 = vunpack.c.l.b16 %v535
        %v1166 = vunpack.c.h.b16 %v535
        %v1167 = vunpack.c.l.b16 %v536
        %v1168 = vunpack.c.h.b16 %v536
        %v1169 = vunpack.c.l.b16 %v537
        %v1170 = vunpack.c.h.b16 %v537
        %v1171 = vunpack.c.l.b16 %v538
        %v1172 = vunpack.c.h.b16 %v538
        %v1173 = vunpack.c.l.b16 %v539
        %v1174 = vunpack.c.h.b16 %v539
        %v1175 = vunpack.c.l.b16 %v540
        %v1176 = vunpack.c.h.b16 %v540
        %v1177 = vunpack.c.l.b16 %v541
        %v1178 = vunpack.c.h.b16 %v541
        %v1179 = vunpack.c.l.b16 %v542
        %v1180 = vunpack.c.h.b16 %v542
        %v1181 = vunpack.c.l.b16 %v543
        %v1182 = vunpack.c.h.b16 %v543
        %v1183 = vunpack.c.l.b16 %v544
        %v1184 = vunpack.c.h.b16 %v544
        %v1185 = vunpack.c.l.b16 %v545
        %v1186 = vunpack.c.h.b16 %v545
        %v1187 = vunpack.c.l.b16 %v546
        %v1188 = vunpack.c.h.b16 %v546
        %v1189 = vunpack.c.l.b16 %v547
        %v1190 = vunpack.c.h.b16 %v547
        %v1191 = vunpack.c.l.b16 %v548
        %v1192 = vunpack.c.h.b16 %v548
        %v1193 = vunpack.c.l.b16 %v549
        %v1194 = vunpack.c.h.b16 %v549
        %v1195 = vunpack.c.l.b16 %v550
        %v1196 = vunpack.c.h.b16 %v550
        %v1197 = vunpack.c.l.b16 %v551
        %v1198 = vunpack.c.h.b16 %v551
        %v1199 = vunpack.c.l.b16 %v552
        %v1200 = vunpack.c.h.b16 %v552
        %v1201 = vunpack.c.l.b16 %v553
        %v1202 = vunpack.c.h.b16 %v553
        %v1203 = vunpack.c.l.b16 %v554
        %v1204 = vunpack.c.h.b16 %v554
        %v1205 = vunpack.c.l.b16 %v555
        %v1206 = vunpack.c.h.b16 %v555
        %v1207 = vunpack.c.l.b16 %v556
        %v1208 = vunpack.c.h.b16 %v556
        %v1209 = vunpack.c.l.b16 %v557
        %v1210 = vunpack.c.h.b16 %v557
        %v1211 = vunpack.c.l.b16 %v558
        %v1212 = vunpack.c.h.b16 %v558
        %v1213 = vunpack.c.l.b16 %v559
        %v1214 = vunpack.c.h.b16 %v559
        %v1215 = vunpack.c.l.b16 %v560
        %v1216 = vunpack.c.h.b16 %v560
        %v1217 = vunpack.c.l.b16 %v561
        %v1218 = vunpack.c.h.b16 %v561
        %v1219 = vunpack.c.l.b16 %v562
        %v1220 = vunpack.c.h.b16 %v562
        %v1221 = vunpack.c.l.b16 %v563
        %v1222 = vunpack.c.h.b16 %v563
        %v1223 = vunpack.c.l.b16 %v564
        %v1224 = vunpack.c.h.b16 %v564
        %v1225 = vunpack.c.l.b16 %v565
        %v1226 = vunpack.c.h.b16 %v565
        %v1227 = vunpack.c.l.b16 %v566
        %v1228 = vunpack.c.h.b16 %v566
        %v1229 = vunpack.c.l.b16 %v567
        %v1230 = vunpack.c.h.b16 %v567
        %v1231 = vunpack.c.l.b16 %v568
        %v1232 = vunpack.c.h.b16 %v568
        %v1233 = vunpack.c.l.b16 %v569
        %v1234 = vunpack.c.h.b16 %v569
        %v1235 = vunpack.c.l.b16 %v570
        %v1236 = vunpack.c.h.b16 %v570
        %v1237 = vunpack.c.l.b16 %v571
        %v1238 = vunpack.c.h.b16 %v571
        %v1239 = vunpack.c.l.b16 %v572
        %v1240 = vunpack.c.h.b16 %v572
        %v1241 = vunpack.c.l.b16 %v573
        %v1242 = vunpack.c.h.b16 %v573
        %v1243 = vunpack.c.l.b16 %v574
        %v1244 = vunpack.c.h.b16 %v574
        %v1245 = vunpack.c.l.b16 %v575
        %v1246 = vunpack.c.h.b16 %v575
        %v1247 = vunpack.c.l.b16 %v576
        %v1248 = vunpack.c.h.b16 %v576
        %v1249 = vunpack.c.l.b16 %v577
        %v1250 = vunpack.c.h.b16 %v577
        %v1251 = vunpack.c.l.b16 %v578
        %v1252 = vunpack.c.h.b16 %v578
        %v1253 = vunpack.c.l.b16 %v579
        %v1254 = vunpack.c.h.b16 %v579
        %v1255 = vunpack.c.l.b16 %v580
        %v1256 = vunpack.c.h.b16 %v580
        %v1257 = vunpack.c.l.b16 %v581
        %v1258 = vunpack.c.h.b16 %v581
        %v1259 = vunpack.c.l.b16 %v582
        %v1260 = vunpack.c.h.b16 %v582
        %v1261 = vunpack.c.l.b16 %v583
        %v1262 = vunpack.c.h.b16 %v583
        %v1263 = vunpack.c.l.b16 %v584
        %v1264 = vunpack.c.h.b16 %v584
        %v1265 = vunpack.c.l.b16 %v585
        %v1266 = vunpack.c.h.b16 %v585
        %v1267 = vunpack.c.l.b16 %v586
        %v1268 = vunpack.c.h.b16 %v586
        %v1269 = vunpack.c.l.b16 %v587
        %v1270 = vunpack.c.h.b16 %v587
        %v1271 = vunpack.c.l.b16 %v588
        %v1272 = vunpack.c.h.b16 %v588
        %v1273 = vunpack.c.l.b16 %v589
        %v1274 = vunpack.c.h.b16 %v589
        %v1275 = vunpack.c.l.b16 %v590
        %v1276 = vunpack.c.h.b16 %v590
        %v1277 = vunpack.c.l.b16 %v591
        %v1278 = vunpack.c.h.b16 %v591
        %v1279 = vunpack.c.l.b16 %v592
        %v1280 = vunpack.c.h.b16 %v592
        %v1281 = vunpack.c.l.b16 %v593
        %v1282 = vunpack.c.h.b16 %v593
        %v1283 = vunpack.c.l.b16 %v594
        %v1284 = vunpack.c.h.b16 %v594
        %v1285 = vunpack.c.l.b16 %v595
        %v1286 = vunpack.c.h.b16 %v595
        %v1287 = vunpack.c.l.b16 %v596
        %v1288 = vunpack.c.h.b16 %v596
        %v1289 = vunpack.c.l.b16 %v597
        %v1290 = vunpack.c.h.b16 %v597
        %v1291 = vunpack.c.l.b16 %v598
        %v1292 = vunpack.c.h.b16 %v598
        %v1293 = vunpack.c.l.b16 %v599
        %v1294 = vunpack.c.h.b16 %v599
        %v1295 = vunpack.c.l.b16 %v600
        %v1296 = vunpack.c.h.b16 %v600
        %v1297 = vunpack.c.l.b16 %v601
        %v1298 = vunpack.c.h.b16 %v601
        %v1299 = vunpack.c.l.b16 %v602
        %v1300 = vunpack.c.h.b16 %v602
        %v1301 = vunpack.c.l.b16 %v603
        %v1302 = vunpack.c.h.b16 %v603
        %v1303 = vunpack.c.l.b16 %v604
        %v1304 = vunpack.c.h.b16 %v604
        %v1305 = vunpack.c.l.b16 %v605
        %v1306 = vunpack.c.h.b16 %v605
        %v1307 = vunpack.c.l.b16 %v606
        %v1308 = vunpack.c.h.b16 %v606
        %v1309 = vunpack.c.l.b16 %v607
        %v1310 = vunpack.c.h.b16 %v607
        %v1311 = vunpack.c.l.b16 %v608
        %v1312 = vunpack.c.h.b16 %v608
        %v1313 = vunpack.c.l.b16 %v609
        %v1314 = vunpack.c.h.b16 %v609
        %v1315 = vunpack.c.l.b16 %v610
        %v1316 = vunpack.c.h.b16 %v610
        %v1317 = vunpack.c.l.b16 %v611
        %v1318 = vunpack.c.h.b16 %v611
        %v1319 = vunpack.c.l.b16 %v612
        %v1320 = vunpack.c.h.b16 %v612
        %v1321 = vunpack.c.l.b16 %v613
        %v1322 = vunpack.c.h.b16 %v613
        %v1323 = vunpack.c.l.b16 %v614
        %v1324 = vunpack.c.h.b16 %v614
        %v1325 = vunpack.c.l.b16 %v615
        %v1326 = vunpack.c.h.b16 %v615
        %v1327 = vunpack.c.l.b16 %v616
        %v1328 = vunpack.c.h.b16 %v616
        %v1329 = vunpack.c.l.b16 %v617
        %v1330 = vunpack.c.h.b16 %v617
        %v1331 = vunpack.c.l.b16 %v618
        %v1332 = vunpack.c.h.b16 %v618
        %v1333 = vunpack.c.l.b16 %v619
        %v1334 = vunpack.c.h.b16 %v619
        %v1335 = vunpack.c.l.b16 %v620
        %v1336 = vunpack.c.h.b16 %v620
        %v1337 = vunpack.c.l.b16 %v621
        %v1338 = vunpack.c.h.b16 %v621
        %v1339 = vunpack.c.l.b16 %v622
        %v1340 = vunpack.c.h.b16 %v622
        %v1341 = vunpack.c.l.b16 %v623
        %v1342 = vunpack.c.h.b16 %v623
        %v1343 = vunpack.c.l.b16 %v624
        %v1344 = vunpack.c.h.b16 %v624
        %v1345 = vunpack.c.l.b16 %v625
        %v1346 = vunpack.c.h.b16 %v625
        %v1347 = vunpack.c.l.b16 %v626
        %v1348 = vunpack.c.h.b16 %v626
        %v1349 = vunpack.c.l.b16 %v627
        %v1350 = vunpack.c.h.b16 %v627
        %v1351 = vunpack.c.l.b16 %v628
        %v1352 = vunpack.c.h.b16 %v628
        %v1353 = vunpack.c.l.b16 %v629
        %v1354 = vunpack.c.h.b16 %v629
        %v1355 = vunpack.c.l.b16 %v630
        %v1356 = vunpack.c.h.b16 %v630
        %v1357 = vunpack.c.l.b16 %v631
        %v1358 = vunpack.c.h.b16 %v631
        %v1359 = vunpack.c.l.b16 %v632
        %v1360 = vunpack.c.h.b16 %v632
        %v1361 = vunpack.c.l.b16 %v633
        %v1362 = vunpack.c.h.b16 %v633
        %v1363 = vunpack.c.l.b16 %v634
        %v1364 = vunpack.c.h.b16 %v634
        %v1365 = vunpack.c.l.b16 %v635
        %v1366 = vunpack.c.h.b16 %v635
        %v1367 = vunpack.c.l.b16 %v636
        %v1368 = vunpack.c.h.b16 %v636
        %v1369 = vunpack.c.l.b16 %v637
        %v1370 = vunpack.c.h.b16 %v637
        %v1371 = vunpack.c.l.b16 %v638
        %v1372 = vunpack.c.h.b16 %v638
        %v1373 = vunpack.c.l.b16 %v639
        %v1374 = vunpack.c.h.b16 %v639
        %v1375 = vunpack.c.l.b16 %v640
        %v1376 = vunpack.c.h.b16 %v640
        %v1377 = vunpack.c.l.b16 %v641
        %v1378 = vunpack.c.h.b16 %v641
        %v1379 = vunpack.c.l.b16 %v642
        %v1380 = vunpack.c.h.b16 %v642
        %v1381 = vunpack.c.l.b16 %v643
        %v1382 = vunpack.c.h.b16 %v643
        %v1383 = vunpack.c.l.b16 %v644
        %v1384 = vunpack.c.h.b16 %v644
        %v1385 = vunpack.c.l.b16 %v645
        %v1386 = vunpack.c.h.b16 %v645
        %v1387 = vunpack.c.l.b16 %v646
        %v1388 = vunpack.c.h.b16 %v646
        %v1389 = vunpack.c.l.b16 %v647
        %v1390 = vunpack.c.h.b16 %v647
        %v1391 = vunpack.c.l.b16 %v648
        %v1392 = vunpack.c.h.b16 %v648
        %v1393 = vunpack.c.l.b16 %v649
        %v1394 = vunpack.c.h.b16 %v649
        %v1395 = vunpack.c.l.b16 %v650
        %v1396 = vunpack.c.h.b16 %v650
        %v1397 = vunpack.c.l.b16 %v651
        %v1398 = vunpack.c.h.b16 %v651
        %v1399 = vunpack.c.l.b16 %v652
        %v1400 = vunpack.c.h.b16 %v652
        %v1401 = vunpack.c.l.b16 %v653
        %v1402 = vunpack.c.h.b16 %v653
        %v1403 = vunpack.c.l.b16 %v654
        %v1404 = vunpack.c.h.b16 %v654
        %v1405 = vunpack.c.l.b16 %v655
        %v1406 = vunpack.c.h.b16 %v655
        %v1407 = vunpack.c.l.b16 %v656
        %v1408 = vunpack.c.h.b16 %v656
        %v1409 = vunpack.c.l.b16 %v657
        %v1410 = vunpack.c.h.b16 %v657
        %v1411 = vunpack.c.l.b16 %v658
        %v1412 = vunpack.c.h.b16 %v658
        %v1413 = vunpack.c.l.b16 %v659
        %v1414 = vunpack.c.h.b16 %v659
        %v1415 = vunpack.c.l.b16 %v660
        %v1416 = vunpack.c.h.b16 %v660
        %v1417 = vunpack.c.l.b16 %v661
        %v1418 = vunpack.c.h.b16 %v661
        %v1419 = vunpack.c.l.b16 %v662
        %v1420 = vunpack.c.h.b16 %v662
        %v1421 = vunpack.c.l.b16 %v663
        %v1422 = vunpack.c.h.b16 %v663
        %v1423 = vunpack.c.l.b16 %v664
        %v1424 = vunpack.c.h.b16 %v664
        %v1425 = vunpack.c.l.b16 %v665
        %v1426 = vunpack.c.h.b16 %v665
        %v1427 = vunpack.c.l.b16 %v666
        %v1428 = vunpack.c.h.b16 %v666
        %v1429 = vunpack.c.l.b16 %v667
        %v1430 = vunpack.c.h.b16 %v667
        %v1431 = vunpack.c.l.b16 %v668
        %v1432 = vunpack.c.h.b16 %v668
        %v1433 = vunpack.c.l.b16 %v669
        %v1434 = vunpack.c.h.b16 %v669
        %v1435 = vunpack.c.l.b16 %v670
        %v1436 = vunpack.c.h.b16 %v670
        %v1437 = vunpack.c.l.b16 %v671
        %v1438 = vunpack.c.h.b16 %v671
        %v1439 = vunpack.c.l.b16 %v672
        %v1440 = vunpack.c.h.b16 %v672
        %v1441 = vunpack.c.l.b16 %v673
        %v1442 = vunpack.c.h.b16 %v673
        %v1443 = vunpack.c.l.b16 %v674
        %v1444 = vunpack.c.h.b16 %v674
        %v1445 = vunpack.c.l.b16 %v675
        %v1446 = vunpack.c.h.b16 %v675
        %v1447 = vunpack.c.l.b16 %v676
        %v1448 = vunpack.c.h.b16 %v676
        %v1449 = vunpack.c.l.b16 %v677
        %v1450 = vunpack.c.h.b16 %v677
        %v1451 = vunpack.c.l.b16 %v678
        %v1452 = vunpack.c.h.b16 %v678
        %v1453 = vunpack.c.l.b16 %v679
        %v1454 = vunpack.c.h.b16 %v679
        %v1455 = vunpack.c.l.b16 %v680
        %v1456 = vunpack.c.h.b16 %v680
        %v1457 = vunpack.c.l.b16 %v681
        %v1458 = vunpack.c.h.b16 %v681
        %v1459 = vunpack.c.l.b16 %v682
        %v1460 = vunpack.c.h.b16 %v682
        %v1461 = vunpack.c.l.b16 %v683
        %v1462 = vunpack.c.h.b16 %v683
        %v1463 = vunpack.c.l.b16 %v684
        %v1464 = vunpack.c.h.b16 %v684
        %v1465 = vunpack.c.l.b16 %v685
        %v1466 = vunpack.c.h.b16 %v685
        %v1467 = vunpack.c.l.b16 %v686
        %v1468 = vunpack.c.h.b16 %v686
        %v1469 = vunpack.c.l.b16 %v687
        %v1470 = vunpack.c.h.b16 %v687
        %v1471 = vunpack.c.l.b16 %v688
        %v1472 = vunpack.c.h.b16 %v688
        %v1473 = vunpack.c.l.b16 %v689
        %v1474 = vunpack.c.h.b16 %v689
        %v1475 = vunpack.c.l.b16 %v690
        %v1476 = vunpack.c.h.b16 %v690
        %v1477 = vunpack.c.l.b16 %v691
        %v1478 = vunpack.c.h.b16 %v691
        %v1479 = vunpack.c.l.b16 %v692
        %v1480 = vunpack.c.h.b16 %v692
        %v1481 = vunpack.c.l.b16 %v693
        %v1482 = vunpack.c.h.b16 %v693
        %v1483 = vunpack.c.l.b16 %v694
        %v1484 = vunpack.c.h.b16 %v694
        %v1485 = vunpack.c.l.b16 %v695
        %v1486 = vunpack.c.h.b16 %v695
        %v1487 = vunpack.c.l.b16 %v696
        %v1488 = vunpack.c.h.b16 %v696
        %v1489 = vunpack.c.l.b16 %v697
        %v1490 = vunpack.c.h.b16 %v697
        %v1491 = vunpack.c.l.b16 %v698
        %v1492 = vunpack.c.h.b16 %v698
        %v1493 = vunpack.c.l.b16 %v699
        %v1494 = vunpack.c.h.b16 %v699
        %v1495 = vunpack.c.l.b16 %v700
        %v1496 = vunpack.c.h.b16 %v700
        %v1497 = vunpack.c.l.b16 %v701
        %v1498 = vunpack.c.h.b16 %v701
        %v1499 = vunpack.c.l.b16 %v702
        %v1500 = vunpack.c.h.b16 %v702
        %v1501 = vunpack.c.l.b16 %v703
        %v1502 = vunpack.c.h.b16 %v703
        %v1503 = vunpack.c.l.b16 %v704
        %v1504 = vunpack.c.h.b16 %v704
        %v1505 = vunpack.c.l.b16 %v705
        %v1506 = vunpack.c.h.b16 %v705
        %v1507 = vunpack.c.l.b16 %v706
        %v1508 = vunpack.c.h.b16 %v706
        %v1509 = vunpack.c.l.b16 %v707
        %v1510 = vunpack.c.h.b16 %v707
        %v1511 = vunpack.c.l.b16 %v708
        %v1512 = vunpack.c.h.b16 %v708
        %v1513 = vunpack.c.l.b16 %v709
        %v1514 = vunpack.c.h.b16 %v709
        %v1515 = vunpack.c.l.b16 %v710
        %v1516 = vunpack.c.h.b16 %v710
        %v1517 = vunpack.c.l.b16 %v711
        %v1518 = vunpack.c.h.b16 %v711
        %v1519 = vunpack.c.l.b16 %v712
        %v1520 = vunpack.c.h.b16 %v712
        %v1521 = vunpack.c.l.b16 %v713
        %v1522 = vunpack.c.h.b16 %v713
        %v1523 = vunpack.c.l.b16 %v714
        %v1524 = vunpack.c.h.b16 %v714
        %v1525 = vunpack.c.l.b16 %v715
        %v1526 = vunpack.c.h.b16 %v715
        %v1527 = vunpack.c.l.b16 %v716
        %v1528 = vunpack.c.h.b16 %v716
        %v1529 = vunpack.c.l.b16 %v717
        %v1530 = vunpack.c.h.b16 %v717
        %v1531 = vunpack.c.l.b16 %v718
        %v1532 = vunpack.c.h.b16 %v718
        %v1533 = vunpack.c.l.b16 %v719
        %v1534 = vunpack.c.h.b16 %v719
        %v1535 = vunpack.c.l.b16 %v720
        %v1536 = vunpack.c.h.b16 %v720
        %v1537 = vunpack.c.l.b16 %v721
        %v1538 = vunpack.c.h.b16 %v721
        %v1539 = vunpack.c.l.b16 %v722
        %v1540 = vunpack.c.h.b16 %v722
        %v1541 = vunpack.c.l.b16 %v723
        %v1542 = vunpack.c.h.b16 %v723
        %v1543 = vunpack.c.l.b16 %v724
        %v1544 = vunpack.c.h.b16 %v724
        %v1545 = vunpack.c.l.b16 %v725
        %v1546 = vunpack.c.h.b16 %v725
        %v1547 = vunpack.c.l.b16 %v726
        %v1548 = vunpack.c.h.b16 %v726
        %v1549 = vunpack.c.l.b16 %v727
        %v1550 = vunpack.c.h.b16 %v727
        %v1551 = vunpack.c.l.b16 %v728
        %v1552 = vunpack.c.h.b16 %v728
        %v1553 = vunpack.c.l.b16 %v729
        %v1554 = vunpack.c.h.b16 %v729
        %v1555 = vunpack.c.l.b16 %v730
        %v1556 = vunpack.c.h.b16 %v730
        %v1557 = vunpack.c.l.b16 %v731
        %v1558 = vunpack.c.h.b16 %v731
        %v1559 = vunpack.c.l.b16 %v732
        %v1560 = vunpack.c.h.b16 %v732
        %v1561 = vunpack.c.l.b16 %v733
        %v1562 = vunpack.c.h.b16 %v733
        %v1563 = vunpack.c.l.b16 %v734
        %v1564 = vunpack.c.h.b16 %v734
        %v1565 = vunpack.c.l.b16 %v735
        %v1566 = vunpack.c.h.b16 %v735
        %v1567 = vunpack.c.l.b16 %v736
        %v1568 = vunpack.c.h.b16 %v736
        %v1569 = vunpack.c.l.b16 %v737
        %v1570 = vunpack.c.h.b16 %v737
        %v1571 = vunpack.c.l.b16 %v738
        %v1572 = vunpack.c.h.b16 %v738
        %v1573 = vunpack.c.l.b16 %v739
        %v1574 = vunpack.c.h.b16 %v739
        %v1575 = vunpack.c.l.b16 %v740
        %v1576 = vunpack.c.h.b16 %v740
        %v1577 = vunpack.c.l.b16 %v741
        %v1578 = vunpack.c.h.b16 %v741
        %v1579 = vunpack.c.l.b16 %v742
        %v1580 = vunpack.c.h.b16 %v742
        %v1581 = vunpack.c.l.b16 %v743
        %v1582 = vunpack.c.h.b16 %v743
        %v1583 = vunpack.c.l.b16 %v744
        %v1584 = vunpack.c.h.b16 %v744
        %v1585 = vunpack.c.l.b16 %v745
        %v1586 = vunpack.c.h.b16 %v745
        %v1587 = vunpack.c.l.b16 %v746
        %v1588 = vunpack.c.h.b16 %v746
        %v1589 = vunpack.c.l.b16 %v747
        %v1590 = vunpack.c.h.b16 %v747
        %v1591 = vunpack.c.l.b16 %v748
        %v1592 = vunpack.c.h.b16 %v748
        %v1593 = vunpack.c.l.b16 %v749
        %v1594 = vunpack.c.h.b16 %v749
        %v1595 = vunpack.c.l.b16 %v750
        %v1596 = vunpack.c.h.b16 %v750
        %v1597 = vunpack.c.l.b16 %v751
        %v1598 = vunpack.c.h.b16 %v751
        %v1599 = vunpack.c.l.b16 %v752
        %v1600 = vunpack.c.h.b16 %v752
        %v1601 = vunpack.c.l.b16 %v753
        %v1602 = vunpack.c.h.b16 %v753
        %v1603 = vunpack.c.l.b16 %v754
        %v1604 = vunpack.c.h.b16 %v754
        %v1605 = vunpack.c.l.b16 %v755
        %v1606 = vunpack.c.h.b16 %v755
        %v1607 = vunpack.c.l.b16 %v756
        %v1608 = vunpack.c.h.b16 %v756
        %v1609 = vunpack.c.l.b16 %v757
        %v1610 = vunpack.c.h.b16 %v757
        %v1611 = vunpack.c.l.b16 %v758
        %v1612 = vunpack.c.h.b16 %v758
        %v1613 = vunpack.c.l.b16 %v759
        %v1614 = vunpack.c.h.b16 %v759
        %v1615 = vunpack.c.l.b16 %v760
        %v1616 = vunpack.c.h.b16 %v760
        %v1617 = vunpack.c.l.b16 %v761
        %v1618 = vunpack.c.h.b16 %v761
        %v1619 = vunpack.c.l.b16 %v762
        %v1620 = vunpack.c.h.b16 %v762
        %v1621 = vunpack.c.l.b16 %v763
        %v1622 = vunpack.c.h.b16 %v763
        %v1623 = vunpack.c.l.b16 %v764
        %v1624 = vunpack.c.h.b16 %v764
        %v1625 = vunpack.c.l.b16 %v765
        %v1626 = vunpack.c.h.b16 %v765
        %v1627 = vunpack.c.l.b16 %v766
        %v1628 = vunpack.c.h.b16 %v766
        %v1629 = vunpack.c.l.b16 %v767
        %v1630 = vunpack.c.h.b16 %v767
        %v1631 = vunpack.c.l.b16 %v768
        %v1632 = vunpack.c.h.b16 %v768
        %v1633 = vunpack.c.l.b16 %v769
        %v1634 = vunpack.c.h.b16 %v769
        %v1635 = vunpack.c.l.b16 %v770
        %v1636 = vunpack.c.h.b16 %v770
        %v1637 = vunpack.c.l.b16 %v771
        %v1638 = vunpack.c.h.b16 %v771
        %v1639 = vunpack.c.l.b16 %v772
        %v1640 = vunpack.c.h.b16 %v772
        %v1641 = vunpack.c.l.b16 %v773
        %v1642 = vunpack.c.h.b16 %v773
        %v1643 = vunpack.c.l.b16 %v774
        %v1644 = vunpack.c.h.b16 %v774
        %v1645 = vunpack.c.l.b16 %v775
        %v1646 = vunpack.c.h.b16 %v775
        %v1647 = vunpack.c.l.b16 %v776
        %v1648 = vunpack.c.h.b16 %v776
        %v1649 = vunpack.c.l.b16 %v777
        %v1650 = vunpack.c.h.b16 %v777
        %v1651 = vunpack.c.l.b16 %v778
        %v1652 = vunpack.c.h.b16 %v778
        %v1653 = vunpack.c.l.b16 %v779
        %v1654 = vunpack.c.h.b16 %v779
        %v1655 = vunpack.c.l.b16 %v780
        %v1656 = vunpack.c.h.b16 %v780
        %v1657 = vunpack.c.l.b16 %v781
        %v1658 = vunpack.c.h.b16 %v781
        %v1659 = vunpack.c.l.b16 %v782
        %v1660 = vunpack.c.h.b16 %v782
        %v1661 = vpack.c.b16 %v1091, %v1085
        %v1662 = vpack.c.b16 %v1092, %v1086
        %v1663 = vpack.c.b16 %v1093, %v1087
        %v1664 = vpack.c.b16 %v1094, %v1088
        %v1665 = vpack.c.b16 %v1095, %v1089
        %v1666 = vpack.c.b16 %v1096, %v1090
        %v1667 = vpack.c.b16 %v1103, %v1097
        %v1668 = vpack.c.b16 %v1104, %v1098
        %v1669 = vpack.c.b16 %v1105, %v1099
        %v1670 = vpack.c.b16 %v1106, %v1100
        %v1671 = vpack.c.b16 %v1107, %v1101
        %v1672 = vpack.c.b16 %v1108, %v1102
        %v1673 = vpack.c.b16 %v1115, %v1109
        %v1674 = vpack.c.b16 %v1116, %v1110
        %v1675 = vpack.c.b16 %v1117, %v1111
        %v1676 = vpack.c.b16 %v1118, %v1112
        %v1677 = vpack.c.b16 %v1119, %v1113
        %v1678 = vpack.c.b16 %v1120, %v1114
        %v1679 = vpack.c.b16 %v1127, %v1121
        %v1680 = vpack.c.b16 %v1128, %v1122
        %v1681 = vpack.c.b16 %v1129, %v1123
        %v1682 = vpack.c.b16 %v1130, %v1124
        %v1683 = vpack.c.b16 %v1131, %v1125
        %v1684 = vpack.c.b16 %v1132, %v1126
        %v1685 = vpack.c.b16 %v1139, %v1133
        %v1686 = vpack.c.b16 %v1140, %v1134
        %v1687 = vpack.c.b16 %v1141, %v1135
        %v1688 = vpack.c.b16 %v1142, %v1136
        %v1689 = vpack.c.b16 %v1143, %v1137
        %v1690 = vpack.c.b16 %v1144, %v1138
        %v1691 = vpack.c.b16 %v1151, %v1145
        %v1692 = vpack.c.b16 %v1152, %v1146
        %v1693 = vpack.c.b16 %v1153, %v1147
        %v1694 = vpack.c.b16 %v1154, %v1148
        %v1695 = vpack.c.b16 %v1155, %v1149
        %v1696 = vpack.c.b16 %v1156, %v1150
        %v1697 = vpack.c.b16 %v1163, %v1157
        %v1698 = vpack.c.b16 %v1164, %v1158
        %v1699 = vpack.c.b16 %v1165, %v1159
        %v1700 = vpack.c.b16 %v1166, %v1160
        %v1701 = vpack.c.b16 %v1167, %v1161
        %v1702 = vpack.c.b16 %v1168, %v1162
        %v1703 = vpack.c.b16 %v1175, %v1169
        %v1704 = vpack.c.b16 %v1176, %v1170
        %v1705 = vpack.c.b16 %v1177, %v1171
        %v1706 = vpack.c.b16 %v1178, %v1172
        %v1707 = vpack.c.b16 %v1179, %v1173
        %v1708 = vpack.c.b16 %v1180, %v1174
        %v1709 = vpack.c.b16 %v1187, %v1181
        %v1710 = vpack.c.b16 %v1188, %v1182
        %v1711 = vpack.c.b16 %v1189, %v1183
        %v1712 = vpack.c.b16 %v1190, %v1184
        %v1713 = vpack.c.b16 %v1191, %v1185
        %v1714 = vpack.c.b16 %v1192, %v1186
        %v1715 = vpack.c.b16 %v1199, %v1193
        %v1716 = vpack.c.b16 %v1200, %v1194
        %v1717 = vpack.c.b16 %v1201, %v1195
        %v1718 = vpack.c.b16 %v1202, %v1196
        %v1719 = vpack.c.b16 %v1203, %v1197
        %v1720 = vpack.c.b16 %v1204, %v1198
        %v1721 = vpack.c.b16 %v1211, %v1205
        %v1722 = vpack.c.b16 %v1212, %v1206
        %v1723 = vpack.c.b16 %v1213, %v1207
        %v1724 = vpack.c.b16 %v1214, %v1208
        %v1725 = vpack.c.b16 %v1215, %v1209
        %v1726 = vpack.c.b16 %v1216, %v1210
        %v1727 = vpack.c.b16 %v1223, %v1217
        %v1728 = vpack.c.b16 %v1224, %v1218
        %v1729 = vpack.c.b16 %v1225, %v1219
        %v1730 = vpack.c.b16 %v1226, %v1220
        %v1731 = vpack.c.b16 %v1227, %v1221
        %v1732 = vpack.c.b16 %v1228, %v1222
        %v1733 = vpack.c.b16 %v1235, %v1229
        %v1734 = vpack.c.b16 %v1236, %v1230
        %v1735 = vpack.c.b16 %v1237, %v1231
        %v1736 = vpack.c.b16 %v1238, %v1232
        %v1737 = vpack.c.b16 %v1239, %v1233
        %v1738 = vpack.c.b16 %v1240, %v1234
        %v1739 = vpack.c.b16 %v1247, %v1241
        %v1740 = vpack.c.b16 %v1248, %v1242
        %v1741 = vpack.c.b16 %v1249, %v1243
        %v1742 = vpack.c.b16 %v1250, %v1244
        %v1743 = vpack.c.b16 %v1251, %v1245
        %v1744 = vpack.c.b16 %v1252, %v1246
        %v1745 = vpack.c.b16 %v1259, %v1253
        %v1746 = vpack.c.b16 %v1260, %v1254
        %v1747 = vpack.c.b16 %v1261, %v1255
        %v1748 = vpack.c.b16 %v1262, %v1256
        %v1749 = vpack.c.b16 %v1263, %v1257
        %v1750 = vpack.c.b16 %v1264, %v1258
        %v1751 = vpack.c.b16 %v1271, %v1265
        %v1752 = vpack.c.b16 %v1272, %v1266
        %v1753 = vpack.c.b16 %v1273, %v1267
        %v1754 = vpack.c.b16 %v1274, %v1268
        %v1755 = vpack.c.b16 %v1275, %v1269
        %v1756 = vpack.c.b16 %v1276, %v1270
        %v1757 = vpack.c.b16 %v1283, %v1277
        %v1758 = vpack.c.b16 %v1284, %v1278
        %v1759 = vpack.c.b16 %v1285, %v1279
        %v1760 = vpack.c.b16 %v1286, %v1280
        %v1761 = vpack.c.b16 %v1287, %v1281
        %v1762 = vpack.c.b16 %v1288, %v1282
        %v1763 = vpack.c.b16 %v1295, %v1289
        %v1764 = vpack.c.b16 %v1296, %v1290
        %v1765 = vpack.c.b16 %v1297, %v1291
        %v1766 = vpack.c.b16 %v1298, %v1292
        %v1767 = vpack.c.b16 %v1299, %v1293
        %v1768 = vpack.c.b16 %v1300, %v1294
        %v1769 = vpack.c.b16 %v1307, %v1301
        %v1770 = vpack.c.b16 %v1308, %v1302
        %v1771 = vpack.c.b16 %v1309, %v1303
        %v1772 = vpack.c.b16 %v1310, %v1304
        %v1773 = vpack.c.b16 %v1311, %v1305
        %v1774 = vpack.c.b16 %v1312, %v1306
        %v1775 = vpack.c.b16 %v1319, %v1313
        %v1776 = vpack.c.b16 %v1320, %v1314
        %v1777 = vpack.c.b16 %v1321, %v1315
        %v1778 = vpack.c.b16 %v1322, %v1316
        %v1779 = vpack.c.b16 %v1323, %v1317
        %v1780 = vpack.c.b16 %v1324, %v1318
        %v1781 = vpack.c.b16 %v1331, %v1325
        %v1782 = vpack.c.b16 %v1332, %v1326
        %v1783 = vpack.c.b16 %v1333, %v1327
        %v1784 = vpack.c.b16 %v1334, %v1328
        %v1785 = vpack.c.b16 %v1335, %v1329
        %v1786 = vpack.c.b16 %v1336, %v1330
        %v1787 = vpack.c.b16 %v1343, %v1337
        %v1788 = vpack.c.b16 %v1344, %v1338
        %v1789 = vpack.c.b16 %v1345, %v1339
        %v1790 = vpack.c.b16 %v1346, %v1340
        %v1791 = vpack.c.b16 %v1347, %v1341
        %v1792 = vpack.c.b16 %v1348, %v1342
        %v1793 = vpack.c.b16 %v1355, %v1349
        %v1794 = vpack.c.b16 %v1356, %v1350
        %v1795 = vpack.c.b16 %v1357, %v1351
        %v1796 = vpack.c.b16 %v1358, %v1352
        %v1797 = vpack.c.b16 %v1359, %v1353
        %v1798 = vpack.c.b16 %v1360, %v1354
        %v1799 = vpack.c.b16 %v1367, %v1361
        %v1800 = vpack.c.b16 %v1368, %v1362
        %v1801 = vpack.c.b16 %v1369, %v1363
        %v1802 = vpack.c.b16 %v1370, %v1364
        %v1803 = vpack.c.b16 %v1371, %v1365
        %v1804 = vpack.c.b16 %v1372, %v1366
        %v1805 = vpack.c.b16 %v1379, %v1373
        %v1806 = vpack.c.b16 %v1380, %v1374
        %v1807 = vpack.c.b16 %v1381, %v1375
        %v1808 = vpack.c.b16 %v1382, %v1376
        %v1809 = vpack.c.b16 %v1383, %v1377
        %v1810 = vpack.c.b16 %v1384, %v1378
        %v1811 = vpack.c.b16 %v1391, %v1385
        %v1812 = vpack.c.b16 %v1392, %v1386
        %v1813 = vpack.c.b16 %v1393, %v1387
        %v1814 = vpack.c.b16 %v1394, %v1388
        %v1815 = vpack.c.b16 %v1395, %v1389
        %v1816 = vpack.c.b16 %v1396, %v1390
        %v1817 = vpack.c.b16 %v1403, %v1397
        %v1818 = vpack.c.b16 %v1404, %v1398
        %v1819 = vpack.c.b16 %v1405, %v1399
        %v1820 = vpack.c.b16 %v1406, %v1400
        %v1821 = vpack.c.b16 %v1407, %v1401
        %v1822 = vpack.c.b16 %v1408, %v1402
        %v1823 = vpack.c.b16 %v1415, %v1409
        %v1824 = vpack.c.b16 %v1416, %v1410
        %v1825 = vpack.c.b16 %v1417, %v1411
        %v1826 = vpack.c.b16 %v1418, %v1412
        %v1827 = vpack.c.b16 %v1419, %v1413
        %v1828 = vpack.c.b16 %v1420, %v1414
        %v1829 = vpack.c.b16 %v1427, %v1421
        %v1830 = vpack.c.b16 %v1428, %v1422
        %v1831 = vpack.c.b16 %v1429, %v1423
        %v1832 = vpack.c.b16 %v1430, %v1424
        %v1833 = vpack.c.b16 %v1431, %v1425
        %v1834 = vpack.c.b16 %v1432, %v1426
        %v1835 = vpack.c.b16 %v1439, %v1433
        %v1836 = vpack.c.b16 %v1440, %v1434
        %v1837 = vpack.c.b16 %v1441, %v1435
        %v1838 = vpack.c.b16 %v1442, %v1436
        %v1839 = vpack.c.b16 %v1443, %v1437
        %v1840 = vpack.c.b16 %v1444, %v1438
        %v1841 = vpack.c.b16 %v1451, %v1445
        %v1842 = vpack.c.b16 %v1452, %v1446
        %v1843 = vpack.c.b16 %v1453, %v1447
        %v1844 = vpack.c.b16 %v1454, %v1448
        %v1845 = vpack.c.b16 %v1455, %v1449
        %v1846 = vpack.c.b16 %v1456, %v1450
        %v1847 = vpack.c.b16 %v1463, %v1457
        %v1848 = vpack.c.b16 %v1464, %v1458
        %v1849 = vpack.c.b16 %v1465, %v1459
        %v1850 = vpack.c.b16 %v1466, %v1460
        %v1851 = vpack.c.b16 %v1467, %v1461
        %v1852 = vpack.c.b16 %v1468, %v1462
        %v1853 = vpack.c.b16 %v1475, %v1469
        %v1854 = vpack.c.b16 %v1476, %v1470
        %v1855 = vpack.c.b16 %v1477, %v1471
        %v1856 = vpack.c.b16 %v1478, %v1472
        %v1857 = vpack.c.b16 %v1479, %v1473
        %v1858 = vpack.c.b16 %v1480, %v1474
        %v1859 = vpack.c.b16 %v1487, %v1481
        %v1860 = vpack.c.b16 %v1488, %v1482
        %v1861 = vpack.c.b16 %v1489, %v1483
        %v1862 = vpack.c.b16 %v1490, %v1484
        %v1863 = vpack.c.b16 %v1491, %v1485
        %v1864 = vpack.c.b16 %v1492, %v1486
        %v1865 = vpack.c.b16 %v1499, %v1493
        %v1866 = vpack.c.b16 %v1500, %v1494
        %v1867 = vpack.c.b16 %v1501, %v1495
        %v1868 = vpack.c.b16 %v1502, %v1496
        %v1869 = vpack.c.b16 %v1503, %v1497
        %v1870 = vpack.c.b16 %v1504, %v1498
        %v1871 = vpack.c.b16 %v1511, %v1505
        %v1872 = vpack.c.b16 %v1512, %v1506
        %v1873 = vpack.c.b16 %v1513, %v1507
        %v1874 = vpack.c.b16 %v1514, %v1508
        %v1875 = vpack.c.b16 %v1515, %v1509
        %v1876 = vpack.c.b16 %v1516, %v1510
        %v1877 = vpack.c.b16 %v1523, %v1517
        %v1878 = vpack.c.b16 %v1524, %v1518
        %v1879 = vpack.c.b16 %v1525, %v1519
        %v1880 = vpack.c.b16 %v1526, %v1520
        %v1881 = vpack.c.b16 %v1527, %v1521
        %v1882 = vpack.c.b16 %v1528, %v1522
        %v1883 = vpack.c.b16 %v1535, %v1529
        %v1884 = vpack.c.b16 %v1536, %v1530
        %v1885 = vpack.c.b16 %v1537, %v1531
        %v1886 = vpack.c.b16 %v1538, %v1532
        %v1887 = vpack.c.b16 %v1539, %v1533
        %v1888 = vpack.c.b16 %v1540, %v1534
        %v1889 = vpack.c.b16 %v1547, %v1541
        %v1890 = vpack.c.b16 %v1548, %v1542
        %v1891 = vpack.c.b16 %v1549, %v1543
        %v1892 = vpack.c.b16 %v1550, %v1544
        %v1893 = vpack.c.b16 %v1551, %v1545
        %v1894 = vpack.c.b16 %v1552, %v1546
        %v1895 = vpack.c.b16 %v1559, %v1553
        %v1896 = vpack.c.b16 %v1560, %v1554
        %v1897 = vpack.c.b16 %v1561, %v1555
        %v1898 = vpack.c.b16 %v1562, %v1556
        %v1899 = vpack.c.b16 %v1563, %v1557
        %v1900 = vpack.c.b16 %v1564, %v1558
        %v1901 = vpack.c.b16 %v1571, %v1565
        %v1902 = vpack.c.b16 %v1572, %v1566
        %v1903 = vpack.c.b16 %v1573, %v1567
        %v1904 = vpack.c.b16 %v1574, %v1568
        %v1905 = vpack.c.b16 %v1575, %v1569
        %v1906 = vpack.c.b16 %v1576, %v1570
        %v1907 = vpack.c.b16 %v1583, %v1577
        %v1908 = vpack.c.b16 %v1584, %v1578
        %v1909 = vpack.c.b16 %v1585, %v1579
        %v1910 = vpack.c.b16 %v1586, %v1580
        %v1911 = vpack.c.b16 %v1587, %v1581
        %v1912 = vpack.c.b16 %v1588, %v1582
        %v1913 = vpack.c.b16 %v1595, %v1589
        %v1914 = vpack.c.b16 %v1596, %v1590
        %v1915 = vpack.c.b16 %v1597, %v1591
        %v1916 = vpack.c.b16 %v1598, %v1592
        %v1917 = vpack.c.b16 %v1599, %v1593
        %v1918 = vpack.c.b16 %v1600, %v1594
        %v1919 = vpack.c.b16 %v1607, %v1601
        %v1920 = vpack.c.b16 %v1608, %v1602
        %v1921 = vpack.c.b16 %v1609, %v1603
        %v1922 = vpack.c.b16 %v1610, %v1604
        %v1923 = vpack.c.b16 %v1611, %v1605
        %v1924 = vpack.c.b16 %v1612, %v1606
        %v1925 = vpack.c.b16 %v1619, %v1613
        %v1926 = vpack.c.b16 %v1620, %v1614
        %v1927 = vpack.c.b16 %v1621, %v1615
        %v1928 = vpack.c.b16 %v1622, %v1616
        %v1929 = vpack.c.b16 %v1623, %v1617
        %v1930 = vpack.c.b16 %v1624, %v1618
        %v1931 = vpack.c.b16 %v1631, %v1625
        %v1932 = vpack.c.b16 %v1632, %v1626
        %v1933 = vpack.c.b16 %v1633, %v1627
        %v1934 = vpack.c.b16 %v1634, %v1628
        %v1935 = vpack.c.b16 %v1635, %v1629
        %v1936 = vpack.c.b16 %v1636, %v1630
        %v1937 = vpack.c.b16 %v1643, %v1637
        %v1938 = vpack.c.b16 %v1644, %v1638
        %v1939 = vpack.c.b16 %v1645, %v1639
        %v1940 = vpack.c.b16 %v1646, %v1640
        %v1941 = vpack.c.b16 %v1647, %v1641
        %v1942 = vpack.c.b16 %v1648, %v1642
        %v1943 = vpack.c.b16 %v1655, %v1649
        %v1944 = vpack.c.b16 %v1656, %v1650
        %v1945 = vpack.c.b16 %v1657, %v1651
        %v1946 = vpack.c.b16 %v1658, %v1652
        %v1947 = vpack.c.b16 %v1659, %v1653
        %v1948 = vpack.c.b16 %v1660, %v1654
        %2237 = vmatpush.bf16.msra.mxu0 %v1703
        %2238 = vmatpush.bf16.msra.mxu0 %v1697
        %2239 = vmatpush.bf16.msra.mxu0 %v1691
        %2240 = vmatpush.bf16.msra.mxu0 %v1685
        %2241 = vmatpush.bf16.msra.mxu0 %v1679
        %2242 = vmatpush.bf16.msra.mxu0 %v1673
        %2243 = vmatpush.bf16.msra.mxu0 %v1667
        %2244 = vmatpush.bf16.msra.mxu0 %v1661
        %2245 = vmatmul.bf16.gmra.mxu0 %v489
        %v2246 = vpop.f32.mrf.mxu0
        %v2247 = vadd.f32 %v785, %v2246
        %v2248 = vpop.f32.mrf.mxu0
        %v2249 = vadd.f32 %v785, %v2248
        %2250 = vdwg.mxu0
        %2251 = vmatpush.bf16.msra.mxu0 %v1751
        %2252 = vmatpush.bf16.msra.mxu0 %v1745
        %2253 = vmatpush.bf16.msra.mxu0 %v1739
        %2254 = vmatpush.bf16.msra.mxu0 %v1733
        %2255 = vmatpush.bf16.msra.mxu0 %v1727
        %2256 = vmatpush.bf16.msra.mxu0 %v1721
        %2257 = vmatpush.bf16.msra.mxu0 %v1715
        %2258 = vmatpush.bf16.msra.mxu0 %v1709
        %2259 = vmatmul.bf16.gmra.mxu0 %v490
        %v2260 = vpop.f32.mrf.mxu0
        %v2261 = vadd.f32 %v2247, %v2260
        %v2262 = vpop.f32.mrf.mxu0
        %v2263 = vadd.f32 %v2249, %v2262
        %2264 = vdwg.mxu0
        %2265 = vmatpush.bf16.msra.mxu0 %v1799
        %2266 = vmatpush.bf16.msra.mxu0 %v1793
        %2267 = vmatpush.bf16.msra.mxu0 %v1787
        %2268 = vmatpush.bf16.msra.mxu0 %v1781
        %2269 = vmatpush.bf16.msra.mxu0 %v1775
        %2270 = vmatpush.bf16.msra.mxu0 %v1769
        %2271 = vmatpush.bf16.msra.mxu0 %v1763
        %2272 = vmatpush.bf16.msra.mxu0 %v1757
        %2273 = vmatmul.bf16.gmra.mxu0 %v491
        %v2274 = vpop.f32.mrf.mxu0
        %v2275 = vadd.f32 %v2261, %v2274
        %v2276 = vpop.f32.mrf.mxu0
        %v2277 = vadd.f32 %v2263, %v2276
        %2278 = vdwg.mxu0
        %2279 = vmatpush.bf16.msra.mxu0 %v1847
        %2280 = vmatpush.bf16.msra.mxu0 %v1841
        %2281 = vmatpush.bf16.msra.mxu0 %v1835
        %2282 = vmatpush.bf16.msra.mxu0 %v1829
        %2283 = vmatpush.bf16.msra.mxu0 %v1823
        %2284 = vmatpush.bf16.msra.mxu0 %v1817
        %2285 = vmatpush.bf16.msra.mxu0 %v1811
        %2286 = vmatpush.bf16.msra.mxu0 %v1805
        %2287 = vmatmul.bf16.gmra.mxu0 %v492
        %v2288 = vpop.f32.mrf.mxu0
        %v2289 = vadd.f32 %v2275, %v2288
        %v2290 = vpop.f32.mrf.mxu0
        %v2291 = vadd.f32 %v2277, %v2290
        %2292 = vdwg.mxu0
        %2293 = vmatpush.bf16.msra.mxu0 %v1895
        %2294 = vmatpush.bf16.msra.mxu0 %v1889
        %2295 = vmatpush.bf16.msra.mxu0 %v1883
        %2296 = vmatpush.bf16.msra.mxu0 %v1877
        %2297 = vmatpush.bf16.msra.mxu0 %v1871
        %2298 = vmatpush.bf16.msra.mxu0 %v1865
        %2299 = vmatpush.bf16.msra.mxu0 %v1859
        %2300 = vmatpush.bf16.msra.mxu0 %v1853
        %2301 = vmatmul.bf16.gmra.mxu0 %v493
        %v2302 = vpop.f32.mrf.mxu0
        %v2303 = vadd.f32 %v2289, %v2302
        %v2304 = vpop.f32.mrf.mxu0
        %v2305 = vadd.f32 %v2291, %v2304
        %2306 = vdwg.mxu0
        %2307 = vmatpush.bf16.msra.mxu0 %v1943
        %2308 = vmatpush.bf16.msra.mxu0 %v1937
        %2309 = vmatpush.bf16.msra.mxu0 %v1931
        %2310 = vmatpush.bf16.msra.mxu0 %v1925
        %2311 = vmatpush.bf16.msra.mxu0 %v1919
        %2312 = vmatpush.bf16.msra.mxu0 %v1913
        %2313 = vmatpush.bf16.msra.mxu0 %v1907
        %2314 = vmatpush.bf16.msra.mxu0 %v1901
        %2315 = vmatmul.bf16.gmra.mxu0 %v494
        %v2316 = vpop.f32.mrf.mxu0
        %v2317 = vadd.f32 %v2303, %v2316
        %v2318 = vpop.f32.mrf.mxu0
        %v2319 = vadd.f32 %v2305, %v2318
        %2320 = vdwg.mxu0
        %2321 = vmatpush.bf16.msra.mxu0 %v1704
        %2322 = vmatpush.bf16.msra.mxu0 %v1698
        %2323 = vmatpush.bf16.msra.mxu0 %v1692
        %2324 = vmatpush.bf16.msra.mxu0 %v1686
        %2325 = vmatpush.bf16.msra.mxu0 %v1680
        %2326 = vmatpush.bf16.msra.mxu0 %v1674
        %2327 = vmatpush.bf16.msra.mxu0 %v1668
        %2328 = vmatpush.bf16.msra.mxu0 %v1662
        %2329 = vmatmul.bf16.gmra.mxu0 %v489
        %v2330 = vpop.f32.mrf.mxu0
        %v2331 = vadd.f32 %v786, %v2330
        %v2332 = vpop.f32.mrf.mxu0
        %v2333 = vadd.f32 %v786, %v2332
        %2334 = vdwg.mxu0
        %2335 = vmatpush.bf16.msra.mxu0 %v1752
        %2336 = vmatpush.bf16.msra.mxu0 %v1746
        %2337 = vmatpush.bf16.msra.mxu0 %v1740
        %2338 = vmatpush.bf16.msra.mxu0 %v1734
        %2339 = vmatpush.bf16.msra.mxu0 %v1728
        %2340 = vmatpush.bf16.msra.mxu0 %v1722
        %2341 = vmatpush.bf16.msra.mxu0 %v1716
        %2342 = vmatpush.bf16.msra.mxu0 %v1710
        %2343 = vmatmul.bf16.gmra.mxu0 %v490
        %v2344 = vpop.f32.mrf.mxu0
        %v2345 = vadd.f32 %v2331, %v2344
        %v2346 = vpop.f32.mrf.mxu0
        %v2347 = vadd.f32 %v2333, %v2346
        %2348 = vdwg.mxu0
        %2349 = vmatpush.bf16.msra.mxu0 %v1800
        %2350 = vmatpush.bf16.msra.mxu0 %v1794
        %2351 = vmatpush.bf16.msra.mxu0 %v1788
        %2352 = vmatpush.bf16.msra.mxu0 %v1782
        %2353 = vmatpush.bf16.msra.mxu0 %v1776
        %2354 = vmatpush.bf16.msra.mxu0 %v1770
        %2355 = vmatpush.bf16.msra.mxu0 %v1764
        %2356 = vmatpush.bf16.msra.mxu0 %v1758
        %2357 = vmatmul.bf16.gmra.mxu0 %v491
        %v2358 = vpop.f32.mrf.mxu0
        %v2359 = vadd.f32 %v2345, %v2358
        %v2360 = vpop.f32.mrf.mxu0
        %v2361 = vadd.f32 %v2347, %v2360
        %2362 = vdwg.mxu0
        %2363 = vmatpush.bf16.msra.mxu0 %v1848
        %2364 = vmatpush.bf16.msra.mxu0 %v1842
        %2365 = vmatpush.bf16.msra.mxu0 %v1836
        %2366 = vmatpush.bf16.msra.mxu0 %v1830
        %2367 = vmatpush.bf16.msra.mxu0 %v1824
        %2368 = vmatpush.bf16.msra.mxu0 %v1818
        %2369 = vmatpush.bf16.msra.mxu0 %v1812
        %2370 = vmatpush.bf16.msra.mxu0 %v1806
        %2371 = vmatmul.bf16.gmra.mxu0 %v492
        %v2372 = vpop.f32.mrf.mxu0
        %v2373 = vadd.f32 %v2359, %v2372
        %v2374 = vpop.f32.mrf.mxu0
        %v2375 = vadd.f32 %v2361, %v2374
        %2376 = vdwg.mxu0
        %2377 = vmatpush.bf16.msra.mxu0 %v1896
        %2378 = vmatpush.bf16.msra.mxu0 %v1890
        %2379 = vmatpush.bf16.msra.mxu0 %v1884
        %2380 = vmatpush.bf16.msra.mxu0 %v1878
        %2381 = vmatpush.bf16.msra.mxu0 %v1872
        %2382 = vmatpush.bf16.msra.mxu0 %v1866
        %2383 = vmatpush.bf16.msra.mxu0 %v1860
        %2384 = vmatpush.bf16.msra.mxu0 %v1854
        %2385 = vmatmul.bf16.gmra.mxu0 %v493
        %v2386 = vpop.f32.mrf.mxu0
        %v2387 = vadd.f32 %v2373, %v2386
        %v2388 = vpop.f32.mrf.mxu0
        %v2389 = vadd.f32 %v2375, %v2388
        %2390 = vdwg.mxu0
        %2391 = vmatpush.bf16.msra.mxu0 %v1944
        %2392 = vmatpush.bf16.msra.mxu0 %v1938
        %2393 = vmatpush.bf16.msra.mxu0 %v1932
        %2394 = vmatpush.bf16.msra.mxu0 %v1926
        %2395 = vmatpush.bf16.msra.mxu0 %v1920
        %2396 = vmatpush.bf16.msra.mxu0 %v1914
        %2397 = vmatpush.bf16.msra.mxu0 %v1908
        %2398 = vmatpush.bf16.msra.mxu0 %v1902
        %2399 = vmatmul.bf16.gmra.mxu0 %v494
        %v2400 = vpop.f32.mrf.mxu0
        %v2401 = vadd.f32 %v2387, %v2400
        %v2402 = vpop.f32.mrf.mxu0
        %v2403 = vadd.f32 %v2389, %v2402
        %2404 = vdwg.mxu0
        %2405 = vmatpush.bf16.msra.mxu0 %v1705
        %2406 = vmatpush.bf16.msra.mxu0 %v1699
        %2407 = vmatpush.bf16.msra.mxu0 %v1693
        %2408 = vmatpush.bf16.msra.mxu0 %v1687
        %2409 = vmatpush.bf16.msra.mxu0 %v1681
        %2410 = vmatpush.bf16.msra.mxu0 %v1675
        %2411 = vmatpush.bf16.msra.mxu0 %v1669
        %2412 = vmatpush.bf16.msra.mxu0 %v1663
        %2413 = vmatmul.bf16.gmra.mxu0 %v489
        %v2414 = vpop.f32.mrf.mxu0
        %v2415 = vadd.f32 %v787, %v2414
        %v2416 = vpop.f32.mrf.mxu0
        %v2417 = vadd.f32 %v787, %v2416
        %2418 = vdwg.mxu0
        %2419 = vmatpush.bf16.msra.mxu0 %v1753
        %2420 = vmatpush.bf16.msra.mxu0 %v1747
        %2421 = vmatpush.bf16.msra.mxu0 %v1741
        %2422 = vmatpush.bf16.msra.mxu0 %v1735
        %2423 = vmatpush.bf16.msra.mxu0 %v1729
        %2424 = vmatpush.bf16.msra.mxu0 %v1723
        %2425 = vmatpush.bf16.msra.mxu0 %v1717
        %2426 = vmatpush.bf16.msra.mxu0 %v1711
        %2427 = vmatmul.bf16.gmra.mxu0 %v490
        %v2428 = vpop.f32.mrf.mxu0
        %v2429 = vadd.f32 %v2415, %v2428
        %v2430 = vpop.f32.mrf.mxu0
        %v2431 = vadd.f32 %v2417, %v2430
        %2432 = vdwg.mxu0
        %2433 = vmatpush.bf16.msra.mxu0 %v1801
        %2434 = vmatpush.bf16.msra.mxu0 %v1795
        %2435 = vmatpush.bf16.msra.mxu0 %v1789
        %2436 = vmatpush.bf16.msra.mxu0 %v1783
        %2437 = vmatpush.bf16.msra.mxu0 %v1777
        %2438 = vmatpush.bf16.msra.mxu0 %v1771
        %2439 = vmatpush.bf16.msra.mxu0 %v1765
        %2440 = vmatpush.bf16.msra.mxu0 %v1759
        %2441 = vmatmul.bf16.gmra.mxu0 %v491
        %v2442 = vpop.f32.mrf.mxu0
        %v2443 = vadd.f32 %v2429, %v2442
        %v2444 = vpop.f32.mrf.mxu0
        %v2445 = vadd.f32 %v2431, %v2444
        %2446 = vdwg.mxu0
        %2447 = vmatpush.bf16.msra.mxu0 %v1849
        %2448 = vmatpush.bf16.msra.mxu0 %v1843
        %2449 = vmatpush.bf16.msra.mxu0 %v1837
        %2450 = vmatpush.bf16.msra.mxu0 %v1831
        %2451 = vmatpush.bf16.msra.mxu0 %v1825
        %2452 = vmatpush.bf16.msra.mxu0 %v1819
        %2453 = vmatpush.bf16.msra.mxu0 %v1813
        %2454 = vmatpush.bf16.msra.mxu0 %v1807
        %2455 = vmatmul.bf16.gmra.mxu0 %v492
        %v2456 = vpop.f32.mrf.mxu0
        %v2457 = vadd.f32 %v2443, %v2456
        %v2458 = vpop.f32.mrf.mxu0
        %v2459 = vadd.f32 %v2445, %v2458
        %2460 = vdwg.mxu0
        %2461 = vmatpush.bf16.msra.mxu0 %v1897
        %2462 = vmatpush.bf16.msra.mxu0 %v1891
        %2463 = vmatpush.bf16.msra.mxu0 %v1885
        %2464 = vmatpush.bf16.msra.mxu0 %v1879
        %2465 = vmatpush.bf16.msra.mxu0 %v1873
        %2466 = vmatpush.bf16.msra.mxu0 %v1867
        %2467 = vmatpush.bf16.msra.mxu0 %v1861
        %2468 = vmatpush.bf16.msra.mxu0 %v1855
        %2469 = vmatmul.bf16.gmra.mxu0 %v493
        %v2470 = vpop.f32.mrf.mxu0
        %v2471 = vadd.f32 %v2457, %v2470
        %v2472 = vpop.f32.mrf.mxu0
        %v2473 = vadd.f32 %v2459, %v2472
        %2474 = vdwg.mxu0
        %2475 = vmatpush.bf16.msra.mxu0 %v1945
        %2476 = vmatpush.bf16.msra.mxu0 %v1939
        %2477 = vmatpush.bf16.msra.mxu0 %v1933
        %2478 = vmatpush.bf16.msra.mxu0 %v1927
        %2479 = vmatpush.bf16.msra.mxu0 %v1921
        %2480 = vmatpush.bf16.msra.mxu0 %v1915
        %2481 = vmatpush.bf16.msra.mxu0 %v1909
        %2482 = vmatpush.bf16.msra.mxu0 %v1903
        %2483 = vmatmul.bf16.gmra.mxu0 %v494
        %v2484 = vpop.f32.mrf.mxu0
        %v2485 = vadd.f32 %v2471, %v2484
        %v2486 = vpop.f32.mrf.mxu0
        %v2487 = vadd.f32 %v2473, %v2486
        %2488 = vdwg.mxu0
        %2489 = vmatpush.bf16.msra.mxu0 %v1706
        %2490 = vmatpush.bf16.msra.mxu0 %v1700
        %2491 = vmatpush.bf16.msra.mxu0 %v1694
        %2492 = vmatpush.bf16.msra.mxu0 %v1688
        %2493 = vmatpush.bf16.msra.mxu0 %v1682
        %2494 = vmatpush.bf16.msra.mxu0 %v1676
        %2495 = vmatpush.bf16.msra.mxu0 %v1670
        %2496 = vmatpush.bf16.msra.mxu0 %v1664
        %2497 = vmatmul.bf16.gmra.mxu0 %v489
        %v2498 = vpop.f32.mrf.mxu0
        %v2499 = vadd.f32 %v788, %v2498
        %v2500 = vpop.f32.mrf.mxu0
        %v2501 = vadd.f32 %v788, %v2500
        %2502 = vdwg.mxu0
        %2503 = vmatpush.bf16.msra.mxu0 %v1754
        %2504 = vmatpush.bf16.msra.mxu0 %v1748
        %2505 = vmatpush.bf16.msra.mxu0 %v1742
        %2506 = vmatpush.bf16.msra.mxu0 %v1736
        %2507 = vmatpush.bf16.msra.mxu0 %v1730
        %2508 = vmatpush.bf16.msra.mxu0 %v1724
        %2509 = vmatpush.bf16.msra.mxu0 %v1718
        %2510 = vmatpush.bf16.msra.mxu0 %v1712
        %2511 = vmatmul.bf16.gmra.mxu0 %v490
        %v2512 = vpop.f32.mrf.mxu0
        %v2513 = vadd.f32 %v2499, %v2512
        %v2514 = vpop.f32.mrf.mxu0
        %v2515 = vadd.f32 %v2501, %v2514
        %2516 = vdwg.mxu0
        %2517 = vmatpush.bf16.msra.mxu0 %v1802
        %2518 = vmatpush.bf16.msra.mxu0 %v1796
        %2519 = vmatpush.bf16.msra.mxu0 %v1790
        %2520 = vmatpush.bf16.msra.mxu0 %v1784
        %2521 = vmatpush.bf16.msra.mxu0 %v1778
        %2522 = vmatpush.bf16.msra.mxu0 %v1772
        %2523 = vmatpush.bf16.msra.mxu0 %v1766
        %2524 = vmatpush.bf16.msra.mxu0 %v1760
        %2525 = vmatmul.bf16.gmra.mxu0 %v491
        %v2526 = vpop.f32.mrf.mxu0
        %v2527 = vadd.f32 %v2513, %v2526
        %v2528 = vpop.f32.mrf.mxu0
        %v2529 = vadd.f32 %v2515, %v2528
        %2530 = vdwg.mxu0
        %2531 = vmatpush.bf16.msra.mxu0 %v1850
        %2532 = vmatpush.bf16.msra.mxu0 %v1844
        %2533 = vmatpush.bf16.msra.mxu0 %v1838
        %2534 = vmatpush.bf16.msra.mxu0 %v1832
        %2535 = vmatpush.bf16.msra.mxu0 %v1826
        %2536 = vmatpush.bf16.msra.mxu0 %v1820
        %2537 = vmatpush.bf16.msra.mxu0 %v1814
        %2538 = vmatpush.bf16.msra.mxu0 %v1808
        %2539 = vmatmul.bf16.gmra.mxu0 %v492
        %v2540 = vpop.f32.mrf.mxu0
        %v2541 = vadd.f32 %v2527, %v2540
        %v2542 = vpop.f32.mrf.mxu0
        %v2543 = vadd.f32 %v2529, %v2542
        %2544 = vdwg.mxu0
        %2545 = vmatpush.bf16.msra.mxu0 %v1898
        %2546 = vmatpush.bf16.msra.mxu0 %v1892
        %2547 = vmatpush.bf16.msra.mxu0 %v1886
        %2548 = vmatpush.bf16.msra.mxu0 %v1880
        %2549 = vmatpush.bf16.msra.mxu0 %v1874
        %2550 = vmatpush.bf16.msra.mxu0 %v1868
        %2551 = vmatpush.bf16.msra.mxu0 %v1862
        %2552 = vmatpush.bf16.msra.mxu0 %v1856
        %2553 = vmatmul.bf16.gmra.mxu0 %v493
        %v2554 = vpop.f32.mrf.mxu0
        %v2555 = vadd.f32 %v2541, %v2554
        %v2556 = vpop.f32.mrf.mxu0
        %v2557 = vadd.f32 %v2543, %v2556
        %2558 = vdwg.mxu0
        %2559 = vmatpush.bf16.msra.mxu0 %v1946
        %2560 = vmatpush.bf16.msra.mxu0 %v1940
        %2561 = vmatpush.bf16.msra.mxu0 %v1934
        %2562 = vmatpush.bf16.msra.mxu0 %v1928
        %2563 = vmatpush.bf16.msra.mxu0 %v1922
        %2564 = vmatpush.bf16.msra.mxu0 %v1916
        %2565 = vmatpush.bf16.msra.mxu0 %v1910
        %2566 = vmatpush.bf16.msra.mxu0 %v1904
        %2567 = vmatmul.bf16.gmra.mxu0 %v494
        %v2568 = vpop.f32.mrf.mxu0
        %v2569 = vadd.f32 %v2555, %v2568
        %v2570 = vpop.f32.mrf.mxu0
        %v2571 = vadd.f32 %v2557, %v2570
        %2572 = vdwg.mxu0
        %2573 = vmatpush.bf16.msra.mxu0 %v1707
        %2574 = vmatpush.bf16.msra.mxu0 %v1701
        %2575 = vmatpush.bf16.msra.mxu0 %v1695
        %2576 = vmatpush.bf16.msra.mxu0 %v1689
        %2577 = vmatpush.bf16.msra.mxu0 %v1683
        %2578 = vmatpush.bf16.msra.mxu0 %v1677
        %2579 = vmatpush.bf16.msra.mxu0 %v1671
        %2580 = vmatpush.bf16.msra.mxu0 %v1665
        %2581 = vmatmul.bf16.gmra.mxu0 %v489
        %v2582 = vpop.f32.mrf.mxu0
        %v2583 = vadd.f32 %v789, %v2582
        %v2584 = vpop.f32.mrf.mxu0
        %v2585 = vadd.f32 %v789, %v2584
        %2586 = vdwg.mxu0
        %2587 = vmatpush.bf16.msra.mxu0 %v1755
        %2588 = vmatpush.bf16.msra.mxu0 %v1749
        %2589 = vmatpush.bf16.msra.mxu0 %v1743
        %2590 = vmatpush.bf16.msra.mxu0 %v1737
        %2591 = vmatpush.bf16.msra.mxu0 %v1731
        %2592 = vmatpush.bf16.msra.mxu0 %v1725
        %2593 = vmatpush.bf16.msra.mxu0 %v1719
        %2594 = vmatpush.bf16.msra.mxu0 %v1713
        %2595 = vmatmul.bf16.gmra.mxu0 %v490
        %v2596 = vpop.f32.mrf.mxu0
        %v2597 = vadd.f32 %v2583, %v2596
        %v2598 = vpop.f32.mrf.mxu0
        %v2599 = vadd.f32 %v2585, %v2598
        %2600 = vdwg.mxu0
        %2601 = vmatpush.bf16.msra.mxu0 %v1803
        %2602 = vmatpush.bf16.msra.mxu0 %v1797
        %2603 = vmatpush.bf16.msra.mxu0 %v1791
        %2604 = vmatpush.bf16.msra.mxu0 %v1785
        %2605 = vmatpush.bf16.msra.mxu0 %v1779
        %2606 = vmatpush.bf16.msra.mxu0 %v1773
        %2607 = vmatpush.bf16.msra.mxu0 %v1767
        %2608 = vmatpush.bf16.msra.mxu0 %v1761
        %2609 = vmatmul.bf16.gmra.mxu0 %v491
        %v2610 = vpop.f32.mrf.mxu0
        %v2611 = vadd.f32 %v2597, %v2610
        %v2612 = vpop.f32.mrf.mxu0
        %v2613 = vadd.f32 %v2599, %v2612
        %2614 = vdwg.mxu0
        %2615 = vmatpush.bf16.msra.mxu0 %v1851
        %2616 = vmatpush.bf16.msra.mxu0 %v1845
        %2617 = vmatpush.bf16.msra.mxu0 %v1839
        %2618 = vmatpush.bf16.msra.mxu0 %v1833
        %2619 = vmatpush.bf16.msra.mxu0 %v1827
        %2620 = vmatpush.bf16.msra.mxu0 %v1821
        %2621 = vmatpush.bf16.msra.mxu0 %v1815
        %2622 = vmatpush.bf16.msra.mxu0 %v1809
        %2623 = vmatmul.bf16.gmra.mxu0 %v492
        %v2624 = vpop.f32.mrf.mxu0
        %v2625 = vadd.f32 %v2611, %v2624
        %v2626 = vpop.f32.mrf.mxu0
        %v2627 = vadd.f32 %v2613, %v2626
        %2628 = vdwg.mxu0
        %2629 = vmatpush.bf16.msra.mxu0 %v1899
        %2630 = vmatpush.bf16.msra.mxu0 %v1893
        %2631 = vmatpush.bf16.msra.mxu0 %v1887
        %2632 = vmatpush.bf16.msra.mxu0 %v1881
        %2633 = vmatpush.bf16.msra.mxu0 %v1875
        %2634 = vmatpush.bf16.msra.mxu0 %v1869
        %2635 = vmatpush.bf16.msra.mxu0 %v1863
        %2636 = vmatpush.bf16.msra.mxu0 %v1857
        %2637 = vmatmul.bf16.gmra.mxu0 %v493
        %v2638 = vpop.f32.mrf.mxu0
        %v2639 = vadd.f32 %v2625, %v2638
        %v2640 = vpop.f32.mrf.mxu0
        %v2641 = vadd.f32 %v2627, %v2640
        %2642 = vdwg.mxu0
        %2643 = vmatpush.bf16.msra.mxu0 %v1947
        %2644 = vmatpush.bf16.msra.mxu0 %v1941
        %2645 = vmatpush.bf16.msra.mxu0 %v1935
        %2646 = vmatpush.bf16.msra.mxu0 %v1929
        %2647 = vmatpush.bf16.msra.mxu0 %v1923
        %2648 = vmatpush.bf16.msra.mxu0 %v1917
        %2649 = vmatpush.bf16.msra.mxu0 %v1911
        %2650 = vmatpush.bf16.msra.mxu0 %v1905
        %2651 = vmatmul.bf16.gmra.mxu0 %v494
        %v2652 = vpop.f32.mrf.mxu0
        %v2653 = vadd.f32 %v2639, %v2652
        %v2654 = vpop.f32.mrf.mxu0
        %v2655 = vadd.f32 %v2641, %v2654
        %2656 = vdwg.mxu0
        %2657 = vmatpush.bf16.msra.mxu0 %v1708
        %2658 = vmatpush.bf16.msra.mxu0 %v1702
        %2659 = vmatpush.bf16.msra.mxu0 %v1696
        %2660 = vmatpush.bf16.msra.mxu0 %v1690
        %2661 = vmatpush.bf16.msra.mxu0 %v1684
        %2662 = vmatpush.bf16.msra.mxu0 %v1678
        %2663 = vmatpush.bf16.msra.mxu0 %v1672
        %2664 = vmatpush.bf16.msra.mxu0 %v1666
        %2665 = vmatmul.bf16.gmra.mxu0 %v489
        %v2666 = vpop.f32.mrf.mxu0
        %v2667 = vadd.f32 %v790, %v2666
        %v2668 = vpop.f32.mrf.mxu0
        %v2669 = vadd.f32 %v790, %v2668
        %2670 = vdwg.mxu0
        %2671 = vmatpush.bf16.msra.mxu0 %v1756
        %2672 = vmatpush.bf16.msra.mxu0 %v1750
        %2673 = vmatpush.bf16.msra.mxu0 %v1744
        %2674 = vmatpush.bf16.msra.mxu0 %v1738
        %2675 = vmatpush.bf16.msra.mxu0 %v1732
        %2676 = vmatpush.bf16.msra.mxu0 %v1726
        %2677 = vmatpush.bf16.msra.mxu0 %v1720
        %2678 = vmatpush.bf16.msra.mxu0 %v1714
        %2679 = vmatmul.bf16.gmra.mxu0 %v490
        %v2680 = vpop.f32.mrf.mxu0
        %v2681 = vadd.f32 %v2667, %v2680
        %v2682 = vpop.f32.mrf.mxu0
        %v2683 = vadd.f32 %v2669, %v2682
        %2684 = vdwg.mxu0
        %2685 = vmatpush.bf16.msra.mxu0 %v1804
        %2686 = vmatpush.bf16.msra.mxu0 %v1798
        %2687 = vmatpush.bf16.msra.mxu0 %v1792
        %2688 = vmatpush.bf16.msra.mxu0 %v1786
        %2689 = vmatpush.bf16.msra.mxu0 %v1780
        %2690 = vmatpush.bf16.msra.mxu0 %v1774
        %2691 = vmatpush.bf16.msra.mxu0 %v1768
        %2692 = vmatpush.bf16.msra.mxu0 %v1762
        %2693 = vmatmul.bf16.gmra.mxu0 %v491
        %v2694 = vpop.f32.mrf.mxu0
        %v2695 = vadd.f32 %v2681, %v2694
        %v2696 = vpop.f32.mrf.mxu0
        %v2697 = vadd.f32 %v2683, %v2696
        %2698 = vdwg.mxu0
        %2699 = vmatpush.bf16.msra.mxu0 %v1852
        %2700 = vmatpush.bf16.msra.mxu0 %v1846
        %2701 = vmatpush.bf16.msra.mxu0 %v1840
        %2702 = vmatpush.bf16.msra.mxu0 %v1834
        %2703 = vmatpush.bf16.msra.mxu0 %v1828
        %2704 = vmatpush.bf16.msra.mxu0 %v1822
        %2705 = vmatpush.bf16.msra.mxu0 %v1816
        %2706 = vmatpush.bf16.msra.mxu0 %v1810
        %2707 = vmatmul.bf16.gmra.mxu0 %v492
        %v2708 = vpop.f32.mrf.mxu0
        %v2709 = vadd.f32 %v2695, %v2708
        %v2710 = vpop.f32.mrf.mxu0
        %v2711 = vadd.f32 %v2697, %v2710
        %2712 = vdwg.mxu0
        %2713 = vmatpush.bf16.msra.mxu0 %v1900
        %2714 = vmatpush.bf16.msra.mxu0 %v1894
        %2715 = vmatpush.bf16.msra.mxu0 %v1888
        %2716 = vmatpush.bf16.msra.mxu0 %v1882
        %2717 = vmatpush.bf16.msra.mxu0 %v1876
        %2718 = vmatpush.bf16.msra.mxu0 %v1870
        %2719 = vmatpush.bf16.msra.mxu0 %v1864
        %2720 = vmatpush.bf16.msra.mxu0 %v1858
        %2721 = vmatmul.bf16.gmra.mxu0 %v493
        %v2722 = vpop.f32.mrf.mxu0
        %v2723 = vadd.f32 %v2709, %v2722
        %v2724 = vpop.f32.mrf.mxu0
        %v2725 = vadd.f32 %v2711, %v2724
        %2726 = vdwg.mxu0
        %2727 = vmatpush.bf16.msra.mxu0 %v1948
        %2728 = vmatpush.bf16.msra.mxu0 %v1942
        %2729 = vmatpush.bf16.msra.mxu0 %v1936
        %2730 = vmatpush.bf16.msra.mxu0 %v1930
        %2731 = vmatpush.bf16.msra.mxu0 %v1924
        %2732 = vmatpush.bf16.msra.mxu0 %v1918
        %2733 = vmatpush.bf16.msra.mxu0 %v1912
        %2734 = vmatpush.bf16.msra.mxu0 %v1906
        %2735 = vmatmul.bf16.gmra.mxu0 %v494
        %v2736 = vpop.f32.mrf.mxu0
        %v2737 = vadd.f32 %v2723, %v2736
        %v2738 = vpop.f32.mrf.mxu0
        %v2739 = vadd.f32 %v2725, %v2738
        %2740 = vdwg.mxu0
        %v2741 = vmax.f32 %v2317, 0.0
        %v2742 = vmax.f32 %v2401, 0.0
        %v2743 = vmax.f32 %v2485, 0.0
        %v2744 = vmax.f32 %v2569, 0.0
        %v2745 = vmax.f32 %v2653, 0.0
        %v2746 = vmax.f32 %v2737, 0.0
        %v2747 = vmax.f32 %v2319, 0.0
        %v2748 = vmax.f32 %v2403, 0.0
        %v2749 = vmax.f32 %v2487, 0.0
        %v2750 = vmax.f32 %v2571, 0.0
        %v2751 = vmax.f32 %v2655, 0.0
        %v2752 = vmax.f32 %v2739, 0.0
        %v2753 = vld [vmem:[#allocation2] sm:$0xff]
        %v2754 = vld [vmem:[#allocation2 + $0x8] sm:$0xff]
        %v2755 = vld [vmem:[#allocation2 + $0x10] sm:$0xff]
        %v2756 = vld [vmem:[#allocation2 + $0x18] sm:$0xff]
        %v2757 = vld [vmem:[#allocation2 + $0x20] sm:$0xff]
        %v2758 = vld [vmem:[#allocation2 + $0x28] sm:$0xff]
        %v2759 = vld [vmem:[#allocation2 + $0x30] sm:$0xff]
        %v2760 = vld [vmem:[#allocation2 + $0x38] sm:$0xff]
        %v2761 = vld [vmem:[#allocation2 + $0x40] sm:$0xff]
        %v2762 = vld [vmem:[#allocation2 + $0x48] sm:$0xff]
        %v2763 = vld [vmem:[#allocation2 + $0x50] sm:$0xff]
        %v2764 = vld [vmem:[#allocation2 + $0x58] sm:$0xff]
        %v2765 = vpack.c.bf16 %v2747, %v2741
        %v2766 = vpack.c.bf16 %v2748, %v2742
        %v2767 = vpack.c.bf16 %v2749, %v2743
        %v2768 = vpack.c.bf16 %v2750, %v2744
        %v2769 = vpack.c.bf16 %v2751, %v2745
        %v2770 = vpack.c.bf16 %v2752, %v2746
        %v2771 = vld [vmem:[%s357] sm:$0xff]
        %v2772 = vld [vmem:[%s357 + $0x8] sm:$0xff]
        %v2773 = vld [vmem:[%s357 + $0x10] sm:$0xff]
        %v2774 = vld [vmem:[%s357 + $0x18] sm:$0xff]
        %v2775 = vld [vmem:[%s357 + $0x20] sm:$0xff]
        %v2776 = vld [vmem:[%s357 + $0x28] sm:$0xff]
        %v2777 = vld [vmem:[%s357 + $0x30] sm:$0xff]
        %v2778 = vld [vmem:[%s357 + $0x38] sm:$0xff]
        %v2779 = vld [vmem:[%s357 + $0x40] sm:$0xff]
        %v2780 = vld [vmem:[%s357 + $0x48] sm:$0xff]
        %v2781 = vld [vmem:[%s357 + $0x50] sm:$0xff]
        %v2782 = vld [vmem:[%s357 + $0x58] sm:$0xff]
        %v2783 = vld [vmem:[%s357 + $0x60] sm:$0xff]
        %v2784 = vld [vmem:[%s357 + $0x68] sm:$0xff]
        %v2785 = vld [vmem:[%s357 + $0x70] sm:$0xff]
        %v2786 = vld [vmem:[%s357 + $0x78] sm:$0xff]
        %v2787 = vld [vmem:[%s357 + $0x80] sm:$0xff]
        %v2788 = vld [vmem:[%s357 + $0x88] sm:$0xff]
        %v2789 = vld [vmem:[%s357 + $0x90] sm:$0xff]
        %v2790 = vld [vmem:[%s357 + $0x98] sm:$0xff]
        %v2791 = vld [vmem:[%s357 + $0xa0] sm:$0xff]
        %v2792 = vld [vmem:[%s357 + $0xa8] sm:$0xff]
        %v2793 = vld [vmem:[%s357 + $0xb0] sm:$0xff]
        %v2794 = vld [vmem:[%s357 + $0xb8] sm:$0xff]
        %v2795 = vld [vmem:[%s357 + $0xc0] sm:$0xff]
        %v2796 = vld [vmem:[%s357 + $0xc8] sm:$0xff]
        %v2797 = vld [vmem:[%s357 + $0xd0] sm:$0xff]
        %v2798 = vld [vmem:[%s357 + $0xd8] sm:$0xff]
        %v2799 = vld [vmem:[%s357 + $0xe0] sm:$0xff]
        %v2800 = vld [vmem:[%s357 + $0xe8] sm:$0xff]
        %v2801 = vld [vmem:[%s357 + $0xf0] sm:$0xff]
        %v2802 = vld [vmem:[%s357 + $0xf8] sm:$0xff]
        %v2803 = vld [vmem:[%s357 + $0x100] sm:$0xff]
        %v2804 = vld [vmem:[%s357 + $0x108] sm:$0xff]
        %v2805 = vld [vmem:[%s357 + $0x110] sm:$0xff]
        %v2806 = vld [vmem:[%s357 + $0x118] sm:$0xff]
        %v2807 = vld [vmem:[%s357 + $0x120] sm:$0xff]
        %v2808 = vld [vmem:[%s357 + $0x128] sm:$0xff]
        %v2809 = vld [vmem:[%s357 + $0x130] sm:$0xff]
        %v2810 = vld [vmem:[%s357 + $0x138] sm:$0xff]
        %v2811 = vld [vmem:[%s357 + $0x140] sm:$0xff]
        %v2812 = vld [vmem:[%s357 + $0x148] sm:$0xff]
        %v2813 = vld [vmem:[%s357 + $0x150] sm:$0xff]
        %v2814 = vld [vmem:[%s357 + $0x158] sm:$0xff]
        %v2815 = vld [vmem:[%s357 + $0x160] sm:$0xff]
        %v2816 = vld [vmem:[%s357 + $0x168] sm:$0xff]
        %v2817 = vld [vmem:[%s357 + $0x170] sm:$0xff]
        %v2818 = vld [vmem:[%s357 + $0x178] sm:$0xff]
        %v2819 = vld [vmem:[%s357 + $0x180] sm:$0xff]
        %v2820 = vld [vmem:[%s357 + $0x188] sm:$0xff]
        %v2821 = vld [vmem:[%s357 + $0x190] sm:$0xff]
        %v2822 = vld [vmem:[%s357 + $0x198] sm:$0xff]
        %v2823 = vld [vmem:[%s357 + $0x1a0] sm:$0xff]
        %v2824 = vld [vmem:[%s357 + $0x1a8] sm:$0xff]
        %v2825 = vld [vmem:[%s357 + $0x1b0] sm:$0xff]
        %v2826 = vld [vmem:[%s357 + $0x1b8] sm:$0xff]
        %v2827 = vld [vmem:[%s357 + $0x1c0] sm:$0xff]
        %v2828 = vld [vmem:[%s357 + $0x1c8] sm:$0xff]
        %v2829 = vld [vmem:[%s357 + $0x1d0] sm:$0xff]
        %v2830 = vld [vmem:[%s357 + $0x1d8] sm:$0xff]
        %v2831 = vld [vmem:[%s357 + $0x1e0] sm:$0xff]
        %v2832 = vld [vmem:[%s357 + $0x1e8] sm:$0xff]
        %v2833 = vld [vmem:[%s357 + $0x1f0] sm:$0xff]
        %v2834 = vld [vmem:[%s357 + $0x1f8] sm:$0xff]
        %v2835 = vld [vmem:[%s357 + $0x200] sm:$0xff]
        %v2836 = vld [vmem:[%s357 + $0x208] sm:$0xff]
        %v2837 = vld [vmem:[%s357 + $0x210] sm:$0xff]
        %v2838 = vld [vmem:[%s357 + $0x218] sm:$0xff]
        %v2839 = vld [vmem:[%s357 + $0x220] sm:$0xff]
        %v2840 = vld [vmem:[%s357 + $0x228] sm:$0xff]
        %v2841 = vld [vmem:[%s357 + $0x230] sm:$0xff]
        %v2842 = vld [vmem:[%s357 + $0x238] sm:$0xff]
        %v2843 = vld [vmem:[%s357 + $0x240] sm:$0xff]
        %v2844 = vld [vmem:[%s357 + $0x248] sm:$0xff]
        %v2845 = vld [vmem:[%s357 + $0x250] sm:$0xff]
        %v2846 = vld [vmem:[%s357 + $0x258] sm:$0xff]
        %v2847 = vld [vmem:[%s357 + $0x260] sm:$0xff]
        %v2848 = vld [vmem:[%s357 + $0x268] sm:$0xff]
        %v2849 = vld [vmem:[%s357 + $0x270] sm:$0xff]
        %v2850 = vld [vmem:[%s357 + $0x278] sm:$0xff]
        %v2851 = vld [vmem:[%s357 + $0x280] sm:$0xff]
        %v2852 = vld [vmem:[%s357 + $0x288] sm:$0xff]
        %v2853 = vld [vmem:[%s357 + $0x290] sm:$0xff]
        %v2854 = vld [vmem:[%s357 + $0x298] sm:$0xff]
        %v2855 = vld [vmem:[%s357 + $0x2a0] sm:$0xff]
        %v2856 = vld [vmem:[%s357 + $0x2a8] sm:$0xff]
        %v2857 = vld [vmem:[%s357 + $0x2b0] sm:$0xff]
        %v2858 = vld [vmem:[%s357 + $0x2b8] sm:$0xff]
        %v2859 = vld [vmem:[%s357 + $0x2c0] sm:$0xff]
        %v2860 = vld [vmem:[%s357 + $0x2c8] sm:$0xff]
        %v2861 = vld [vmem:[%s357 + $0x2d0] sm:$0xff]
        %v2862 = vld [vmem:[%s357 + $0x2d8] sm:$0xff]
        %v2863 = vld [vmem:[%s357 + $0x2e0] sm:$0xff]
        %v2864 = vld [vmem:[%s357 + $0x2e8] sm:$0xff]
        %v2865 = vld [vmem:[%s357 + $0x2f0] sm:$0xff]
        %v2866 = vld [vmem:[%s357 + $0x2f8] sm:$0xff]
        %v2867 = vld [vmem:[%s357 + $0x300] sm:$0xff]
        %v2868 = vld [vmem:[%s357 + $0x308] sm:$0xff]
        %v2869 = vld [vmem:[%s357 + $0x310] sm:$0xff]
        %v2870 = vld [vmem:[%s357 + $0x318] sm:$0xff]
        %v2871 = vld [vmem:[%s357 + $0x320] sm:$0xff]
        %v2872 = vld [vmem:[%s357 + $0x328] sm:$0xff]
        %v2873 = vld [vmem:[%s357 + $0x330] sm:$0xff]
        %v2874 = vld [vmem:[%s357 + $0x338] sm:$0xff]
        %v2875 = vld [vmem:[%s357 + $0x340] sm:$0xff]
        %v2876 = vld [vmem:[%s357 + $0x348] sm:$0xff]
        %v2877 = vld [vmem:[%s357 + $0x350] sm:$0xff]
        %v2878 = vld [vmem:[%s357 + $0x358] sm:$0xff]
        %v2879 = vld [vmem:[%s357 + $0x360] sm:$0xff]
        %v2880 = vld [vmem:[%s357 + $0x368] sm:$0xff]
        %v2881 = vld [vmem:[%s357 + $0x370] sm:$0xff]
        %v2882 = vld [vmem:[%s357 + $0x378] sm:$0xff]
        %v2883 = vld [vmem:[%s357 + $0x380] sm:$0xff]
        %v2884 = vld [vmem:[%s357 + $0x388] sm:$0xff]
        %v2885 = vld [vmem:[%s357 + $0x390] sm:$0xff]
        %v2886 = vld [vmem:[%s357 + $0x398] sm:$0xff]
        %v2887 = vld [vmem:[%s357 + $0x3a0] sm:$0xff]
        %v2888 = vld [vmem:[%s357 + $0x3a8] sm:$0xff]
        %v2889 = vld [vmem:[%s357 + $0x3b0] sm:$0xff]
        %v2890 = vld [vmem:[%s357 + $0x3b8] sm:$0xff]
        %v2891 = vld [vmem:[%s357 + $0x3c0] sm:$0xff]
        %v2892 = vld [vmem:[%s357 + $0x3c8] sm:$0xff]
        %v2893 = vld [vmem:[%s357 + $0x3d0] sm:$0xff]
        %v2894 = vld [vmem:[%s357 + $0x3d8] sm:$0xff]
        %v2895 = vld [vmem:[%s357 + $0x3e0] sm:$0xff]
        %v2896 = vld [vmem:[%s357 + $0x3e8] sm:$0xff]
        %v2897 = vld [vmem:[%s357 + $0x3f0] sm:$0xff]
        %v2898 = vld [vmem:[%s357 + $0x3f8] sm:$0xff]
        %v2899 = vld [vmem:[%s357 + $0x400] sm:$0xff]
        %v2900 = vld [vmem:[%s357 + $0x408] sm:$0xff]
        %v2901 = vld [vmem:[%s357 + $0x410] sm:$0xff]
        %v2902 = vld [vmem:[%s357 + $0x418] sm:$0xff]
        %v2903 = vld [vmem:[%s357 + $0x420] sm:$0xff]
        %v2904 = vld [vmem:[%s357 + $0x428] sm:$0xff]
        %v2905 = vld [vmem:[%s357 + $0x430] sm:$0xff]
        %v2906 = vld [vmem:[%s357 + $0x438] sm:$0xff]
        %v2907 = vld [vmem:[%s357 + $0x440] sm:$0xff]
        %v2908 = vld [vmem:[%s357 + $0x448] sm:$0xff]
        %v2909 = vld [vmem:[%s357 + $0x450] sm:$0xff]
        %v2910 = vld [vmem:[%s357 + $0x458] sm:$0xff]
        %v2911 = vld [vmem:[%s357 + $0x460] sm:$0xff]
        %v2912 = vld [vmem:[%s357 + $0x468] sm:$0xff]
        %v2913 = vld [vmem:[%s357 + $0x470] sm:$0xff]
        %v2914 = vld [vmem:[%s357 + $0x478] sm:$0xff]
        %v2915 = vld [vmem:[%s357 + $0x480] sm:$0xff]
        %v2916 = vld [vmem:[%s357 + $0x488] sm:$0xff]
        %v2917 = vld [vmem:[%s357 + $0x490] sm:$0xff]
        %v2918 = vld [vmem:[%s357 + $0x498] sm:$0xff]
        %v2919 = vld [vmem:[%s357 + $0x4a0] sm:$0xff]
        %v2920 = vld [vmem:[%s357 + $0x4a8] sm:$0xff]
        %v2921 = vld [vmem:[%s357 + $0x4b0] sm:$0xff]
        %v2922 = vld [vmem:[%s357 + $0x4b8] sm:$0xff]
        %v2923 = vld [vmem:[%s357 + $0x4c0] sm:$0xff]
        %v2924 = vld [vmem:[%s357 + $0x4c8] sm:$0xff]
        %v2925 = vld [vmem:[%s357 + $0x4d0] sm:$0xff]
        %v2926 = vld [vmem:[%s357 + $0x4d8] sm:$0xff]
        %v2927 = vld [vmem:[%s357 + $0x4e0] sm:$0xff]
        %v2928 = vld [vmem:[%s357 + $0x4e8] sm:$0xff]
        %v2929 = vld [vmem:[%s357 + $0x4f0] sm:$0xff]
        %v2930 = vld [vmem:[%s357 + $0x4f8] sm:$0xff]
        %v2931 = vld [vmem:[%s357 + $0x500] sm:$0xff]
        %v2932 = vld [vmem:[%s357 + $0x508] sm:$0xff]
        %v2933 = vld [vmem:[%s357 + $0x510] sm:$0xff]
        %v2934 = vld [vmem:[%s357 + $0x518] sm:$0xff]
        %v2935 = vld [vmem:[%s357 + $0x520] sm:$0xff]
        %v2936 = vld [vmem:[%s357 + $0x528] sm:$0xff]
        %v2937 = vld [vmem:[%s357 + $0x530] sm:$0xff]
        %v2938 = vld [vmem:[%s357 + $0x538] sm:$0xff]
        %v2939 = vld [vmem:[%s357 + $0x540] sm:$0xff]
        %v2940 = vld [vmem:[%s357 + $0x548] sm:$0xff]
        %v2941 = vld [vmem:[%s357 + $0x550] sm:$0xff]
        %v2942 = vld [vmem:[%s357 + $0x558] sm:$0xff]
        %v2943 = vld [vmem:[%s357 + $0x560] sm:$0xff]
        %v2944 = vld [vmem:[%s357 + $0x568] sm:$0xff]
        %v2945 = vld [vmem:[%s357 + $0x570] sm:$0xff]
        %v2946 = vld [vmem:[%s357 + $0x578] sm:$0xff]
        %v2947 = vld [vmem:[%s357 + $0x580] sm:$0xff]
        %v2948 = vld [vmem:[%s357 + $0x588] sm:$0xff]
        %v2949 = vld [vmem:[%s357 + $0x590] sm:$0xff]
        %v2950 = vld [vmem:[%s357 + $0x598] sm:$0xff]
        %v2951 = vld [vmem:[%s357 + $0x5a0] sm:$0xff]
        %v2952 = vld [vmem:[%s357 + $0x5a8] sm:$0xff]
        %v2953 = vld [vmem:[%s357 + $0x5b0] sm:$0xff]
        %v2954 = vld [vmem:[%s357 + $0x5b8] sm:$0xff]
        %v2955 = vld [vmem:[%s357 + $0x5c0] sm:$0xff]
        %v2956 = vld [vmem:[%s357 + $0x5c8] sm:$0xff]
        %v2957 = vld [vmem:[%s357 + $0x5d0] sm:$0xff]
        %v2958 = vld [vmem:[%s357 + $0x5d8] sm:$0xff]
        %v2959 = vld [vmem:[%s357 + $0x5e0] sm:$0xff]
        %v2960 = vld [vmem:[%s357 + $0x5e8] sm:$0xff]
        %v2961 = vld [vmem:[%s357 + $0x5f0] sm:$0xff]
        %v2962 = vld [vmem:[%s357 + $0x5f8] sm:$0xff]
        %v2963 = vld [vmem:[%s357 + $0x600] sm:$0xff]
        %v2964 = vld [vmem:[%s357 + $0x608] sm:$0xff]
        %v2965 = vld [vmem:[%s357 + $0x610] sm:$0xff]
        %v2966 = vld [vmem:[%s357 + $0x618] sm:$0xff]
        %v2967 = vld [vmem:[%s357 + $0x620] sm:$0xff]
        %v2968 = vld [vmem:[%s357 + $0x628] sm:$0xff]
        %v2969 = vld [vmem:[%s357 + $0x630] sm:$0xff]
        %v2970 = vld [vmem:[%s357 + $0x638] sm:$0xff]
        %v2971 = vld [vmem:[%s357 + $0x640] sm:$0xff]
        %v2972 = vld [vmem:[%s357 + $0x648] sm:$0xff]
        %v2973 = vld [vmem:[%s357 + $0x650] sm:$0xff]
        %v2974 = vld [vmem:[%s357 + $0x658] sm:$0xff]
        %v2975 = vld [vmem:[%s357 + $0x660] sm:$0xff]
        %v2976 = vld [vmem:[%s357 + $0x668] sm:$0xff]
        %v2977 = vld [vmem:[%s357 + $0x670] sm:$0xff]
        %v2978 = vld [vmem:[%s357 + $0x678] sm:$0xff]
        %v2979 = vld [vmem:[%s357 + $0x680] sm:$0xff]
        %v2980 = vld [vmem:[%s357 + $0x688] sm:$0xff]
        %v2981 = vld [vmem:[%s357 + $0x690] sm:$0xff]
        %v2982 = vld [vmem:[%s357 + $0x698] sm:$0xff]
        %v2983 = vld [vmem:[%s357 + $0x6a0] sm:$0xff]
        %v2984 = vld [vmem:[%s357 + $0x6a8] sm:$0xff]
        %v2985 = vld [vmem:[%s357 + $0x6b0] sm:$0xff]
        %v2986 = vld [vmem:[%s357 + $0x6b8] sm:$0xff]
        %v2987 = vld [vmem:[%s357 + $0x6c0] sm:$0xff]
        %v2988 = vld [vmem:[%s357 + $0x6c8] sm:$0xff]
        %v2989 = vld [vmem:[%s357 + $0x6d0] sm:$0xff]
        %v2990 = vld [vmem:[%s357 + $0x6d8] sm:$0xff]
        %v2991 = vld [vmem:[%s357 + $0x6e0] sm:$0xff]
        %v2992 = vld [vmem:[%s357 + $0x6e8] sm:$0xff]
        %v2993 = vld [vmem:[%s357 + $0x6f0] sm:$0xff]
        %v2994 = vld [vmem:[%s357 + $0x6f8] sm:$0xff]
        %v2995 = vld [vmem:[%s357 + $0x700] sm:$0xff]
        %v2996 = vld [vmem:[%s357 + $0x708] sm:$0xff]
        %v2997 = vld [vmem:[%s357 + $0x710] sm:$0xff]
        %v2998 = vld [vmem:[%s357 + $0x718] sm:$0xff]
        %v2999 = vld [vmem:[%s357 + $0x720] sm:$0xff]
        %v3000 = vld [vmem:[%s357 + $0x728] sm:$0xff]
        %v3001 = vld [vmem:[%s357 + $0x730] sm:$0xff]
        %v3002 = vld [vmem:[%s357 + $0x738] sm:$0xff]
        %v3003 = vld [vmem:[%s357 + $0x740] sm:$0xff]
        %v3004 = vld [vmem:[%s357 + $0x748] sm:$0xff]
        %v3005 = vld [vmem:[%s357 + $0x750] sm:$0xff]
        %v3006 = vld [vmem:[%s357 + $0x758] sm:$0xff]
        %v3007 = vld [vmem:[%s357 + $0x760] sm:$0xff]
        %v3008 = vld [vmem:[%s357 + $0x768] sm:$0xff]
        %v3009 = vld [vmem:[%s357 + $0x770] sm:$0xff]
        %v3010 = vld [vmem:[%s357 + $0x778] sm:$0xff]
        %v3011 = vld [vmem:[%s357 + $0x780] sm:$0xff]
        %v3012 = vld [vmem:[%s357 + $0x788] sm:$0xff]
        %v3013 = vld [vmem:[%s357 + $0x790] sm:$0xff]
        %v3014 = vld [vmem:[%s357 + $0x798] sm:$0xff]
        %v3015 = vld [vmem:[%s357 + $0x7a0] sm:$0xff]
        %v3016 = vld [vmem:[%s357 + $0x7a8] sm:$0xff]
        %v3017 = vld [vmem:[%s357 + $0x7b0] sm:$0xff]
        %v3018 = vld [vmem:[%s357 + $0x7b8] sm:$0xff]
        %v3019 = vld [vmem:[%s357 + $0x7c0] sm:$0xff]
        %v3020 = vld [vmem:[%s357 + $0x7c8] sm:$0xff]
        %v3021 = vld [vmem:[%s357 + $0x7d0] sm:$0xff]
        %v3022 = vld [vmem:[%s357 + $0x7d8] sm:$0xff]
        %v3023 = vld [vmem:[%s357 + $0x7e0] sm:$0xff]
        %v3024 = vld [vmem:[%s357 + $0x7e8] sm:$0xff]
        %v3025 = vld [vmem:[%s357 + $0x7f0] sm:$0xff]
        %v3026 = vld [vmem:[%s357 + $0x7f8] sm:$0xff]
        %v3027 = vld [vmem:[%s357 + $0x800] sm:$0xff]
        %v3028 = vld [vmem:[%s357 + $0x808] sm:$0xff]
        %v3029 = vld [vmem:[%s357 + $0x810] sm:$0xff]
        %v3030 = vld [vmem:[%s357 + $0x818] sm:$0xff]
        %v3031 = vld [vmem:[%s357 + $0x820] sm:$0xff]
        %v3032 = vld [vmem:[%s357 + $0x828] sm:$0xff]
        %v3033 = vld [vmem:[%s357 + $0x830] sm:$0xff]
        %v3034 = vld [vmem:[%s357 + $0x838] sm:$0xff]
        %v3035 = vld [vmem:[%s357 + $0x840] sm:$0xff]
        %v3036 = vld [vmem:[%s357 + $0x848] sm:$0xff]
        %v3037 = vld [vmem:[%s357 + $0x850] sm:$0xff]
        %v3038 = vld [vmem:[%s357 + $0x858] sm:$0xff]
        %v3039 = vld [vmem:[%s357 + $0x860] sm:$0xff]
        %v3040 = vld [vmem:[%s357 + $0x868] sm:$0xff]
        %v3041 = vld [vmem:[%s357 + $0x870] sm:$0xff]
        %v3042 = vld [vmem:[%s357 + $0x878] sm:$0xff]
        %v3043 = vld [vmem:[%s357 + $0x880] sm:$0xff]
        %v3044 = vld [vmem:[%s357 + $0x888] sm:$0xff]
        %v3045 = vld [vmem:[%s357 + $0x890] sm:$0xff]
        %v3046 = vld [vmem:[%s357 + $0x898] sm:$0xff]
        %v3047 = vld [vmem:[%s357 + $0x8a0] sm:$0xff]
        %v3048 = vld [vmem:[%s357 + $0x8a8] sm:$0xff]
        %v3049 = vld [vmem:[%s357 + $0x8b0] sm:$0xff]
        %v3050 = vld [vmem:[%s357 + $0x8b8] sm:$0xff]
        %v3051 = vld [vmem:[%s357 + $0x8c0] sm:$0xff]
        %v3052 = vld [vmem:[%s357 + $0x8c8] sm:$0xff]
        %v3053 = vld [vmem:[%s357 + $0x8d0] sm:$0xff]
        %v3054 = vld [vmem:[%s357 + $0x8d8] sm:$0xff]
        %v3055 = vld [vmem:[%s357 + $0x8e0] sm:$0xff]
        %v3056 = vld [vmem:[%s357 + $0x8e8] sm:$0xff]
        %v3057 = vld [vmem:[%s357 + $0x8f0] sm:$0xff]
        %v3058 = vld [vmem:[%s357 + $0x8f8] sm:$0xff]
        %v3347 = vunpack.c.l.b16 %v2771
        %v3348 = vunpack.c.h.b16 %v2771
        %v3349 = vunpack.c.l.b16 %v2772
        %v3350 = vunpack.c.h.b16 %v2772
        %v3351 = vunpack.c.l.b16 %v2773
        %v3352 = vunpack.c.h.b16 %v2773
        %v3353 = vunpack.c.l.b16 %v2774
        %v3354 = vunpack.c.h.b16 %v2774
        %v3355 = vunpack.c.l.b16 %v2775
        %v3356 = vunpack.c.h.b16 %v2775
        %v3357 = vunpack.c.l.b16 %v2776
        %v3358 = vunpack.c.h.b16 %v2776
        %v3359 = vunpack.c.l.b16 %v2777
        %v3360 = vunpack.c.h.b16 %v2777
        %v3361 = vunpack.c.l.b16 %v2778
        %v3362 = vunpack.c.h.b16 %v2778
        %v3363 = vunpack.c.l.b16 %v2779
        %v3364 = vunpack.c.h.b16 %v2779
        %v3365 = vunpack.c.l.b16 %v2780
        %v3366 = vunpack.c.h.b16 %v2780
        %v3367 = vunpack.c.l.b16 %v2781
        %v3368 = vunpack.c.h.b16 %v2781
        %v3369 = vunpack.c.l.b16 %v2782
        %v3370 = vunpack.c.h.b16 %v2782
        %v3371 = vunpack.c.l.b16 %v2783
        %v3372 = vunpack.c.h.b16 %v2783
        %v3373 = vunpack.c.l.b16 %v2784
        %v3374 = vunpack.c.h.b16 %v2784
        %v3375 = vunpack.c.l.b16 %v2785
        %v3376 = vunpack.c.h.b16 %v2785
        %v3377 = vunpack.c.l.b16 %v2786
        %v3378 = vunpack.c.h.b16 %v2786
        %v3379 = vunpack.c.l.b16 %v2787
        %v3380 = vunpack.c.h.b16 %v2787
        %v3381 = vunpack.c.l.b16 %v2788
        %v3382 = vunpack.c.h.b16 %v2788
        %v3383 = vunpack.c.l.b16 %v2789
        %v3384 = vunpack.c.h.b16 %v2789
        %v3385 = vunpack.c.l.b16 %v2790
        %v3386 = vunpack.c.h.b16 %v2790
        %v3387 = vunpack.c.l.b16 %v2791
        %v3388 = vunpack.c.h.b16 %v2791
        %v3389 = vunpack.c.l.b16 %v2792
        %v3390 = vunpack.c.h.b16 %v2792
        %v3391 = vunpack.c.l.b16 %v2793
        %v3392 = vunpack.c.h.b16 %v2793
        %v3393 = vunpack.c.l.b16 %v2794
        %v3394 = vunpack.c.h.b16 %v2794
        %v3395 = vunpack.c.l.b16 %v2795
        %v3396 = vunpack.c.h.b16 %v2795
        %v3397 = vunpack.c.l.b16 %v2796
        %v3398 = vunpack.c.h.b16 %v2796
        %v3399 = vunpack.c.l.b16 %v2797
        %v3400 = vunpack.c.h.b16 %v2797
        %v3401 = vunpack.c.l.b16 %v2798
        %v3402 = vunpack.c.h.b16 %v2798
        %v3403 = vunpack.c.l.b16 %v2799
        %v3404 = vunpack.c.h.b16 %v2799
        %v3405 = vunpack.c.l.b16 %v2800
        %v3406 = vunpack.c.h.b16 %v2800
        %v3407 = vunpack.c.l.b16 %v2801
        %v3408 = vunpack.c.h.b16 %v2801
        %v3409 = vunpack.c.l.b16 %v2802
        %v3410 = vunpack.c.h.b16 %v2802
        %v3411 = vunpack.c.l.b16 %v2803
        %v3412 = vunpack.c.h.b16 %v2803
        %v3413 = vunpack.c.l.b16 %v2804
        %v3414 = vunpack.c.h.b16 %v2804
        %v3415 = vunpack.c.l.b16 %v2805
        %v3416 = vunpack.c.h.b16 %v2805
        %v3417 = vunpack.c.l.b16 %v2806
        %v3418 = vunpack.c.h.b16 %v2806
        %v3419 = vunpack.c.l.b16 %v2807
        %v3420 = vunpack.c.h.b16 %v2807
        %v3421 = vunpack.c.l.b16 %v2808
        %v3422 = vunpack.c.h.b16 %v2808
        %v3423 = vunpack.c.l.b16 %v2809
        %v3424 = vunpack.c.h.b16 %v2809
        %v3425 = vunpack.c.l.b16 %v2810
        %v3426 = vunpack.c.h.b16 %v2810
        %v3427 = vunpack.c.l.b16 %v2811
        %v3428 = vunpack.c.h.b16 %v2811
        %v3429 = vunpack.c.l.b16 %v2812
        %v3430 = vunpack.c.h.b16 %v2812
        %v3431 = vunpack.c.l.b16 %v2813
        %v3432 = vunpack.c.h.b16 %v2813
        %v3433 = vunpack.c.l.b16 %v2814
        %v3434 = vunpack.c.h.b16 %v2814
        %v3435 = vunpack.c.l.b16 %v2815
        %v3436 = vunpack.c.h.b16 %v2815
        %v3437 = vunpack.c.l.b16 %v2816
        %v3438 = vunpack.c.h.b16 %v2816
        %v3439 = vunpack.c.l.b16 %v2817
        %v3440 = vunpack.c.h.b16 %v2817
        %v3441 = vunpack.c.l.b16 %v2818
        %v3442 = vunpack.c.h.b16 %v2818
        %v3443 = vunpack.c.l.b16 %v2819
        %v3444 = vunpack.c.h.b16 %v2819
        %v3445 = vunpack.c.l.b16 %v2820
        %v3446 = vunpack.c.h.b16 %v2820
        %v3447 = vunpack.c.l.b16 %v2821
        %v3448 = vunpack.c.h.b16 %v2821
        %v3449 = vunpack.c.l.b16 %v2822
        %v3450 = vunpack.c.h.b16 %v2822
        %v3451 = vunpack.c.l.b16 %v2823
        %v3452 = vunpack.c.h.b16 %v2823
        %v3453 = vunpack.c.l.b16 %v2824
        %v3454 = vunpack.c.h.b16 %v2824
        %v3455 = vunpack.c.l.b16 %v2825
        %v3456 = vunpack.c.h.b16 %v2825
        %v3457 = vunpack.c.l.b16 %v2826
        %v3458 = vunpack.c.h.b16 %v2826
        %v3459 = vunpack.c.l.b16 %v2827
        %v3460 = vunpack.c.h.b16 %v2827
        %v3461 = vunpack.c.l.b16 %v2828
        %v3462 = vunpack.c.h.b16 %v2828
        %v3463 = vunpack.c.l.b16 %v2829
        %v3464 = vunpack.c.h.b16 %v2829
        %v3465 = vunpack.c.l.b16 %v2830
        %v3466 = vunpack.c.h.b16 %v2830
        %v3467 = vunpack.c.l.b16 %v2831
        %v3468 = vunpack.c.h.b16 %v2831
        %v3469 = vunpack.c.l.b16 %v2832
        %v3470 = vunpack.c.h.b16 %v2832
        %v3471 = vunpack.c.l.b16 %v2833
        %v3472 = vunpack.c.h.b16 %v2833
        %v3473 = vunpack.c.l.b16 %v2834
        %v3474 = vunpack.c.h.b16 %v2834
        %v3475 = vunpack.c.l.b16 %v2835
        %v3476 = vunpack.c.h.b16 %v2835
        %v3477 = vunpack.c.l.b16 %v2836
        %v3478 = vunpack.c.h.b16 %v2836
        %v3479 = vunpack.c.l.b16 %v2837
        %v3480 = vunpack.c.h.b16 %v2837
        %v3481 = vunpack.c.l.b16 %v2838
        %v3482 = vunpack.c.h.b16 %v2838
        %v3483 = vunpack.c.l.b16 %v2839
        %v3484 = vunpack.c.h.b16 %v2839
        %v3485 = vunpack.c.l.b16 %v2840
        %v3486 = vunpack.c.h.b16 %v2840
        %v3487 = vunpack.c.l.b16 %v2841
        %v3488 = vunpack.c.h.b16 %v2841
        %v3489 = vunpack.c.l.b16 %v2842
        %v3490 = vunpack.c.h.b16 %v2842
        %v3491 = vunpack.c.l.b16 %v2843
        %v3492 = vunpack.c.h.b16 %v2843
        %v3493 = vunpack.c.l.b16 %v2844
        %v3494 = vunpack.c.h.b16 %v2844
        %v3495 = vunpack.c.l.b16 %v2845
        %v3496 = vunpack.c.h.b16 %v2845
        %v3497 = vunpack.c.l.b16 %v2846
        %v3498 = vunpack.c.h.b16 %v2846
        %v3499 = vunpack.c.l.b16 %v2847
        %v3500 = vunpack.c.h.b16 %v2847
        %v3501 = vunpack.c.l.b16 %v2848
        %v3502 = vunpack.c.h.b16 %v2848
        %v3503 = vunpack.c.l.b16 %v2849
        %v3504 = vunpack.c.h.b16 %v2849
        %v3505 = vunpack.c.l.b16 %v2850
        %v3506 = vunpack.c.h.b16 %v2850
        %v3507 = vunpack.c.l.b16 %v2851
        %v3508 = vunpack.c.h.b16 %v2851
        %v3509 = vunpack.c.l.b16 %v2852
        %v3510 = vunpack.c.h.b16 %v2852
        %v3511 = vunpack.c.l.b16 %v2853
        %v3512 = vunpack.c.h.b16 %v2853
        %v3513 = vunpack.c.l.b16 %v2854
        %v3514 = vunpack.c.h.b16 %v2854
        %v3515 = vunpack.c.l.b16 %v2855
        %v3516 = vunpack.c.h.b16 %v2855
        %v3517 = vunpack.c.l.b16 %v2856
        %v3518 = vunpack.c.h.b16 %v2856
        %v3519 = vunpack.c.l.b16 %v2857
        %v3520 = vunpack.c.h.b16 %v2857
        %v3521 = vunpack.c.l.b16 %v2858
        %v3522 = vunpack.c.h.b16 %v2858
        %v3523 = vunpack.c.l.b16 %v2859
        %v3524 = vunpack.c.h.b16 %v2859
        %v3525 = vunpack.c.l.b16 %v2860
        %v3526 = vunpack.c.h.b16 %v2860
        %v3527 = vunpack.c.l.b16 %v2861
        %v3528 = vunpack.c.h.b16 %v2861
        %v3529 = vunpack.c.l.b16 %v2862
        %v3530 = vunpack.c.h.b16 %v2862
        %v3531 = vunpack.c.l.b16 %v2863
        %v3532 = vunpack.c.h.b16 %v2863
        %v3533 = vunpack.c.l.b16 %v2864
        %v3534 = vunpack.c.h.b16 %v2864
        %v3535 = vunpack.c.l.b16 %v2865
        %v3536 = vunpack.c.h.b16 %v2865
        %v3537 = vunpack.c.l.b16 %v2866
        %v3538 = vunpack.c.h.b16 %v2866
        %v3539 = vunpack.c.l.b16 %v2867
        %v3540 = vunpack.c.h.b16 %v2867
        %v3541 = vunpack.c.l.b16 %v2868
        %v3542 = vunpack.c.h.b16 %v2868
        %v3543 = vunpack.c.l.b16 %v2869
        %v3544 = vunpack.c.h.b16 %v2869
        %v3545 = vunpack.c.l.b16 %v2870
        %v3546 = vunpack.c.h.b16 %v2870
        %v3547 = vunpack.c.l.b16 %v2871
        %v3548 = vunpack.c.h.b16 %v2871
        %v3549 = vunpack.c.l.b16 %v2872
        %v3550 = vunpack.c.h.b16 %v2872
        %v3551 = vunpack.c.l.b16 %v2873
        %v3552 = vunpack.c.h.b16 %v2873
        %v3553 = vunpack.c.l.b16 %v2874
        %v3554 = vunpack.c.h.b16 %v2874
        %v3555 = vunpack.c.l.b16 %v2875
        %v3556 = vunpack.c.h.b16 %v2875
        %v3557 = vunpack.c.l.b16 %v2876
        %v3558 = vunpack.c.h.b16 %v2876
        %v3559 = vunpack.c.l.b16 %v2877
        %v3560 = vunpack.c.h.b16 %v2877
        %v3561 = vunpack.c.l.b16 %v2878
        %v3562 = vunpack.c.h.b16 %v2878
        %v3563 = vunpack.c.l.b16 %v2879
        %v3564 = vunpack.c.h.b16 %v2879
        %v3565 = vunpack.c.l.b16 %v2880
        %v3566 = vunpack.c.h.b16 %v2880
        %v3567 = vunpack.c.l.b16 %v2881
        %v3568 = vunpack.c.h.b16 %v2881
        %v3569 = vunpack.c.l.b16 %v2882
        %v3570 = vunpack.c.h.b16 %v2882
        %v3571 = vunpack.c.l.b16 %v2883
        %v3572 = vunpack.c.h.b16 %v2883
        %v3573 = vunpack.c.l.b16 %v2884
        %v3574 = vunpack.c.h.b16 %v2884
        %v3575 = vunpack.c.l.b16 %v2885
        %v3576 = vunpack.c.h.b16 %v2885
        %v3577 = vunpack.c.l.b16 %v2886
        %v3578 = vunpack.c.h.b16 %v2886
        %v3579 = vunpack.c.l.b16 %v2887
        %v3580 = vunpack.c.h.b16 %v2887
        %v3581 = vunpack.c.l.b16 %v2888
        %v3582 = vunpack.c.h.b16 %v2888
        %v3583 = vunpack.c.l.b16 %v2889
        %v3584 = vunpack.c.h.b16 %v2889
        %v3585 = vunpack.c.l.b16 %v2890
        %v3586 = vunpack.c.h.b16 %v2890
        %v3587 = vunpack.c.l.b16 %v2891
        %v3588 = vunpack.c.h.b16 %v2891
        %v3589 = vunpack.c.l.b16 %v2892
        %v3590 = vunpack.c.h.b16 %v2892
        %v3591 = vunpack.c.l.b16 %v2893
        %v3592 = vunpack.c.h.b16 %v2893
        %v3593 = vunpack.c.l.b16 %v2894
        %v3594 = vunpack.c.h.b16 %v2894
        %v3595 = vunpack.c.l.b16 %v2895
        %v3596 = vunpack.c.h.b16 %v2895
        %v3597 = vunpack.c.l.b16 %v2896
        %v3598 = vunpack.c.h.b16 %v2896
        %v3599 = vunpack.c.l.b16 %v2897
        %v3600 = vunpack.c.h.b16 %v2897
        %v3601 = vunpack.c.l.b16 %v2898
        %v3602 = vunpack.c.h.b16 %v2898
        %v3603 = vunpack.c.l.b16 %v2899
        %v3604 = vunpack.c.h.b16 %v2899
        %v3605 = vunpack.c.l.b16 %v2900
        %v3606 = vunpack.c.h.b16 %v2900
        %v3607 = vunpack.c.l.b16 %v2901
        %v3608 = vunpack.c.h.b16 %v2901
        %v3609 = vunpack.c.l.b16 %v2902
        %v3610 = vunpack.c.h.b16 %v2902
        %v3611 = vunpack.c.l.b16 %v2903
        %v3612 = vunpack.c.h.b16 %v2903
        %v3613 = vunpack.c.l.b16 %v2904
        %v3614 = vunpack.c.h.b16 %v2904
        %v3615 = vunpack.c.l.b16 %v2905
        %v3616 = vunpack.c.h.b16 %v2905
        %v3617 = vunpack.c.l.b16 %v2906
        %v3618 = vunpack.c.h.b16 %v2906
        %v3619 = vunpack.c.l.b16 %v2907
        %v3620 = vunpack.c.h.b16 %v2907
        %v3621 = vunpack.c.l.b16 %v2908
        %v3622 = vunpack.c.h.b16 %v2908
        %v3623 = vunpack.c.l.b16 %v2909
        %v3624 = vunpack.c.h.b16 %v2909
        %v3625 = vunpack.c.l.b16 %v2910
        %v3626 = vunpack.c.h.b16 %v2910
        %v3627 = vunpack.c.l.b16 %v2911
        %v3628 = vunpack.c.h.b16 %v2911
        %v3629 = vunpack.c.l.b16 %v2912
        %v3630 = vunpack.c.h.b16 %v2912
        %v3631 = vunpack.c.l.b16 %v2913
        %v3632 = vunpack.c.h.b16 %v2913
        %v3633 = vunpack.c.l.b16 %v2914
        %v3634 = vunpack.c.h.b16 %v2914
        %v3635 = vunpack.c.l.b16 %v2915
        %v3636 = vunpack.c.h.b16 %v2915
        %v3637 = vunpack.c.l.b16 %v2916
        %v3638 = vunpack.c.h.b16 %v2916
        %v3639 = vunpack.c.l.b16 %v2917
        %v3640 = vunpack.c.h.b16 %v2917
        %v3641 = vunpack.c.l.b16 %v2918
        %v3642 = vunpack.c.h.b16 %v2918
        %v3643 = vunpack.c.l.b16 %v2919
        %v3644 = vunpack.c.h.b16 %v2919
        %v3645 = vunpack.c.l.b16 %v2920
        %v3646 = vunpack.c.h.b16 %v2920
        %v3647 = vunpack.c.l.b16 %v2921
        %v3648 = vunpack.c.h.b16 %v2921
        %v3649 = vunpack.c.l.b16 %v2922
        %v3650 = vunpack.c.h.b16 %v2922
        %v3651 = vunpack.c.l.b16 %v2923
        %v3652 = vunpack.c.h.b16 %v2923
        %v3653 = vunpack.c.l.b16 %v2924
        %v3654 = vunpack.c.h.b16 %v2924
        %v3655 = vunpack.c.l.b16 %v2925
        %v3656 = vunpack.c.h.b16 %v2925
        %v3657 = vunpack.c.l.b16 %v2926
        %v3658 = vunpack.c.h.b16 %v2926
        %v3659 = vunpack.c.l.b16 %v2927
        %v3660 = vunpack.c.h.b16 %v2927
        %v3661 = vunpack.c.l.b16 %v2928
        %v3662 = vunpack.c.h.b16 %v2928
        %v3663 = vunpack.c.l.b16 %v2929
        %v3664 = vunpack.c.h.b16 %v2929
        %v3665 = vunpack.c.l.b16 %v2930
        %v3666 = vunpack.c.h.b16 %v2930
        %v3667 = vunpack.c.l.b16 %v2931
        %v3668 = vunpack.c.h.b16 %v2931
        %v3669 = vunpack.c.l.b16 %v2932
        %v3670 = vunpack.c.h.b16 %v2932
        %v3671 = vunpack.c.l.b16 %v2933
        %v3672 = vunpack.c.h.b16 %v2933
        %v3673 = vunpack.c.l.b16 %v2934
        %v3674 = vunpack.c.h.b16 %v2934
        %v3675 = vunpack.c.l.b16 %v2935
        %v3676 = vunpack.c.h.b16 %v2935
        %v3677 = vunpack.c.l.b16 %v2936
        %v3678 = vunpack.c.h.b16 %v2936
        %v3679 = vunpack.c.l.b16 %v2937
        %v3680 = vunpack.c.h.b16 %v2937
        %v3681 = vunpack.c.l.b16 %v2938
        %v3682 = vunpack.c.h.b16 %v2938
        %v3683 = vunpack.c.l.b16 %v2939
        %v3684 = vunpack.c.h.b16 %v2939
        %v3685 = vunpack.c.l.b16 %v2940
        %v3686 = vunpack.c.h.b16 %v2940
        %v3687 = vunpack.c.l.b16 %v2941
        %v3688 = vunpack.c.h.b16 %v2941
        %v3689 = vunpack.c.l.b16 %v2942
        %v3690 = vunpack.c.h.b16 %v2942
        %v3691 = vunpack.c.l.b16 %v2943
        %v3692 = vunpack.c.h.b16 %v2943
        %v3693 = vunpack.c.l.b16 %v2944
        %v3694 = vunpack.c.h.b16 %v2944
        %v3695 = vunpack.c.l.b16 %v2945
        %v3696 = vunpack.c.h.b16 %v2945
        %v3697 = vunpack.c.l.b16 %v2946
        %v3698 = vunpack.c.h.b16 %v2946
        %v3699 = vunpack.c.l.b16 %v2947
        %v3700 = vunpack.c.h.b16 %v2947
        %v3701 = vunpack.c.l.b16 %v2948
        %v3702 = vunpack.c.h.b16 %v2948
        %v3703 = vunpack.c.l.b16 %v2949
        %v3704 = vunpack.c.h.b16 %v2949
        %v3705 = vunpack.c.l.b16 %v2950
        %v3706 = vunpack.c.h.b16 %v2950
        %v3707 = vunpack.c.l.b16 %v2951
        %v3708 = vunpack.c.h.b16 %v2951
        %v3709 = vunpack.c.l.b16 %v2952
        %v3710 = vunpack.c.h.b16 %v2952
        %v3711 = vunpack.c.l.b16 %v2953
        %v3712 = vunpack.c.h.b16 %v2953
        %v3713 = vunpack.c.l.b16 %v2954
        %v3714 = vunpack.c.h.b16 %v2954
        %v3715 = vunpack.c.l.b16 %v2955
        %v3716 = vunpack.c.h.b16 %v2955
        %v3717 = vunpack.c.l.b16 %v2956
        %v3718 = vunpack.c.h.b16 %v2956
        %v3719 = vunpack.c.l.b16 %v2957
        %v3720 = vunpack.c.h.b16 %v2957
        %v3721 = vunpack.c.l.b16 %v2958
        %v3722 = vunpack.c.h.b16 %v2958
        %v3723 = vunpack.c.l.b16 %v2959
        %v3724 = vunpack.c.h.b16 %v2959
        %v3725 = vunpack.c.l.b16 %v2960
        %v3726 = vunpack.c.h.b16 %v2960
        %v3727 = vunpack.c.l.b16 %v2961
        %v3728 = vunpack.c.h.b16 %v2961
        %v3729 = vunpack.c.l.b16 %v2962
        %v3730 = vunpack.c.h.b16 %v2962
        %v3731 = vunpack.c.l.b16 %v2963
        %v3732 = vunpack.c.h.b16 %v2963
        %v3733 = vunpack.c.l.b16 %v2964
        %v3734 = vunpack.c.h.b16 %v2964
        %v3735 = vunpack.c.l.b16 %v2965
        %v3736 = vunpack.c.h.b16 %v2965
        %v3737 = vunpack.c.l.b16 %v2966
        %v3738 = vunpack.c.h.b16 %v2966
        %v3739 = vunpack.c.l.b16 %v2967
        %v3740 = vunpack.c.h.b16 %v2967
        %v3741 = vunpack.c.l.b16 %v2968
        %v3742 = vunpack.c.h.b16 %v2968
        %v3743 = vunpack.c.l.b16 %v2969
        %v3744 = vunpack.c.h.b16 %v2969
        %v3745 = vunpack.c.l.b16 %v2970
        %v3746 = vunpack.c.h.b16 %v2970
        %v3747 = vunpack.c.l.b16 %v2971
        %v3748 = vunpack.c.h.b16 %v2971
        %v3749 = vunpack.c.l.b16 %v2972
        %v3750 = vunpack.c.h.b16 %v2972
        %v3751 = vunpack.c.l.b16 %v2973
        %v3752 = vunpack.c.h.b16 %v2973
        %v3753 = vunpack.c.l.b16 %v2974
        %v3754 = vunpack.c.h.b16 %v2974
        %v3755 = vunpack.c.l.b16 %v2975
        %v3756 = vunpack.c.h.b16 %v2975
        %v3757 = vunpack.c.l.b16 %v2976
        %v3758 = vunpack.c.h.b16 %v2976
        %v3759 = vunpack.c.l.b16 %v2977
        %v3760 = vunpack.c.h.b16 %v2977
        %v3761 = vunpack.c.l.b16 %v2978
        %v3762 = vunpack.c.h.b16 %v2978
        %v3763 = vunpack.c.l.b16 %v2979
        %v3764 = vunpack.c.h.b16 %v2979
        %v3765 = vunpack.c.l.b16 %v2980
        %v3766 = vunpack.c.h.b16 %v2980
        %v3767 = vunpack.c.l.b16 %v2981
        %v3768 = vunpack.c.h.b16 %v2981
        %v3769 = vunpack.c.l.b16 %v2982
        %v3770 = vunpack.c.h.b16 %v2982
        %v3771 = vunpack.c.l.b16 %v2983
        %v3772 = vunpack.c.h.b16 %v2983
        %v3773 = vunpack.c.l.b16 %v2984
        %v3774 = vunpack.c.h.b16 %v2984
        %v3775 = vunpack.c.l.b16 %v2985
        %v3776 = vunpack.c.h.b16 %v2985
        %v3777 = vunpack.c.l.b16 %v2986
        %v3778 = vunpack.c.h.b16 %v2986
        %v3779 = vunpack.c.l.b16 %v2987
        %v3780 = vunpack.c.h.b16 %v2987
        %v3781 = vunpack.c.l.b16 %v2988
        %v3782 = vunpack.c.h.b16 %v2988
        %v3783 = vunpack.c.l.b16 %v2989
        %v3784 = vunpack.c.h.b16 %v2989
        %v3785 = vunpack.c.l.b16 %v2990
        %v3786 = vunpack.c.h.b16 %v2990
        %v3787 = vunpack.c.l.b16 %v2991
        %v3788 = vunpack.c.h.b16 %v2991
        %v3789 = vunpack.c.l.b16 %v2992
        %v3790 = vunpack.c.h.b16 %v2992
        %v3791 = vunpack.c.l.b16 %v2993
        %v3792 = vunpack.c.h.b16 %v2993
        %v3793 = vunpack.c.l.b16 %v2994
        %v3794 = vunpack.c.h.b16 %v2994
        %v3795 = vunpack.c.l.b16 %v2995
        %v3796 = vunpack.c.h.b16 %v2995
        %v3797 = vunpack.c.l.b16 %v2996
        %v3798 = vunpack.c.h.b16 %v2996
        %v3799 = vunpack.c.l.b16 %v2997
        %v3800 = vunpack.c.h.b16 %v2997
        %v3801 = vunpack.c.l.b16 %v2998
        %v3802 = vunpack.c.h.b16 %v2998
        %v3803 = vunpack.c.l.b16 %v2999
        %v3804 = vunpack.c.h.b16 %v2999
        %v3805 = vunpack.c.l.b16 %v3000
        %v3806 = vunpack.c.h.b16 %v3000
        %v3807 = vunpack.c.l.b16 %v3001
        %v3808 = vunpack.c.h.b16 %v3001
        %v3809 = vunpack.c.l.b16 %v3002
        %v3810 = vunpack.c.h.b16 %v3002
        %v3811 = vunpack.c.l.b16 %v3003
        %v3812 = vunpack.c.h.b16 %v3003
        %v3813 = vunpack.c.l.b16 %v3004
        %v3814 = vunpack.c.h.b16 %v3004
        %v3815 = vunpack.c.l.b16 %v3005
        %v3816 = vunpack.c.h.b16 %v3005
        %v3817 = vunpack.c.l.b16 %v3006
        %v3818 = vunpack.c.h.b16 %v3006
        %v3819 = vunpack.c.l.b16 %v3007
        %v3820 = vunpack.c.h.b16 %v3007
        %v3821 = vunpack.c.l.b16 %v3008
        %v3822 = vunpack.c.h.b16 %v3008
        %v3823 = vunpack.c.l.b16 %v3009
        %v3824 = vunpack.c.h.b16 %v3009
        %v3825 = vunpack.c.l.b16 %v3010
        %v3826 = vunpack.c.h.b16 %v3010
        %v3827 = vunpack.c.l.b16 %v3011
        %v3828 = vunpack.c.h.b16 %v3011
        %v3829 = vunpack.c.l.b16 %v3012
        %v3830 = vunpack.c.h.b16 %v3012
        %v3831 = vunpack.c.l.b16 %v3013
        %v3832 = vunpack.c.h.b16 %v3013
        %v3833 = vunpack.c.l.b16 %v3014
        %v3834 = vunpack.c.h.b16 %v3014
        %v3835 = vunpack.c.l.b16 %v3015
        %v3836 = vunpack.c.h.b16 %v3015
        %v3837 = vunpack.c.l.b16 %v3016
        %v3838 = vunpack.c.h.b16 %v3016
        %v3839 = vunpack.c.l.b16 %v3017
        %v3840 = vunpack.c.h.b16 %v3017
        %v3841 = vunpack.c.l.b16 %v3018
        %v3842 = vunpack.c.h.b16 %v3018
        %v3843 = vunpack.c.l.b16 %v3019
        %v3844 = vunpack.c.h.b16 %v3019
        %v3845 = vunpack.c.l.b16 %v3020
        %v3846 = vunpack.c.h.b16 %v3020
        %v3847 = vunpack.c.l.b16 %v3021
        %v3848 = vunpack.c.h.b16 %v3021
        %v3849 = vunpack.c.l.b16 %v3022
        %v3850 = vunpack.c.h.b16 %v3022
        %v3851 = vunpack.c.l.b16 %v3023
        %v3852 = vunpack.c.h.b16 %v3023
        %v3853 = vunpack.c.l.b16 %v3024
        %v3854 = vunpack.c.h.b16 %v3024
        %v3855 = vunpack.c.l.b16 %v3025
        %v3856 = vunpack.c.h.b16 %v3025
        %v3857 = vunpack.c.l.b16 %v3026
        %v3858 = vunpack.c.h.b16 %v3026
        %v3859 = vunpack.c.l.b16 %v3027
        %v3860 = vunpack.c.h.b16 %v3027
        %v3861 = vunpack.c.l.b16 %v3028
        %v3862 = vunpack.c.h.b16 %v3028
        %v3863 = vunpack.c.l.b16 %v3029
        %v3864 = vunpack.c.h.b16 %v3029
        %v3865 = vunpack.c.l.b16 %v3030
        %v3866 = vunpack.c.h.b16 %v3030
        %v3867 = vunpack.c.l.b16 %v3031
        %v3868 = vunpack.c.h.b16 %v3031
        %v3869 = vunpack.c.l.b16 %v3032
        %v3870 = vunpack.c.h.b16 %v3032
        %v3871 = vunpack.c.l.b16 %v3033
        %v3872 = vunpack.c.h.b16 %v3033
        %v3873 = vunpack.c.l.b16 %v3034
        %v3874 = vunpack.c.h.b16 %v3034
        %v3875 = vunpack.c.l.b16 %v3035
        %v3876 = vunpack.c.h.b16 %v3035
        %v3877 = vunpack.c.l.b16 %v3036
        %v3878 = vunpack.c.h.b16 %v3036
        %v3879 = vunpack.c.l.b16 %v3037
        %v3880 = vunpack.c.h.b16 %v3037
        %v3881 = vunpack.c.l.b16 %v3038
        %v3882 = vunpack.c.h.b16 %v3038
        %v3883 = vunpack.c.l.b16 %v3039
        %v3884 = vunpack.c.h.b16 %v3039
        %v3885 = vunpack.c.l.b16 %v3040
        %v3886 = vunpack.c.h.b16 %v3040
        %v3887 = vunpack.c.l.b16 %v3041
        %v3888 = vunpack.c.h.b16 %v3041
        %v3889 = vunpack.c.l.b16 %v3042
        %v3890 = vunpack.c.h.b16 %v3042
        %v3891 = vunpack.c.l.b16 %v3043
        %v3892 = vunpack.c.h.b16 %v3043
        %v3893 = vunpack.c.l.b16 %v3044
        %v3894 = vunpack.c.h.b16 %v3044
        %v3895 = vunpack.c.l.b16 %v3045
        %v3896 = vunpack.c.h.b16 %v3045
        %v3897 = vunpack.c.l.b16 %v3046
        %v3898 = vunpack.c.h.b16 %v3046
        %v3899 = vunpack.c.l.b16 %v3047
        %v3900 = vunpack.c.h.b16 %v3047
        %v3901 = vunpack.c.l.b16 %v3048
        %v3902 = vunpack.c.h.b16 %v3048
        %v3903 = vunpack.c.l.b16 %v3049
        %v3904 = vunpack.c.h.b16 %v3049
        %v3905 = vunpack.c.l.b16 %v3050
        %v3906 = vunpack.c.h.b16 %v3050
        %v3907 = vunpack.c.l.b16 %v3051
        %v3908 = vunpack.c.h.b16 %v3051
        %v3909 = vunpack.c.l.b16 %v3052
        %v3910 = vunpack.c.h.b16 %v3052
        %v3911 = vunpack.c.l.b16 %v3053
        %v3912 = vunpack.c.h.b16 %v3053
        %v3913 = vunpack.c.l.b16 %v3054
        %v3914 = vunpack.c.h.b16 %v3054
        %v3915 = vunpack.c.l.b16 %v3055
        %v3916 = vunpack.c.h.b16 %v3055
        %v3917 = vunpack.c.l.b16 %v3056
        %v3918 = vunpack.c.h.b16 %v3056
        %v3919 = vunpack.c.l.b16 %v3057
        %v3920 = vunpack.c.h.b16 %v3057
        %v3921 = vunpack.c.l.b16 %v3058
        %v3922 = vunpack.c.h.b16 %v3058
        %v3923 = vpack.c.b16 %v3353, %v3347
        %v3924 = vpack.c.b16 %v3354, %v3348
        %v3925 = vpack.c.b16 %v3355, %v3349
        %v3926 = vpack.c.b16 %v3356, %v3350
        %v3927 = vpack.c.b16 %v3357, %v3351
        %v3928 = vpack.c.b16 %v3358, %v3352
        %v3929 = vpack.c.b16 %v3365, %v3359
        %v3930 = vpack.c.b16 %v3366, %v3360
        %v3931 = vpack.c.b16 %v3367, %v3361
        %v3932 = vpack.c.b16 %v3368, %v3362
        %v3933 = vpack.c.b16 %v3369, %v3363
        %v3934 = vpack.c.b16 %v3370, %v3364
        %v3935 = vpack.c.b16 %v3377, %v3371
        %v3936 = vpack.c.b16 %v3378, %v3372
        %v3937 = vpack.c.b16 %v3379, %v3373
        %v3938 = vpack.c.b16 %v3380, %v3374
        %v3939 = vpack.c.b16 %v3381, %v3375
        %v3940 = vpack.c.b16 %v3382, %v3376
        %v3941 = vpack.c.b16 %v3389, %v3383
        %v3942 = vpack.c.b16 %v3390, %v3384
        %v3943 = vpack.c.b16 %v3391, %v3385
        %v3944 = vpack.c.b16 %v3392, %v3386
        %v3945 = vpack.c.b16 %v3393, %v3387
        %v3946 = vpack.c.b16 %v3394, %v3388
        %v3947 = vpack.c.b16 %v3401, %v3395
        %v3948 = vpack.c.b16 %v3402, %v3396
        %v3949 = vpack.c.b16 %v3403, %v3397
        %v3950 = vpack.c.b16 %v3404, %v3398
        %v3951 = vpack.c.b16 %v3405, %v3399
        %v3952 = vpack.c.b16 %v3406, %v3400
        %v3953 = vpack.c.b16 %v3413, %v3407
        %v3954 = vpack.c.b16 %v3414, %v3408
        %v3955 = vpack.c.b16 %v3415, %v3409
        %v3956 = vpack.c.b16 %v3416, %v3410
        %v3957 = vpack.c.b16 %v3417, %v3411
        %v3958 = vpack.c.b16 %v3418, %v3412
        %v3959 = vpack.c.b16 %v3425, %v3419
        %v3960 = vpack.c.b16 %v3426, %v3420
        %v3961 = vpack.c.b16 %v3427, %v3421
        %v3962 = vpack.c.b16 %v3428, %v3422
        %v3963 = vpack.c.b16 %v3429, %v3423
        %v3964 = vpack.c.b16 %v3430, %v3424
        %v3965 = vpack.c.b16 %v3437, %v3431
        %v3966 = vpack.c.b16 %v3438, %v3432
        %v3967 = vpack.c.b16 %v3439, %v3433
        %v3968 = vpack.c.b16 %v3440, %v3434
        %v3969 = vpack.c.b16 %v3441, %v3435
        %v3970 = vpack.c.b16 %v3442, %v3436
        %v3971 = vpack.c.b16 %v3449, %v3443
        %v3972 = vpack.c.b16 %v3450, %v3444
        %v3973 = vpack.c.b16 %v3451, %v3445
        %v3974 = vpack.c.b16 %v3452, %v3446
        %v3975 = vpack.c.b16 %v3453, %v3447
        %v3976 = vpack.c.b16 %v3454, %v3448
        %v3977 = vpack.c.b16 %v3461, %v3455
        %v3978 = vpack.c.b16 %v3462, %v3456
        %v3979 = vpack.c.b16 %v3463, %v3457
        %v3980 = vpack.c.b16 %v3464, %v3458
        %v3981 = vpack.c.b16 %v3465, %v3459
        %v3982 = vpack.c.b16 %v3466, %v3460
        %v3983 = vpack.c.b16 %v3473, %v3467
        %v3984 = vpack.c.b16 %v3474, %v3468
        %v3985 = vpack.c.b16 %v3475, %v3469
        %v3986 = vpack.c.b16 %v3476, %v3470
        %v3987 = vpack.c.b16 %v3477, %v3471
        %v3988 = vpack.c.b16 %v3478, %v3472
        %v3989 = vpack.c.b16 %v3485, %v3479
        %v3990 = vpack.c.b16 %v3486, %v3480
        %v3991 = vpack.c.b16 %v3487, %v3481
        %v3992 = vpack.c.b16 %v3488, %v3482
        %v3993 = vpack.c.b16 %v3489, %v3483
        %v3994 = vpack.c.b16 %v3490, %v3484
        %v3995 = vpack.c.b16 %v3497, %v3491
        %v3996 = vpack.c.b16 %v3498, %v3492
        %v3997 = vpack.c.b16 %v3499, %v3493
        %v3998 = vpack.c.b16 %v3500, %v3494
        %v3999 = vpack.c.b16 %v3501, %v3495
        %v4000 = vpack.c.b16 %v3502, %v3496
        %v4001 = vpack.c.b16 %v3509, %v3503
        %v4002 = vpack.c.b16 %v3510, %v3504
        %v4003 = vpack.c.b16 %v3511, %v3505
        %v4004 = vpack.c.b16 %v3512, %v3506
        %v4005 = vpack.c.b16 %v3513, %v3507
        %v4006 = vpack.c.b16 %v3514, %v3508
        %v4007 = vpack.c.b16 %v3521, %v3515
        %v4008 = vpack.c.b16 %v3522, %v3516
        %v4009 = vpack.c.b16 %v3523, %v3517
        %v4010 = vpack.c.b16 %v3524, %v3518
        %v4011 = vpack.c.b16 %v3525, %v3519
        %v4012 = vpack.c.b16 %v3526, %v3520
        %v4013 = vpack.c.b16 %v3533, %v3527
        %v4014 = vpack.c.b16 %v3534, %v3528
        %v4015 = vpack.c.b16 %v3535, %v3529
        %v4016 = vpack.c.b16 %v3536, %v3530
        %v4017 = vpack.c.b16 %v3537, %v3531
        %v4018 = vpack.c.b16 %v3538, %v3532
        %v4019 = vpack.c.b16 %v3545, %v3539
        %v4020 = vpack.c.b16 %v3546, %v3540
        %v4021 = vpack.c.b16 %v3547, %v3541
        %v4022 = vpack.c.b16 %v3548, %v3542
        %v4023 = vpack.c.b16 %v3549, %v3543
        %v4024 = vpack.c.b16 %v3550, %v3544
        %v4025 = vpack.c.b16 %v3557, %v3551
        %v4026 = vpack.c.b16 %v3558, %v3552
        %v4027 = vpack.c.b16 %v3559, %v3553
        %v4028 = vpack.c.b16 %v3560, %v3554
        %v4029 = vpack.c.b16 %v3561, %v3555
        %v4030 = vpack.c.b16 %v3562, %v3556
        %v4031 = vpack.c.b16 %v3569, %v3563
        %v4032 = vpack.c.b16 %v3570, %v3564
        %v4033 = vpack.c.b16 %v3571, %v3565
        %v4034 = vpack.c.b16 %v3572, %v3566
        %v4035 = vpack.c.b16 %v3573, %v3567
        %v4036 = vpack.c.b16 %v3574, %v3568
        %v4037 = vpack.c.b16 %v3581, %v3575
        %v4038 = vpack.c.b16 %v3582, %v3576
        %v4039 = vpack.c.b16 %v3583, %v3577
        %v4040 = vpack.c.b16 %v3584, %v3578
        %v4041 = vpack.c.b16 %v3585, %v3579
        %v4042 = vpack.c.b16 %v3586, %v3580
        %v4043 = vpack.c.b16 %v3593, %v3587
        %v4044 = vpack.c.b16 %v3594, %v3588
        %v4045 = vpack.c.b16 %v3595, %v3589
        %v4046 = vpack.c.b16 %v3596, %v3590
        %v4047 = vpack.c.b16 %v3597, %v3591
        %v4048 = vpack.c.b16 %v3598, %v3592
        %v4049 = vpack.c.b16 %v3605, %v3599
        %v4050 = vpack.c.b16 %v3606, %v3600
        %v4051 = vpack.c.b16 %v3607, %v3601
        %v4052 = vpack.c.b16 %v3608, %v3602
        %v4053 = vpack.c.b16 %v3609, %v3603
        %v4054 = vpack.c.b16 %v3610, %v3604
        %v4055 = vpack.c.b16 %v3617, %v3611
        %v4056 = vpack.c.b16 %v3618, %v3612
        %v4057 = vpack.c.b16 %v3619, %v3613
        %v4058 = vpack.c.b16 %v3620, %v3614
        %v4059 = vpack.c.b16 %v3621, %v3615
        %v4060 = vpack.c.b16 %v3622, %v3616
        %v4061 = vpack.c.b16 %v3629, %v3623
        %v4062 = vpack.c.b16 %v3630, %v3624
        %v4063 = vpack.c.b16 %v3631, %v3625
        %v4064 = vpack.c.b16 %v3632, %v3626
        %v4065 = vpack.c.b16 %v3633, %v3627
        %v4066 = vpack.c.b16 %v3634, %v3628
        %v4067 = vpack.c.b16 %v3641, %v3635
        %v4068 = vpack.c.b16 %v3642, %v3636
        %v4069 = vpack.c.b16 %v3643, %v3637
        %v4070 = vpack.c.b16 %v3644, %v3638
        %v4071 = vpack.c.b16 %v3645, %v3639
        %v4072 = vpack.c.b16 %v3646, %v3640
        %v4073 = vpack.c.b16 %v3653, %v3647
        %v4074 = vpack.c.b16 %v3654, %v3648
        %v4075 = vpack.c.b16 %v3655, %v3649
        %v4076 = vpack.c.b16 %v3656, %v3650
        %v4077 = vpack.c.b16 %v3657, %v3651
        %v4078 = vpack.c.b16 %v3658, %v3652
        %v4079 = vpack.c.b16 %v3665, %v3659
        %v4080 = vpack.c.b16 %v3666, %v3660
        %v4081 = vpack.c.b16 %v3667, %v3661
        %v4082 = vpack.c.b16 %v3668, %v3662
        %v4083 = vpack.c.b16 %v3669, %v3663
        %v4084 = vpack.c.b16 %v3670, %v3664
        %v4085 = vpack.c.b16 %v3677, %v3671
        %v4086 = vpack.c.b16 %v3678, %v3672
        %v4087 = vpack.c.b16 %v3679, %v3673
        %v4088 = vpack.c.b16 %v3680, %v3674
        %v4089 = vpack.c.b16 %v3681, %v3675
        %v4090 = vpack.c.b16 %v3682, %v3676
        %v4091 = vpack.c.b16 %v3689, %v3683
        %v4092 = vpack.c.b16 %v3690, %v3684
        %v4093 = vpack.c.b16 %v3691, %v3685
        %v4094 = vpack.c.b16 %v3692, %v3686
        %v4095 = vpack.c.b16 %v3693, %v3687
        %v4096 = vpack.c.b16 %v3694, %v3688
        %v4097 = vpack.c.b16 %v3701, %v3695
        %v4098 = vpack.c.b16 %v3702, %v3696
        %v4099 = vpack.c.b16 %v3703, %v3697
        %v4100 = vpack.c.b16 %v3704, %v3698
        %v4101 = vpack.c.b16 %v3705, %v3699
        %v4102 = vpack.c.b16 %v3706, %v3700
        %v4103 = vpack.c.b16 %v3713, %v3707
        %v4104 = vpack.c.b16 %v3714, %v3708
        %v4105 = vpack.c.b16 %v3715, %v3709
        %v4106 = vpack.c.b16 %v3716, %v3710
        %v4107 = vpack.c.b16 %v3717, %v3711
        %v4108 = vpack.c.b16 %v3718, %v3712
        %v4109 = vpack.c.b16 %v3725, %v3719
        %v4110 = vpack.c.b16 %v3726, %v3720
        %v4111 = vpack.c.b16 %v3727, %v3721
        %v4112 = vpack.c.b16 %v3728, %v3722
        %v4113 = vpack.c.b16 %v3729, %v3723
        %v4114 = vpack.c.b16 %v3730, %v3724
        %v4115 = vpack.c.b16 %v3737, %v3731
        %v4116 = vpack.c.b16 %v3738, %v3732
        %v4117 = vpack.c.b16 %v3739, %v3733
        %v4118 = vpack.c.b16 %v3740, %v3734
        %v4119 = vpack.c.b16 %v3741, %v3735
        %v4120 = vpack.c.b16 %v3742, %v3736
        %v4121 = vpack.c.b16 %v3749, %v3743
        %v4122 = vpack.c.b16 %v3750, %v3744
        %v4123 = vpack.c.b16 %v3751, %v3745
        %v4124 = vpack.c.b16 %v3752, %v3746
        %v4125 = vpack.c.b16 %v3753, %v3747
        %v4126 = vpack.c.b16 %v3754, %v3748
        %v4127 = vpack.c.b16 %v3761, %v3755
        %v4128 = vpack.c.b16 %v3762, %v3756
        %v4129 = vpack.c.b16 %v3763, %v3757
        %v4130 = vpack.c.b16 %v3764, %v3758
        %v4131 = vpack.c.b16 %v3765, %v3759
        %v4132 = vpack.c.b16 %v3766, %v3760
        %v4133 = vpack.c.b16 %v3773, %v3767
        %v4134 = vpack.c.b16 %v3774, %v3768
        %v4135 = vpack.c.b16 %v3775, %v3769
        %v4136 = vpack.c.b16 %v3776, %v3770
        %v4137 = vpack.c.b16 %v3777, %v3771
        %v4138 = vpack.c.b16 %v3778, %v3772
        %v4139 = vpack.c.b16 %v3785, %v3779
        %v4140 = vpack.c.b16 %v3786, %v3780
        %v4141 = vpack.c.b16 %v3787, %v3781
        %v4142 = vpack.c.b16 %v3788, %v3782
        %v4143 = vpack.c.b16 %v3789, %v3783
        %v4144 = vpack.c.b16 %v3790, %v3784
        %v4145 = vpack.c.b16 %v3797, %v3791
        %v4146 = vpack.c.b16 %v3798, %v3792
        %v4147 = vpack.c.b16 %v3799, %v3793
        %v4148 = vpack.c.b16 %v3800, %v3794
        %v4149 = vpack.c.b16 %v3801, %v3795
        %v4150 = vpack.c.b16 %v3802, %v3796
        %v4151 = vpack.c.b16 %v3809, %v3803
        %v4152 = vpack.c.b16 %v3810, %v3804
        %v4153 = vpack.c.b16 %v3811, %v3805
        %v4154 = vpack.c.b16 %v3812, %v3806
        %v4155 = vpack.c.b16 %v3813, %v3807
        %v4156 = vpack.c.b16 %v3814, %v3808
        %v4157 = vpack.c.b16 %v3821, %v3815
        %v4158 = vpack.c.b16 %v3822, %v3816
        %v4159 = vpack.c.b16 %v3823, %v3817
        %v4160 = vpack.c.b16 %v3824, %v3818
        %v4161 = vpack.c.b16 %v3825, %v3819
        %v4162 = vpack.c.b16 %v3826, %v3820
        %v4163 = vpack.c.b16 %v3833, %v3827
        %v4164 = vpack.c.b16 %v3834, %v3828
        %v4165 = vpack.c.b16 %v3835, %v3829
        %v4166 = vpack.c.b16 %v3836, %v3830
        %v4167 = vpack.c.b16 %v3837, %v3831
        %v4168 = vpack.c.b16 %v3838, %v3832
        %v4169 = vpack.c.b16 %v3845, %v3839
        %v4170 = vpack.c.b16 %v3846, %v3840
        %v4171 = vpack.c.b16 %v3847, %v3841
        %v4172 = vpack.c.b16 %v3848, %v3842
        %v4173 = vpack.c.b16 %v3849, %v3843
        %v4174 = vpack.c.b16 %v3850, %v3844
        %v4175 = vpack.c.b16 %v3857, %v3851
        %v4176 = vpack.c.b16 %v3858, %v3852
        %v4177 = vpack.c.b16 %v3859, %v3853
        %v4178 = vpack.c.b16 %v3860, %v3854
        %v4179 = vpack.c.b16 %v3861, %v3855
        %v4180 = vpack.c.b16 %v3862, %v3856
        %v4181 = vpack.c.b16 %v3869, %v3863
        %v4182 = vpack.c.b16 %v3870, %v3864
        %v4183 = vpack.c.b16 %v3871, %v3865
        %v4184 = vpack.c.b16 %v3872, %v3866
        %v4185 = vpack.c.b16 %v3873, %v3867
        %v4186 = vpack.c.b16 %v3874, %v3868
        %v4187 = vpack.c.b16 %v3881, %v3875
        %v4188 = vpack.c.b16 %v3882, %v3876
        %v4189 = vpack.c.b16 %v3883, %v3877
        %v4190 = vpack.c.b16 %v3884, %v3878
        %v4191 = vpack.c.b16 %v3885, %v3879
        %v4192 = vpack.c.b16 %v3886, %v3880
        %v4193 = vpack.c.b16 %v3893, %v3887
        %v4194 = vpack.c.b16 %v3894, %v3888
        %v4195 = vpack.c.b16 %v3895, %v3889
        %v4196 = vpack.c.b16 %v3896, %v3890
        %v4197 = vpack.c.b16 %v3897, %v3891
        %v4198 = vpack.c.b16 %v3898, %v3892
        %v4199 = vpack.c.b16 %v3905, %v3899
        %v4200 = vpack.c.b16 %v3906, %v3900
        %v4201 = vpack.c.b16 %v3907, %v3901
        %v4202 = vpack.c.b16 %v3908, %v3902
        %v4203 = vpack.c.b16 %v3909, %v3903
        %v4204 = vpack.c.b16 %v3910, %v3904
        %v4205 = vpack.c.b16 %v3917, %v3911
        %v4206 = vpack.c.b16 %v3918, %v3912
        %v4207 = vpack.c.b16 %v3919, %v3913
        %v4208 = vpack.c.b16 %v3920, %v3914
        %v4209 = vpack.c.b16 %v3921, %v3915
        %v4210 = vpack.c.b16 %v3922, %v3916
        %4499 = vmatpush.bf16.msra.mxu0 %v3965
        %4500 = vmatpush.bf16.msra.mxu0 %v3959
        %4501 = vmatpush.bf16.msra.mxu0 %v3953
        %4502 = vmatpush.bf16.msra.mxu0 %v3947
        %4503 = vmatpush.bf16.msra.mxu0 %v3941
        %4504 = vmatpush.bf16.msra.mxu0 %v3935
        %4505 = vmatpush.bf16.msra.mxu0 %v3929
        %4506 = vmatpush.bf16.msra.mxu0 %v3923
        %4507 = vmatmul.bf16.gmra.mxu0 %v2765
        %v4508 = vpop.f32.mrf.mxu0
        %v4509 = vadd.f32 0.0, %v4508
        %v4510 = vpop.f32.mrf.mxu0
        %v4511 = vadd.f32 0.0, %v4510
        %4512 = vdwg.mxu0
        %4513 = vmatpush.bf16.msra.mxu0 %v4013
        %4514 = vmatpush.bf16.msra.mxu0 %v4007
        %4515 = vmatpush.bf16.msra.mxu0 %v4001
        %4516 = vmatpush.bf16.msra.mxu0 %v3995
        %4517 = vmatpush.bf16.msra.mxu0 %v3989
        %4518 = vmatpush.bf16.msra.mxu0 %v3983
        %4519 = vmatpush.bf16.msra.mxu0 %v3977
        %4520 = vmatpush.bf16.msra.mxu0 %v3971
        %4521 = vmatmul.bf16.gmra.mxu0 %v2766
        %v4522 = vpop.f32.mrf.mxu0
        %v4523 = vadd.f32 %v4509, %v4522
        %v4524 = vpop.f32.mrf.mxu0
        %v4525 = vadd.f32 %v4511, %v4524
        %4526 = vdwg.mxu0
        %4527 = vmatpush.bf16.msra.mxu0 %v4061
        %4528 = vmatpush.bf16.msra.mxu0 %v4055
        %4529 = vmatpush.bf16.msra.mxu0 %v4049
        %4530 = vmatpush.bf16.msra.mxu0 %v4043
        %4531 = vmatpush.bf16.msra.mxu0 %v4037
        %4532 = vmatpush.bf16.msra.mxu0 %v4031
        %4533 = vmatpush.bf16.msra.mxu0 %v4025
        %4534 = vmatpush.bf16.msra.mxu0 %v4019
        %4535 = vmatmul.bf16.gmra.mxu0 %v2767
        %v4536 = vpop.f32.mrf.mxu0
        %v4537 = vadd.f32 %v4523, %v4536
        %v4538 = vpop.f32.mrf.mxu0
        %v4539 = vadd.f32 %v4525, %v4538
        %4540 = vdwg.mxu0
        %4541 = vmatpush.bf16.msra.mxu0 %v4109
        %4542 = vmatpush.bf16.msra.mxu0 %v4103
        %4543 = vmatpush.bf16.msra.mxu0 %v4097
        %4544 = vmatpush.bf16.msra.mxu0 %v4091
        %4545 = vmatpush.bf16.msra.mxu0 %v4085
        %4546 = vmatpush.bf16.msra.mxu0 %v4079
        %4547 = vmatpush.bf16.msra.mxu0 %v4073
        %4548 = vmatpush.bf16.msra.mxu0 %v4067
        %4549 = vmatmul.bf16.gmra.mxu0 %v2768
        %v4550 = vpop.f32.mrf.mxu0
        %v4551 = vadd.f32 %v4537, %v4550
        %v4552 = vpop.f32.mrf.mxu0
        %v4553 = vadd.f32 %v4539, %v4552
        %4554 = vdwg.mxu0
        %4555 = vmatpush.bf16.msra.mxu0 %v4157
        %4556 = vmatpush.bf16.msra.mxu0 %v4151
        %4557 = vmatpush.bf16.msra.mxu0 %v4145
        %4558 = vmatpush.bf16.msra.mxu0 %v4139
        %4559 = vmatpush.bf16.msra.mxu0 %v4133
        %4560 = vmatpush.bf16.msra.mxu0 %v4127
        %4561 = vmatpush.bf16.msra.mxu0 %v4121
        %4562 = vmatpush.bf16.msra.mxu0 %v4115
        %4563 = vmatmul.bf16.gmra.mxu0 %v2769
        %v4564 = vpop.f32.mrf.mxu0
        %v4565 = vadd.f32 %v4551, %v4564
        %v4566 = vpop.f32.mrf.mxu0
        %v4567 = vadd.f32 %v4553, %v4566
        %4568 = vdwg.mxu0
        %4569 = vmatpush.bf16.msra.mxu0 %v4205
        %4570 = vmatpush.bf16.msra.mxu0 %v4199
        %4571 = vmatpush.bf16.msra.mxu0 %v4193
        %4572 = vmatpush.bf16.msra.mxu0 %v4187
        %4573 = vmatpush.bf16.msra.mxu0 %v4181
        %4574 = vmatpush.bf16.msra.mxu0 %v4175
        %4575 = vmatpush.bf16.msra.mxu0 %v4169
        %4576 = vmatpush.bf16.msra.mxu0 %v4163
        %4577 = vmatmul.bf16.gmra.mxu0 %v2770
        %v4578 = vpop.f32.mrf.mxu0
        %v4579 = vadd.f32 %v4565, %v4578
        %v4580 = vpop.f32.mrf.mxu0
        %v4581 = vadd.f32 %v4567, %v4580
        %4582 = vdwg.mxu0
        %4583 = vmatpush.bf16.msra.mxu0 %v3966
        %4584 = vmatpush.bf16.msra.mxu0 %v3960
        %4585 = vmatpush.bf16.msra.mxu0 %v3954
        %4586 = vmatpush.bf16.msra.mxu0 %v3948
        %4587 = vmatpush.bf16.msra.mxu0 %v3942
        %4588 = vmatpush.bf16.msra.mxu0 %v3936
        %4589 = vmatpush.bf16.msra.mxu0 %v3930
        %4590 = vmatpush.bf16.msra.mxu0 %v3924
        %4591 = vmatmul.bf16.gmra.mxu0 %v2765
        %v4592 = vpop.f32.mrf.mxu0
        %v4593 = vadd.f32 0.0, %v4592
        %v4594 = vpop.f32.mrf.mxu0
        %v4595 = vadd.f32 0.0, %v4594
        %4596 = vdwg.mxu0
        %4597 = vmatpush.bf16.msra.mxu0 %v4014
        %4598 = vmatpush.bf16.msra.mxu0 %v4008
        %4599 = vmatpush.bf16.msra.mxu0 %v4002
        %4600 = vmatpush.bf16.msra.mxu0 %v3996
        %4601 = vmatpush.bf16.msra.mxu0 %v3990
        %4602 = vmatpush.bf16.msra.mxu0 %v3984
        %4603 = vmatpush.bf16.msra.mxu0 %v3978
        %4604 = vmatpush.bf16.msra.mxu0 %v3972
        %4605 = vmatmul.bf16.gmra.mxu0 %v2766
        %v4606 = vpop.f32.mrf.mxu0
        %v4607 = vadd.f32 %v4593, %v4606
        %v4608 = vpop.f32.mrf.mxu0
        %v4609 = vadd.f32 %v4595, %v4608
        %4610 = vdwg.mxu0
        %4611 = vmatpush.bf16.msra.mxu0 %v4062
        %4612 = vmatpush.bf16.msra.mxu0 %v4056
        %4613 = vmatpush.bf16.msra.mxu0 %v4050
        %4614 = vmatpush.bf16.msra.mxu0 %v4044
        %4615 = vmatpush.bf16.msra.mxu0 %v4038
        %4616 = vmatpush.bf16.msra.mxu0 %v4032
        %4617 = vmatpush.bf16.msra.mxu0 %v4026
        %4618 = vmatpush.bf16.msra.mxu0 %v4020
        %4619 = vmatmul.bf16.gmra.mxu0 %v2767
        %v4620 = vpop.f32.mrf.mxu0
        %v4621 = vadd.f32 %v4607, %v4620
        %v4622 = vpop.f32.mrf.mxu0
        %v4623 = vadd.f32 %v4609, %v4622
        %4624 = vdwg.mxu0
        %4625 = vmatpush.bf16.msra.mxu0 %v4110
        %4626 = vmatpush.bf16.msra.mxu0 %v4104
        %4627 = vmatpush.bf16.msra.mxu0 %v4098
        %4628 = vmatpush.bf16.msra.mxu0 %v4092
        %4629 = vmatpush.bf16.msra.mxu0 %v4086
        %4630 = vmatpush.bf16.msra.mxu0 %v4080
        %4631 = vmatpush.bf16.msra.mxu0 %v4074
        %4632 = vmatpush.bf16.msra.mxu0 %v4068
        %4633 = vmatmul.bf16.gmra.mxu0 %v2768
        %v4634 = vpop.f32.mrf.mxu0
        %v4635 = vadd.f32 %v4621, %v4634
        %v4636 = vpop.f32.mrf.mxu0
        %v4637 = vadd.f32 %v4623, %v4636
        %4638 = vdwg.mxu0
        %4639 = vmatpush.bf16.msra.mxu0 %v4158
        %4640 = vmatpush.bf16.msra.mxu0 %v4152
        %4641 = vmatpush.bf16.msra.mxu0 %v4146
        %4642 = vmatpush.bf16.msra.mxu0 %v4140
        %4643 = vmatpush.bf16.msra.mxu0 %v4134
        %4644 = vmatpush.bf16.msra.mxu0 %v4128
        %4645 = vmatpush.bf16.msra.mxu0 %v4122
        %4646 = vmatpush.bf16.msra.mxu0 %v4116
        %4647 = vmatmul.bf16.gmra.mxu0 %v2769
        %v4648 = vpop.f32.mrf.mxu0
        %v4649 = vadd.f32 %v4635, %v4648
        %v4650 = vpop.f32.mrf.mxu0
        %v4651 = vadd.f32 %v4637, %v4650
        %4652 = vdwg.mxu0
        %4653 = vmatpush.bf16.msra.mxu0 %v4206
        %4654 = vmatpush.bf16.msra.mxu0 %v4200
        %4655 = vmatpush.bf16.msra.mxu0 %v4194
        %4656 = vmatpush.bf16.msra.mxu0 %v4188
        %4657 = vmatpush.bf16.msra.mxu0 %v4182
        %4658 = vmatpush.bf16.msra.mxu0 %v4176
        %4659 = vmatpush.bf16.msra.mxu0 %v4170
        %4660 = vmatpush.bf16.msra.mxu0 %v4164
        %4661 = vmatmul.bf16.gmra.mxu0 %v2770
        %v4662 = vpop.f32.mrf.mxu0
        %v4663 = vadd.f32 %v4649, %v4662
        %v4664 = vpop.f32.mrf.mxu0
        %v4665 = vadd.f32 %v4651, %v4664
        %4666 = vdwg.mxu0
        %4667 = vmatpush.bf16.msra.mxu0 %v3967
        %4668 = vmatpush.bf16.msra.mxu0 %v3961
        %4669 = vmatpush.bf16.msra.mxu0 %v3955
        %4670 = vmatpush.bf16.msra.mxu0 %v3949
        %4671 = vmatpush.bf16.msra.mxu0 %v3943
        %4672 = vmatpush.bf16.msra.mxu0 %v3937
        %4673 = vmatpush.bf16.msra.mxu0 %v3931
        %4674 = vmatpush.bf16.msra.mxu0 %v3925
        %4675 = vmatmul.bf16.gmra.mxu0 %v2765
        %v4676 = vpop.f32.mrf.mxu0
        %v4677 = vadd.f32 0.0, %v4676
        %v4678 = vpop.f32.mrf.mxu0
        %v4679 = vadd.f32 0.0, %v4678
        %4680 = vdwg.mxu0
        %4681 = vmatpush.bf16.msra.mxu0 %v4015
        %4682 = vmatpush.bf16.msra.mxu0 %v4009
        %4683 = vmatpush.bf16.msra.mxu0 %v4003
        %4684 = vmatpush.bf16.msra.mxu0 %v3997
        %4685 = vmatpush.bf16.msra.mxu0 %v3991
        %4686 = vmatpush.bf16.msra.mxu0 %v3985
        %4687 = vmatpush.bf16.msra.mxu0 %v3979
        %4688 = vmatpush.bf16.msra.mxu0 %v3973
        %4689 = vmatmul.bf16.gmra.mxu0 %v2766
        %v4690 = vpop.f32.mrf.mxu0
        %v4691 = vadd.f32 %v4677, %v4690
        %v4692 = vpop.f32.mrf.mxu0
        %v4693 = vadd.f32 %v4679, %v4692
        %4694 = vdwg.mxu0
        %4695 = vmatpush.bf16.msra.mxu0 %v4063
        %4696 = vmatpush.bf16.msra.mxu0 %v4057
        %4697 = vmatpush.bf16.msra.mxu0 %v4051
        %4698 = vmatpush.bf16.msra.mxu0 %v4045
        %4699 = vmatpush.bf16.msra.mxu0 %v4039
        %4700 = vmatpush.bf16.msra.mxu0 %v4033
        %4701 = vmatpush.bf16.msra.mxu0 %v4027
        %4702 = vmatpush.bf16.msra.mxu0 %v4021
        %4703 = vmatmul.bf16.gmra.mxu0 %v2767
        %v4704 = vpop.f32.mrf.mxu0
        %v4705 = vadd.f32 %v4691, %v4704
        %v4706 = vpop.f32.mrf.mxu0
        %v4707 = vadd.f32 %v4693, %v4706
        %4708 = vdwg.mxu0
        %4709 = vmatpush.bf16.msra.mxu0 %v4111
        %4710 = vmatpush.bf16.msra.mxu0 %v4105
        %4711 = vmatpush.bf16.msra.mxu0 %v4099
        %4712 = vmatpush.bf16.msra.mxu0 %v4093
        %4713 = vmatpush.bf16.msra.mxu0 %v4087
        %4714 = vmatpush.bf16.msra.mxu0 %v4081
        %4715 = vmatpush.bf16.msra.mxu0 %v4075
        %4716 = vmatpush.bf16.msra.mxu0 %v4069
        %4717 = vmatmul.bf16.gmra.mxu0 %v2768
        %v4718 = vpop.f32.mrf.mxu0
        %v4719 = vadd.f32 %v4705, %v4718
        %v4720 = vpop.f32.mrf.mxu0
        %v4721 = vadd.f32 %v4707, %v4720
        %4722 = vdwg.mxu0
        %4723 = vmatpush.bf16.msra.mxu0 %v4159
        %4724 = vmatpush.bf16.msra.mxu0 %v4153
        %4725 = vmatpush.bf16.msra.mxu0 %v4147
        %4726 = vmatpush.bf16.msra.mxu0 %v4141
        %4727 = vmatpush.bf16.msra.mxu0 %v4135
        %4728 = vmatpush.bf16.msra.mxu0 %v4129
        %4729 = vmatpush.bf16.msra.mxu0 %v4123
        %4730 = vmatpush.bf16.msra.mxu0 %v4117
        %4731 = vmatmul.bf16.gmra.mxu0 %v2769
        %v4732 = vpop.f32.mrf.mxu0
        %v4733 = vadd.f32 %v4719, %v4732
        %v4734 = vpop.f32.mrf.mxu0
        %v4735 = vadd.f32 %v4721, %v4734
        %4736 = vdwg.mxu0
        %4737 = vmatpush.bf16.msra.mxu0 %v4207
        %4738 = vmatpush.bf16.msra.mxu0 %v4201
        %4739 = vmatpush.bf16.msra.mxu0 %v4195
        %4740 = vmatpush.bf16.msra.mxu0 %v4189
        %4741 = vmatpush.bf16.msra.mxu0 %v4183
        %4742 = vmatpush.bf16.msra.mxu0 %v4177
        %4743 = vmatpush.bf16.msra.mxu0 %v4171
        %4744 = vmatpush.bf16.msra.mxu0 %v4165
        %4745 = vmatmul.bf16.gmra.mxu0 %v2770
        %v4746 = vpop.f32.mrf.mxu0
        %v4747 = vadd.f32 %v4733, %v4746
        %v4748 = vpop.f32.mrf.mxu0
        %v4749 = vadd.f32 %v4735, %v4748
        %4750 = vdwg.mxu0
        %4751 = vmatpush.bf16.msra.mxu0 %v3968
        %4752 = vmatpush.bf16.msra.mxu0 %v3962
        %4753 = vmatpush.bf16.msra.mxu0 %v3956
        %4754 = vmatpush.bf16.msra.mxu0 %v3950
        %4755 = vmatpush.bf16.msra.mxu0 %v3944
        %4756 = vmatpush.bf16.msra.mxu0 %v3938
        %4757 = vmatpush.bf16.msra.mxu0 %v3932
        %4758 = vmatpush.bf16.msra.mxu0 %v3926
        %4759 = vmatmul.bf16.gmra.mxu0 %v2765
        %v4760 = vpop.f32.mrf.mxu0
        %v4761 = vadd.f32 0.0, %v4760
        %v4762 = vpop.f32.mrf.mxu0
        %v4763 = vadd.f32 0.0, %v4762
        %4764 = vdwg.mxu0
        %4765 = vmatpush.bf16.msra.mxu0 %v4016
        %4766 = vmatpush.bf16.msra.mxu0 %v4010
        %4767 = vmatpush.bf16.msra.mxu0 %v4004
        %4768 = vmatpush.bf16.msra.mxu0 %v3998
        %4769 = vmatpush.bf16.msra.mxu0 %v3992
        %4770 = vmatpush.bf16.msra.mxu0 %v3986
        %4771 = vmatpush.bf16.msra.mxu0 %v3980
        %4772 = vmatpush.bf16.msra.mxu0 %v3974
        %4773 = vmatmul.bf16.gmra.mxu0 %v2766
        %v4774 = vpop.f32.mrf.mxu0
        %v4775 = vadd.f32 %v4761, %v4774
        %v4776 = vpop.f32.mrf.mxu0
        %v4777 = vadd.f32 %v4763, %v4776
        %4778 = vdwg.mxu0
        %4779 = vmatpush.bf16.msra.mxu0 %v4064
        %4780 = vmatpush.bf16.msra.mxu0 %v4058
        %4781 = vmatpush.bf16.msra.mxu0 %v4052
        %4782 = vmatpush.bf16.msra.mxu0 %v4046
        %4783 = vmatpush.bf16.msra.mxu0 %v4040
        %4784 = vmatpush.bf16.msra.mxu0 %v4034
        %4785 = vmatpush.bf16.msra.mxu0 %v4028
        %4786 = vmatpush.bf16.msra.mxu0 %v4022
        %4787 = vmatmul.bf16.gmra.mxu0 %v2767
        %v4788 = vpop.f32.mrf.mxu0
        %v4789 = vadd.f32 %v4775, %v4788
        %v4790 = vpop.f32.mrf.mxu0
        %v4791 = vadd.f32 %v4777, %v4790
        %4792 = vdwg.mxu0
        %4793 = vmatpush.bf16.msra.mxu0 %v4112
        %4794 = vmatpush.bf16.msra.mxu0 %v4106
        %4795 = vmatpush.bf16.msra.mxu0 %v4100
        %4796 = vmatpush.bf16.msra.mxu0 %v4094
        %4797 = vmatpush.bf16.msra.mxu0 %v4088
        %4798 = vmatpush.bf16.msra.mxu0 %v4082
        %4799 = vmatpush.bf16.msra.mxu0 %v4076
        %4800 = vmatpush.bf16.msra.mxu0 %v4070
        %4801 = vmatmul.bf16.gmra.mxu0 %v2768
        %v4802 = vpop.f32.mrf.mxu0
        %v4803 = vadd.f32 %v4789, %v4802
        %v4804 = vpop.f32.mrf.mxu0
        %v4805 = vadd.f32 %v4791, %v4804
        %4806 = vdwg.mxu0
        %4807 = vmatpush.bf16.msra.mxu0 %v4160
        %4808 = vmatpush.bf16.msra.mxu0 %v4154
        %4809 = vmatpush.bf16.msra.mxu0 %v4148
        %4810 = vmatpush.bf16.msra.mxu0 %v4142
        %4811 = vmatpush.bf16.msra.mxu0 %v4136
        %4812 = vmatpush.bf16.msra.mxu0 %v4130
        %4813 = vmatpush.bf16.msra.mxu0 %v4124
        %4814 = vmatpush.bf16.msra.mxu0 %v4118
        %4815 = vmatmul.bf16.gmra.mxu0 %v2769
        %v4816 = vpop.f32.mrf.mxu0
        %v4817 = vadd.f32 %v4803, %v4816
        %v4818 = vpop.f32.mrf.mxu0
        %v4819 = vadd.f32 %v4805, %v4818
        %4820 = vdwg.mxu0
        %4821 = vmatpush.bf16.msra.mxu0 %v4208
        %4822 = vmatpush.bf16.msra.mxu0 %v4202
        %4823 = vmatpush.bf16.msra.mxu0 %v4196
        %4824 = vmatpush.bf16.msra.mxu0 %v4190
        %4825 = vmatpush.bf16.msra.mxu0 %v4184
        %4826 = vmatpush.bf16.msra.mxu0 %v4178
        %4827 = vmatpush.bf16.msra.mxu0 %v4172
        %4828 = vmatpush.bf16.msra.mxu0 %v4166
        %4829 = vmatmul.bf16.gmra.mxu0 %v2770
        %v4830 = vpop.f32.mrf.mxu0
        %v4831 = vadd.f32 %v4817, %v4830
        %v4832 = vpop.f32.mrf.mxu0
        %v4833 = vadd.f32 %v4819, %v4832
        %4834 = vdwg.mxu0
        %4835 = vmatpush.bf16.msra.mxu0 %v3969
        %4836 = vmatpush.bf16.msra.mxu0 %v3963
        %4837 = vmatpush.bf16.msra.mxu0 %v3957
        %4838 = vmatpush.bf16.msra.mxu0 %v3951
        %4839 = vmatpush.bf16.msra.mxu0 %v3945
        %4840 = vmatpush.bf16.msra.mxu0 %v3939
        %4841 = vmatpush.bf16.msra.mxu0 %v3933
        %4842 = vmatpush.bf16.msra.mxu0 %v3927
        %4843 = vmatmul.bf16.gmra.mxu0 %v2765
        %v4844 = vpop.f32.mrf.mxu0
        %v4845 = vadd.f32 0.0, %v4844
        %v4846 = vpop.f32.mrf.mxu0
        %v4847 = vadd.f32 0.0, %v4846
        %4848 = vdwg.mxu0
        %4849 = vmatpush.bf16.msra.mxu0 %v4017
        %4850 = vmatpush.bf16.msra.mxu0 %v4011
        %4851 = vmatpush.bf16.msra.mxu0 %v4005
        %4852 = vmatpush.bf16.msra.mxu0 %v3999
        %4853 = vmatpush.bf16.msra.mxu0 %v3993
        %4854 = vmatpush.bf16.msra.mxu0 %v3987
        %4855 = vmatpush.bf16.msra.mxu0 %v3981
        %4856 = vmatpush.bf16.msra.mxu0 %v3975
        %4857 = vmatmul.bf16.gmra.mxu0 %v2766
        %v4858 = vpop.f32.mrf.mxu0
        %v4859 = vadd.f32 %v4845, %v4858
        %v4860 = vpop.f32.mrf.mxu0
        %v4861 = vadd.f32 %v4847, %v4860
        %4862 = vdwg.mxu0
        %4863 = vmatpush.bf16.msra.mxu0 %v4065
        %4864 = vmatpush.bf16.msra.mxu0 %v4059
        %4865 = vmatpush.bf16.msra.mxu0 %v4053
        %4866 = vmatpush.bf16.msra.mxu0 %v4047
        %4867 = vmatpush.bf16.msra.mxu0 %v4041
        %4868 = vmatpush.bf16.msra.mxu0 %v4035
        %4869 = vmatpush.bf16.msra.mxu0 %v4029
        %4870 = vmatpush.bf16.msra.mxu0 %v4023
        %4871 = vmatmul.bf16.gmra.mxu0 %v2767
        %v4872 = vpop.f32.mrf.mxu0
        %v4873 = vadd.f32 %v4859, %v4872
        %v4874 = vpop.f32.mrf.mxu0
        %v4875 = vadd.f32 %v4861, %v4874
        %4876 = vdwg.mxu0
        %4877 = vmatpush.bf16.msra.mxu0 %v4113
        %4878 = vmatpush.bf16.msra.mxu0 %v4107
        %4879 = vmatpush.bf16.msra.mxu0 %v4101
        %4880 = vmatpush.bf16.msra.mxu0 %v4095
        %4881 = vmatpush.bf16.msra.mxu0 %v4089
        %4882 = vmatpush.bf16.msra.mxu0 %v4083
        %4883 = vmatpush.bf16.msra.mxu0 %v4077
        %4884 = vmatpush.bf16.msra.mxu0 %v4071
        %4885 = vmatmul.bf16.gmra.mxu0 %v2768
        %v4886 = vpop.f32.mrf.mxu0
        %v4887 = vadd.f32 %v4873, %v4886
        %v4888 = vpop.f32.mrf.mxu0
        %v4889 = vadd.f32 %v4875, %v4888
        %4890 = vdwg.mxu0
        %4891 = vmatpush.bf16.msra.mxu0 %v4161
        %4892 = vmatpush.bf16.msra.mxu0 %v4155
        %4893 = vmatpush.bf16.msra.mxu0 %v4149
        %4894 = vmatpush.bf16.msra.mxu0 %v4143
        %4895 = vmatpush.bf16.msra.mxu0 %v4137
        %4896 = vmatpush.bf16.msra.mxu0 %v4131
        %4897 = vmatpush.bf16.msra.mxu0 %v4125
        %4898 = vmatpush.bf16.msra.mxu0 %v4119
        %4899 = vmatmul.bf16.gmra.mxu0 %v2769
        %v4900 = vpop.f32.mrf.mxu0
        %v4901 = vadd.f32 %v4887, %v4900
        %v4902 = vpop.f32.mrf.mxu0
        %v4903 = vadd.f32 %v4889, %v4902
        %4904 = vdwg.mxu0
        %4905 = vmatpush.bf16.msra.mxu0 %v4209
        %4906 = vmatpush.bf16.msra.mxu0 %v4203
        %4907 = vmatpush.bf16.msra.mxu0 %v4197
        %4908 = vmatpush.bf16.msra.mxu0 %v4191
        %4909 = vmatpush.bf16.msra.mxu0 %v4185
        %4910 = vmatpush.bf16.msra.mxu0 %v4179
        %4911 = vmatpush.bf16.msra.mxu0 %v4173
        %4912 = vmatpush.bf16.msra.mxu0 %v4167
        %4913 = vmatmul.bf16.gmra.mxu0 %v2770
        %v4914 = vpop.f32.mrf.mxu0
        %v4915 = vadd.f32 %v4901, %v4914
        %v4916 = vpop.f32.mrf.mxu0
        %v4917 = vadd.f32 %v4903, %v4916
        %4918 = vdwg.mxu0
        %4919 = vmatpush.bf16.msra.mxu0 %v3970
        %4920 = vmatpush.bf16.msra.mxu0 %v3964
        %4921 = vmatpush.bf16.msra.mxu0 %v3958
        %4922 = vmatpush.bf16.msra.mxu0 %v3952
        %4923 = vmatpush.bf16.msra.mxu0 %v3946
        %4924 = vmatpush.bf16.msra.mxu0 %v3940
        %4925 = vmatpush.bf16.msra.mxu0 %v3934
        %4926 = vmatpush.bf16.msra.mxu0 %v3928
        %4927 = vmatmul.bf16.gmra.mxu0 %v2765
        %v4928 = vpop.f32.mrf.mxu0
        %v4929 = vadd.f32 0.0, %v4928
        %v4930 = vpop.f32.mrf.mxu0
        %v4931 = vadd.f32 0.0, %v4930
        %4932 = vdwg.mxu0
        %4933 = vmatpush.bf16.msra.mxu0 %v4018
        %4934 = vmatpush.bf16.msra.mxu0 %v4012
        %4935 = vmatpush.bf16.msra.mxu0 %v4006
        %4936 = vmatpush.bf16.msra.mxu0 %v4000
        %4937 = vmatpush.bf16.msra.mxu0 %v3994
        %4938 = vmatpush.bf16.msra.mxu0 %v3988
        %4939 = vmatpush.bf16.msra.mxu0 %v3982
        %4940 = vmatpush.bf16.msra.mxu0 %v3976
        %4941 = vmatmul.bf16.gmra.mxu0 %v2766
        %v4942 = vpop.f32.mrf.mxu0
        %v4943 = vadd.f32 %v4929, %v4942
        %v4944 = vpop.f32.mrf.mxu0
        %v4945 = vadd.f32 %v4931, %v4944
        %4946 = vdwg.mxu0
        %4947 = vmatpush.bf16.msra.mxu0 %v4066
        %4948 = vmatpush.bf16.msra.mxu0 %v4060
        %4949 = vmatpush.bf16.msra.mxu0 %v4054
        %4950 = vmatpush.bf16.msra.mxu0 %v4048
        %4951 = vmatpush.bf16.msra.mxu0 %v4042
        %4952 = vmatpush.bf16.msra.mxu0 %v4036
        %4953 = vmatpush.bf16.msra.mxu0 %v4030
        %4954 = vmatpush.bf16.msra.mxu0 %v4024
        %4955 = vmatmul.bf16.gmra.mxu0 %v2767
        %v4956 = vpop.f32.mrf.mxu0
        %v4957 = vadd.f32 %v4943, %v4956
        %v4958 = vpop.f32.mrf.mxu0
        %v4959 = vadd.f32 %v4945, %v4958
        %4960 = vdwg.mxu0
        %4961 = vmatpush.bf16.msra.mxu0 %v4114
        %4962 = vmatpush.bf16.msra.mxu0 %v4108
        %4963 = vmatpush.bf16.msra.mxu0 %v4102
        %4964 = vmatpush.bf16.msra.mxu0 %v4096
        %4965 = vmatpush.bf16.msra.mxu0 %v4090
        %4966 = vmatpush.bf16.msra.mxu0 %v4084
        %4967 = vmatpush.bf16.msra.mxu0 %v4078
        %4968 = vmatpush.bf16.msra.mxu0 %v4072
        %4969 = vmatmul.bf16.gmra.mxu0 %v2768
        %v4970 = vpop.f32.mrf.mxu0
        %v4971 = vadd.f32 %v4957, %v4970
        %v4972 = vpop.f32.mrf.mxu0
        %v4973 = vadd.f32 %v4959, %v4972
        %4974 = vdwg.mxu0
        %4975 = vmatpush.bf16.msra.mxu0 %v4162
        %4976 = vmatpush.bf16.msra.mxu0 %v4156
        %4977 = vmatpush.bf16.msra.mxu0 %v4150
        %4978 = vmatpush.bf16.msra.mxu0 %v4144
        %4979 = vmatpush.bf16.msra.mxu0 %v4138
        %4980 = vmatpush.bf16.msra.mxu0 %v4132
        %4981 = vmatpush.bf16.msra.mxu0 %v4126
        %4982 = vmatpush.bf16.msra.mxu0 %v4120
        %4983 = vmatmul.bf16.gmra.mxu0 %v2769
        %v4984 = vpop.f32.mrf.mxu0
        %v4985 = vadd.f32 %v4971, %v4984
        %v4986 = vpop.f32.mrf.mxu0
        %v4987 = vadd.f32 %v4973, %v4986
        %4988 = vdwg.mxu0
        %4989 = vmatpush.bf16.msra.mxu0 %v4210
        %4990 = vmatpush.bf16.msra.mxu0 %v4204
        %4991 = vmatpush.bf16.msra.mxu0 %v4198
        %4992 = vmatpush.bf16.msra.mxu0 %v4192
        %4993 = vmatpush.bf16.msra.mxu0 %v4186
        %4994 = vmatpush.bf16.msra.mxu0 %v4180
        %4995 = vmatpush.bf16.msra.mxu0 %v4174
        %4996 = vmatpush.bf16.msra.mxu0 %v4168
        %4997 = vmatmul.bf16.gmra.mxu0 %v2770
        %v4998 = vpop.f32.mrf.mxu0
        %v4999 = vadd.f32 %v4985, %v4998
        %v5000 = vpop.f32.mrf.mxu0
        %v5001 = vadd.f32 %v4987, %v5000
        %5002 = vdwg.mxu0
        %v5003 = vadd.f32 %v2753, %v4579
        %v5004 = vadd.f32 %v2754, %v4663
        %v5005 = vadd.f32 %v2755, %v4747
        %v5006 = vadd.f32 %v2756, %v4831
        %v5007 = vadd.f32 %v2757, %v4915
        %v5008 = vadd.f32 %v2758, %v4999
        %v5009 = vadd.f32 %v2759, %v4581
        %v5010 = vadd.f32 %v2760, %v4665
        %v5011 = vadd.f32 %v2761, %v4749
        %v5012 = vadd.f32 %v2762, %v4833
        %v5013 = vadd.f32 %v2763, %v4917
        %v5014 = vadd.f32 %v2764, %v5001
        %5015 = vst [vmem:[#allocation2] sm:$0xff] %v5003
        %5016 = vst [vmem:[#allocation2 + $0x8] sm:$0xff] %v5004
        %5017 = vst [vmem:[#allocation2 + $0x10] sm:$0xff] %v5005
        %5018 = vst [vmem:[#allocation2 + $0x18] sm:$0xff] %v5006
        %5019 = vst [vmem:[#allocation2 + $0x20] sm:$0xff] %v5007
        %5020 = vst [vmem:[#allocation2 + $0x28] sm:$0xff] %v5008
        %5021 = vst [vmem:[#allocation2 + $0x30] sm:$0xff] %v5009
        %5022 = vst [vmem:[#allocation2 + $0x38] sm:$0xff] %v5010
        %5023 = vst [vmem:[#allocation2 + $0x40] sm:$0xff] %v5011
        %5024 = vst [vmem:[#allocation2 + $0x48] sm:$0xff] %v5012
        %5025 = vst [vmem:[#allocation2 + $0x50] sm:$0xff] %v5013
        %5026 = vst [vmem:[#allocation2 + $0x58] sm:$0xff] %v5014
        %p5027 = scmp.eq.s32.totalorder %s29, 3
        // Predicated region
        $region65: #{dnabert_forward.51} parent=47 // pred_check
          %p5028 = pneg %p5027
        $region66: #{dnabert_forward.51} parent=47 // pred_check_branch
          %5030 = sbr.rel (%p5028) target = $region68
        $region67: #{dnabert_forward.51} parent=47 // pred_region
          %v5031 = vld [vmem:[#allocation2] sm:$0xff]
          %v5032 = vld [vmem:[#allocation2 + $0x8] sm:$0xff]
          %v5033 = vld [vmem:[#allocation2 + $0x10] sm:$0xff]
          %v5034 = vld [vmem:[#allocation2 + $0x18] sm:$0xff]
          %v5035 = vld [vmem:[#allocation2 + $0x20] sm:$0xff]
          %v5036 = vld [vmem:[#allocation2 + $0x28] sm:$0xff]
          %v5037 = vld [vmem:[#allocation2 + $0x30] sm:$0xff]
          %v5038 = vld [vmem:[#allocation2 + $0x38] sm:$0xff]
          %v5039 = vld [vmem:[#allocation2 + $0x40] sm:$0xff]
          %v5040 = vld [vmem:[#allocation2 + $0x48] sm:$0xff]
          %v5041 = vld [vmem:[#allocation2 + $0x50] sm:$0xff]
          %v5042 = vld [vmem:[#allocation2 + $0x58] sm:$0xff]
          %v5043 = vadd.f32 %v5031, %v5032
          %v5044 = vadd.f32 %v5043, %v5033
          %v5045 = vadd.f32 %v5044, %v5034
          %v5046 = vadd.f32 %v5045, %v5035
          %v5047 = vadd.f32 %v5046, %v5036
          %5048 = vadd.xlane.f32.xlu0 %v5047
          %v5049 = vpop.xlane.xlu0 %5048
          %v5050 = vadd.f32 %v5037, %v5038
          %v5051 = vadd.f32 %v5050, %v5039
          %v5052 = vadd.f32 %v5051, %v5040
          %v5053 = vadd.f32 %v5052, %v5041
          %v5054 = vadd.f32 %v5053, %v5042
          %5055 = vadd.xlane.f32.xlu0 %v5054
          %v5056 = vpop.xlane.xlu0 %5055
          %v5057 = vrcp.pop 768.0
          %v5058 = vmul.f32 768.0, %v5057
          %v5059 = vsub.f32 1.0, %v5058
          %v5060 = vmul.f32 %v5057, %v5059
          %v5061 = vadd.f32 %v5057, %v5060
          %vm5062 = vweird.f32 %v5057
          %v5063 = vsel %vm5062, %v5057, %v5061
          %v5064 = vmul.f32 %v5049, %v5063
          %v5065 = vmul.f32 %v5056, %v5063
          %v5066 = vsub.f32 %v5031, %v5064
          %v5067 = vsub.f32 %v5032, %v5064
          %v5068 = vsub.f32 %v5033, %v5064
          %v5069 = vsub.f32 %v5034, %v5064
          %v5070 = vsub.f32 %v5035, %v5064
          %v5071 = vsub.f32 %v5036, %v5064
          %v5072 = vsub.f32 %v5037, %v5065
          %v5073 = vsub.f32 %v5038, %v5065
          %v5074 = vsub.f32 %v5039, %v5065
          %v5075 = vsub.f32 %v5040, %v5065
          %v5076 = vsub.f32 %v5041, %v5065
          %v5077 = vsub.f32 %v5042, %v5065
          %v5078 = vmul.f32 %v5066, %v5066
          %v5079 = vmul.f32 %v5067, %v5067
          %v5080 = vmul.f32 %v5068, %v5068
          %v5081 = vmul.f32 %v5069, %v5069
          %v5082 = vmul.f32 %v5070, %v5070
          %v5083 = vmul.f32 %v5071, %v5071
          %v5084 = vmul.f32 %v5072, %v5072
          %v5085 = vmul.f32 %v5073, %v5073
          %v5086 = vmul.f32 %v5074, %v5074
          %v5087 = vmul.f32 %v5075, %v5075
          %v5088 = vmul.f32 %v5076, %v5076
          %v5089 = vmul.f32 %v5077, %v5077
          %v5090 = vadd.f32 %v5078, %v5079
          %v5091 = vadd.f32 %v5090, %v5080
          %v5092 = vadd.f32 %v5091, %v5081
          %v5093 = vadd.f32 %v5092, %v5082
          %v5094 = vadd.f32 %v5093, %v5083
          %5095 = vadd.xlane.f32.xlu0 %v5094
          %v5096 = vpop.xlane.xlu0 %5095
          %v5097 = vadd.f32 %v5084, %v5085
          %v5098 = vadd.f32 %v5097, %v5086
          %v5099 = vadd.f32 %v5098, %v5087
          %v5100 = vadd.f32 %v5099, %v5088
          %v5101 = vadd.f32 %v5100, %v5089
          %5102 = vadd.xlane.f32.xlu0 %v5101
          %v5103 = vpop.xlane.xlu0 %5102
          %v5104 = vmul.f32 %v5096, %v5063
          %v5105 = vmul.f32 %v5103, %v5063
          %v5106 = vadd.f32 %v5104, 1e-05
          %v5107 = vadd.f32 %v5105, 1e-05
          %v5108 = vrsqrt.pop %v5106
          %v5109 = vmul.f32 %v5108, %v5106
          %v5110 = vmul.f32 %v5109, %v5108
          %v5111 = vmul.f32 0.5, %v5110
          %v5112 = vsub.f32 1.5, %v5111
          %v5113 = vmul.f32 %v5108, %v5112
          %vm5114 = vweird.f32 %v5106
          %vm5115 = vweird.f32 %v5108
          %vm5116 = vmor %vm5114, %vm5115
          %v5117 = vsel %vm5116, %v5108, %v5113
          %v5118 = vrsqrt.pop %v5107
          %v5119 = vmul.f32 %v5118, %v5107
          %v5120 = vmul.f32 %v5119, %v5118
          %v5121 = vmul.f32 0.5, %v5120
          %v5122 = vsub.f32 1.5, %v5121
          %v5123 = vmul.f32 %v5118, %v5122
          %vm5124 = vweird.f32 %v5107
          %vm5125 = vweird.f32 %v5118
          %vm5126 = vmor %vm5124, %vm5125
          %v5127 = vsel %vm5126, %v5118, %v5123
          %v5128 = vmul.f32 %v5066, %v5117
          %v5129 = vmul.f32 %v5067, %v5117
          %v5130 = vmul.f32 %v5068, %v5117
          %v5131 = vmul.f32 %v5069, %v5117
          %v5132 = vmul.f32 %v5070, %v5117
          %v5133 = vmul.f32 %v5071, %v5117
          %v5134 = vmul.f32 %v5072, %v5127
          %v5135 = vmul.f32 %v5073, %v5127
          %v5136 = vmul.f32 %v5074, %v5127
          %v5137 = vmul.f32 %v5075, %v5127
          %v5138 = vmul.f32 %v5076, %v5127
          %v5139 = vmul.f32 %v5077, %v5127
          %v5140 = vld [vmem:[%s5] sm:$0x3f]
          %v5142 = vperm.slane %v5140, 0
          %v5143 = vperm.slane %v5140, 1
          %v5144 = vperm.slane %v5140, 2
          %v5145 = vperm.slane %v5140, 3
          %v5146 = vperm.slane %v5140, 4
          %v5147 = vperm.slane %v5140, 5
          %v5154 = vmul.f32 %v5128, %v5142
          %v5155 = vmul.f32 %v5129, %v5143
          %v5156 = vmul.f32 %v5130, %v5144
          %v5157 = vmul.f32 %v5131, %v5145
          %v5158 = vmul.f32 %v5132, %v5146
          %v5159 = vmul.f32 %v5133, %v5147
          %v5160 = vmul.f32 %v5134, %v5142
          %v5161 = vmul.f32 %v5135, %v5143
          %v5162 = vmul.f32 %v5136, %v5144
          %v5163 = vmul.f32 %v5137, %v5145
          %v5164 = vmul.f32 %v5138, %v5146
          %v5165 = vmul.f32 %v5139, %v5147
          %v5166 = vld [vmem:[%s6] sm:$0x3f]
          %v5168 = vperm.slane %v5166, 0
          %v5169 = vperm.slane %v5166, 1
          %v5170 = vperm.slane %v5166, 2
          %v5171 = vperm.slane %v5166, 3
          %v5172 = vperm.slane %v5166, 4
          %v5173 = vperm.slane %v5166, 5
          %v5180 = vadd.f32 %v5154, %v5168
          %v5181 = vadd.f32 %v5155, %v5169
          %v5182 = vadd.f32 %v5156, %v5170
          %v5183 = vadd.f32 %v5157, %v5171
          %v5184 = vadd.f32 %v5158, %v5172
          %v5185 = vadd.f32 %v5159, %v5173
          %v5186 = vadd.f32 %v5160, %v5168
          %v5187 = vadd.f32 %v5161, %v5169
          %v5188 = vadd.f32 %v5162, %v5170
          %v5189 = vadd.f32 %v5163, %v5171
          %v5190 = vadd.f32 %v5164, %v5172
          %v5191 = vadd.f32 %v5165, %v5173
          %5192 = vst [vmem:[%s421] sm:$0xff] %v5180
          %5193 = vst [vmem:[%s421 + $0x8] sm:$0xff] %v5181
          %5194 = vst [vmem:[%s421 + $0x10] sm:$0xff] %v5182
          %5195 = vst [vmem:[%s421 + $0x18] sm:$0xff] %v5183
          %5196 = vst [vmem:[%s421 + $0x20] sm:$0xff] %v5184
          %5197 = vst [vmem:[%s421 + $0x28] sm:$0xff] %v5185
          %5198 = vst [vmem:[%s421 + $0x30] sm:$0xff] %v5186
          %5199 = vst [vmem:[%s421 + $0x38] sm:$0xff] %v5187
          %5200 = vst [vmem:[%s421 + $0x40] sm:$0xff] %v5188
          %5201 = vst [vmem:[%s421 + $0x48] sm:$0xff] %v5189
          %5202 = vst [vmem:[%s421 + $0x50] sm:$0xff] %v5190
          %5203 = vst [vmem:[%s421 + $0x58] sm:$0xff] %v5191
        $region68: #{dnabert_forward.51} parent=47 // pred_fallthru
          _
        %s5204 = smul.u32 2, %s28
        %p5205 = scmp.lt.s32.totalorder %s5204, 1
        %s5206 = scalar_select %p5205, %s5204, 1
        %s5207 = smul.addr %s5206, 6
        %s5208 = smul.addr %s5207, 8
        %s5209 = scalar_lea.vmem %s7, %s5208
        // Predicated region
        $region69: #{dnabert_forward.51} parent=47 // pred_check
          %p5210 = pneg %p221
        $region70: #{dnabert_forward.51} parent=47 // pred_check_branch
          %5212 = sbr.rel (%p5210) target = $region72
        $region71: #{dnabert_forward.51} parent=47 // pred_region
          %s5213 = smul.u32 2, %s28
        $region72: #{dnabert_forward.51} parent=47 // pred_fallthru
          _
        // Predicated region
        $region73: #{dnabert_forward.51} parent=47 // pred_check
          %p5214 = pneg %p221
        $region74: #{dnabert_forward.51} parent=47 // pred_check_branch
          %5216 = sbr.rel (%p5214) target = $region76
        $region75: #{dnabert_forward.51} parent=47 // pred_region
          %s5217 = smul.u32 2, %s28
          %p5218 = scmp.lt.s32.totalorder %s5217, 1
          %s5219 = scalar_select %p5218, %s5217, 1
          %s5220 = smul.addr %s5219, 6
          %s5221 = smul.addr %s5220, 8
          %s5222 = scalar_lea.vmem %s7, %s5221
        $region76: #{dnabert_forward.51} parent=47 // pred_fallthru
          _
      $region48: #{dnabert_forward.51} parent=5 // pred_fallthru
        _
      %p5223 = scmp.le.s32.totalorder 2, %s19
      // Predicated region
      $region77: #{dnabert_forward.51} parent=5 // pred_check
        %p5224 = pneg %p5223
      $region78: #{dnabert_forward.51} parent=5 // pred_check_branch
        %5226 = sbr.rel (%p5224) target = $region80
      $region79: #{dnabert_forward.51} parent=5 // pred_region
        %s5227 = ssub.s32 %s19, 2
      $region80: #{dnabert_forward.51} parent=5 // pred_fallthru
        _
    $region6: #{dnabert_forward.51} parent=1 // loop_footer
      %s23 = sadd.s32 1, %s19
    $region7: #{dnabert_forward.51} parent=1 // loop_footer_branch
      %18 = sbr.rel target = $region3
    $region8: #{dnabert_forward.51} parent=1 // loop_exit
      _
    %5228 = vsyncpa [#allocation4], 1
    %s5229 = scalar_lea.sflag [#allocation4], 1
    %5230 = vsyncpa %s5229, 1
    %5231 = vsyncpa [#allocation6], 1
    %s5232 = scalar_lea.sflag [#allocation6], 1
    %5233 = vsyncpa %s5232, 1

</llo_original>
